<compile_context>
chip_gen: v7x
topology: tpu7x:2x2x1
jax: 0.10.0
libtpu: 0.0.40
codegen_flags: <defaults>
</compile_context>

<pallas_src>
import jax
import jax.numpy as jnp
from jax.experimental import pallas as pl
from jax.experimental.pallas import tpu as pltpu

# ----------------------------- model hyper-params -----------------------------
VOCAB_SIZE = 64          # vocab_size (small synthetic)
EMBED_SIZE = 32          # embed_size
HIDDEN_SIZE = 32         # hidden_size
NUM_LAYERS = 2           # num_layers
PAD_ID = 1               # <pad> token id
TAGGER_VOCAB = 16        # source_tagger.vocab_size
TAGGER_NUM_TAGS = 8      # source_tagger.num_tags
TAGGER_EMBED = 16        # source_tagger embedding dim
TAG_PAD_IDX = 0          # source_tagger.embedding.padding_idx


# =============================== Pallas kernel ================================

def _lstm_cell(g, h, c, m):
    """One LSTM cell update on a (B, 4H) gate pre-activation.

    g: (B, 4H), h/c: (B, H), m: (B, 1) with 1.0 where the step is valid.
    Returns (h_keep, c_keep, y_out): state frozen past the sequence length and
    the emitted output zeroed there (pack/pad_packed semantics).
    """
    H = HIDDEN_SIZE
    sg = jax.nn.sigmoid(g)            # one full-width EUP pass (i, f, o gates)
    tg = jnp.tanh(g)                  # one full-width EUP pass (g gate)
    i_g = sg[:, 0 * H:1 * H]
    f_g = sg[:, 1 * H:2 * H]
    g_g = tg[:, 2 * H:3 * H]
    o_g = sg[:, 3 * H:4 * H]
    c_new = f_g * c + i_g * g_g
    h_new = o_g * jnp.tanh(c_new)
    keep = m > 0.5
    h_k = jnp.where(keep, h_new, h)
    c_k = jnp.where(keep, c_new, c)
    y = jnp.where(keep, h_new, 0.0)
    return h_k, c_k, y


def _run_stack(gx0, wih1, b1, whh0, whh1, msk, h0, c0, h1, c1, out_sc, T, B):
    """Two stacked LSTM layers, wavefront-interleaved (statically unrolled).

    gx0   : (T*B, 4H) hoisted layer-0 input projections (time-major rows,
            row index = t*B + b), kept as a VMEM value.
    wih1  : (H, 4H) layer-1 input weight; b1: (1, 4H) layer-1 bias.
    whh0/1: (H, 4H) recurrent weights.
    msk   : (B, Tm) step-validity mask (value).
    h0/c0, h1/c1 : (B, H) initial states per layer.
    out_sc: (B, T, H) VMEM scratch collecting layer-1 (final-layer) outputs
            (consumed only after the recurrence -> off the critical path).
    Returns the final states ((h0, c0), (h1, c1)).

    At wavefront step t, layer-0 step t and layer-1 step t-1 are issued
    together; their matmuls are mutually independent so the MXU pipe always
    has >1 op in flight.
    """
    y_prev = None
    for t in range(T + 1):            # small T: static unroll, one basic block
        if t < T:
            g0 = (gx0[t * B:(t + 1) * B, :]
                  + jnp.dot(h0, whh0, preferred_element_type=jnp.float32))
        if t > 0:
            g1 = (jnp.dot(y_prev, wih1, preferred_element_type=jnp.float32)
                  + jnp.dot(h1, whh1, preferred_element_type=jnp.float32)
                  + b1)
            h1, c1, y1 = _lstm_cell(g1, h1, c1, msk[:, t - 1:t])
            out_sc[:, t - 1, :] = y1
        if t < T:
            h0, c0, y_prev = _lstm_cell(g0, h0, c0, msk[:, t:t + 1])
    return (h0, c0), (h1, c1)


def _seq2seq_kernel(enc_emb_ref, dec_emb_ref, step_mask_ref, pad_mask_ref,
                    wih_ref, whh_ref, b_ref,
                    wc_ref, bc_ref, wo_ref, bo_ref,
                    score_ref, logits_ref,
                    enc_out_sc, dec_out_sc):
    """Fused encoder LSTM -> decoder LSTM -> attention -> vocab projection.

    Whole batch processed in one invocation.  LSTM weights are stacked as
    [enc_l0, enc_l1, dec_l0, dec_l1] along the leading dim.
    """
    H = HIDDEN_SIZE
    B = pad_mask_ref.shape[0]
    Te = pad_mask_ref.shape[1]
    Td = logits_ref.shape[1]
    Tdp = score_ref.shape[2]

    enc_msk = step_mask_ref[0]        # (B, Tm) 1.0 where t < encoder length
    dec_msk = step_mask_ref[1]        # (B, Tm) 1.0 where t < decoder length

    zero = jnp.zeros((B, H), jnp.float32)

    # Hoisted layer-0 input projections for BOTH stacks: one MXU matmul each,
    # issued before any recurrence so the MXU always has independent work.
    gx_enc0 = (jnp.dot(enc_emb_ref[...], wih_ref[0],
                       preferred_element_type=jnp.float32) + b_ref[0])  # (Te*B,4H)
    gx_dec0 = (jnp.dot(dec_emb_ref[...], wih_ref[2],
                       preferred_element_type=jnp.float32) + b_ref[2])  # (Td*B,4H)

    # ----------------------------- encoder stack -----------------------------
    (h0e, c0e), (h1e, c1e) = _run_stack(
        gx_enc0, wih_ref[1], b_ref[1], whh_ref[0], whh_ref[1],
        enc_msk, zero, zero, zero, zero, enc_out_sc, Te, B)

    # --------------- decoder stack (init = encoder final states) -------------
    _run_stack(
        gx_dec0, wih_ref[3], b_ref[3], whh_ref[2], whh_ref[3],
        dec_msk, h0e, c0e, h1e, c1e, dec_out_sc, Td, B)

    # ---------------------- attention + output projection --------------------
    wc = wc_ref[...]                  # (2H, H)
    bc = bc_ref[...]                  # (1, H)
    wo = wo_ref[...]                  # (H, Vp)
    bo = bo_ref[...]                  # (1, Vp)

    for b in range(B):                # B is tiny & static; tail is off-chain
        enc_b = enc_out_sc[b]         # (Te, H)
        dec_b = dec_out_sc[b]         # (Td, H)

        # attention_score = bmm(encoder_output, lstm_out^T); pad rows -> 1e-10
        # (fill value mirrors the reference module exactly).
        score = jnp.dot(enc_b, dec_b.T,
                        preferred_element_type=jnp.float32)       # (Te, Td)
        pad_col = pad_mask_ref[b]                                 # (Te, 1)
        score = jnp.where(pad_col > 0.5, jnp.float32(1e-10), score)

        # lane-dense score writeback: block padded to Tdp=128 lanes
        score_ref[b] = jnp.zeros((Te, Tdp), jnp.float32)
        score_ref[b, :, 0:Td] = score

        # softmax over the encoder axis (torch Softmax(dim=1) on (B, Te, Td))
        smax = jnp.max(score, axis=0, keepdims=True)
        ex = jnp.exp(score - smax)
        w = ex / jnp.sum(ex, axis=0, keepdims=True)

        # weighted_sum[m, d] = sum_n w[n, m] * enc[n, d]
        wsum = jnp.dot(w.T, enc_b, preferred_element_type=jnp.float32)  # (Td,H)

        # attention_concat(cat(lstm_out, weighted_sum)) then tanh
        hidden = jnp.tanh(
            jnp.dot(dec_b, wc[:H, :], preferred_element_type=jnp.float32)
            + jnp.dot(wsum, wc[H:, :], preferred_element_type=jnp.float32)
            + bc)                                                       # (Td,H)

        # output projection to (padded, lane-dense) vocab
        logits_ref[b] = (jnp.dot(hidden, wo,
                                 preferred_element_type=jnp.float32) + bo)


# ============================== plain-JAX glue ================================

def source_tagger_forward(p, tokens):
    """Synthetic source tagger: embedding + per-position linear -> tag logits.
    tokens: (B, Te) int32  ->  (B, Te, num_tags)."""
    e = p["emb"][tokens]
    return jnp.einsum("bte,en->btn", e, p["w"]) + p["b"]


def seq2seq_forward(params, x, y):
    """x: (Te, B) int32 questions, y: (Td, B) int32 gold responses."""
    Te, B = x.shape
    Td = y.shape[0]
    E, H = EMBED_SIZE, HIDDEN_SIZE
    V = params["out_w"].shape[-1]
    Vp = ((V + 127) // 128) * 128        # lane-dense padded vocab width
    Tdp = ((Td + 127) // 128) * 128      # lane-dense padded score width
    Tm = max(Te, Td)

    # ---- source tagger path (tiny gathers/argmax: plain JAX) ----
    x_vocab1 = params["enc_embedding_vocab"][x, 0]                  # (Te, B)
    vmin = jnp.min(x_vocab1)
    vmax = jnp.max(x_vocab1)
    # guard against divide-by-zero when all embedding scalars coincide
    scale = (TAGGER_VOCAB - 1) / jnp.maximum(vmax - vmin, jnp.float32(1e-6))
    x_vocab2 = jnp.round(scale * (x_vocab1 - vmin)).astype(x.dtype)  # (Te, B)
    tag_logits = source_tagger_forward(params["tagger"], x_vocab2.T)  # (B,Te,nt)
    tag_idx = jnp.argmax(tag_logits, axis=-1).T                      # (Te, B)

    # ---- embeddings (dropout = identity), TIME-MAJOR 2-D for the kernel ----
    # row index = t*B + b, so each step's (B, E) slab is a contiguous slice.
    enc_embed = params["embedding"][x] + params["enc_embedding_tag"][tag_idx]
    dec_embed = params["embedding"][y]                               # (Td, B, E)
    enc_tm = enc_embed.reshape(Te * B, E)
    dec_tm = dec_embed.reshape(Td * B, E)

    # ---- packed-sequence masks (enc/dec step validity packed together) ----
    x_len = jnp.count_nonzero(x != PAD_ID, axis=0)                   # (B,)
    y_len = jnp.count_nonzero(y != PAD_ID, axis=0)                   # (B,)
    t_idx = jnp.arange(Tm)
    enc_mask = (t_idx[None, :] < x_len[:, None]).astype(jnp.float32)  # (B, Tm)
    dec_mask = (t_idx[None, :] < y_len[:, None]).astype(jnp.float32)  # (B, Tm)
    step_masks = jnp.stack([enc_mask, dec_mask], axis=0)              # (2,B,Tm)
    pad_mask = (x.T == PAD_ID).astype(jnp.float32)[:, :, None]        # (B,Te,1)

    # ---- lane-dense output projection (pad V -> multiple of 128) ----
    wo_p = jnp.pad(params["out_w"], ((0, 0), (0, Vp - V)))
    bo_p = jnp.pad(params["out_b"], ((0, 0), (0, Vp - V)))

    grid_spec = pltpu.PrefetchScalarGridSpec(
        num_scalar_prefetch=0,
        grid=(1,),                      # whole batch handled inside the body
        in_specs=[
            pl.BlockSpec((Te * B, E), lambda i: (0, 0)),             # enc embed
            pl.BlockSpec((Td * B, E), lambda i: (0, 0)),             # dec embed
            pl.BlockSpec((2, B, Tm), lambda i: (0, 0, 0)),           # step masks
            pl.BlockSpec((B, Te, 1), lambda i: (0, 0, 0)),           # pad mask
            pl.BlockSpec((2 * NUM_LAYERS, H, 4 * H), lambda i: (0, 0, 0)),
            pl.BlockSpec((2 * NUM_LAYERS, H, 4 * H), lambda i: (0, 0, 0)),
            pl.BlockSpec((2 * NUM_LAYERS, 1, 4 * H), lambda i: (0, 0, 0)),
            pl.BlockSpec((2 * H, H), lambda i: (0, 0)),              # attn W
            pl.BlockSpec((1, H), lambda i: (0, 0)),                  # attn b
            pl.BlockSpec((H, Vp), lambda i: (0, 0)),                 # out W (pad)
            pl.BlockSpec((1, Vp), lambda i: (0, 0)),                 # out b (pad)
        ],
        out_specs=[
            pl.BlockSpec((B, Te, Tdp), lambda i: (0, 0, 0)),         # attn score
            pl.BlockSpec((B, Td, Vp), lambda i: (0, 0, 0)),          # logits
        ],
        scratch_shapes=[
            pltpu.VMEM((B, Te, H), jnp.float32),   # encoder final-layer outputs
            pltpu.VMEM((B, Td, H), jnp.float32),   # decoder final-layer outputs
        ])

    score_p, logits_p = pl.pallas_call(
        _seq2seq_kernel,
        out_shape=(jax.ShapeDtypeStruct((B, Te, Tdp), jnp.float32),
                   jax.ShapeDtypeStruct((B, Td, Vp), jnp.float32)),
        grid_spec=grid_spec,
        compiler_params=pltpu.CompilerParams(
            dimension_semantics=("arbitrary",)),
    )(enc_tm, dec_tm, step_masks, pad_mask,
      params["lstm_wih"], params["lstm_whh"], params["lstm_b"],
      params["attn_concat_w"], params["attn_concat_b"], wo_p, bo_p)

    score = score_p[:, :, :Td]                                       # (B, Te, Td)
    logits = jnp.transpose(logits_p[:, :, :V], (1, 0, 2))            # (Td, B, V)
    # torch .squeeze() is a no-op for Td>1, B>1, V>1
    return logits, score


# =============================== init & driver ================================

def init_params(key):
    ks = iter(jax.random.split(key, 32))

    def nrm(shape, scale=0.1):
        return scale * jax.random.normal(next(ks), shape, jnp.float32)

    # Layer-0 (input=E) and layer-1 (input=H) W_ih are stacked in one array.
    assert EMBED_SIZE == HIDDEN_SIZE

    params = {}
    params["embedding"] = nrm((VOCAB_SIZE, EMBED_SIZE)).at[PAD_ID].set(0.0)
    params["enc_embedding_vocab"] = nrm((VOCAB_SIZE, 1)).at[PAD_ID].set(0.0)
    params["enc_embedding_tag"] = nrm(
        (TAGGER_NUM_TAGS, EMBED_SIZE)).at[TAG_PAD_IDX].set(0.0)
    params["tagger"] = {
        "emb": nrm((TAGGER_VOCAB, TAGGER_EMBED)).at[TAG_PAD_IDX].set(0.0),
        "w": nrm((TAGGER_EMBED, TAGGER_NUM_TAGS)),
        "b": nrm((TAGGER_NUM_TAGS,)),
    }
    # stacked LSTM weights: [enc_l0, enc_l1, dec_l0, dec_l1]
    params["lstm_wih"] = nrm((2 * NUM_LAYERS, HIDDEN_SIZE, 4 * HIDDEN_SIZE))
    params["lstm_whh"] = nrm((2 * NUM_LAYERS, HIDDEN_SIZE, 4 * HIDDEN_SIZE))
    params["lstm_b"] = nrm((2 * NUM_LAYERS, 1, 4 * HIDDEN_SIZE))  # b_ih + b_hh
    params["attn_concat_w"] = nrm((2 * HIDDEN_SIZE, HIDDEN_SIZE))
    params["attn_concat_b"] = nrm((1, HIDDEN_SIZE))
    params["out_w"] = nrm((HIDDEN_SIZE, VOCAB_SIZE))
    params["out_b"] = nrm((1, VOCAB_SIZE))
    return params


if __name__ == "__main__":
    key = jax.random.PRNGKey(0)
    k_param, k_x, k_y = jax.random.split(key, 3)

    B = 2        # batch
    Te = 8       # encoder (input) sequence length
    Td = 8       # decoder (gold response) sequence length

    params = init_params(k_param)

    # tokens in [4, VOCAB) avoid special ids; add trailing <pad>=1 to batch 1
    x = jax.random.randint(k_x, (Te, B), 4, VOCAB_SIZE, dtype=jnp.int32)
    y = jax.random.randint(k_y, (Td, B), 4, VOCAB_SIZE, dtype=jnp.int32)
    x = x.at[Te - 2:, 1].set(PAD_ID)
    y = y.at[Td - 3:, 1].set(PAD_ID)

    fwd = jax.jit(seq2seq_forward)
    logits, attention_score = fwd(params, x, y)
    jax.block_until_ready((logits, attention_score))

    assert logits.shape == (Td, B, VOCAB_SIZE)
    assert attention_score.shape == (B, Te, Td)
    assert bool(jnp.all(jnp.isfinite(logits)))
    print("KERNEL_OK")
</pallas_src>

<mosaic_0001>
module attributes {stable_mosaic.version = 11 : i64} {
  func.func @_seq2seq_kernel(%arg0: i32, %arg1: memref<16x32xf32, #tpu.memory_space<vmem>>, %arg2: memref<16x32xf32, #tpu.memory_space<vmem>>, %arg3: memref<2x2x8xf32, #tpu.memory_space<vmem>>, %arg4: memref<2x8x1xf32, #tpu.memory_space<vmem>>, %arg5: memref<4x32x128xf32, #tpu.memory_space<vmem>>, %arg6: memref<4x32x128xf32, #tpu.memory_space<vmem>>, %arg7: memref<4x1x128xf32, #tpu.memory_space<vmem>>, %arg8: memref<64x32xf32, #tpu.memory_space<vmem>>, %arg9: memref<1x32xf32, #tpu.memory_space<vmem>>, %arg10: memref<32x128xf32, #tpu.memory_space<vmem>>, %arg11: memref<1x128xf32, #tpu.memory_space<vmem>>, %arg12: memref<2x8x128xf32, #tpu.memory_space<vmem>>, %arg13: memref<2x8x128xf32, #tpu.memory_space<vmem>>, %arg14: memref<2x8x32xf32, #tpu.memory_space<vmem>>, %arg15: memref<2x8x32xf32, #tpu.memory_space<vmem>>) attributes {dimension_semantics = [#tpu.dimension_semantics<arbitrary>], iteration_bounds = array<i64: 1>, scalar_prefetch = 0 : i64, scratch_operands = 2 : i64, tpu.core_type = #tpu.core_type<tc>, window_params = [{pipeline_mode = #tpu.pipeline_mode<synchronous>, transform_indices = @transform_0, window_bounds = array<i64: 16, 32>}, {pipeline_mode = #tpu.pipeline_mode<synchronous>, transform_indices = @transform_1, window_bounds = array<i64: 16, 32>}, {pipeline_mode = #tpu.pipeline_mode<synchronous>, transform_indices = @transform_2, window_bounds = array<i64: 2, 2, 8>}, {pipeline_mode = #tpu.pipeline_mode<synchronous>, transform_indices = @transform_3, window_bounds = array<i64: 2, 8, 1>}, {pipeline_mode = #tpu.pipeline_mode<synchronous>, transform_indices = @transform_4, window_bounds = array<i64: 4, 32, 128>}, {pipeline_mode = #tpu.pipeline_mode<synchronous>, transform_indices = @transform_5, window_bounds = array<i64: 4, 32, 128>}, {pipeline_mode = #tpu.pipeline_mode<synchronous>, transform_indices = @transform_6, window_bounds = array<i64: 4, 1, 128>}, {pipeline_mode = #tpu.pipeline_mode<synchronous>, transform_indices = @transform_7, window_bounds = array<i64: 64, 32>}, {pipeline_mode = #tpu.pipeline_mode<synchronous>, transform_indices = @transform_8, window_bounds = array<i64: 1, 32>}, {pipeline_mode = #tpu.pipeline_mode<synchronous>, transform_indices = @transform_9, window_bounds = array<i64: 32, 128>}, {pipeline_mode = #tpu.pipeline_mode<synchronous>, transform_indices = @transform_10, window_bounds = array<i64: 1, 128>}, {pipeline_mode = #tpu.pipeline_mode<synchronous>, transform_indices = @transform_11, window_bounds = array<i64: 2, 8, 128>}, {pipeline_mode = #tpu.pipeline_mode<synchronous>, transform_indices = @transform_12, window_bounds = array<i64: 2, 8, 128>}]} {
    %c0 = arith.constant 0 : index
    %c0_0 = arith.constant 0 : index
    %c0_1 = arith.constant 0 : index
    %0 = vector.load %arg3[%c0, %c0_0, %c0_1] : memref<2x2x8xf32, #tpu.memory_space<vmem>>, vector<1x2x8xf32>
    %1 = vector.shape_cast %0 : vector<1x2x8xf32> to vector<2x8xf32>
    %c1 = arith.constant 1 : index
    %c0_2 = arith.constant 0 : index
    %c0_3 = arith.constant 0 : index
    %2 = vector.load %arg3[%c1, %c0_2, %c0_3] : memref<2x2x8xf32, #tpu.memory_space<vmem>>, vector<1x2x8xf32>
    %3 = vector.shape_cast %2 : vector<1x2x8xf32> to vector<2x8xf32>
    %cst = arith.constant 0.000000e+00 : f32
    %4 = vector.broadcast %cst : f32 to vector<2x32xf32>
    %c0_4 = arith.constant 0 : index
    %c0_5 = arith.constant 0 : index
    %5 = vector.load %arg1[%c0_4, %c0_5] : memref<16x32xf32, #tpu.memory_space<vmem>>, vector<16x32xf32>
    %c0_6 = arith.constant 0 : index
    %c0_7 = arith.constant 0 : index
    %c0_8 = arith.constant 0 : index
    %6 = vector.load %arg5[%c0_6, %c0_7, %c0_8] : memref<4x32x128xf32, #tpu.memory_space<vmem>>, vector<1x32x128xf32>
    %7 = vector.shape_cast %6 : vector<1x32x128xf32> to vector<32x128xf32>
    %cst_9 = arith.constant dense<0.000000e+00> : vector<16x128xf32>
    %8 = tpu.matmul %5, %7, %cst_9 {dimension_numbers = #tpu.dot_dimension_numbers<[1], [0], [0], [1], [0, 0, 1, 1], [], []>} : vector<16x32xf32>, vector<32x128xf32>, vector<16x128xf32> -> vector<16x128xf32>
    %c0_10 = arith.constant 0 : index
    %c0_11 = arith.constant 0 : index
    %c0_12 = arith.constant 0 : index
    %9 = vector.load %arg7[%c0_10, %c0_11, %c0_12] : memref<4x1x128xf32, #tpu.memory_space<vmem>>, vector<1x1x128xf32>
    %10 = vector.shape_cast %9 : vector<1x1x128xf32> to vector<1x128xf32>
    %11 = vector.broadcast %10 : vector<1x128xf32> to vector<16x128xf32>
    %12 = arith.addf %8, %11 : vector<16x128xf32>
    %c0_13 = arith.constant 0 : index
    %c0_14 = arith.constant 0 : index
    %13 = vector.load %arg2[%c0_13, %c0_14] : memref<16x32xf32, #tpu.memory_space<vmem>>, vector<16x32xf32>
    %c2 = arith.constant 2 : index
    %c0_15 = arith.constant 0 : index
    %c0_16 = arith.constant 0 : index
    %14 = vector.load %arg5[%c2, %c0_15, %c0_16] : memref<4x32x128xf32, #tpu.memory_space<vmem>>, vector<1x32x128xf32>
    %15 = vector.shape_cast %14 : vector<1x32x128xf32> to vector<32x128xf32>
    %cst_17 = arith.constant dense<0.000000e+00> : vector<16x128xf32>
    %16 = tpu.matmul %13, %15, %cst_17 {dimension_numbers = #tpu.dot_dimension_numbers<[1], [0], [0], [1], [0, 0, 1, 1], [], []>} : vector<16x32xf32>, vector<32x128xf32>, vector<16x128xf32> -> vector<16x128xf32>
    %c2_18 = arith.constant 2 : index
    %c0_19 = arith.constant 0 : index
    %c0_20 = arith.constant 0 : index
    %17 = vector.load %arg7[%c2_18, %c0_19, %c0_20] : memref<4x1x128xf32, #tpu.memory_space<vmem>>, vector<1x1x128xf32>
    %18 = vector.shape_cast %17 : vector<1x1x128xf32> to vector<1x128xf32>
    %19 = vector.broadcast %18 : vector<1x128xf32> to vector<16x128xf32>
    %20 = arith.addf %16, %19 : vector<16x128xf32>
    %c1_21 = arith.constant 1 : index
    %c0_22 = arith.constant 0 : index
    %c0_23 = arith.constant 0 : index
    %21 = vector.load %arg5[%c1_21, %c0_22, %c0_23] : memref<4x32x128xf32, #tpu.memory_space<vmem>>, vector<1x32x128xf32>
    %22 = vector.shape_cast %21 : vector<1x32x128xf32> to vector<32x128xf32>
    %c1_24 = arith.constant 1 : index
    %c0_25 = arith.constant 0 : index
    %c0_26 = arith.constant 0 : index
    %23 = vector.load %arg7[%c1_24, %c0_25, %c0_26] : memref<4x1x128xf32, #tpu.memory_space<vmem>>, vector<1x1x128xf32>
    %24 = vector.shape_cast %23 : vector<1x1x128xf32> to vector<1x128xf32>
    %c0_27 = arith.constant 0 : index
    %c0_28 = arith.constant 0 : index
    %c0_29 = arith.constant 0 : index
    %25 = vector.load %arg6[%c0_27, %c0_28, %c0_29] : memref<4x32x128xf32, #tpu.memory_space<vmem>>, vector<1x32x128xf32>
    %26 = vector.shape_cast %25 : vector<1x32x128xf32> to vector<32x128xf32>
    %c1_30 = arith.constant 1 : index
    %c0_31 = arith.constant 0 : index
    %c0_32 = arith.constant 0 : index
    %27 = vector.load %arg6[%c1_30, %c0_31, %c0_32] : memref<4x32x128xf32, #tpu.memory_space<vmem>>, vector<1x32x128xf32>
    %28 = vector.shape_cast %27 : vector<1x32x128xf32> to vector<32x128xf32>
    %29 = vector.extract_strided_slice %12 {offsets = [0, 0], sizes = [2, 128], strides = [1, 1]} : vector<16x128xf32> to vector<2x128xf32>
    %cst_33 = arith.constant dense<0.000000e+00> : vector<2x128xf32>
    %30 = tpu.matmul %4, %26, %cst_33 {dimension_numbers = #tpu.dot_dimension_numbers<[1], [0], [0], [1], [0, 0, 1, 1], [], []>} : vector<2x32xf32>, vector<32x128xf32>, vector<2x128xf32> -> vector<2x128xf32>
    %31 = arith.addf %29, %30 : vector<2x128xf32>
    %32 = vector.extract_strided_slice %1 {offsets = [0, 0], sizes = [2, 1], strides = [1, 1]} : vector<2x8xf32> to vector<2x1xf32>
    %33 = arith.negf %31 : vector<2x128xf32>
    %34 = math.exp %33 : vector<2x128xf32>
    %cst_34 = arith.constant 1.000000e+00 : f32
    %35 = vector.broadcast %cst_34 : f32 to vector<2x128xf32>
    %36 = arith.addf %35, %34 : vector<2x128xf32>
    %37 = arith.divf %35, %36 : vector<2x128xf32>
    %38 = math.tanh %31 : vector<2x128xf32>
    %39 = vector.extract_strided_slice %37 {offsets = [0, 0], sizes = [2, 32], strides = [1, 1]} : vector<2x128xf32> to vector<2x32xf32>
    %40 = vector.extract_strided_slice %37 {offsets = [0, 32], sizes = [2, 32], strides = [1, 1]} : vector<2x128xf32> to vector<2x32xf32>
    %41 = vector.extract_strided_slice %38 {offsets = [0, 64], sizes = [2, 32], strides = [1, 1]} : vector<2x128xf32> to vector<2x32xf32>
    %42 = vector.extract_strided_slice %37 {offsets = [0, 96], sizes = [2, 32], strides = [1, 1]} : vector<2x128xf32> to vector<2x32xf32>
    %43 = arith.mulf %40, %4 : vector<2x32xf32>
    %44 = arith.mulf %39, %41 : vector<2x32xf32>
    %45 = arith.addf %43, %44 : vector<2x32xf32>
    %46 = math.tanh %45 : vector<2x32xf32>
    %47 = arith.mulf %42, %46 : vector<2x32xf32>
    %cst_35 = arith.constant 5.000000e-01 : f32
    %48 = vector.broadcast %cst_35 : f32 to vector<2x1xf32>
    %49 = arith.cmpf ogt, %32, %48 : vector<2x1xf32>
    %50 = vector.shape_cast %49 : vector<2x1xi1> to vector<2x1xi1>
    %51 = vector.broadcast %50 : vector<2x1xi1> to vector<2x32xi1>
    %52 = arith.select %51, %47, %4 : vector<2x32xi1>, vector<2x32xf32>
    %53 = vector.shape_cast %49 : vector<2x1xi1> to vector<2x1xi1>
    %54 = vector.broadcast %53 : vector<2x1xi1> to vector<2x32xi1>
    %55 = arith.select %54, %45, %4 : vector<2x32xi1>, vector<2x32xf32>
    %cst_36 = arith.constant 0.000000e+00 : f32
    %56 = vector.shape_cast %49 : vector<2x1xi1> to vector<2x1xi1>
    %57 = vector.broadcast %56 : vector<2x1xi1> to vector<2x32xi1>
    %58 = vector.broadcast %cst_36 : f32 to vector<2x32xf32>
    %59 = arith.select %57, %47, %58 : vector<2x32xi1>, vector<2x32xf32>
    %60 = vector.extract_strided_slice %12 {offsets = [2, 0], sizes = [2, 128], strides = [1, 1]} : vector<16x128xf32> to vector<2x128xf32>
    %cst_37 = arith.constant dense<0.000000e+00> : vector<2x128xf32>
    %61 = tpu.matmul %52, %26, %cst_37 {dimension_numbers = #tpu.dot_dimension_numbers<[1], [0], [0], [1], [0, 0, 1, 1], [], []>} : vector<2x32xf32>, vector<32x128xf32>, vector<2x128xf32> -> vector<2x128xf32>
    %62 = arith.addf %60, %61 : vector<2x128xf32>
    %cst_38 = arith.constant dense<0.000000e+00> : vector<2x128xf32>
    %63 = tpu.matmul %59, %22, %cst_38 {dimension_numbers = #tpu.dot_dimension_numbers<[1], [0], [0], [1], [0, 0, 1, 1], [], []>} : vector<2x32xf32>, vector<32x128xf32>, vector<2x128xf32> -> vector<2x128xf32>
    %cst_39 = arith.constant dense<0.000000e+00> : vector<2x128xf32>
    %64 = tpu.matmul %4, %28, %cst_39 {dimension_numbers = #tpu.dot_dimension_numbers<[1], [0], [0], [1], [0, 0, 1, 1], [], []>} : vector<2x32xf32>, vector<32x128xf32>, vector<2x128xf32> -> vector<2x128xf32>
    %65 = arith.addf %63, %64 : vector<2x128xf32>
    %66 = vector.broadcast %24 : vector<1x128xf32> to vector<2x128xf32>
    %67 = arith.addf %65, %66 : vector<2x128xf32>
    %68 = vector.extract_strided_slice %1 {offsets = [0, 0], sizes = [2, 1], strides = [1, 1]} : vector<2x8xf32> to vector<2x1xf32>
    %69 = arith.negf %67 : vector<2x128xf32>
    %70 = math.exp %69 : vector<2x128xf32>
    %cst_40 = arith.constant 1.000000e+00 : f32
    %71 = vector.broadcast %cst_40 : f32 to vector<2x128xf32>
    %72 = arith.addf %71, %70 : vector<2x128xf32>
    %73 = arith.divf %71, %72 : vector<2x128xf32>
    %74 = math.tanh %67 : vector<2x128xf32>
    %75 = vector.extract_strided_slice %73 {offsets = [0, 0], sizes = [2, 32], strides = [1, 1]} : vector<2x128xf32> to vector<2x32xf32>
    %76 = vector.extract_strided_slice %73 {offsets = [0, 32], sizes = [2, 32], strides = [1, 1]} : vector<2x128xf32> to vector<2x32xf32>
    %77 = vector.extract_strided_slice %74 {offsets = [0, 64], sizes = [2, 32], strides = [1, 1]} : vector<2x128xf32> to vector<2x32xf32>
    %78 = vector.extract_strided_slice %73 {offsets = [0, 96], sizes = [2, 32], strides = [1, 1]} : vector<2x128xf32> to vector<2x32xf32>
    %79 = arith.mulf %76, %4 : vector<2x32xf32>
    %80 = arith.mulf %75, %77 : vector<2x32xf32>
    %81 = arith.addf %79, %80 : vector<2x32xf32>
    %82 = math.tanh %81 : vector<2x32xf32>
    %83 = arith.mulf %78, %82 : vector<2x32xf32>
    %cst_41 = arith.constant 5.000000e-01 : f32
    %84 = vector.broadcast %cst_41 : f32 to vector<2x1xf32>
    %85 = arith.cmpf ogt, %68, %84 : vector<2x1xf32>
    %86 = vector.shape_cast %85 : vector<2x1xi1> to vector<2x1xi1>
    %87 = vector.broadcast %86 : vector<2x1xi1> to vector<2x32xi1>
    %88 = arith.select %87, %83, %4 : vector<2x32xi1>, vector<2x32xf32>
    %89 = vector.shape_cast %85 : vector<2x1xi1> to vector<2x1xi1>
    %90 = vector.broadcast %89 : vector<2x1xi1> to vector<2x32xi1>
    %91 = arith.select %90, %81, %4 : vector<2x32xi1>, vector<2x32xf32>
    %cst_42 = arith.constant 0.000000e+00 : f32
    %92 = vector.shape_cast %85 : vector<2x1xi1> to vector<2x1xi1>
    %93 = vector.broadcast %92 : vector<2x1xi1> to vector<2x32xi1>
    %94 = vector.broadcast %cst_42 : f32 to vector<2x32xf32>
    %95 = arith.select %93, %83, %94 : vector<2x32xi1>, vector<2x32xf32>
    %c0_43 = arith.constant 0 : index
    %c0_44 = arith.constant 0 : index
    %c0_45 = arith.constant 0 : index
    %96 = vector.load %arg14[%c0_43, %c0_44, %c0_45] : memref<2x8x32xf32, #tpu.memory_space<vmem>>, vector<2x1x32xf32>
    %97 = vector.shape_cast %96 : vector<2x1x32xf32> to vector<2x32xf32>
    %98 = vector.shape_cast %95 : vector<2x32xf32> to vector<2x1x32xf32>
    tpu.vector_store %arg14[%c0_43, %c0_44, %c0_45], %98 {strides = array<i32>} : memref<2x8x32xf32, #tpu.memory_space<vmem>>, vector<2x1x32xf32>,
    %99 = vector.extract_strided_slice %1 {offsets = [0, 1], sizes = [2, 1], strides = [1, 1]} : vector<2x8xf32> to vector<2x1xf32>
    %100 = arith.negf %62 : vector<2x128xf32>
    %101 = math.exp %100 : vector<2x128xf32>
    %cst_46 = arith.constant 1.000000e+00 : f32
    %102 = vector.broadcast %cst_46 : f32 to vector<2x128xf32>
    %103 = arith.addf %102, %101 : vector<2x128xf32>
    %104 = arith.divf %102, %103 : vector<2x128xf32>
    %105 = math.tanh %62 : vector<2x128xf32>
    %106 = vector.extract_strided_slice %104 {offsets = [0, 0], sizes = [2, 32], strides = [1, 1]} : vector<2x128xf32> to vector<2x32xf32>
    %107 = vector.extract_strided_slice %104 {offsets = [0, 32], sizes = [2, 32], strides = [1, 1]} : vector<2x128xf32> to vector<2x32xf32>
    %108 = vector.extract_strided_slice %105 {offsets = [0, 64], sizes = [2, 32], strides = [1, 1]} : vector<2x128xf32> to vector<2x32xf32>
    %109 = vector.extract_strided_slice %104 {offsets = [0, 96], sizes = [2, 32], strides = [1, 1]} : vector<2x128xf32> to vector<2x32xf32>
    %110 = arith.mulf %107, %55 : vector<2x32xf32>
    %111 = arith.mulf %106, %108 : vector<2x32xf32>
    %112 = arith.addf %110, %111 : vector<2x32xf32>
    %113 = math.tanh %112 : vector<2x32xf32>
    %114 = arith.mulf %109, %113 : vector<2x32xf32>
    %cst_47 = arith.constant 5.000000e-01 : f32
    %115 = vector.broadcast %cst_47 : f32 to vector<2x1xf32>
    %116 = arith.cmpf ogt, %99, %115 : vector<2x1xf32>
    %117 = vector.shape_cast %116 : vector<2x1xi1> to vector<2x1xi1>
    %118 = vector.broadcast %117 : vector<2x1xi1> to vector<2x32xi1>
    %119 = arith.select %118, %114, %52 : vector<2x32xi1>, vector<2x32xf32>
    %120 = vector.shape_cast %116 : vector<2x1xi1> to vector<2x1xi1>
    %121 = vector.broadcast %120 : vector<2x1xi1> to vector<2x32xi1>
    %122 = arith.select %121, %112, %55 : vector<2x32xi1>, vector<2x32xf32>
    %cst_48 = arith.constant 0.000000e+00 : f32
    %123 = vector.shape_cast %116 : vector<2x1xi1> to vector<2x1xi1>
    %124 = vector.broadcast %123 : vector<2x1xi1> to vector<2x32xi1>
    %125 = vector.broadcast %cst_48 : f32 to vector<2x32xf32>
    %126 = arith.select %124, %114, %125 : vector<2x32xi1>, vector<2x32xf32>
    %127 = vector.extract_strided_slice %12 {offsets = [4, 0], sizes = [2, 128], strides = [1, 1]} : vector<16x128xf32> to vector<2x128xf32>
    %cst_49 = arith.constant dense<0.000000e+00> : vector<2x128xf32>
    %128 = tpu.matmul %119, %26, %cst_49 {dimension_numbers = #tpu.dot_dimension_numbers<[1], [0], [0], [1], [0, 0, 1, 1], [], []>} : vector<2x32xf32>, vector<32x128xf32>, vector<2x128xf32> -> vector<2x128xf32>
    %129 = arith.addf %127, %128 : vector<2x128xf32>
    %cst_50 = arith.constant dense<0.000000e+00> : vector<2x128xf32>
    %130 = tpu.matmul %126, %22, %cst_50 {dimension_numbers = #tpu.dot_dimension_numbers<[1], [0], [0], [1], [0, 0, 1, 1], [], []>} : vector<2x32xf32>, vector<32x128xf32>, vector<2x128xf32> -> vector<2x128xf32>
    %cst_51 = arith.constant dense<0.000000e+00> : vector<2x128xf32>
    %131 = tpu.matmul %88, %28, %cst_51 {dimension_numbers = #tpu.dot_dimension_numbers<[1], [0], [0], [1], [0, 0, 1, 1], [], []>} : vector<2x32xf32>, vector<32x128xf32>, vector<2x128xf32> -> vector<2x128xf32>
    %132 = arith.addf %130, %131 : vector<2x128xf32>
    %133 = vector.broadcast %24 : vector<1x128xf32> to vector<2x128xf32>
    %134 = arith.addf %132, %133 : vector<2x128xf32>
    %135 = vector.extract_strided_slice %1 {offsets = [0, 1], sizes = [2, 1], strides = [1, 1]} : vector<2x8xf32> to vector<2x1xf32>
    %136 = arith.negf %134 : vector<2x128xf32>
    %137 = math.exp %136 : vector<2x128xf32>
    %cst_52 = arith.constant 1.000000e+00 : f32
    %138 = vector.broadcast %cst_52 : f32 to vector<2x128xf32>
    %139 = arith.addf %138, %137 : vector<2x128xf32>
    %140 = arith.divf %138, %139 : vector<2x128xf32>
    %141 = math.tanh %134 : vector<2x128xf32>
    %142 = vector.extract_strided_slice %140 {offsets = [0, 0], sizes = [2, 32], strides = [1, 1]} : vector<2x128xf32> to vector<2x32xf32>
    %143 = vector.extract_strided_slice %140 {offsets = [0, 32], sizes = [2, 32], strides = [1, 1]} : vector<2x128xf32> to vector<2x32xf32>
    %144 = vector.extract_strided_slice %141 {offsets = [0, 64], sizes = [2, 32], strides = [1, 1]} : vector<2x128xf32> to vector<2x32xf32>
    %145 = vector.extract_strided_slice %140 {offsets = [0, 96], sizes = [2, 32], strides = [1, 1]} : vector<2x128xf32> to vector<2x32xf32>
    %146 = arith.mulf %143, %91 : vector<2x32xf32>
    %147 = arith.mulf %142, %144 : vector<2x32xf32>
    %148 = arith.addf %146, %147 : vector<2x32xf32>
    %149 = math.tanh %148 : vector<2x32xf32>
    %150 = arith.mulf %145, %149 : vector<2x32xf32>
    %cst_53 = arith.constant 5.000000e-01 : f32
    %151 = vector.broadcast %cst_53 : f32 to vector<2x1xf32>
    %152 = arith.cmpf ogt, %135, %151 : vector<2x1xf32>
    %153 = vector.shape_cast %152 : vector<2x1xi1> to vector<2x1xi1>
    %154 = vector.broadcast %153 : vector<2x1xi1> to vector<2x32xi1>
    %155 = arith.select %154, %150, %88 : vector<2x32xi1>, vector<2x32xf32>
    %156 = vector.shape_cast %152 : vector<2x1xi1> to vector<2x1xi1>
    %157 = vector.broadcast %156 : vector<2x1xi1> to vector<2x32xi1>
    %158 = arith.select %157, %148, %91 : vector<2x32xi1>, vector<2x32xf32>
    %cst_54 = arith.constant 0.000000e+00 : f32
    %159 = vector.shape_cast %152 : vector<2x1xi1> to vector<2x1xi1>
    %160 = vector.broadcast %159 : vector<2x1xi1> to vector<2x32xi1>
    %161 = vector.broadcast %cst_54 : f32 to vector<2x32xf32>
    %162 = arith.select %160, %150, %161 : vector<2x32xi1>, vector<2x32xf32>
    %c0_55 = arith.constant 0 : index
    %c1_56 = arith.constant 1 : index
    %c0_57 = arith.constant 0 : index
    %163 = vector.load %arg14[%c0_55, %c1_56, %c0_57] : memref<2x8x32xf32, #tpu.memory_space<vmem>>, vector<2x1x32xf32>
    %164 = vector.shape_cast %163 : vector<2x1x32xf32> to vector<2x32xf32>
    %165 = vector.shape_cast %162 : vector<2x32xf32> to vector<2x1x32xf32>
    tpu.vector_store %arg14[%c0_55, %c1_56, %c0_57], %165 {strides = array<i32>} : memref<2x8x32xf32, #tpu.memory_space<vmem>>, vector<2x1x32xf32>,
    %166 = vector.extract_strided_slice %1 {offsets = [0, 2], sizes = [2, 1], strides = [1, 1]} : vector<2x8xf32> to vector<2x1xf32>
    %167 = arith.negf %129 : vector<2x128xf32>
    %168 = math.exp %167 : vector<2x128xf32>
    %cst_58 = arith.constant 1.000000e+00 : f32
    %169 = vector.broadcast %cst_58 : f32 to vector<2x128xf32>
    %170 = arith.addf %169, %168 : vector<2x128xf32>
    %171 = arith.divf %169, %170 : vector<2x128xf32>
    %172 = math.tanh %129 : vector<2x128xf32>
    %173 = vector.extract_strided_slice %171 {offsets = [0, 0], sizes = [2, 32], strides = [1, 1]} : vector<2x128xf32> to vector<2x32xf32>
    %174 = vector.extract_strided_slice %171 {offsets = [0, 32], sizes = [2, 32], strides = [1, 1]} : vector<2x128xf32> to vector<2x32xf32>
    %175 = vector.extract_strided_slice %172 {offsets = [0, 64], sizes = [2, 32], strides = [1, 1]} : vector<2x128xf32> to vector<2x32xf32>
    %176 = vector.extract_strided_slice %171 {offsets = [0, 96], sizes = [2, 32], strides = [1, 1]} : vector<2x128xf32> to vector<2x32xf32>
    %177 = arith.mulf %174, %122 : vector<2x32xf32>
    %178 = arith.mulf %173, %175 : vector<2x32xf32>
    %179 = arith.addf %177, %178 : vector<2x32xf32>
    %180 = math.tanh %179 : vector<2x32xf32>
    %181 = arith.mulf %176, %180 : vector<2x32xf32>
    %cst_59 = arith.constant 5.000000e-01 : f32
    %182 = vector.broadcast %cst_59 : f32 to vector<2x1xf32>
    %183 = arith.cmpf ogt, %166, %182 : vector<2x1xf32>
    %184 = vector.shape_cast %183 : vector<2x1xi1> to vector<2x1xi1>
    %185 = vector.broadcast %184 : vector<2x1xi1> to vector<2x32xi1>
    %186 = arith.select %185, %181, %119 : vector<2x32xi1>, vector<2x32xf32>
    %187 = vector.shape_cast %183 : vector<2x1xi1> to vector<2x1xi1>
    %188 = vector.broadcast %187 : vector<2x1xi1> to vector<2x32xi1>
    %189 = arith.select %188, %179, %122 : vector<2x32xi1>, vector<2x32xf32>
    %cst_60 = arith.constant 0.000000e+00 : f32
    %190 = vector.shape_cast %183 : vector<2x1xi1> to vector<2x1xi1>
    %191 = vector.broadcast %190 : vector<2x1xi1> to vector<2x32xi1>
    %192 = vector.broadcast %cst_60 : f32 to vector<2x32xf32>
    %193 = arith.select %191, %181, %192 : vector<2x32xi1>, vector<2x32xf32>
    %194 = vector.extract_strided_slice %12 {offsets = [6, 0], sizes = [2, 128], strides = [1, 1]} : vector<16x128xf32> to vector<2x128xf32>
    %cst_61 = arith.constant dense<0.000000e+00> : vector<2x128xf32>
    %195 = tpu.matmul %186, %26, %cst_61 {dimension_numbers = #tpu.dot_dimension_numbers<[1], [0], [0], [1], [0, 0, 1, 1], [], []>} : vector<2x32xf32>, vector<32x128xf32>, vector<2x128xf32> -> vector<2x128xf32>
    %196 = arith.addf %194, %195 : vector<2x128xf32>
    %cst_62 = arith.constant dense<0.000000e+00> : vector<2x128xf32>
    %197 = tpu.matmul %193, %22, %cst_62 {dimension_numbers = #tpu.dot_dimension_numbers<[1], [0], [0], [1], [0, 0, 1, 1], [], []>} : vector<2x32xf32>, vector<32x128xf32>, vector<2x128xf32> -> vector<2x128xf32>
    %cst_63 = arith.constant dense<0.000000e+00> : vector<2x128xf32>
    %198 = tpu.matmul %155, %28, %cst_63 {dimension_numbers = #tpu.dot_dimension_numbers<[1], [0], [0], [1], [0, 0, 1, 1], [], []>} : vector<2x32xf32>, vector<32x128xf32>, vector<2x128xf32> -> vector<2x128xf32>
    %199 = arith.addf %197, %198 : vector<2x128xf32>
    %200 = vector.broadcast %24 : vector<1x128xf32> to vector<2x128xf32>
    %201 = arith.addf %199, %200 : vector<2x128xf32>
    %202 = vector.extract_strided_slice %1 {offsets = [0, 2], sizes = [2, 1], strides = [1, 1]} : vector<2x8xf32> to vector<2x1xf32>
    %203 = arith.negf %201 : vector<2x128xf32>
    %204 = math.exp %203 : vector<2x128xf32>
    %cst_64 = arith.constant 1.000000e+00 : f32
    %205 = vector.broadcast %cst_64 : f32 to vector<2x128xf32>
    %206 = arith.addf %205, %204 : vector<2x128xf32>
    %207 = arith.divf %205, %206 : vector<2x128xf32>
    %208 = math.tanh %201 : vector<2x128xf32>
    %209 = vector.extract_strided_slice %207 {offsets = [0, 0], sizes = [2, 32], strides = [1, 1]} : vector<2x128xf32> to vector<2x32xf32>
    %210 = vector.extract_strided_slice %207 {offsets = [0, 32], sizes = [2, 32], strides = [1, 1]} : vector<2x128xf32> to vector<2x32xf32>
    %211 = vector.extract_strided_slice %208 {offsets = [0, 64], sizes = [2, 32], strides = [1, 1]} : vector<2x128xf32> to vector<2x32xf32>
    %212 = vector.extract_strided_slice %207 {offsets = [0, 96], sizes = [2, 32], strides = [1, 1]} : vector<2x128xf32> to vector<2x32xf32>
    %213 = arith.mulf %210, %158 : vector<2x32xf32>
    %214 = arith.mulf %209, %211 : vector<2x32xf32>
    %215 = arith.addf %213, %214 : vector<2x32xf32>
    %216 = math.tanh %215 : vector<2x32xf32>
    %217 = arith.mulf %212, %216 : vector<2x32xf32>
    %cst_65 = arith.constant 5.000000e-01 : f32
    %218 = vector.broadcast %cst_65 : f32 to vector<2x1xf32>
    %219 = arith.cmpf ogt, %202, %218 : vector<2x1xf32>
    %220 = vector.shape_cast %219 : vector<2x1xi1> to vector<2x1xi1>
    %221 = vector.broadcast %220 : vector<2x1xi1> to vector<2x32xi1>
    %222 = arith.select %221, %217, %155 : vector<2x32xi1>, vector<2x32xf32>
    %223 = vector.shape_cast %219 : vector<2x1xi1> to vector<2x1xi1>
    %224 = vector.broadcast %223 : vector<2x1xi1> to vector<2x32xi1>
    %225 = arith.select %224, %215, %158 : vector<2x32xi1>, vector<2x32xf32>
    %cst_66 = arith.constant 0.000000e+00 : f32
    %226 = vector.shape_cast %219 : vector<2x1xi1> to vector<2x1xi1>
    %227 = vector.broadcast %226 : vector<2x1xi1> to vector<2x32xi1>
    %228 = vector.broadcast %cst_66 : f32 to vector<2x32xf32>
    %229 = arith.select %227, %217, %228 : vector<2x32xi1>, vector<2x32xf32>
    %c0_67 = arith.constant 0 : index
    %c2_68 = arith.constant 2 : index
    %c0_69 = arith.constant 0 : index
    %230 = vector.load %arg14[%c0_67, %c2_68, %c0_69] : memref<2x8x32xf32, #tpu.memory_space<vmem>>, vector<2x1x32xf32>
    %231 = vector.shape_cast %230 : vector<2x1x32xf32> to vector<2x32xf32>
    %232 = vector.shape_cast %229 : vector<2x32xf32> to vector<2x1x32xf32>
    tpu.vector_store %arg14[%c0_67, %c2_68, %c0_69], %232 {strides = array<i32>} : memref<2x8x32xf32, #tpu.memory_space<vmem>>, vector<2x1x32xf32>,
    %233 = vector.extract_strided_slice %1 {offsets = [0, 3], sizes = [2, 1], strides = [1, 1]} : vector<2x8xf32> to vector<2x1xf32>
    %234 = arith.negf %196 : vector<2x128xf32>
    %235 = math.exp %234 : vector<2x128xf32>
    %cst_70 = arith.constant 1.000000e+00 : f32
    %236 = vector.broadcast %cst_70 : f32 to vector<2x128xf32>
    %237 = arith.addf %236, %235 : vector<2x128xf32>
    %238 = arith.divf %236, %237 : vector<2x128xf32>
    %239 = math.tanh %196 : vector<2x128xf32>
    %240 = vector.extract_strided_slice %238 {offsets = [0, 0], sizes = [2, 32], strides = [1, 1]} : vector<2x128xf32> to vector<2x32xf32>
    %241 = vector.extract_strided_slice %238 {offsets = [0, 32], sizes = [2, 32], strides = [1, 1]} : vector<2x128xf32> to vector<2x32xf32>
    %242 = vector.extract_strided_slice %239 {offsets = [0, 64], sizes = [2, 32], strides = [1, 1]} : vector<2x128xf32> to vector<2x32xf32>
    %243 = vector.extract_strided_slice %238 {offsets = [0, 96], sizes = [2, 32], strides = [1, 1]} : vector<2x128xf32> to vector<2x32xf32>
    %244 = arith.mulf %241, %189 : vector<2x32xf32>
    %245 = arith.mulf %240, %242 : vector<2x32xf32>
    %246 = arith.addf %244, %245 : vector<2x32xf32>
    %247 = math.tanh %246 : vector<2x32xf32>
    %248 = arith.mulf %243, %247 : vector<2x32xf32>
    %cst_71 = arith.constant 5.000000e-01 : f32
    %249 = vector.broadcast %cst_71 : f32 to vector<2x1xf32>
    %250 = arith.cmpf ogt, %233, %249 : vector<2x1xf32>
    %251 = vector.shape_cast %250 : vector<2x1xi1> to vector<2x1xi1>
    %252 = vector.broadcast %251 : vector<2x1xi1> to vector<2x32xi1>
    %253 = arith.select %252, %248, %186 : vector<2x32xi1>, vector<2x32xf32>
    %254 = vector.shape_cast %250 : vector<2x1xi1> to vector<2x1xi1>
    %255 = vector.broadcast %254 : vector<2x1xi1> to vector<2x32xi1>
    %256 = arith.select %255, %246, %189 : vector<2x32xi1>, vector<2x32xf32>
    %cst_72 = arith.constant 0.000000e+00 : f32
    %257 = vector.shape_cast %250 : vector<2x1xi1> to vector<2x1xi1>
    %258 = vector.broadcast %257 : vector<2x1xi1> to vector<2x32xi1>
    %259 = vector.broadcast %cst_72 : f32 to vector<2x32xf32>
    %260 = arith.select %258, %248, %259 : vector<2x32xi1>, vector<2x32xf32>
    %261 = vector.extract_strided_slice %12 {offsets = [8, 0], sizes = [2, 128], strides = [1, 1]} : vector<16x128xf32> to vector<2x128xf32>
    %cst_73 = arith.constant dense<0.000000e+00> : vector<2x128xf32>
    %262 = tpu.matmul %253, %26, %cst_73 {dimension_numbers = #tpu.dot_dimension_numbers<[1], [0], [0], [1], [0, 0, 1, 1], [], []>} : vector<2x32xf32>, vector<32x128xf32>, vector<2x128xf32> -> vector<2x128xf32>
    %263 = arith.addf %261, %262 : vector<2x128xf32>
    %cst_74 = arith.constant dense<0.000000e+00> : vector<2x128xf32>
    %264 = tpu.matmul %260, %22, %cst_74 {dimension_numbers = #tpu.dot_dimension_numbers<[1], [0], [0], [1], [0, 0, 1, 1], [], []>} : vector<2x32xf32>, vector<32x128xf32>, vector<2x128xf32> -> vector<2x128xf32>
    %cst_75 = arith.constant dense<0.000000e+00> : vector<2x128xf32>
    %265 = tpu.matmul %222, %28, %cst_75 {dimension_numbers = #tpu.dot_dimension_numbers<[1], [0], [0], [1], [0, 0, 1, 1], [], []>} : vector<2x32xf32>, vector<32x128xf32>, vector<2x128xf32> -> vector<2x128xf32>
    %266 = arith.addf %264, %265 : vector<2x128xf32>
    %267 = vector.broadcast %24 : vector<1x128xf32> to vector<2x128xf32>
    %268 = arith.addf %266, %267 : vector<2x128xf32>
    %269 = vector.extract_strided_slice %1 {offsets = [0, 3], sizes = [2, 1], strides = [1, 1]} : vector<2x8xf32> to vector<2x1xf32>
    %270 = arith.negf %268 : vector<2x128xf32>
    %271 = math.exp %270 : vector<2x128xf32>
    %cst_76 = arith.constant 1.000000e+00 : f32
    %272 = vector.broadcast %cst_76 : f32 to vector<2x128xf32>
    %273 = arith.addf %272, %271 : vector<2x128xf32>
    %274 = arith.divf %272, %273 : vector<2x128xf32>
    %275 = math.tanh %268 : vector<2x128xf32>
    %276 = vector.extract_strided_slice %274 {offsets = [0, 0], sizes = [2, 32], strides = [1, 1]} : vector<2x128xf32> to vector<2x32xf32>
    %277 = vector.extract_strided_slice %274 {offsets = [0, 32], sizes = [2, 32], strides = [1, 1]} : vector<2x128xf32> to vector<2x32xf32>
    %278 = vector.extract_strided_slice %275 {offsets = [0, 64], sizes = [2, 32], strides = [1, 1]} : vector<2x128xf32> to vector<2x32xf32>
    %279 = vector.extract_strided_slice %274 {offsets = [0, 96], sizes = [2, 32], strides = [1, 1]} : vector<2x128xf32> to vector<2x32xf32>
    %280 = arith.mulf %277, %225 : vector<2x32xf32>
    %281 = arith.mulf %276, %278 : vector<2x32xf32>
    %282 = arith.addf %280, %281 : vector<2x32xf32>
    %283 = math.tanh %282 : vector<2x32xf32>
    %284 = arith.mulf %279, %283 : vector<2x32xf32>
    %cst_77 = arith.constant 5.000000e-01 : f32
    %285 = vector.broadcast %cst_77 : f32 to vector<2x1xf32>
    %286 = arith.cmpf ogt, %269, %285 : vector<2x1xf32>
    %287 = vector.shape_cast %286 : vector<2x1xi1> to vector<2x1xi1>
    %288 = vector.broadcast %287 : vector<2x1xi1> to vector<2x32xi1>
    %289 = arith.select %288, %284, %222 : vector<2x32xi1>, vector<2x32xf32>
    %290 = vector.shape_cast %286 : vector<2x1xi1> to vector<2x1xi1>
    %291 = vector.broadcast %290 : vector<2x1xi1> to vector<2x32xi1>
    %292 = arith.select %291, %282, %225 : vector<2x32xi1>, vector<2x32xf32>
    %cst_78 = arith.constant 0.000000e+00 : f32
    %293 = vector.shape_cast %286 : vector<2x1xi1> to vector<2x1xi1>
    %294 = vector.broadcast %293 : vector<2x1xi1> to vector<2x32xi1>
    %295 = vector.broadcast %cst_78 : f32 to vector<2x32xf32>
    %296 = arith.select %294, %284, %295 : vector<2x32xi1>, vector<2x32xf32>
    %c0_79 = arith.constant 0 : index
    %c3 = arith.constant 3 : index
    %c0_80 = arith.constant 0 : index
    %297 = vector.load %arg14[%c0_79, %c3, %c0_80] : memref<2x8x32xf32, #tpu.memory_space<vmem>>, vector<2x1x32xf32>
    %298 = vector.shape_cast %297 : vector<2x1x32xf32> to vector<2x32xf32>
    %299 = vector.shape_cast %296 : vector<2x32xf32> to vector<2x1x32xf32>
    tpu.vector_store %arg14[%c0_79, %c3, %c0_80], %299 {strides = array<i32>} : memref<2x8x32xf32, #tpu.memory_space<vmem>>, vector<2x1x32xf32>,
    %300 = vector.extract_strided_slice %1 {offsets = [0, 4], sizes = [2, 1], strides = [1, 1]} : vector<2x8xf32> to vector<2x1xf32>
    %301 = arith.negf %263 : vector<2x128xf32>
    %302 = math.exp %301 : vector<2x128xf32>
    %cst_81 = arith.constant 1.000000e+00 : f32
    %303 = vector.broadcast %cst_81 : f32 to vector<2x128xf32>
    %304 = arith.addf %303, %302 : vector<2x128xf32>
    %305 = arith.divf %303, %304 : vector<2x128xf32>
    %306 = math.tanh %263 : vector<2x128xf32>
    %307 = vector.extract_strided_slice %305 {offsets = [0, 0], sizes = [2, 32], strides = [1, 1]} : vector<2x128xf32> to vector<2x32xf32>
    %308 = vector.extract_strided_slice %305 {offsets = [0, 32], sizes = [2, 32], strides = [1, 1]} : vector<2x128xf32> to vector<2x32xf32>
    %309 = vector.extract_strided_slice %306 {offsets = [0, 64], sizes = [2, 32], strides = [1, 1]} : vector<2x128xf32> to vector<2x32xf32>
    %310 = vector.extract_strided_slice %305 {offsets = [0, 96], sizes = [2, 32], strides = [1, 1]} : vector<2x128xf32> to vector<2x32xf32>
    %311 = arith.mulf %308, %256 : vector<2x32xf32>
    %312 = arith.mulf %307, %309 : vector<2x32xf32>
    %313 = arith.addf %311, %312 : vector<2x32xf32>
    %314 = math.tanh %313 : vector<2x32xf32>
    %315 = arith.mulf %310, %314 : vector<2x32xf32>
    %cst_82 = arith.constant 5.000000e-01 : f32
    %316 = vector.broadcast %cst_82 : f32 to vector<2x1xf32>
    %317 = arith.cmpf ogt, %300, %316 : vector<2x1xf32>
    %318 = vector.shape_cast %317 : vector<2x1xi1> to vector<2x1xi1>
    %319 = vector.broadcast %318 : vector<2x1xi1> to vector<2x32xi1>
    %320 = arith.select %319, %315, %253 : vector<2x32xi1>, vector<2x32xf32>
    %321 = vector.shape_cast %317 : vector<2x1xi1> to vector<2x1xi1>
    %322 = vector.broadcast %321 : vector<2x1xi1> to vector<2x32xi1>
    %323 = arith.select %322, %313, %256 : vector<2x32xi1>, vector<2x32xf32>
    %cst_83 = arith.constant 0.000000e+00 : f32
    %324 = vector.shape_cast %317 : vector<2x1xi1> to vector<2x1xi1>
    %325 = vector.broadcast %324 : vector<2x1xi1> to vector<2x32xi1>
    %326 = vector.broadcast %cst_83 : f32 to vector<2x32xf32>
    %327 = arith.select %325, %315, %326 : vector<2x32xi1>, vector<2x32xf32>
    %328 = vector.extract_strided_slice %12 {offsets = [10, 0], sizes = [2, 128], strides = [1, 1]} : vector<16x128xf32> to vector<2x128xf32>
    %cst_84 = arith.constant dense<0.000000e+00> : vector<2x128xf32>
    %329 = tpu.matmul %320, %26, %cst_84 {dimension_numbers = #tpu.dot_dimension_numbers<[1], [0], [0], [1], [0, 0, 1, 1], [], []>} : vector<2x32xf32>, vector<32x128xf32>, vector<2x128xf32> -> vector<2x128xf32>
    %330 = arith.addf %328, %329 : vector<2x128xf32>
    %cst_85 = arith.constant dense<0.000000e+00> : vector<2x128xf32>
    %331 = tpu.matmul %327, %22, %cst_85 {dimension_numbers = #tpu.dot_dimension_numbers<[1], [0], [0], [1], [0, 0, 1, 1], [], []>} : vector<2x32xf32>, vector<32x128xf32>, vector<2x128xf32> -> vector<2x128xf32>
    %cst_86 = arith.constant dense<0.000000e+00> : vector<2x128xf32>
    %332 = tpu.matmul %289, %28, %cst_86 {dimension_numbers = #tpu.dot_dimension_numbers<[1], [0], [0], [1], [0, 0, 1, 1], [], []>} : vector<2x32xf32>, vector<32x128xf32>, vector<2x128xf32> -> vector<2x128xf32>
    %333 = arith.addf %331, %332 : vector<2x128xf32>
    %334 = vector.broadcast %24 : vector<1x128xf32> to vector<2x128xf32>
    %335 = arith.addf %333, %334 : vector<2x128xf32>
    %336 = vector.extract_strided_slice %1 {offsets = [0, 4], sizes = [2, 1], strides = [1, 1]} : vector<2x8xf32> to vector<2x1xf32>
    %337 = arith.negf %335 : vector<2x128xf32>
    %338 = math.exp %337 : vector<2x128xf32>
    %cst_87 = arith.constant 1.000000e+00 : f32
    %339 = vector.broadcast %cst_87 : f32 to vector<2x128xf32>
    %340 = arith.addf %339, %338 : vector<2x128xf32>
    %341 = arith.divf %339, %340 : vector<2x128xf32>
    %342 = math.tanh %335 : vector<2x128xf32>
    %343 = vector.extract_strided_slice %341 {offsets = [0, 0], sizes = [2, 32], strides = [1, 1]} : vector<2x128xf32> to vector<2x32xf32>
    %344 = vector.extract_strided_slice %341 {offsets = [0, 32], sizes = [2, 32], strides = [1, 1]} : vector<2x128xf32> to vector<2x32xf32>
    %345 = vector.extract_strided_slice %342 {offsets = [0, 64], sizes = [2, 32], strides = [1, 1]} : vector<2x128xf32> to vector<2x32xf32>
    %346 = vector.extract_strided_slice %341 {offsets = [0, 96], sizes = [2, 32], strides = [1, 1]} : vector<2x128xf32> to vector<2x32xf32>
    %347 = arith.mulf %344, %292 : vector<2x32xf32>
    %348 = arith.mulf %343, %345 : vector<2x32xf32>
    %349 = arith.addf %347, %348 : vector<2x32xf32>
    %350 = math.tanh %349 : vector<2x32xf32>
    %351 = arith.mulf %346, %350 : vector<2x32xf32>
    %cst_88 = arith.constant 5.000000e-01 : f32
    %352 = vector.broadcast %cst_88 : f32 to vector<2x1xf32>
    %353 = arith.cmpf ogt, %336, %352 : vector<2x1xf32>
    %354 = vector.shape_cast %353 : vector<2x1xi1> to vector<2x1xi1>
    %355 = vector.broadcast %354 : vector<2x1xi1> to vector<2x32xi1>
    %356 = arith.select %355, %351, %289 : vector<2x32xi1>, vector<2x32xf32>
    %357 = vector.shape_cast %353 : vector<2x1xi1> to vector<2x1xi1>
    %358 = vector.broadcast %357 : vector<2x1xi1> to vector<2x32xi1>
    %359 = arith.select %358, %349, %292 : vector<2x32xi1>, vector<2x32xf32>
    %cst_89 = arith.constant 0.000000e+00 : f32
    %360 = vector.shape_cast %353 : vector<2x1xi1> to vector<2x1xi1>
    %361 = vector.broadcast %360 : vector<2x1xi1> to vector<2x32xi1>
    %362 = vector.broadcast %cst_89 : f32 to vector<2x32xf32>
    %363 = arith.select %361, %351, %362 : vector<2x32xi1>, vector<2x32xf32>
    %c0_90 = arith.constant 0 : index
    %c4 = arith.constant 4 : index
    %c0_91 = arith.constant 0 : index
    %364 = vector.load %arg14[%c0_90, %c4, %c0_91] : memref<2x8x32xf32, #tpu.memory_space<vmem>>, vector<2x1x32xf32>
    %365 = vector.shape_cast %364 : vector<2x1x32xf32> to vector<2x32xf32>
    %366 = vector.shape_cast %363 : vector<2x32xf32> to vector<2x1x32xf32>
    tpu.vector_store %arg14[%c0_90, %c4, %c0_91], %366 {strides = array<i32>} : memref<2x8x32xf32, #tpu.memory_space<vmem>>, vector<2x1x32xf32>,
    %367 = vector.extract_strided_slice %1 {offsets = [0, 5], sizes = [2, 1], strides = [1, 1]} : vector<2x8xf32> to vector<2x1xf32>
    %368 = arith.negf %330 : vector<2x128xf32>
    %369 = math.exp %368 : vector<2x128xf32>
    %cst_92 = arith.constant 1.000000e+00 : f32
    %370 = vector.broadcast %cst_92 : f32 to vector<2x128xf32>
    %371 = arith.addf %370, %369 : vector<2x128xf32>
    %372 = arith.divf %370, %371 : vector<2x128xf32>
    %373 = math.tanh %330 : vector<2x128xf32>
    %374 = vector.extract_strided_slice %372 {offsets = [0, 0], sizes = [2, 32], strides = [1, 1]} : vector<2x128xf32> to vector<2x32xf32>
    %375 = vector.extract_strided_slice %372 {offsets = [0, 32], sizes = [2, 32], strides = [1, 1]} : vector<2x128xf32> to vector<2x32xf32>
    %376 = vector.extract_strided_slice %373 {offsets = [0, 64], sizes = [2, 32], strides = [1, 1]} : vector<2x128xf32> to vector<2x32xf32>
    %377 = vector.extract_strided_slice %372 {offsets = [0, 96], sizes = [2, 32], strides = [1, 1]} : vector<2x128xf32> to vector<2x32xf32>
    %378 = arith.mulf %375, %323 : vector<2x32xf32>
    %379 = arith.mulf %374, %376 : vector<2x32xf32>
    %380 = arith.addf %378, %379 : vector<2x32xf32>
    %381 = math.tanh %380 : vector<2x32xf32>
    %382 = arith.mulf %377, %381 : vector<2x32xf32>
    %cst_93 = arith.constant 5.000000e-01 : f32
    %383 = vector.broadcast %cst_93 : f32 to vector<2x1xf32>
    %384 = arith.cmpf ogt, %367, %383 : vector<2x1xf32>
    %385 = vector.shape_cast %384 : vector<2x1xi1> to vector<2x1xi1>
    %386 = vector.broadcast %385 : vector<2x1xi1> to vector<2x32xi1>
    %387 = arith.select %386, %382, %320 : vector<2x32xi1>, vector<2x32xf32>
    %388 = vector.shape_cast %384 : vector<2x1xi1> to vector<2x1xi1>
    %389 = vector.broadcast %388 : vector<2x1xi1> to vector<2x32xi1>
    %390 = arith.select %389, %380, %323 : vector<2x32xi1>, vector<2x32xf32>
    %cst_94 = arith.constant 0.000000e+00 : f32
    %391 = vector.shape_cast %384 : vector<2x1xi1> to vector<2x1xi1>
    %392 = vector.broadcast %391 : vector<2x1xi1> to vector<2x32xi1>
    %393 = vector.broadcast %cst_94 : f32 to vector<2x32xf32>
    %394 = arith.select %392, %382, %393 : vector<2x32xi1>, vector<2x32xf32>
    %395 = vector.extract_strided_slice %12 {offsets = [12, 0], sizes = [2, 128], strides = [1, 1]} : vector<16x128xf32> to vector<2x128xf32>
    %cst_95 = arith.constant dense<0.000000e+00> : vector<2x128xf32>
    %396 = tpu.matmul %387, %26, %cst_95 {dimension_numbers = #tpu.dot_dimension_numbers<[1], [0], [0], [1], [0, 0, 1, 1], [], []>} : vector<2x32xf32>, vector<32x128xf32>, vector<2x128xf32> -> vector<2x128xf32>
    %397 = arith.addf %395, %396 : vector<2x128xf32>
    %cst_96 = arith.constant dense<0.000000e+00> : vector<2x128xf32>
    %398 = tpu.matmul %394, %22, %cst_96 {dimension_numbers = #tpu.dot_dimension_numbers<[1], [0], [0], [1], [0, 0, 1, 1], [], []>} : vector<2x32xf32>, vector<32x128xf32>, vector<2x128xf32> -> vector<2x128xf32>
    %cst_97 = arith.constant dense<0.000000e+00> : vector<2x128xf32>
    %399 = tpu.matmul %356, %28, %cst_97 {dimension_numbers = #tpu.dot_dimension_numbers<[1], [0], [0], [1], [0, 0, 1, 1], [], []>} : vector<2x32xf32>, vector<32x128xf32>, vector<2x128xf32> -> vector<2x128xf32>
    %400 = arith.addf %398, %399 : vector<2x128xf32>
    %401 = vector.broadcast %24 : vector<1x128xf32> to vector<2x128xf32>
    %402 = arith.addf %400, %401 : vector<2x128xf32>
    %403 = vector.extract_strided_slice %1 {offsets = [0, 5], sizes = [2, 1], strides = [1, 1]} : vector<2x8xf32> to vector<2x1xf32>
    %404 = arith.negf %402 : vector<2x128xf32>
    %405 = math.exp %404 : vector<2x128xf32>
    %cst_98 = arith.constant 1.000000e+00 : f32
    %406 = vector.broadcast %cst_98 : f32 to vector<2x128xf32>
    %407 = arith.addf %406, %405 : vector<2x128xf32>
    %408 = arith.divf %406, %407 : vector<2x128xf32>
    %409 = math.tanh %402 : vector<2x128xf32>
    %410 = vector.extract_strided_slice %408 {offsets = [0, 0], sizes = [2, 32], strides = [1, 1]} : vector<2x128xf32> to vector<2x32xf32>
    %411 = vector.extract_strided_slice %408 {offsets = [0, 32], sizes = [2, 32], strides = [1, 1]} : vector<2x128xf32> to vector<2x32xf32>
    %412 = vector.extract_strided_slice %409 {offsets = [0, 64], sizes = [2, 32], strides = [1, 1]} : vector<2x128xf32> to vector<2x32xf32>
    %413 = vector.extract_strided_slice %408 {offsets = [0, 96], sizes = [2, 32], strides = [1, 1]} : vector<2x128xf32> to vector<2x32xf32>
    %414 = arith.mulf %411, %359 : vector<2x32xf32>
    %415 = arith.mulf %410, %412 : vector<2x32xf32>
    %416 = arith.addf %414, %415 : vector<2x32xf32>
    %417 = math.tanh %416 : vector<2x32xf32>
    %418 = arith.mulf %413, %417 : vector<2x32xf32>
    %cst_99 = arith.constant 5.000000e-01 : f32
    %419 = vector.broadcast %cst_99 : f32 to vector<2x1xf32>
    %420 = arith.cmpf ogt, %403, %419 : vector<2x1xf32>
    %421 = vector.shape_cast %420 : vector<2x1xi1> to vector<2x1xi1>
    %422 = vector.broadcast %421 : vector<2x1xi1> to vector<2x32xi1>
    %423 = arith.select %422, %418, %356 : vector<2x32xi1>, vector<2x32xf32>
    %424 = vector.shape_cast %420 : vector<2x1xi1> to vector<2x1xi1>
    %425 = vector.broadcast %424 : vector<2x1xi1> to vector<2x32xi1>
    %426 = arith.select %425, %416, %359 : vector<2x32xi1>, vector<2x32xf32>
    %cst_100 = arith.constant 0.000000e+00 : f32
    %427 = vector.shape_cast %420 : vector<2x1xi1> to vector<2x1xi1>
    %428 = vector.broadcast %427 : vector<2x1xi1> to vector<2x32xi1>
    %429 = vector.broadcast %cst_100 : f32 to vector<2x32xf32>
    %430 = arith.select %428, %418, %429 : vector<2x32xi1>, vector<2x32xf32>
    %c0_101 = arith.constant 0 : index
    %c5 = arith.constant 5 : index
    %c0_102 = arith.constant 0 : index
    %431 = vector.load %arg14[%c0_101, %c5, %c0_102] : memref<2x8x32xf32, #tpu.memory_space<vmem>>, vector<2x1x32xf32>
    %432 = vector.shape_cast %431 : vector<2x1x32xf32> to vector<2x32xf32>
    %433 = vector.shape_cast %430 : vector<2x32xf32> to vector<2x1x32xf32>
    tpu.vector_store %arg14[%c0_101, %c5, %c0_102], %433 {strides = array<i32>} : memref<2x8x32xf32, #tpu.memory_space<vmem>>, vector<2x1x32xf32>,
    %434 = vector.extract_strided_slice %1 {offsets = [0, 6], sizes = [2, 1], strides = [1, 1]} : vector<2x8xf32> to vector<2x1xf32>
    %435 = arith.negf %397 : vector<2x128xf32>
    %436 = math.exp %435 : vector<2x128xf32>
    %cst_103 = arith.constant 1.000000e+00 : f32
    %437 = vector.broadcast %cst_103 : f32 to vector<2x128xf32>
    %438 = arith.addf %437, %436 : vector<2x128xf32>
    %439 = arith.divf %437, %438 : vector<2x128xf32>
    %440 = math.tanh %397 : vector<2x128xf32>
    %441 = vector.extract_strided_slice %439 {offsets = [0, 0], sizes = [2, 32], strides = [1, 1]} : vector<2x128xf32> to vector<2x32xf32>
    %442 = vector.extract_strided_slice %439 {offsets = [0, 32], sizes = [2, 32], strides = [1, 1]} : vector<2x128xf32> to vector<2x32xf32>
    %443 = vector.extract_strided_slice %440 {offsets = [0, 64], sizes = [2, 32], strides = [1, 1]} : vector<2x128xf32> to vector<2x32xf32>
    %444 = vector.extract_strided_slice %439 {offsets = [0, 96], sizes = [2, 32], strides = [1, 1]} : vector<2x128xf32> to vector<2x32xf32>
    %445 = arith.mulf %442, %390 : vector<2x32xf32>
    %446 = arith.mulf %441, %443 : vector<2x32xf32>
    %447 = arith.addf %445, %446 : vector<2x32xf32>
    %448 = math.tanh %447 : vector<2x32xf32>
    %449 = arith.mulf %444, %448 : vector<2x32xf32>
    %cst_104 = arith.constant 5.000000e-01 : f32
    %450 = vector.broadcast %cst_104 : f32 to vector<2x1xf32>
    %451 = arith.cmpf ogt, %434, %450 : vector<2x1xf32>
    %452 = vector.shape_cast %451 : vector<2x1xi1> to vector<2x1xi1>
    %453 = vector.broadcast %452 : vector<2x1xi1> to vector<2x32xi1>
    %454 = arith.select %453, %449, %387 : vector<2x32xi1>, vector<2x32xf32>
    %455 = vector.shape_cast %451 : vector<2x1xi1> to vector<2x1xi1>
    %456 = vector.broadcast %455 : vector<2x1xi1> to vector<2x32xi1>
    %457 = arith.select %456, %447, %390 : vector<2x32xi1>, vector<2x32xf32>
    %cst_105 = arith.constant 0.000000e+00 : f32
    %458 = vector.shape_cast %451 : vector<2x1xi1> to vector<2x1xi1>
    %459 = vector.broadcast %458 : vector<2x1xi1> to vector<2x32xi1>
    %460 = vector.broadcast %cst_105 : f32 to vector<2x32xf32>
    %461 = arith.select %459, %449, %460 : vector<2x32xi1>, vector<2x32xf32>
    %462 = vector.extract_strided_slice %12 {offsets = [14, 0], sizes = [2, 128], strides = [1, 1]} : vector<16x128xf32> to vector<2x128xf32>
    %cst_106 = arith.constant dense<0.000000e+00> : vector<2x128xf32>
    %463 = tpu.matmul %454, %26, %cst_106 {dimension_numbers = #tpu.dot_dimension_numbers<[1], [0], [0], [1], [0, 0, 1, 1], [], []>} : vector<2x32xf32>, vector<32x128xf32>, vector<2x128xf32> -> vector<2x128xf32>
    %464 = arith.addf %462, %463 : vector<2x128xf32>
    %cst_107 = arith.constant dense<0.000000e+00> : vector<2x128xf32>
    %465 = tpu.matmul %461, %22, %cst_107 {dimension_numbers = #tpu.dot_dimension_numbers<[1], [0], [0], [1], [0, 0, 1, 1], [], []>} : vector<2x32xf32>, vector<32x128xf32>, vector<2x128xf32> -> vector<2x128xf32>
    %cst_108 = arith.constant dense<0.000000e+00> : vector<2x128xf32>
    %466 = tpu.matmul %423, %28, %cst_108 {dimension_numbers = #tpu.dot_dimension_numbers<[1], [0], [0], [1], [0, 0, 1, 1], [], []>} : vector<2x32xf32>, vector<32x128xf32>, vector<2x128xf32> -> vector<2x128xf32>
    %467 = arith.addf %465, %466 : vector<2x128xf32>
    %468 = vector.broadcast %24 : vector<1x128xf32> to vector<2x128xf32>
    %469 = arith.addf %467, %468 : vector<2x128xf32>
    %470 = vector.extract_strided_slice %1 {offsets = [0, 6], sizes = [2, 1], strides = [1, 1]} : vector<2x8xf32> to vector<2x1xf32>
    %471 = arith.negf %469 : vector<2x128xf32>
    %472 = math.exp %471 : vector<2x128xf32>
    %cst_109 = arith.constant 1.000000e+00 : f32
    %473 = vector.broadcast %cst_109 : f32 to vector<2x128xf32>
    %474 = arith.addf %473, %472 : vector<2x128xf32>
    %475 = arith.divf %473, %474 : vector<2x128xf32>
    %476 = math.tanh %469 : vector<2x128xf32>
    %477 = vector.extract_strided_slice %475 {offsets = [0, 0], sizes = [2, 32], strides = [1, 1]} : vector<2x128xf32> to vector<2x32xf32>
    %478 = vector.extract_strided_slice %475 {offsets = [0, 32], sizes = [2, 32], strides = [1, 1]} : vector<2x128xf32> to vector<2x32xf32>
    %479 = vector.extract_strided_slice %476 {offsets = [0, 64], sizes = [2, 32], strides = [1, 1]} : vector<2x128xf32> to vector<2x32xf32>
    %480 = vector.extract_strided_slice %475 {offsets = [0, 96], sizes = [2, 32], strides = [1, 1]} : vector<2x128xf32> to vector<2x32xf32>
    %481 = arith.mulf %478, %426 : vector<2x32xf32>
    %482 = arith.mulf %477, %479 : vector<2x32xf32>
    %483 = arith.addf %481, %482 : vector<2x32xf32>
    %484 = math.tanh %483 : vector<2x32xf32>
    %485 = arith.mulf %480, %484 : vector<2x32xf32>
    %cst_110 = arith.constant 5.000000e-01 : f32
    %486 = vector.broadcast %cst_110 : f32 to vector<2x1xf32>
    %487 = arith.cmpf ogt, %470, %486 : vector<2x1xf32>
    %488 = vector.shape_cast %487 : vector<2x1xi1> to vector<2x1xi1>
    %489 = vector.broadcast %488 : vector<2x1xi1> to vector<2x32xi1>
    %490 = arith.select %489, %485, %423 : vector<2x32xi1>, vector<2x32xf32>
    %491 = vector.shape_cast %487 : vector<2x1xi1> to vector<2x1xi1>
    %492 = vector.broadcast %491 : vector<2x1xi1> to vector<2x32xi1>
    %493 = arith.select %492, %483, %426 : vector<2x32xi1>, vector<2x32xf32>
    %cst_111 = arith.constant 0.000000e+00 : f32
    %494 = vector.shape_cast %487 : vector<2x1xi1> to vector<2x1xi1>
    %495 = vector.broadcast %494 : vector<2x1xi1> to vector<2x32xi1>
    %496 = vector.broadcast %cst_111 : f32 to vector<2x32xf32>
    %497 = arith.select %495, %485, %496 : vector<2x32xi1>, vector<2x32xf32>
    %c0_112 = arith.constant 0 : index
    %c6 = arith.constant 6 : index
    %c0_113 = arith.constant 0 : index
    %498 = vector.load %arg14[%c0_112, %c6, %c0_113] : memref<2x8x32xf32, #tpu.memory_space<vmem>>, vector<2x1x32xf32>
    %499 = vector.shape_cast %498 : vector<2x1x32xf32> to vector<2x32xf32>
    %500 = vector.shape_cast %497 : vector<2x32xf32> to vector<2x1x32xf32>
    tpu.vector_store %arg14[%c0_112, %c6, %c0_113], %500 {strides = array<i32>} : memref<2x8x32xf32, #tpu.memory_space<vmem>>, vector<2x1x32xf32>,
    %501 = vector.extract_strided_slice %1 {offsets = [0, 7], sizes = [2, 1], strides = [1, 1]} : vector<2x8xf32> to vector<2x1xf32>
    %502 = arith.negf %464 : vector<2x128xf32>
    %503 = math.exp %502 : vector<2x128xf32>
    %cst_114 = arith.constant 1.000000e+00 : f32
    %504 = vector.broadcast %cst_114 : f32 to vector<2x128xf32>
    %505 = arith.addf %504, %503 : vector<2x128xf32>
    %506 = arith.divf %504, %505 : vector<2x128xf32>
    %507 = math.tanh %464 : vector<2x128xf32>
    %508 = vector.extract_strided_slice %506 {offsets = [0, 0], sizes = [2, 32], strides = [1, 1]} : vector<2x128xf32> to vector<2x32xf32>
    %509 = vector.extract_strided_slice %506 {offsets = [0, 32], sizes = [2, 32], strides = [1, 1]} : vector<2x128xf32> to vector<2x32xf32>
    %510 = vector.extract_strided_slice %507 {offsets = [0, 64], sizes = [2, 32], strides = [1, 1]} : vector<2x128xf32> to vector<2x32xf32>
    %511 = vector.extract_strided_slice %506 {offsets = [0, 96], sizes = [2, 32], strides = [1, 1]} : vector<2x128xf32> to vector<2x32xf32>
    %512 = arith.mulf %509, %457 : vector<2x32xf32>
    %513 = arith.mulf %508, %510 : vector<2x32xf32>
    %514 = arith.addf %512, %513 : vector<2x32xf32>
    %515 = math.tanh %514 : vector<2x32xf32>
    %516 = arith.mulf %511, %515 : vector<2x32xf32>
    %cst_115 = arith.constant 5.000000e-01 : f32
    %517 = vector.broadcast %cst_115 : f32 to vector<2x1xf32>
    %518 = arith.cmpf ogt, %501, %517 : vector<2x1xf32>
    %519 = vector.shape_cast %518 : vector<2x1xi1> to vector<2x1xi1>
    %520 = vector.broadcast %519 : vector<2x1xi1> to vector<2x32xi1>
    %521 = arith.select %520, %516, %454 : vector<2x32xi1>, vector<2x32xf32>
    %522 = vector.shape_cast %518 : vector<2x1xi1> to vector<2x1xi1>
    %523 = vector.broadcast %522 : vector<2x1xi1> to vector<2x32xi1>
    %524 = arith.select %523, %514, %457 : vector<2x32xi1>, vector<2x32xf32>
    %cst_116 = arith.constant 0.000000e+00 : f32
    %525 = vector.shape_cast %518 : vector<2x1xi1> to vector<2x1xi1>
    %526 = vector.broadcast %525 : vector<2x1xi1> to vector<2x32xi1>
    %527 = vector.broadcast %cst_116 : f32 to vector<2x32xf32>
    %528 = arith.select %526, %516, %527 : vector<2x32xi1>, vector<2x32xf32>
    %cst_117 = arith.constant dense<0.000000e+00> : vector<2x128xf32>
    %529 = tpu.matmul %528, %22, %cst_117 {dimension_numbers = #tpu.dot_dimension_numbers<[1], [0], [0], [1], [0, 0, 1, 1], [], []>} : vector<2x32xf32>, vector<32x128xf32>, vector<2x128xf32> -> vector<2x128xf32>
    %cst_118 = arith.constant dense<0.000000e+00> : vector<2x128xf32>
    %530 = tpu.matmul %490, %28, %cst_118 {dimension_numbers = #tpu.dot_dimension_numbers<[1], [0], [0], [1], [0, 0, 1, 1], [], []>} : vector<2x32xf32>, vector<32x128xf32>, vector<2x128xf32> -> vector<2x128xf32>
    %531 = arith.addf %529, %530 : vector<2x128xf32>
    %532 = vector.broadcast %24 : vector<1x128xf32> to vector<2x128xf32>
    %533 = arith.addf %531, %532 : vector<2x128xf32>
    %534 = vector.extract_strided_slice %1 {offsets = [0, 7], sizes = [2, 1], strides = [1, 1]} : vector<2x8xf32> to vector<2x1xf32>
    %535 = arith.negf %533 : vector<2x128xf32>
    %536 = math.exp %535 : vector<2x128xf32>
    %cst_119 = arith.constant 1.000000e+00 : f32
    %537 = vector.broadcast %cst_119 : f32 to vector<2x128xf32>
    %538 = arith.addf %537, %536 : vector<2x128xf32>
    %539 = arith.divf %537, %538 : vector<2x128xf32>
    %540 = math.tanh %533 : vector<2x128xf32>
    %541 = vector.extract_strided_slice %539 {offsets = [0, 0], sizes = [2, 32], strides = [1, 1]} : vector<2x128xf32> to vector<2x32xf32>
    %542 = vector.extract_strided_slice %539 {offsets = [0, 32], sizes = [2, 32], strides = [1, 1]} : vector<2x128xf32> to vector<2x32xf32>
    %543 = vector.extract_strided_slice %540 {offsets = [0, 64], sizes = [2, 32], strides = [1, 1]} : vector<2x128xf32> to vector<2x32xf32>
    %544 = vector.extract_strided_slice %539 {offsets = [0, 96], sizes = [2, 32], strides = [1, 1]} : vector<2x128xf32> to vector<2x32xf32>
    %545 = arith.mulf %542, %493 : vector<2x32xf32>
    %546 = arith.mulf %541, %543 : vector<2x32xf32>
    %547 = arith.addf %545, %546 : vector<2x32xf32>
    %548 = math.tanh %547 : vector<2x32xf32>
    %549 = arith.mulf %544, %548 : vector<2x32xf32>
    %cst_120 = arith.constant 5.000000e-01 : f32
    %550 = vector.broadcast %cst_120 : f32 to vector<2x1xf32>
    %551 = arith.cmpf ogt, %534, %550 : vector<2x1xf32>
    %552 = vector.shape_cast %551 : vector<2x1xi1> to vector<2x1xi1>
    %553 = vector.broadcast %552 : vector<2x1xi1> to vector<2x32xi1>
    %554 = arith.select %553, %549, %490 : vector<2x32xi1>, vector<2x32xf32>
    %555 = vector.shape_cast %551 : vector<2x1xi1> to vector<2x1xi1>
    %556 = vector.broadcast %555 : vector<2x1xi1> to vector<2x32xi1>
    %557 = arith.select %556, %547, %493 : vector<2x32xi1>, vector<2x32xf32>
    %cst_121 = arith.constant 0.000000e+00 : f32
    %558 = vector.shape_cast %551 : vector<2x1xi1> to vector<2x1xi1>
    %559 = vector.broadcast %558 : vector<2x1xi1> to vector<2x32xi1>
    %560 = vector.broadcast %cst_121 : f32 to vector<2x32xf32>
    %561 = arith.select %559, %549, %560 : vector<2x32xi1>, vector<2x32xf32>
    %c0_122 = arith.constant 0 : index
    %c7 = arith.constant 7 : index
    %c0_123 = arith.constant 0 : index
    %562 = vector.load %arg14[%c0_122, %c7, %c0_123] : memref<2x8x32xf32, #tpu.memory_space<vmem>>, vector<2x1x32xf32>
    %563 = vector.shape_cast %562 : vector<2x1x32xf32> to vector<2x32xf32>
    %564 = vector.shape_cast %561 : vector<2x32xf32> to vector<2x1x32xf32>
    tpu.vector_store %arg14[%c0_122, %c7, %c0_123], %564 {strides = array<i32>} : memref<2x8x32xf32, #tpu.memory_space<vmem>>, vector<2x1x32xf32>,
    %c3_124 = arith.constant 3 : index
    %c0_125 = arith.constant 0 : index
    %c0_126 = arith.constant 0 : index
    %565 = vector.load %arg5[%c3_124, %c0_125, %c0_126] : memref<4x32x128xf32, #tpu.memory_space<vmem>>, vector<1x32x128xf32>
    %566 = vector.shape_cast %565 : vector<1x32x128xf32> to vector<32x128xf32>
    %c3_127 = arith.constant 3 : index
    %c0_128 = arith.constant 0 : index
    %c0_129 = arith.constant 0 : index
    %567 = vector.load %arg7[%c3_127, %c0_128, %c0_129] : memref<4x1x128xf32, #tpu.memory_space<vmem>>, vector<1x1x128xf32>
    %568 = vector.shape_cast %567 : vector<1x1x128xf32> to vector<1x128xf32>
    %c2_130 = arith.constant 2 : index
    %c0_131 = arith.constant 0 : index
    %c0_132 = arith.constant 0 : index
    %569 = vector.load %arg6[%c2_130, %c0_131, %c0_132] : memref<4x32x128xf32, #tpu.memory_space<vmem>>, vector<1x32x128xf32>
    %570 = vector.shape_cast %569 : vector<1x32x128xf32> to vector<32x128xf32>
    %c3_133 = arith.constant 3 : index
    %c0_134 = arith.constant 0 : index
    %c0_135 = arith.constant 0 : index
    %571 = vector.load %arg6[%c3_133, %c0_134, %c0_135] : memref<4x32x128xf32, #tpu.memory_space<vmem>>, vector<1x32x128xf32>
    %572 = vector.shape_cast %571 : vector<1x32x128xf32> to vector<32x128xf32>
    %573 = vector.extract_strided_slice %20 {offsets = [0, 0], sizes = [2, 128], strides = [1, 1]} : vector<16x128xf32> to vector<2x128xf32>
    %cst_136 = arith.constant dense<0.000000e+00> : vector<2x128xf32>
    %574 = tpu.matmul %521, %570, %cst_136 {dimension_numbers = #tpu.dot_dimension_numbers<[1], [0], [0], [1], [0, 0, 1, 1], [], []>} : vector<2x32xf32>, vector<32x128xf32>, vector<2x128xf32> -> vector<2x128xf32>
    %575 = arith.addf %573, %574 : vector<2x128xf32>
    %576 = vector.extract_strided_slice %3 {offsets = [0, 0], sizes = [2, 1], strides = [1, 1]} : vector<2x8xf32> to vector<2x1xf32>
    %577 = arith.negf %575 : vector<2x128xf32>
    %578 = math.exp %577 : vector<2x128xf32>
    %cst_137 = arith.constant 1.000000e+00 : f32
    %579 = vector.broadcast %cst_137 : f32 to vector<2x128xf32>
    %580 = arith.addf %579, %578 : vector<2x128xf32>
    %581 = arith.divf %579, %580 : vector<2x128xf32>
    %582 = math.tanh %575 : vector<2x128xf32>
    %583 = vector.extract_strided_slice %581 {offsets = [0, 0], sizes = [2, 32], strides = [1, 1]} : vector<2x128xf32> to vector<2x32xf32>
    %584 = vector.extract_strided_slice %581 {offsets = [0, 32], sizes = [2, 32], strides = [1, 1]} : vector<2x128xf32> to vector<2x32xf32>
    %585 = vector.extract_strided_slice %582 {offsets = [0, 64], sizes = [2, 32], strides = [1, 1]} : vector<2x128xf32> to vector<2x32xf32>
    %586 = vector.extract_strided_slice %581 {offsets = [0, 96], sizes = [2, 32], strides = [1, 1]} : vector<2x128xf32> to vector<2x32xf32>
    %587 = arith.mulf %584, %524 : vector<2x32xf32>
    %588 = arith.mulf %583, %585 : vector<2x32xf32>
    %589 = arith.addf %587, %588 : vector<2x32xf32>
    %590 = math.tanh %589 : vector<2x32xf32>
    %591 = arith.mulf %586, %590 : vector<2x32xf32>
    %cst_138 = arith.constant 5.000000e-01 : f32
    %592 = vector.broadcast %cst_138 : f32 to vector<2x1xf32>
    %593 = arith.cmpf ogt, %576, %592 : vector<2x1xf32>
    %594 = vector.shape_cast %593 : vector<2x1xi1> to vector<2x1xi1>
    %595 = vector.broadcast %594 : vector<2x1xi1> to vector<2x32xi1>
    %596 = arith.select %595, %591, %521 : vector<2x32xi1>, vector<2x32xf32>
    %597 = vector.shape_cast %593 : vector<2x1xi1> to vector<2x1xi1>
    %598 = vector.broadcast %597 : vector<2x1xi1> to vector<2x32xi1>
    %599 = arith.select %598, %589, %524 : vector<2x32xi1>, vector<2x32xf32>
    %cst_139 = arith.constant 0.000000e+00 : f32
    %600 = vector.shape_cast %593 : vector<2x1xi1> to vector<2x1xi1>
    %601 = vector.broadcast %600 : vector<2x1xi1> to vector<2x32xi1>
    %602 = vector.broadcast %cst_139 : f32 to vector<2x32xf32>
    %603 = arith.select %601, %591, %602 : vector<2x32xi1>, vector<2x32xf32>
    %604 = vector.extract_strided_slice %20 {offsets = [2, 0], sizes = [2, 128], strides = [1, 1]} : vector<16x128xf32> to vector<2x128xf32>
    %cst_140 = arith.constant dense<0.000000e+00> : vector<2x128xf32>
    %605 = tpu.matmul %596, %570, %cst_140 {dimension_numbers = #tpu.dot_dimension_numbers<[1], [0], [0], [1], [0, 0, 1, 1], [], []>} : vector<2x32xf32>, vector<32x128xf32>, vector<2x128xf32> -> vector<2x128xf32>
    %606 = arith.addf %604, %605 : vector<2x128xf32>
    %cst_141 = arith.constant dense<0.000000e+00> : vector<2x128xf32>
    %607 = tpu.matmul %603, %566, %cst_141 {dimension_numbers = #tpu.dot_dimension_numbers<[1], [0], [0], [1], [0, 0, 1, 1], [], []>} : vector<2x32xf32>, vector<32x128xf32>, vector<2x128xf32> -> vector<2x128xf32>
    %cst_142 = arith.constant dense<0.000000e+00> : vector<2x128xf32>
    %608 = tpu.matmul %554, %572, %cst_142 {dimension_numbers = #tpu.dot_dimension_numbers<[1], [0], [0], [1], [0, 0, 1, 1], [], []>} : vector<2x32xf32>, vector<32x128xf32>, vector<2x128xf32> -> vector<2x128xf32>
    %609 = arith.addf %607, %608 : vector<2x128xf32>
    %610 = vector.broadcast %568 : vector<1x128xf32> to vector<2x128xf32>
    %611 = arith.addf %609, %610 : vector<2x128xf32>
    %612 = vector.extract_strided_slice %3 {offsets = [0, 0], sizes = [2, 1], strides = [1, 1]} : vector<2x8xf32> to vector<2x1xf32>
    %613 = arith.negf %611 : vector<2x128xf32>
    %614 = math.exp %613 : vector<2x128xf32>
    %cst_143 = arith.constant 1.000000e+00 : f32
    %615 = vector.broadcast %cst_143 : f32 to vector<2x128xf32>
    %616 = arith.addf %615, %614 : vector<2x128xf32>
    %617 = arith.divf %615, %616 : vector<2x128xf32>
    %618 = math.tanh %611 : vector<2x128xf32>
    %619 = vector.extract_strided_slice %617 {offsets = [0, 0], sizes = [2, 32], strides = [1, 1]} : vector<2x128xf32> to vector<2x32xf32>
    %620 = vector.extract_strided_slice %617 {offsets = [0, 32], sizes = [2, 32], strides = [1, 1]} : vector<2x128xf32> to vector<2x32xf32>
    %621 = vector.extract_strided_slice %618 {offsets = [0, 64], sizes = [2, 32], strides = [1, 1]} : vector<2x128xf32> to vector<2x32xf32>
    %622 = vector.extract_strided_slice %617 {offsets = [0, 96], sizes = [2, 32], strides = [1, 1]} : vector<2x128xf32> to vector<2x32xf32>
    %623 = arith.mulf %620, %557 : vector<2x32xf32>
    %624 = arith.mulf %619, %621 : vector<2x32xf32>
    %625 = arith.addf %623, %624 : vector<2x32xf32>
    %626 = math.tanh %625 : vector<2x32xf32>
    %627 = arith.mulf %622, %626 : vector<2x32xf32>
    %cst_144 = arith.constant 5.000000e-01 : f32
    %628 = vector.broadcast %cst_144 : f32 to vector<2x1xf32>
    %629 = arith.cmpf ogt, %612, %628 : vector<2x1xf32>
    %630 = vector.shape_cast %629 : vector<2x1xi1> to vector<2x1xi1>
    %631 = vector.broadcast %630 : vector<2x1xi1> to vector<2x32xi1>
    %632 = arith.select %631, %627, %554 : vector<2x32xi1>, vector<2x32xf32>
    %633 = vector.shape_cast %629 : vector<2x1xi1> to vector<2x1xi1>
    %634 = vector.broadcast %633 : vector<2x1xi1> to vector<2x32xi1>
    %635 = arith.select %634, %625, %557 : vector<2x32xi1>, vector<2x32xf32>
    %cst_145 = arith.constant 0.000000e+00 : f32
    %636 = vector.shape_cast %629 : vector<2x1xi1> to vector<2x1xi1>
    %637 = vector.broadcast %636 : vector<2x1xi1> to vector<2x32xi1>
    %638 = vector.broadcast %cst_145 : f32 to vector<2x32xf32>
    %639 = arith.select %637, %627, %638 : vector<2x32xi1>, vector<2x32xf32>
    %c0_146 = arith.constant 0 : index
    %c0_147 = arith.constant 0 : index
    %c0_148 = arith.constant 0 : index
    %640 = vector.load %arg15[%c0_146, %c0_147, %c0_148] : memref<2x8x32xf32, #tpu.memory_space<vmem>>, vector<2x1x32xf32>
    %641 = vector.shape_cast %640 : vector<2x1x32xf32> to vector<2x32xf32>
    %642 = vector.shape_cast %639 : vector<2x32xf32> to vector<2x1x32xf32>
    tpu.vector_store %arg15[%c0_146, %c0_147, %c0_148], %642 {strides = array<i32>} : memref<2x8x32xf32, #tpu.memory_space<vmem>>, vector<2x1x32xf32>,
    %643 = vector.extract_strided_slice %3 {offsets = [0, 1], sizes = [2, 1], strides = [1, 1]} : vector<2x8xf32> to vector<2x1xf32>
    %644 = arith.negf %606 : vector<2x128xf32>
    %645 = math.exp %644 : vector<2x128xf32>
    %cst_149 = arith.constant 1.000000e+00 : f32
    %646 = vector.broadcast %cst_149 : f32 to vector<2x128xf32>
    %647 = arith.addf %646, %645 : vector<2x128xf32>
    %648 = arith.divf %646, %647 : vector<2x128xf32>
    %649 = math.tanh %606 : vector<2x128xf32>
    %650 = vector.extract_strided_slice %648 {offsets = [0, 0], sizes = [2, 32], strides = [1, 1]} : vector<2x128xf32> to vector<2x32xf32>
    %651 = vector.extract_strided_slice %648 {offsets = [0, 32], sizes = [2, 32], strides = [1, 1]} : vector<2x128xf32> to vector<2x32xf32>
    %652 = vector.extract_strided_slice %649 {offsets = [0, 64], sizes = [2, 32], strides = [1, 1]} : vector<2x128xf32> to vector<2x32xf32>
    %653 = vector.extract_strided_slice %648 {offsets = [0, 96], sizes = [2, 32], strides = [1, 1]} : vector<2x128xf32> to vector<2x32xf32>
    %654 = arith.mulf %651, %599 : vector<2x32xf32>
    %655 = arith.mulf %650, %652 : vector<2x32xf32>
    %656 = arith.addf %654, %655 : vector<2x32xf32>
    %657 = math.tanh %656 : vector<2x32xf32>
    %658 = arith.mulf %653, %657 : vector<2x32xf32>
    %cst_150 = arith.constant 5.000000e-01 : f32
    %659 = vector.broadcast %cst_150 : f32 to vector<2x1xf32>
    %660 = arith.cmpf ogt, %643, %659 : vector<2x1xf32>
    %661 = vector.shape_cast %660 : vector<2x1xi1> to vector<2x1xi1>
    %662 = vector.broadcast %661 : vector<2x1xi1> to vector<2x32xi1>
    %663 = arith.select %662, %658, %596 : vector<2x32xi1>, vector<2x32xf32>
    %664 = vector.shape_cast %660 : vector<2x1xi1> to vector<2x1xi1>
    %665 = vector.broadcast %664 : vector<2x1xi1> to vector<2x32xi1>
    %666 = arith.select %665, %656, %599 : vector<2x32xi1>, vector<2x32xf32>
    %cst_151 = arith.constant 0.000000e+00 : f32
    %667 = vector.shape_cast %660 : vector<2x1xi1> to vector<2x1xi1>
    %668 = vector.broadcast %667 : vector<2x1xi1> to vector<2x32xi1>
    %669 = vector.broadcast %cst_151 : f32 to vector<2x32xf32>
    %670 = arith.select %668, %658, %669 : vector<2x32xi1>, vector<2x32xf32>
    %671 = vector.extract_strided_slice %20 {offsets = [4, 0], sizes = [2, 128], strides = [1, 1]} : vector<16x128xf32> to vector<2x128xf32>
    %cst_152 = arith.constant dense<0.000000e+00> : vector<2x128xf32>
    %672 = tpu.matmul %663, %570, %cst_152 {dimension_numbers = #tpu.dot_dimension_numbers<[1], [0], [0], [1], [0, 0, 1, 1], [], []>} : vector<2x32xf32>, vector<32x128xf32>, vector<2x128xf32> -> vector<2x128xf32>
    %673 = arith.addf %671, %672 : vector<2x128xf32>
    %cst_153 = arith.constant dense<0.000000e+00> : vector<2x128xf32>
    %674 = tpu.matmul %670, %566, %cst_153 {dimension_numbers = #tpu.dot_dimension_numbers<[1], [0], [0], [1], [0, 0, 1, 1], [], []>} : vector<2x32xf32>, vector<32x128xf32>, vector<2x128xf32> -> vector<2x128xf32>
    %cst_154 = arith.constant dense<0.000000e+00> : vector<2x128xf32>
    %675 = tpu.matmul %632, %572, %cst_154 {dimension_numbers = #tpu.dot_dimension_numbers<[1], [0], [0], [1], [0, 0, 1, 1], [], []>} : vector<2x32xf32>, vector<32x128xf32>, vector<2x128xf32> -> vector<2x128xf32>
    %676 = arith.addf %674, %675 : vector<2x128xf32>
    %677 = vector.broadcast %568 : vector<1x128xf32> to vector<2x128xf32>
    %678 = arith.addf %676, %677 : vector<2x128xf32>
    %679 = vector.extract_strided_slice %3 {offsets = [0, 1], sizes = [2, 1], strides = [1, 1]} : vector<2x8xf32> to vector<2x1xf32>
    %680 = arith.negf %678 : vector<2x128xf32>
    %681 = math.exp %680 : vector<2x128xf32>
    %cst_155 = arith.constant 1.000000e+00 : f32
    %682 = vector.broadcast %cst_155 : f32 to vector<2x128xf32>
    %683 = arith.addf %682, %681 : vector<2x128xf32>
    %684 = arith.divf %682, %683 : vector<2x128xf32>
    %685 = math.tanh %678 : vector<2x128xf32>
    %686 = vector.extract_strided_slice %684 {offsets = [0, 0], sizes = [2, 32], strides = [1, 1]} : vector<2x128xf32> to vector<2x32xf32>
    %687 = vector.extract_strided_slice %684 {offsets = [0, 32], sizes = [2, 32], strides = [1, 1]} : vector<2x128xf32> to vector<2x32xf32>
    %688 = vector.extract_strided_slice %685 {offsets = [0, 64], sizes = [2, 32], strides = [1, 1]} : vector<2x128xf32> to vector<2x32xf32>
    %689 = vector.extract_strided_slice %684 {offsets = [0, 96], sizes = [2, 32], strides = [1, 1]} : vector<2x128xf32> to vector<2x32xf32>
    %690 = arith.mulf %687, %635 : vector<2x32xf32>
    %691 = arith.mulf %686, %688 : vector<2x32xf32>
    %692 = arith.addf %690, %691 : vector<2x32xf32>
    %693 = math.tanh %692 : vector<2x32xf32>
    %694 = arith.mulf %689, %693 : vector<2x32xf32>
    %cst_156 = arith.constant 5.000000e-01 : f32
    %695 = vector.broadcast %cst_156 : f32 to vector<2x1xf32>
    %696 = arith.cmpf ogt, %679, %695 : vector<2x1xf32>
    %697 = vector.shape_cast %696 : vector<2x1xi1> to vector<2x1xi1>
    %698 = vector.broadcast %697 : vector<2x1xi1> to vector<2x32xi1>
    %699 = arith.select %698, %694, %632 : vector<2x32xi1>, vector<2x32xf32>
    %700 = vector.shape_cast %696 : vector<2x1xi1> to vector<2x1xi1>
    %701 = vector.broadcast %700 : vector<2x1xi1> to vector<2x32xi1>
    %702 = arith.select %701, %692, %635 : vector<2x32xi1>, vector<2x32xf32>
    %cst_157 = arith.constant 0.000000e+00 : f32
    %703 = vector.shape_cast %696 : vector<2x1xi1> to vector<2x1xi1>
    %704 = vector.broadcast %703 : vector<2x1xi1> to vector<2x32xi1>
    %705 = vector.broadcast %cst_157 : f32 to vector<2x32xf32>
    %706 = arith.select %704, %694, %705 : vector<2x32xi1>, vector<2x32xf32>
    %c0_158 = arith.constant 0 : index
    %c1_159 = arith.constant 1 : index
    %c0_160 = arith.constant 0 : index
    %707 = vector.load %arg15[%c0_158, %c1_159, %c0_160] : memref<2x8x32xf32, #tpu.memory_space<vmem>>, vector<2x1x32xf32>
    %708 = vector.shape_cast %707 : vector<2x1x32xf32> to vector<2x32xf32>
    %709 = vector.shape_cast %706 : vector<2x32xf32> to vector<2x1x32xf32>
    tpu.vector_store %arg15[%c0_158, %c1_159, %c0_160], %709 {strides = array<i32>} : memref<2x8x32xf32, #tpu.memory_space<vmem>>, vector<2x1x32xf32>,
    %710 = vector.extract_strided_slice %3 {offsets = [0, 2], sizes = [2, 1], strides = [1, 1]} : vector<2x8xf32> to vector<2x1xf32>
    %711 = arith.negf %673 : vector<2x128xf32>
    %712 = math.exp %711 : vector<2x128xf32>
    %cst_161 = arith.constant 1.000000e+00 : f32
    %713 = vector.broadcast %cst_161 : f32 to vector<2x128xf32>
    %714 = arith.addf %713, %712 : vector<2x128xf32>
    %715 = arith.divf %713, %714 : vector<2x128xf32>
    %716 = math.tanh %673 : vector<2x128xf32>
    %717 = vector.extract_strided_slice %715 {offsets = [0, 0], sizes = [2, 32], strides = [1, 1]} : vector<2x128xf32> to vector<2x32xf32>
    %718 = vector.extract_strided_slice %715 {offsets = [0, 32], sizes = [2, 32], strides = [1, 1]} : vector<2x128xf32> to vector<2x32xf32>
    %719 = vector.extract_strided_slice %716 {offsets = [0, 64], sizes = [2, 32], strides = [1, 1]} : vector<2x128xf32> to vector<2x32xf32>
    %720 = vector.extract_strided_slice %715 {offsets = [0, 96], sizes = [2, 32], strides = [1, 1]} : vector<2x128xf32> to vector<2x32xf32>
    %721 = arith.mulf %718, %666 : vector<2x32xf32>
    %722 = arith.mulf %717, %719 : vector<2x32xf32>
    %723 = arith.addf %721, %722 : vector<2x32xf32>
    %724 = math.tanh %723 : vector<2x32xf32>
    %725 = arith.mulf %720, %724 : vector<2x32xf32>
    %cst_162 = arith.constant 5.000000e-01 : f32
    %726 = vector.broadcast %cst_162 : f32 to vector<2x1xf32>
    %727 = arith.cmpf ogt, %710, %726 : vector<2x1xf32>
    %728 = vector.shape_cast %727 : vector<2x1xi1> to vector<2x1xi1>
    %729 = vector.broadcast %728 : vector<2x1xi1> to vector<2x32xi1>
    %730 = arith.select %729, %725, %663 : vector<2x32xi1>, vector<2x32xf32>
    %731 = vector.shape_cast %727 : vector<2x1xi1> to vector<2x1xi1>
    %732 = vector.broadcast %731 : vector<2x1xi1> to vector<2x32xi1>
    %733 = arith.select %732, %723, %666 : vector<2x32xi1>, vector<2x32xf32>
    %cst_163 = arith.constant 0.000000e+00 : f32
    %734 = vector.shape_cast %727 : vector<2x1xi1> to vector<2x1xi1>
    %735 = vector.broadcast %734 : vector<2x1xi1> to vector<2x32xi1>
    %736 = vector.broadcast %cst_163 : f32 to vector<2x32xf32>
    %737 = arith.select %735, %725, %736 : vector<2x32xi1>, vector<2x32xf32>
    %738 = vector.extract_strided_slice %20 {offsets = [6, 0], sizes = [2, 128], strides = [1, 1]} : vector<16x128xf32> to vector<2x128xf32>
    %cst_164 = arith.constant dense<0.000000e+00> : vector<2x128xf32>
    %739 = tpu.matmul %730, %570, %cst_164 {dimension_numbers = #tpu.dot_dimension_numbers<[1], [0], [0], [1], [0, 0, 1, 1], [], []>} : vector<2x32xf32>, vector<32x128xf32>, vector<2x128xf32> -> vector<2x128xf32>
    %740 = arith.addf %738, %739 : vector<2x128xf32>
    %cst_165 = arith.constant dense<0.000000e+00> : vector<2x128xf32>
    %741 = tpu.matmul %737, %566, %cst_165 {dimension_numbers = #tpu.dot_dimension_numbers<[1], [0], [0], [1], [0, 0, 1, 1], [], []>} : vector<2x32xf32>, vector<32x128xf32>, vector<2x128xf32> -> vector<2x128xf32>
    %cst_166 = arith.constant dense<0.000000e+00> : vector<2x128xf32>
    %742 = tpu.matmul %699, %572, %cst_166 {dimension_numbers = #tpu.dot_dimension_numbers<[1], [0], [0], [1], [0, 0, 1, 1], [], []>} : vector<2x32xf32>, vector<32x128xf32>, vector<2x128xf32> -> vector<2x128xf32>
    %743 = arith.addf %741, %742 : vector<2x128xf32>
    %744 = vector.broadcast %568 : vector<1x128xf32> to vector<2x128xf32>
    %745 = arith.addf %743, %744 : vector<2x128xf32>
    %746 = vector.extract_strided_slice %3 {offsets = [0, 2], sizes = [2, 1], strides = [1, 1]} : vector<2x8xf32> to vector<2x1xf32>
    %747 = arith.negf %745 : vector<2x128xf32>
    %748 = math.exp %747 : vector<2x128xf32>
    %cst_167 = arith.constant 1.000000e+00 : f32
    %749 = vector.broadcast %cst_167 : f32 to vector<2x128xf32>
    %750 = arith.addf %749, %748 : vector<2x128xf32>
    %751 = arith.divf %749, %750 : vector<2x128xf32>
    %752 = math.tanh %745 : vector<2x128xf32>
    %753 = vector.extract_strided_slice %751 {offsets = [0, 0], sizes = [2, 32], strides = [1, 1]} : vector<2x128xf32> to vector<2x32xf32>
    %754 = vector.extract_strided_slice %751 {offsets = [0, 32], sizes = [2, 32], strides = [1, 1]} : vector<2x128xf32> to vector<2x32xf32>
    %755 = vector.extract_strided_slice %752 {offsets = [0, 64], sizes = [2, 32], strides = [1, 1]} : vector<2x128xf32> to vector<2x32xf32>
    %756 = vector.extract_strided_slice %751 {offsets = [0, 96], sizes = [2, 32], strides = [1, 1]} : vector<2x128xf32> to vector<2x32xf32>
    %757 = arith.mulf %754, %702 : vector<2x32xf32>
    %758 = arith.mulf %753, %755 : vector<2x32xf32>
    %759 = arith.addf %757, %758 : vector<2x32xf32>
    %760 = math.tanh %759 : vector<2x32xf32>
    %761 = arith.mulf %756, %760 : vector<2x32xf32>
    %cst_168 = arith.constant 5.000000e-01 : f32
    %762 = vector.broadcast %cst_168 : f32 to vector<2x1xf32>
    %763 = arith.cmpf ogt, %746, %762 : vector<2x1xf32>
    %764 = vector.shape_cast %763 : vector<2x1xi1> to vector<2x1xi1>
    %765 = vector.broadcast %764 : vector<2x1xi1> to vector<2x32xi1>
    %766 = arith.select %765, %761, %699 : vector<2x32xi1>, vector<2x32xf32>
    %767 = vector.shape_cast %763 : vector<2x1xi1> to vector<2x1xi1>
    %768 = vector.broadcast %767 : vector<2x1xi1> to vector<2x32xi1>
    %769 = arith.select %768, %759, %702 : vector<2x32xi1>, vector<2x32xf32>
    %cst_169 = arith.constant 0.000000e+00 : f32
    %770 = vector.shape_cast %763 : vector<2x1xi1> to vector<2x1xi1>
    %771 = vector.broadcast %770 : vector<2x1xi1> to vector<2x32xi1>
    %772 = vector.broadcast %cst_169 : f32 to vector<2x32xf32>
    %773 = arith.select %771, %761, %772 : vector<2x32xi1>, vector<2x32xf32>
    %c0_170 = arith.constant 0 : index
    %c2_171 = arith.constant 2 : index
    %c0_172 = arith.constant 0 : index
    %774 = vector.load %arg15[%c0_170, %c2_171, %c0_172] : memref<2x8x32xf32, #tpu.memory_space<vmem>>, vector<2x1x32xf32>
    %775 = vector.shape_cast %774 : vector<2x1x32xf32> to vector<2x32xf32>
    %776 = vector.shape_cast %773 : vector<2x32xf32> to vector<2x1x32xf32>
    tpu.vector_store %arg15[%c0_170, %c2_171, %c0_172], %776 {strides = array<i32>} : memref<2x8x32xf32, #tpu.memory_space<vmem>>, vector<2x1x32xf32>,
    %777 = vector.extract_strided_slice %3 {offsets = [0, 3], sizes = [2, 1], strides = [1, 1]} : vector<2x8xf32> to vector<2x1xf32>
    %778 = arith.negf %740 : vector<2x128xf32>
    %779 = math.exp %778 : vector<2x128xf32>
    %cst_173 = arith.constant 1.000000e+00 : f32
    %780 = vector.broadcast %cst_173 : f32 to vector<2x128xf32>
    %781 = arith.addf %780, %779 : vector<2x128xf32>
    %782 = arith.divf %780, %781 : vector<2x128xf32>
    %783 = math.tanh %740 : vector<2x128xf32>
    %784 = vector.extract_strided_slice %782 {offsets = [0, 0], sizes = [2, 32], strides = [1, 1]} : vector<2x128xf32> to vector<2x32xf32>
    %785 = vector.extract_strided_slice %782 {offsets = [0, 32], sizes = [2, 32], strides = [1, 1]} : vector<2x128xf32> to vector<2x32xf32>
    %786 = vector.extract_strided_slice %783 {offsets = [0, 64], sizes = [2, 32], strides = [1, 1]} : vector<2x128xf32> to vector<2x32xf32>
    %787 = vector.extract_strided_slice %782 {offsets = [0, 96], sizes = [2, 32], strides = [1, 1]} : vector<2x128xf32> to vector<2x32xf32>
    %788 = arith.mulf %785, %733 : vector<2x32xf32>
    %789 = arith.mulf %784, %786 : vector<2x32xf32>
    %790 = arith.addf %788, %789 : vector<2x32xf32>
    %791 = math.tanh %790 : vector<2x32xf32>
    %792 = arith.mulf %787, %791 : vector<2x32xf32>
    %cst_174 = arith.constant 5.000000e-01 : f32
    %793 = vector.broadcast %cst_174 : f32 to vector<2x1xf32>
    %794 = arith.cmpf ogt, %777, %793 : vector<2x1xf32>
    %795 = vector.shape_cast %794 : vector<2x1xi1> to vector<2x1xi1>
    %796 = vector.broadcast %795 : vector<2x1xi1> to vector<2x32xi1>
    %797 = arith.select %796, %792, %730 : vector<2x32xi1>, vector<2x32xf32>
    %798 = vector.shape_cast %794 : vector<2x1xi1> to vector<2x1xi1>
    %799 = vector.broadcast %798 : vector<2x1xi1> to vector<2x32xi1>
    %800 = arith.select %799, %790, %733 : vector<2x32xi1>, vector<2x32xf32>
    %cst_175 = arith.constant 0.000000e+00 : f32
    %801 = vector.shape_cast %794 : vector<2x1xi1> to vector<2x1xi1>
    %802 = vector.broadcast %801 : vector<2x1xi1> to vector<2x32xi1>
    %803 = vector.broadcast %cst_175 : f32 to vector<2x32xf32>
    %804 = arith.select %802, %792, %803 : vector<2x32xi1>, vector<2x32xf32>
    %805 = vector.extract_strided_slice %20 {offsets = [8, 0], sizes = [2, 128], strides = [1, 1]} : vector<16x128xf32> to vector<2x128xf32>
    %cst_176 = arith.constant dense<0.000000e+00> : vector<2x128xf32>
    %806 = tpu.matmul %797, %570, %cst_176 {dimension_numbers = #tpu.dot_dimension_numbers<[1], [0], [0], [1], [0, 0, 1, 1], [], []>} : vector<2x32xf32>, vector<32x128xf32>, vector<2x128xf32> -> vector<2x128xf32>
    %807 = arith.addf %805, %806 : vector<2x128xf32>
    %cst_177 = arith.constant dense<0.000000e+00> : vector<2x128xf32>
    %808 = tpu.matmul %804, %566, %cst_177 {dimension_numbers = #tpu.dot_dimension_numbers<[1], [0], [0], [1], [0, 0, 1, 1], [], []>} : vector<2x32xf32>, vector<32x128xf32>, vector<2x128xf32> -> vector<2x128xf32>
    %cst_178 = arith.constant dense<0.000000e+00> : vector<2x128xf32>
    %809 = tpu.matmul %766, %572, %cst_178 {dimension_numbers = #tpu.dot_dimension_numbers<[1], [0], [0], [1], [0, 0, 1, 1], [], []>} : vector<2x32xf32>, vector<32x128xf32>, vector<2x128xf32> -> vector<2x128xf32>
    %810 = arith.addf %808, %809 : vector<2x128xf32>
    %811 = vector.broadcast %568 : vector<1x128xf32> to vector<2x128xf32>
    %812 = arith.addf %810, %811 : vector<2x128xf32>
    %813 = vector.extract_strided_slice %3 {offsets = [0, 3], sizes = [2, 1], strides = [1, 1]} : vector<2x8xf32> to vector<2x1xf32>
    %814 = arith.negf %812 : vector<2x128xf32>
    %815 = math.exp %814 : vector<2x128xf32>
    %cst_179 = arith.constant 1.000000e+00 : f32
    %816 = vector.broadcast %cst_179 : f32 to vector<2x128xf32>
    %817 = arith.addf %816, %815 : vector<2x128xf32>
    %818 = arith.divf %816, %817 : vector<2x128xf32>
    %819 = math.tanh %812 : vector<2x128xf32>
    %820 = vector.extract_strided_slice %818 {offsets = [0, 0], sizes = [2, 32], strides = [1, 1]} : vector<2x128xf32> to vector<2x32xf32>
    %821 = vector.extract_strided_slice %818 {offsets = [0, 32], sizes = [2, 32], strides = [1, 1]} : vector<2x128xf32> to vector<2x32xf32>
    %822 = vector.extract_strided_slice %819 {offsets = [0, 64], sizes = [2, 32], strides = [1, 1]} : vector<2x128xf32> to vector<2x32xf32>
    %823 = vector.extract_strided_slice %818 {offsets = [0, 96], sizes = [2, 32], strides = [1, 1]} : vector<2x128xf32> to vector<2x32xf32>
    %824 = arith.mulf %821, %769 : vector<2x32xf32>
    %825 = arith.mulf %820, %822 : vector<2x32xf32>
    %826 = arith.addf %824, %825 : vector<2x32xf32>
    %827 = math.tanh %826 : vector<2x32xf32>
    %828 = arith.mulf %823, %827 : vector<2x32xf32>
    %cst_180 = arith.constant 5.000000e-01 : f32
    %829 = vector.broadcast %cst_180 : f32 to vector<2x1xf32>
    %830 = arith.cmpf ogt, %813, %829 : vector<2x1xf32>
    %831 = vector.shape_cast %830 : vector<2x1xi1> to vector<2x1xi1>
    %832 = vector.broadcast %831 : vector<2x1xi1> to vector<2x32xi1>
    %833 = arith.select %832, %828, %766 : vector<2x32xi1>, vector<2x32xf32>
    %834 = vector.shape_cast %830 : vector<2x1xi1> to vector<2x1xi1>
    %835 = vector.broadcast %834 : vector<2x1xi1> to vector<2x32xi1>
    %836 = arith.select %835, %826, %769 : vector<2x32xi1>, vector<2x32xf32>
    %cst_181 = arith.constant 0.000000e+00 : f32
    %837 = vector.shape_cast %830 : vector<2x1xi1> to vector<2x1xi1>
    %838 = vector.broadcast %837 : vector<2x1xi1> to vector<2x32xi1>
    %839 = vector.broadcast %cst_181 : f32 to vector<2x32xf32>
    %840 = arith.select %838, %828, %839 : vector<2x32xi1>, vector<2x32xf32>
    %c0_182 = arith.constant 0 : index
    %c3_183 = arith.constant 3 : index
    %c0_184 = arith.constant 0 : index
    %841 = vector.load %arg15[%c0_182, %c3_183, %c0_184] : memref<2x8x32xf32, #tpu.memory_space<vmem>>, vector<2x1x32xf32>
    %842 = vector.shape_cast %841 : vector<2x1x32xf32> to vector<2x32xf32>
    %843 = vector.shape_cast %840 : vector<2x32xf32> to vector<2x1x32xf32>
    tpu.vector_store %arg15[%c0_182, %c3_183, %c0_184], %843 {strides = array<i32>} : memref<2x8x32xf32, #tpu.memory_space<vmem>>, vector<2x1x32xf32>,
    %844 = vector.extract_strided_slice %3 {offsets = [0, 4], sizes = [2, 1], strides = [1, 1]} : vector<2x8xf32> to vector<2x1xf32>
    %845 = arith.negf %807 : vector<2x128xf32>
    %846 = math.exp %845 : vector<2x128xf32>
    %cst_185 = arith.constant 1.000000e+00 : f32
    %847 = vector.broadcast %cst_185 : f32 to vector<2x128xf32>
    %848 = arith.addf %847, %846 : vector<2x128xf32>
    %849 = arith.divf %847, %848 : vector<2x128xf32>
    %850 = math.tanh %807 : vector<2x128xf32>
    %851 = vector.extract_strided_slice %849 {offsets = [0, 0], sizes = [2, 32], strides = [1, 1]} : vector<2x128xf32> to vector<2x32xf32>
    %852 = vector.extract_strided_slice %849 {offsets = [0, 32], sizes = [2, 32], strides = [1, 1]} : vector<2x128xf32> to vector<2x32xf32>
    %853 = vector.extract_strided_slice %850 {offsets = [0, 64], sizes = [2, 32], strides = [1, 1]} : vector<2x128xf32> to vector<2x32xf32>
    %854 = vector.extract_strided_slice %849 {offsets = [0, 96], sizes = [2, 32], strides = [1, 1]} : vector<2x128xf32> to vector<2x32xf32>
    %855 = arith.mulf %852, %800 : vector<2x32xf32>
    %856 = arith.mulf %851, %853 : vector<2x32xf32>
    %857 = arith.addf %855, %856 : vector<2x32xf32>
    %858 = math.tanh %857 : vector<2x32xf32>
    %859 = arith.mulf %854, %858 : vector<2x32xf32>
    %cst_186 = arith.constant 5.000000e-01 : f32
    %860 = vector.broadcast %cst_186 : f32 to vector<2x1xf32>
    %861 = arith.cmpf ogt, %844, %860 : vector<2x1xf32>
    %862 = vector.shape_cast %861 : vector<2x1xi1> to vector<2x1xi1>
    %863 = vector.broadcast %862 : vector<2x1xi1> to vector<2x32xi1>
    %864 = arith.select %863, %859, %797 : vector<2x32xi1>, vector<2x32xf32>
    %865 = vector.shape_cast %861 : vector<2x1xi1> to vector<2x1xi1>
    %866 = vector.broadcast %865 : vector<2x1xi1> to vector<2x32xi1>
    %867 = arith.select %866, %857, %800 : vector<2x32xi1>, vector<2x32xf32>
    %cst_187 = arith.constant 0.000000e+00 : f32
    %868 = vector.shape_cast %861 : vector<2x1xi1> to vector<2x1xi1>
    %869 = vector.broadcast %868 : vector<2x1xi1> to vector<2x32xi1>
    %870 = vector.broadcast %cst_187 : f32 to vector<2x32xf32>
    %871 = arith.select %869, %859, %870 : vector<2x32xi1>, vector<2x32xf32>
    %872 = vector.extract_strided_slice %20 {offsets = [10, 0], sizes = [2, 128], strides = [1, 1]} : vector<16x128xf32> to vector<2x128xf32>
    %cst_188 = arith.constant dense<0.000000e+00> : vector<2x128xf32>
    %873 = tpu.matmul %864, %570, %cst_188 {dimension_numbers = #tpu.dot_dimension_numbers<[1], [0], [0], [1], [0, 0, 1, 1], [], []>} : vector<2x32xf32>, vector<32x128xf32>, vector<2x128xf32> -> vector<2x128xf32>
    %874 = arith.addf %872, %873 : vector<2x128xf32>
    %cst_189 = arith.constant dense<0.000000e+00> : vector<2x128xf32>
    %875 = tpu.matmul %871, %566, %cst_189 {dimension_numbers = #tpu.dot_dimension_numbers<[1], [0], [0], [1], [0, 0, 1, 1], [], []>} : vector<2x32xf32>, vector<32x128xf32>, vector<2x128xf32> -> vector<2x128xf32>
    %cst_190 = arith.constant dense<0.000000e+00> : vector<2x128xf32>
    %876 = tpu.matmul %833, %572, %cst_190 {dimension_numbers = #tpu.dot_dimension_numbers<[1], [0], [0], [1], [0, 0, 1, 1], [], []>} : vector<2x32xf32>, vector<32x128xf32>, vector<2x128xf32> -> vector<2x128xf32>
    %877 = arith.addf %875, %876 : vector<2x128xf32>
    %878 = vector.broadcast %568 : vector<1x128xf32> to vector<2x128xf32>
    %879 = arith.addf %877, %878 : vector<2x128xf32>
    %880 = vector.extract_strided_slice %3 {offsets = [0, 4], sizes = [2, 1], strides = [1, 1]} : vector<2x8xf32> to vector<2x1xf32>
    %881 = arith.negf %879 : vector<2x128xf32>
    %882 = math.exp %881 : vector<2x128xf32>
    %cst_191 = arith.constant 1.000000e+00 : f32
    %883 = vector.broadcast %cst_191 : f32 to vector<2x128xf32>
    %884 = arith.addf %883, %882 : vector<2x128xf32>
    %885 = arith.divf %883, %884 : vector<2x128xf32>
    %886 = math.tanh %879 : vector<2x128xf32>
    %887 = vector.extract_strided_slice %885 {offsets = [0, 0], sizes = [2, 32], strides = [1, 1]} : vector<2x128xf32> to vector<2x32xf32>
    %888 = vector.extract_strided_slice %885 {offsets = [0, 32], sizes = [2, 32], strides = [1, 1]} : vector<2x128xf32> to vector<2x32xf32>
    %889 = vector.extract_strided_slice %886 {offsets = [0, 64], sizes = [2, 32], strides = [1, 1]} : vector<2x128xf32> to vector<2x32xf32>
    %890 = vector.extract_strided_slice %885 {offsets = [0, 96], sizes = [2, 32], strides = [1, 1]} : vector<2x128xf32> to vector<2x32xf32>
    %891 = arith.mulf %888, %836 : vector<2x32xf32>
    %892 = arith.mulf %887, %889 : vector<2x32xf32>
    %893 = arith.addf %891, %892 : vector<2x32xf32>
    %894 = math.tanh %893 : vector<2x32xf32>
    %895 = arith.mulf %890, %894 : vector<2x32xf32>
    %cst_192 = arith.constant 5.000000e-01 : f32
    %896 = vector.broadcast %cst_192 : f32 to vector<2x1xf32>
    %897 = arith.cmpf ogt, %880, %896 : vector<2x1xf32>
    %898 = vector.shape_cast %897 : vector<2x1xi1> to vector<2x1xi1>
    %899 = vector.broadcast %898 : vector<2x1xi1> to vector<2x32xi1>
    %900 = arith.select %899, %895, %833 : vector<2x32xi1>, vector<2x32xf32>
    %901 = vector.shape_cast %897 : vector<2x1xi1> to vector<2x1xi1>
    %902 = vector.broadcast %901 : vector<2x1xi1> to vector<2x32xi1>
    %903 = arith.select %902, %893, %836 : vector<2x32xi1>, vector<2x32xf32>
    %cst_193 = arith.constant 0.000000e+00 : f32
    %904 = vector.shape_cast %897 : vector<2x1xi1> to vector<2x1xi1>
    %905 = vector.broadcast %904 : vector<2x1xi1> to vector<2x32xi1>
    %906 = vector.broadcast %cst_193 : f32 to vector<2x32xf32>
    %907 = arith.select %905, %895, %906 : vector<2x32xi1>, vector<2x32xf32>
    %c0_194 = arith.constant 0 : index
    %c4_195 = arith.constant 4 : index
    %c0_196 = arith.constant 0 : index
    %908 = vector.load %arg15[%c0_194, %c4_195, %c0_196] : memref<2x8x32xf32, #tpu.memory_space<vmem>>, vector<2x1x32xf32>
    %909 = vector.shape_cast %908 : vector<2x1x32xf32> to vector<2x32xf32>
    %910 = vector.shape_cast %907 : vector<2x32xf32> to vector<2x1x32xf32>
    tpu.vector_store %arg15[%c0_194, %c4_195, %c0_196], %910 {strides = array<i32>} : memref<2x8x32xf32, #tpu.memory_space<vmem>>, vector<2x1x32xf32>,
    %911 = vector.extract_strided_slice %3 {offsets = [0, 5], sizes = [2, 1], strides = [1, 1]} : vector<2x8xf32> to vector<2x1xf32>
    %912 = arith.negf %874 : vector<2x128xf32>
    %913 = math.exp %912 : vector<2x128xf32>
    %cst_197 = arith.constant 1.000000e+00 : f32
    %914 = vector.broadcast %cst_197 : f32 to vector<2x128xf32>
    %915 = arith.addf %914, %913 : vector<2x128xf32>
    %916 = arith.divf %914, %915 : vector<2x128xf32>
    %917 = math.tanh %874 : vector<2x128xf32>
    %918 = vector.extract_strided_slice %916 {offsets = [0, 0], sizes = [2, 32], strides = [1, 1]} : vector<2x128xf32> to vector<2x32xf32>
    %919 = vector.extract_strided_slice %916 {offsets = [0, 32], sizes = [2, 32], strides = [1, 1]} : vector<2x128xf32> to vector<2x32xf32>
    %920 = vector.extract_strided_slice %917 {offsets = [0, 64], sizes = [2, 32], strides = [1, 1]} : vector<2x128xf32> to vector<2x32xf32>
    %921 = vector.extract_strided_slice %916 {offsets = [0, 96], sizes = [2, 32], strides = [1, 1]} : vector<2x128xf32> to vector<2x32xf32>
    %922 = arith.mulf %919, %867 : vector<2x32xf32>
    %923 = arith.mulf %918, %920 : vector<2x32xf32>
    %924 = arith.addf %922, %923 : vector<2x32xf32>
    %925 = math.tanh %924 : vector<2x32xf32>
    %926 = arith.mulf %921, %925 : vector<2x32xf32>
    %cst_198 = arith.constant 5.000000e-01 : f32
    %927 = vector.broadcast %cst_198 : f32 to vector<2x1xf32>
    %928 = arith.cmpf ogt, %911, %927 : vector<2x1xf32>
    %929 = vector.shape_cast %928 : vector<2x1xi1> to vector<2x1xi1>
    %930 = vector.broadcast %929 : vector<2x1xi1> to vector<2x32xi1>
    %931 = arith.select %930, %926, %864 : vector<2x32xi1>, vector<2x32xf32>
    %932 = vector.shape_cast %928 : vector<2x1xi1> to vector<2x1xi1>
    %933 = vector.broadcast %932 : vector<2x1xi1> to vector<2x32xi1>
    %934 = arith.select %933, %924, %867 : vector<2x32xi1>, vector<2x32xf32>
    %cst_199 = arith.constant 0.000000e+00 : f32
    %935 = vector.shape_cast %928 : vector<2x1xi1> to vector<2x1xi1>
    %936 = vector.broadcast %935 : vector<2x1xi1> to vector<2x32xi1>
    %937 = vector.broadcast %cst_199 : f32 to vector<2x32xf32>
    %938 = arith.select %936, %926, %937 : vector<2x32xi1>, vector<2x32xf32>
    %939 = vector.extract_strided_slice %20 {offsets = [12, 0], sizes = [2, 128], strides = [1, 1]} : vector<16x128xf32> to vector<2x128xf32>
    %cst_200 = arith.constant dense<0.000000e+00> : vector<2x128xf32>
    %940 = tpu.matmul %931, %570, %cst_200 {dimension_numbers = #tpu.dot_dimension_numbers<[1], [0], [0], [1], [0, 0, 1, 1], [], []>} : vector<2x32xf32>, vector<32x128xf32>, vector<2x128xf32> -> vector<2x128xf32>
    %941 = arith.addf %939, %940 : vector<2x128xf32>
    %cst_201 = arith.constant dense<0.000000e+00> : vector<2x128xf32>
    %942 = tpu.matmul %938, %566, %cst_201 {dimension_numbers = #tpu.dot_dimension_numbers<[1], [0], [0], [1], [0, 0, 1, 1], [], []>} : vector<2x32xf32>, vector<32x128xf32>, vector<2x128xf32> -> vector<2x128xf32>
    %cst_202 = arith.constant dense<0.000000e+00> : vector<2x128xf32>
    %943 = tpu.matmul %900, %572, %cst_202 {dimension_numbers = #tpu.dot_dimension_numbers<[1], [0], [0], [1], [0, 0, 1, 1], [], []>} : vector<2x32xf32>, vector<32x128xf32>, vector<2x128xf32> -> vector<2x128xf32>
    %944 = arith.addf %942, %943 : vector<2x128xf32>
    %945 = vector.broadcast %568 : vector<1x128xf32> to vector<2x128xf32>
    %946 = arith.addf %944, %945 : vector<2x128xf32>
    %947 = vector.extract_strided_slice %3 {offsets = [0, 5], sizes = [2, 1], strides = [1, 1]} : vector<2x8xf32> to vector<2x1xf32>
    %948 = arith.negf %946 : vector<2x128xf32>
    %949 = math.exp %948 : vector<2x128xf32>
    %cst_203 = arith.constant 1.000000e+00 : f32
    %950 = vector.broadcast %cst_203 : f32 to vector<2x128xf32>
    %951 = arith.addf %950, %949 : vector<2x128xf32>
    %952 = arith.divf %950, %951 : vector<2x128xf32>
    %953 = math.tanh %946 : vector<2x128xf32>
    %954 = vector.extract_strided_slice %952 {offsets = [0, 0], sizes = [2, 32], strides = [1, 1]} : vector<2x128xf32> to vector<2x32xf32>
    %955 = vector.extract_strided_slice %952 {offsets = [0, 32], sizes = [2, 32], strides = [1, 1]} : vector<2x128xf32> to vector<2x32xf32>
    %956 = vector.extract_strided_slice %953 {offsets = [0, 64], sizes = [2, 32], strides = [1, 1]} : vector<2x128xf32> to vector<2x32xf32>
    %957 = vector.extract_strided_slice %952 {offsets = [0, 96], sizes = [2, 32], strides = [1, 1]} : vector<2x128xf32> to vector<2x32xf32>
    %958 = arith.mulf %955, %903 : vector<2x32xf32>
    %959 = arith.mulf %954, %956 : vector<2x32xf32>
    %960 = arith.addf %958, %959 : vector<2x32xf32>
    %961 = math.tanh %960 : vector<2x32xf32>
    %962 = arith.mulf %957, %961 : vector<2x32xf32>
    %cst_204 = arith.constant 5.000000e-01 : f32
    %963 = vector.broadcast %cst_204 : f32 to vector<2x1xf32>
    %964 = arith.cmpf ogt, %947, %963 : vector<2x1xf32>
    %965 = vector.shape_cast %964 : vector<2x1xi1> to vector<2x1xi1>
    %966 = vector.broadcast %965 : vector<2x1xi1> to vector<2x32xi1>
    %967 = arith.select %966, %962, %900 : vector<2x32xi1>, vector<2x32xf32>
    %968 = vector.shape_cast %964 : vector<2x1xi1> to vector<2x1xi1>
    %969 = vector.broadcast %968 : vector<2x1xi1> to vector<2x32xi1>
    %970 = arith.select %969, %960, %903 : vector<2x32xi1>, vector<2x32xf32>
    %cst_205 = arith.constant 0.000000e+00 : f32
    %971 = vector.shape_cast %964 : vector<2x1xi1> to vector<2x1xi1>
    %972 = vector.broadcast %971 : vector<2x1xi1> to vector<2x32xi1>
    %973 = vector.broadcast %cst_205 : f32 to vector<2x32xf32>
    %974 = arith.select %972, %962, %973 : vector<2x32xi1>, vector<2x32xf32>
    %c0_206 = arith.constant 0 : index
    %c5_207 = arith.constant 5 : index
    %c0_208 = arith.constant 0 : index
    %975 = vector.load %arg15[%c0_206, %c5_207, %c0_208] : memref<2x8x32xf32, #tpu.memory_space<vmem>>, vector<2x1x32xf32>
    %976 = vector.shape_cast %975 : vector<2x1x32xf32> to vector<2x32xf32>
    %977 = vector.shape_cast %974 : vector<2x32xf32> to vector<2x1x32xf32>
    tpu.vector_store %arg15[%c0_206, %c5_207, %c0_208], %977 {strides = array<i32>} : memref<2x8x32xf32, #tpu.memory_space<vmem>>, vector<2x1x32xf32>,
    %978 = vector.extract_strided_slice %3 {offsets = [0, 6], sizes = [2, 1], strides = [1, 1]} : vector<2x8xf32> to vector<2x1xf32>
    %979 = arith.negf %941 : vector<2x128xf32>
    %980 = math.exp %979 : vector<2x128xf32>
    %cst_209 = arith.constant 1.000000e+00 : f32
    %981 = vector.broadcast %cst_209 : f32 to vector<2x128xf32>
    %982 = arith.addf %981, %980 : vector<2x128xf32>
    %983 = arith.divf %981, %982 : vector<2x128xf32>
    %984 = math.tanh %941 : vector<2x128xf32>
    %985 = vector.extract_strided_slice %983 {offsets = [0, 0], sizes = [2, 32], strides = [1, 1]} : vector<2x128xf32> to vector<2x32xf32>
    %986 = vector.extract_strided_slice %983 {offsets = [0, 32], sizes = [2, 32], strides = [1, 1]} : vector<2x128xf32> to vector<2x32xf32>
    %987 = vector.extract_strided_slice %984 {offsets = [0, 64], sizes = [2, 32], strides = [1, 1]} : vector<2x128xf32> to vector<2x32xf32>
    %988 = vector.extract_strided_slice %983 {offsets = [0, 96], sizes = [2, 32], strides = [1, 1]} : vector<2x128xf32> to vector<2x32xf32>
    %989 = arith.mulf %986, %934 : vector<2x32xf32>
    %990 = arith.mulf %985, %987 : vector<2x32xf32>
    %991 = arith.addf %989, %990 : vector<2x32xf32>
    %992 = math.tanh %991 : vector<2x32xf32>
    %993 = arith.mulf %988, %992 : vector<2x32xf32>
    %cst_210 = arith.constant 5.000000e-01 : f32
    %994 = vector.broadcast %cst_210 : f32 to vector<2x1xf32>
    %995 = arith.cmpf ogt, %978, %994 : vector<2x1xf32>
    %996 = vector.shape_cast %995 : vector<2x1xi1> to vector<2x1xi1>
    %997 = vector.broadcast %996 : vector<2x1xi1> to vector<2x32xi1>
    %998 = arith.select %997, %993, %931 : vector<2x32xi1>, vector<2x32xf32>
    %999 = vector.shape_cast %995 : vector<2x1xi1> to vector<2x1xi1>
    %1000 = vector.broadcast %999 : vector<2x1xi1> to vector<2x32xi1>
    %1001 = arith.select %1000, %991, %934 : vector<2x32xi1>, vector<2x32xf32>
    %cst_211 = arith.constant 0.000000e+00 : f32
    %1002 = vector.shape_cast %995 : vector<2x1xi1> to vector<2x1xi1>
    %1003 = vector.broadcast %1002 : vector<2x1xi1> to vector<2x32xi1>
    %1004 = vector.broadcast %cst_211 : f32 to vector<2x32xf32>
    %1005 = arith.select %1003, %993, %1004 : vector<2x32xi1>, vector<2x32xf32>
    %1006 = vector.extract_strided_slice %20 {offsets = [14, 0], sizes = [2, 128], strides = [1, 1]} : vector<16x128xf32> to vector<2x128xf32>
    %cst_212 = arith.constant dense<0.000000e+00> : vector<2x128xf32>
    %1007 = tpu.matmul %998, %570, %cst_212 {dimension_numbers = #tpu.dot_dimension_numbers<[1], [0], [0], [1], [0, 0, 1, 1], [], []>} : vector<2x32xf32>, vector<32x128xf32>, vector<2x128xf32> -> vector<2x128xf32>
    %1008 = arith.addf %1006, %1007 : vector<2x128xf32>
    %cst_213 = arith.constant dense<0.000000e+00> : vector<2x128xf32>
    %1009 = tpu.matmul %1005, %566, %cst_213 {dimension_numbers = #tpu.dot_dimension_numbers<[1], [0], [0], [1], [0, 0, 1, 1], [], []>} : vector<2x32xf32>, vector<32x128xf32>, vector<2x128xf32> -> vector<2x128xf32>
    %cst_214 = arith.constant dense<0.000000e+00> : vector<2x128xf32>
    %1010 = tpu.matmul %967, %572, %cst_214 {dimension_numbers = #tpu.dot_dimension_numbers<[1], [0], [0], [1], [0, 0, 1, 1], [], []>} : vector<2x32xf32>, vector<32x128xf32>, vector<2x128xf32> -> vector<2x128xf32>
    %1011 = arith.addf %1009, %1010 : vector<2x128xf32>
    %1012 = vector.broadcast %568 : vector<1x128xf32> to vector<2x128xf32>
    %1013 = arith.addf %1011, %1012 : vector<2x128xf32>
    %1014 = vector.extract_strided_slice %3 {offsets = [0, 6], sizes = [2, 1], strides = [1, 1]} : vector<2x8xf32> to vector<2x1xf32>
    %1015 = arith.negf %1013 : vector<2x128xf32>
    %1016 = math.exp %1015 : vector<2x128xf32>
    %cst_215 = arith.constant 1.000000e+00 : f32
    %1017 = vector.broadcast %cst_215 : f32 to vector<2x128xf32>
    %1018 = arith.addf %1017, %1016 : vector<2x128xf32>
    %1019 = arith.divf %1017, %1018 : vector<2x128xf32>
    %1020 = math.tanh %1013 : vector<2x128xf32>
    %1021 = vector.extract_strided_slice %1019 {offsets = [0, 0], sizes = [2, 32], strides = [1, 1]} : vector<2x128xf32> to vector<2x32xf32>
    %1022 = vector.extract_strided_slice %1019 {offsets = [0, 32], sizes = [2, 32], strides = [1, 1]} : vector<2x128xf32> to vector<2x32xf32>
    %1023 = vector.extract_strided_slice %1020 {offsets = [0, 64], sizes = [2, 32], strides = [1, 1]} : vector<2x128xf32> to vector<2x32xf32>
    %1024 = vector.extract_strided_slice %1019 {offsets = [0, 96], sizes = [2, 32], strides = [1, 1]} : vector<2x128xf32> to vector<2x32xf32>
    %1025 = arith.mulf %1022, %970 : vector<2x32xf32>
    %1026 = arith.mulf %1021, %1023 : vector<2x32xf32>
    %1027 = arith.addf %1025, %1026 : vector<2x32xf32>
    %1028 = math.tanh %1027 : vector<2x32xf32>
    %1029 = arith.mulf %1024, %1028 : vector<2x32xf32>
    %cst_216 = arith.constant 5.000000e-01 : f32
    %1030 = vector.broadcast %cst_216 : f32 to vector<2x1xf32>
    %1031 = arith.cmpf ogt, %1014, %1030 : vector<2x1xf32>
    %1032 = vector.shape_cast %1031 : vector<2x1xi1> to vector<2x1xi1>
    %1033 = vector.broadcast %1032 : vector<2x1xi1> to vector<2x32xi1>
    %1034 = arith.select %1033, %1029, %967 : vector<2x32xi1>, vector<2x32xf32>
    %1035 = vector.shape_cast %1031 : vector<2x1xi1> to vector<2x1xi1>
    %1036 = vector.broadcast %1035 : vector<2x1xi1> to vector<2x32xi1>
    %1037 = arith.select %1036, %1027, %970 : vector<2x32xi1>, vector<2x32xf32>
    %cst_217 = arith.constant 0.000000e+00 : f32
    %1038 = vector.shape_cast %1031 : vector<2x1xi1> to vector<2x1xi1>
    %1039 = vector.broadcast %1038 : vector<2x1xi1> to vector<2x32xi1>
    %1040 = vector.broadcast %cst_217 : f32 to vector<2x32xf32>
    %1041 = arith.select %1039, %1029, %1040 : vector<2x32xi1>, vector<2x32xf32>
    %c0_218 = arith.constant 0 : index
    %c6_219 = arith.constant 6 : index
    %c0_220 = arith.constant 0 : index
    %1042 = vector.load %arg15[%c0_218, %c6_219, %c0_220] : memref<2x8x32xf32, #tpu.memory_space<vmem>>, vector<2x1x32xf32>
    %1043 = vector.shape_cast %1042 : vector<2x1x32xf32> to vector<2x32xf32>
    %1044 = vector.shape_cast %1041 : vector<2x32xf32> to vector<2x1x32xf32>
    tpu.vector_store %arg15[%c0_218, %c6_219, %c0_220], %1044 {strides = array<i32>} : memref<2x8x32xf32, #tpu.memory_space<vmem>>, vector<2x1x32xf32>,
    %1045 = vector.extract_strided_slice %3 {offsets = [0, 7], sizes = [2, 1], strides = [1, 1]} : vector<2x8xf32> to vector<2x1xf32>
    %1046 = arith.negf %1008 : vector<2x128xf32>
    %1047 = math.exp %1046 : vector<2x128xf32>
    %cst_221 = arith.constant 1.000000e+00 : f32
    %1048 = vector.broadcast %cst_221 : f32 to vector<2x128xf32>
    %1049 = arith.addf %1048, %1047 : vector<2x128xf32>
    %1050 = arith.divf %1048, %1049 : vector<2x128xf32>
    %1051 = math.tanh %1008 : vector<2x128xf32>
    %1052 = vector.extract_strided_slice %1050 {offsets = [0, 0], sizes = [2, 32], strides = [1, 1]} : vector<2x128xf32> to vector<2x32xf32>
    %1053 = vector.extract_strided_slice %1050 {offsets = [0, 32], sizes = [2, 32], strides = [1, 1]} : vector<2x128xf32> to vector<2x32xf32>
    %1054 = vector.extract_strided_slice %1051 {offsets = [0, 64], sizes = [2, 32], strides = [1, 1]} : vector<2x128xf32> to vector<2x32xf32>
    %1055 = vector.extract_strided_slice %1050 {offsets = [0, 96], sizes = [2, 32], strides = [1, 1]} : vector<2x128xf32> to vector<2x32xf32>
    %1056 = arith.mulf %1053, %1001 : vector<2x32xf32>
    %1057 = arith.mulf %1052, %1054 : vector<2x32xf32>
    %1058 = arith.addf %1056, %1057 : vector<2x32xf32>
    %1059 = math.tanh %1058 : vector<2x32xf32>
    %1060 = arith.mulf %1055, %1059 : vector<2x32xf32>
    %cst_222 = arith.constant 5.000000e-01 : f32
    %1061 = vector.broadcast %cst_222 : f32 to vector<2x1xf32>
    %1062 = arith.cmpf ogt, %1045, %1061 : vector<2x1xf32>
    %cst_223 = arith.constant 0.000000e+00 : f32
    %1063 = vector.shape_cast %1062 : vector<2x1xi1> to vector<2x1xi1>
    %1064 = vector.broadcast %1063 : vector<2x1xi1> to vector<2x32xi1>
    %1065 = vector.broadcast %cst_223 : f32 to vector<2x32xf32>
    %1066 = arith.select %1064, %1060, %1065 : vector<2x32xi1>, vector<2x32xf32>
    %cst_224 = arith.constant dense<0.000000e+00> : vector<2x128xf32>
    %1067 = tpu.matmul %1066, %566, %cst_224 {dimension_numbers = #tpu.dot_dimension_numbers<[1], [0], [0], [1], [0, 0, 1, 1], [], []>} : vector<2x32xf32>, vector<32x128xf32>, vector<2x128xf32> -> vector<2x128xf32>
    %cst_225 = arith.constant dense<0.000000e+00> : vector<2x128xf32>
    %1068 = tpu.matmul %1034, %572, %cst_225 {dimension_numbers = #tpu.dot_dimension_numbers<[1], [0], [0], [1], [0, 0, 1, 1], [], []>} : vector<2x32xf32>, vector<32x128xf32>, vector<2x128xf32> -> vector<2x128xf32>
    %1069 = arith.addf %1067, %1068 : vector<2x128xf32>
    %1070 = vector.broadcast %568 : vector<1x128xf32> to vector<2x128xf32>
    %1071 = arith.addf %1069, %1070 : vector<2x128xf32>
    %1072 = vector.extract_strided_slice %3 {offsets = [0, 7], sizes = [2, 1], strides = [1, 1]} : vector<2x8xf32> to vector<2x1xf32>
    %1073 = arith.negf %1071 : vector<2x128xf32>
    %1074 = math.exp %1073 : vector<2x128xf32>
    %cst_226 = arith.constant 1.000000e+00 : f32
    %1075 = vector.broadcast %cst_226 : f32 to vector<2x128xf32>
    %1076 = arith.addf %1075, %1074 : vector<2x128xf32>
    %1077 = arith.divf %1075, %1076 : vector<2x128xf32>
    %1078 = math.tanh %1071 : vector<2x128xf32>
    %1079 = vector.extract_strided_slice %1077 {offsets = [0, 0], sizes = [2, 32], strides = [1, 1]} : vector<2x128xf32> to vector<2x32xf32>
    %1080 = vector.extract_strided_slice %1077 {offsets = [0, 32], sizes = [2, 32], strides = [1, 1]} : vector<2x128xf32> to vector<2x32xf32>
    %1081 = vector.extract_strided_slice %1078 {offsets = [0, 64], sizes = [2, 32], strides = [1, 1]} : vector<2x128xf32> to vector<2x32xf32>
    %1082 = vector.extract_strided_slice %1077 {offsets = [0, 96], sizes = [2, 32], strides = [1, 1]} : vector<2x128xf32> to vector<2x32xf32>
    %1083 = arith.mulf %1080, %1037 : vector<2x32xf32>
    %1084 = arith.mulf %1079, %1081 : vector<2x32xf32>
    %1085 = arith.addf %1083, %1084 : vector<2x32xf32>
    %1086 = math.tanh %1085 : vector<2x32xf32>
    %1087 = arith.mulf %1082, %1086 : vector<2x32xf32>
    %cst_227 = arith.constant 5.000000e-01 : f32
    %1088 = vector.broadcast %cst_227 : f32 to vector<2x1xf32>
    %1089 = arith.cmpf ogt, %1072, %1088 : vector<2x1xf32>
    %cst_228 = arith.constant 0.000000e+00 : f32
    %1090 = vector.shape_cast %1089 : vector<2x1xi1> to vector<2x1xi1>
    %1091 = vector.broadcast %1090 : vector<2x1xi1> to vector<2x32xi1>
    %1092 = vector.broadcast %cst_228 : f32 to vector<2x32xf32>
    %1093 = arith.select %1091, %1087, %1092 : vector<2x32xi1>, vector<2x32xf32>
    %c0_229 = arith.constant 0 : index
    %c7_230 = arith.constant 7 : index
    %c0_231 = arith.constant 0 : index
    %1094 = vector.load %arg15[%c0_229, %c7_230, %c0_231] : memref<2x8x32xf32, #tpu.memory_space<vmem>>, vector<2x1x32xf32>
    %1095 = vector.shape_cast %1094 : vector<2x1x32xf32> to vector<2x32xf32>
    %1096 = vector.shape_cast %1093 : vector<2x32xf32> to vector<2x1x32xf32>
    tpu.vector_store %arg15[%c0_229, %c7_230, %c0_231], %1096 {strides = array<i32>} : memref<2x8x32xf32, #tpu.memory_space<vmem>>, vector<2x1x32xf32>,
    %c0_232 = arith.constant 0 : index
    %c0_233 = arith.constant 0 : index
    %1097 = vector.load %arg8[%c0_232, %c0_233] : memref<64x32xf32, #tpu.memory_space<vmem>>, vector<64x32xf32>
    %c0_234 = arith.constant 0 : index
    %c0_235 = arith.constant 0 : index
    %1098 = vector.load %arg9[%c0_234, %c0_235] : memref<1x32xf32, #tpu.memory_space<vmem>>, vector<1x32xf32>
    %c0_236 = arith.constant 0 : index
    %c0_237 = arith.constant 0 : index
    %1099 = vector.load %arg10[%c0_236, %c0_237] : memref<32x128xf32, #tpu.memory_space<vmem>>, vector<32x128xf32>
    %c0_238 = arith.constant 0 : index
    %c0_239 = arith.constant 0 : index
    %1100 = vector.load %arg11[%c0_238, %c0_239] : memref<1x128xf32, #tpu.memory_space<vmem>>, vector<1x128xf32>
    %c0_240 = arith.constant 0 : index
    %c0_241 = arith.constant 0 : index
    %c0_242 = arith.constant 0 : index
    %1101 = vector.load %arg14[%c0_240, %c0_241, %c0_242] : memref<2x8x32xf32, #tpu.memory_space<vmem>>, vector<1x8x32xf32>
    %1102 = vector.shape_cast %1101 : vector<1x8x32xf32> to vector<8x32xf32>
    %c0_243 = arith.constant 0 : index
    %c0_244 = arith.constant 0 : index
    %c0_245 = arith.constant 0 : index
    %1103 = vector.load %arg15[%c0_243, %c0_244, %c0_245] : memref<2x8x32xf32, #tpu.memory_space<vmem>>, vector<1x8x32xf32>
    %1104 = vector.shape_cast %1103 : vector<1x8x32xf32> to vector<8x32xf32>
    %1105 = tpu.transpose %1104, [1, 0] : vector<8x32xf32> -> vector<32x8xf32>
    %cst_246 = arith.constant dense<0.000000e+00> : vector<8x8xf32>
    %1106 = tpu.matmul %1102, %1105, %cst_246 {dimension_numbers = #tpu.dot_dimension_numbers<[1], [0], [0], [1], [0, 0, 1, 1], [], []>} : vector<8x32xf32>, vector<32x8xf32>, vector<8x8xf32> -> vector<8x8xf32>
    %c0_247 = arith.constant 0 : index
    %c0_248 = arith.constant 0 : index
    %c0_249 = arith.constant 0 : index
    %1107 = vector.load %arg4[%c0_247, %c0_248, %c0_249] : memref<2x8x1xf32, #tpu.memory_space<vmem>>, vector<1x8x1xf32>
    %1108 = vector.shape_cast %1107 : vector<1x8x1xf32> to vector<8x1xf32>
    %cst_250 = arith.constant 5.000000e-01 : f32
    %1109 = vector.broadcast %cst_250 : f32 to vector<8x1xf32>
    %1110 = arith.cmpf ogt, %1108, %1109 : vector<8x1xf32>
    %cst_251 = arith.constant 1.000000e-10 : f32
    %1111 = vector.shape_cast %1110 : vector<8x1xi1> to vector<8x1xi1>
    %1112 = vector.broadcast %1111 : vector<8x1xi1> to vector<8x8xi1>
    %1113 = vector.broadcast %cst_251 : f32 to vector<8x8xf32>
    %1114 = arith.select %1112, %1113, %1106 : vector<8x8xi1>, vector<8x8xf32>
    %cst_252 = arith.constant 0.000000e+00 : f32
    %1115 = vector.broadcast %cst_252 : f32 to vector<8x128xf32>
    %c0_253 = arith.constant 0 : index
    %c0_254 = arith.constant 0 : index
    %c0_255 = arith.constant 0 : index
    %1116 = vector.load %arg12[%c0_253, %c0_254, %c0_255] : memref<2x8x128xf32, #tpu.memory_space<vmem>>, vector<1x8x128xf32>
    %1117 = vector.shape_cast %1116 : vector<1x8x128xf32> to vector<8x128xf32>
    %1118 = vector.shape_cast %1115 : vector<8x128xf32> to vector<1x8x128xf32>
    tpu.vector_store %arg12[%c0_253, %c0_254, %c0_255], %1118 {strides = array<i32>} : memref<2x8x128xf32, #tpu.memory_space<vmem>>, vector<1x8x128xf32>,
    %c0_256 = arith.constant 0 : index
    %c0_257 = arith.constant 0 : index
    %c0_258 = arith.constant 0 : index
    %1119 = vector.load %arg12[%c0_256, %c0_257, %c0_258] : memref<2x8x128xf32, #tpu.memory_space<vmem>>, vector<1x8x8xf32>
    %1120 = vector.shape_cast %1119 : vector<1x8x8xf32> to vector<8x8xf32>
    %1121 = vector.shape_cast %1114 : vector<8x8xf32> to vector<1x8x8xf32>
    tpu.vector_store %arg12[%c0_256, %c0_257, %c0_258], %1121 {strides = array<i32>} : memref<2x8x128xf32, #tpu.memory_space<vmem>>, vector<1x8x8xf32>,
    %cst_259 = arith.constant dense<0xFF800000> : vector<8xf32>
    %1122 = vector.multi_reduction <maximumf>, %1114, %cst_259 [0] : vector<8x8xf32> to vector<8xf32>
    %1123 = vector.shape_cast %1122 : vector<8xf32> to vector<1x8xf32>
    %1124 = vector.broadcast %1123 : vector<1x8xf32> to vector<8x8xf32>
    %1125 = arith.subf %1114, %1124 : vector<8x8xf32>
    %1126 = math.exp %1125 : vector<8x8xf32>
    %cst_260 = arith.constant dense<0.000000e+00> : vector<8xf32>
    %1127 = vector.multi_reduction <add>, %1126, %cst_260 [0] : vector<8x8xf32> to vector<8xf32>
    %1128 = vector.shape_cast %1127 : vector<8xf32> to vector<1x8xf32>
    %1129 = vector.broadcast %1128 : vector<1x8xf32> to vector<8x8xf32>
    %1130 = arith.divf %1126, %1129 : vector<8x8xf32>
    %1131 = tpu.transpose %1130, [1, 0] : vector<8x8xf32> -> vector<8x8xf32>
    %cst_261 = arith.constant dense<0.000000e+00> : vector<8x32xf32>
    %1132 = tpu.matmul %1131, %1102, %cst_261 {dimension_numbers = #tpu.dot_dimension_numbers<[1], [0], [0], [1], [0, 0, 1, 1], [], []>} : vector<8x8xf32>, vector<8x32xf32>, vector<8x32xf32> -> vector<8x32xf32>
    %1133 = vector.extract_strided_slice %1097 {offsets = [0, 0], sizes = [32, 32], strides = [1, 1]} : vector<64x32xf32> to vector<32x32xf32>
    %cst_262 = arith.constant dense<0.000000e+00> : vector<8x32xf32>
    %1134 = tpu.matmul %1104, %1133, %cst_262 {dimension_numbers = #tpu.dot_dimension_numbers<[1], [0], [0], [1], [0, 0, 1, 1], [], []>} : vector<8x32xf32>, vector<32x32xf32>, vector<8x32xf32> -> vector<8x32xf32>
    %1135 = vector.extract_strided_slice %1097 {offsets = [32, 0], sizes = [32, 32], strides = [1, 1]} : vector<64x32xf32> to vector<32x32xf32>
    %cst_263 = arith.constant dense<0.000000e+00> : vector<8x32xf32>
    %1136 = tpu.matmul %1132, %1135, %cst_263 {dimension_numbers = #tpu.dot_dimension_numbers<[1], [0], [0], [1], [0, 0, 1, 1], [], []>} : vector<8x32xf32>, vector<32x32xf32>, vector<8x32xf32> -> vector<8x32xf32>
    %1137 = arith.addf %1134, %1136 : vector<8x32xf32>
    %1138 = vector.broadcast %1098 : vector<1x32xf32> to vector<8x32xf32>
    %1139 = arith.addf %1137, %1138 : vector<8x32xf32>
    %1140 = math.tanh %1139 : vector<8x32xf32>
    %cst_264 = arith.constant dense<0.000000e+00> : vector<8x128xf32>
    %1141 = tpu.matmul %1140, %1099, %cst_264 {dimension_numbers = #tpu.dot_dimension_numbers<[1], [0], [0], [1], [0, 0, 1, 1], [], []>} : vector<8x32xf32>, vector<32x128xf32>, vector<8x128xf32> -> vector<8x128xf32>
    %1142 = vector.broadcast %1100 : vector<1x128xf32> to vector<8x128xf32>
    %1143 = arith.addf %1141, %1142 : vector<8x128xf32>
    %c0_265 = arith.constant 0 : index
    %c0_266 = arith.constant 0 : index
    %c0_267 = arith.constant 0 : index
    %1144 = vector.load %arg13[%c0_265, %c0_266, %c0_267] : memref<2x8x128xf32, #tpu.memory_space<vmem>>, vector<1x8x128xf32>
    %1145 = vector.shape_cast %1144 : vector<1x8x128xf32> to vector<8x128xf32>
    %1146 = vector.shape_cast %1143 : vector<8x128xf32> to vector<1x8x128xf32>
    tpu.vector_store %arg13[%c0_265, %c0_266, %c0_267], %1146 {strides = array<i32>} : memref<2x8x128xf32, #tpu.memory_space<vmem>>, vector<1x8x128xf32>,
    %c1_268 = arith.constant 1 : index
    %c0_269 = arith.constant 0 : index
    %c0_270 = arith.constant 0 : index
    %1147 = vector.load %arg14[%c1_268, %c0_269, %c0_270] : memref<2x8x32xf32, #tpu.memory_space<vmem>>, vector<1x8x32xf32>
    %1148 = vector.shape_cast %1147 : vector<1x8x32xf32> to vector<8x32xf32>
    %c1_271 = arith.constant 1 : index
    %c0_272 = arith.constant 0 : index
    %c0_273 = arith.constant 0 : index
    %1149 = vector.load %arg15[%c1_271, %c0_272, %c0_273] : memref<2x8x32xf32, #tpu.memory_space<vmem>>, vector<1x8x32xf32>
    %1150 = vector.shape_cast %1149 : vector<1x8x32xf32> to vector<8x32xf32>
    %1151 = tpu.transpose %1150, [1, 0] : vector<8x32xf32> -> vector<32x8xf32>
    %cst_274 = arith.constant dense<0.000000e+00> : vector<8x8xf32>
    %1152 = tpu.matmul %1148, %1151, %cst_274 {dimension_numbers = #tpu.dot_dimension_numbers<[1], [0], [0], [1], [0, 0, 1, 1], [], []>} : vector<8x32xf32>, vector<32x8xf32>, vector<8x8xf32> -> vector<8x8xf32>
    %c1_275 = arith.constant 1 : index
    %c0_276 = arith.constant 0 : index
    %c0_277 = arith.constant 0 : index
    %1153 = vector.load %arg4[%c1_275, %c0_276, %c0_277] : memref<2x8x1xf32, #tpu.memory_space<vmem>>, vector<1x8x1xf32>
    %1154 = vector.shape_cast %1153 : vector<1x8x1xf32> to vector<8x1xf32>
    %cst_278 = arith.constant 5.000000e-01 : f32
    %1155 = vector.broadcast %cst_278 : f32 to vector<8x1xf32>
    %1156 = arith.cmpf ogt, %1154, %1155 : vector<8x1xf32>
    %cst_279 = arith.constant 1.000000e-10 : f32
    %1157 = vector.shape_cast %1156 : vector<8x1xi1> to vector<8x1xi1>
    %1158 = vector.broadcast %1157 : vector<8x1xi1> to vector<8x8xi1>
    %1159 = vector.broadcast %cst_279 : f32 to vector<8x8xf32>
    %1160 = arith.select %1158, %1159, %1152 : vector<8x8xi1>, vector<8x8xf32>
    %cst_280 = arith.constant 0.000000e+00 : f32
    %1161 = vector.broadcast %cst_280 : f32 to vector<8x128xf32>
    %c1_281 = arith.constant 1 : index
    %c0_282 = arith.constant 0 : index
    %c0_283 = arith.constant 0 : index
    %1162 = vector.load %arg12[%c1_281, %c0_282, %c0_283] : memref<2x8x128xf32, #tpu.memory_space<vmem>>, vector<1x8x128xf32>
    %1163 = vector.shape_cast %1162 : vector<1x8x128xf32> to vector<8x128xf32>
    %1164 = vector.shape_cast %1161 : vector<8x128xf32> to vector<1x8x128xf32>
    tpu.vector_store %arg12[%c1_281, %c0_282, %c0_283], %1164 {strides = array<i32>} : memref<2x8x128xf32, #tpu.memory_space<vmem>>, vector<1x8x128xf32>,
    %c1_284 = arith.constant 1 : index
    %c0_285 = arith.constant 0 : index
    %c0_286 = arith.constant 0 : index
    %1165 = vector.load %arg12[%c1_284, %c0_285, %c0_286] : memref<2x8x128xf32, #tpu.memory_space<vmem>>, vector<1x8x8xf32>
    %1166 = vector.shape_cast %1165 : vector<1x8x8xf32> to vector<8x8xf32>
    %1167 = vector.shape_cast %1160 : vector<8x8xf32> to vector<1x8x8xf32>
    tpu.vector_store %arg12[%c1_284, %c0_285, %c0_286], %1167 {strides = array<i32>} : memref<2x8x128xf32, #tpu.memory_space<vmem>>, vector<1x8x8xf32>,
    %cst_287 = arith.constant dense<0xFF800000> : vector<8xf32>
    %1168 = vector.multi_reduction <maximumf>, %1160, %cst_287 [0] : vector<8x8xf32> to vector<8xf32>
    %1169 = vector.shape_cast %1168 : vector<8xf32> to vector<1x8xf32>
    %1170 = vector.broadcast %1169 : vector<1x8xf32> to vector<8x8xf32>
    %1171 = arith.subf %1160, %1170 : vector<8x8xf32>
    %1172 = math.exp %1171 : vector<8x8xf32>
    %cst_288 = arith.constant dense<0.000000e+00> : vector<8xf32>
    %1173 = vector.multi_reduction <add>, %1172, %cst_288 [0] : vector<8x8xf32> to vector<8xf32>
    %1174 = vector.shape_cast %1173 : vector<8xf32> to vector<1x8xf32>
    %1175 = vector.broadcast %1174 : vector<1x8xf32> to vector<8x8xf32>
    %1176 = arith.divf %1172, %1175 : vector<8x8xf32>
    %1177 = tpu.transpose %1176, [1, 0] : vector<8x8xf32> -> vector<8x8xf32>
    %cst_289 = arith.constant dense<0.000000e+00> : vector<8x32xf32>
    %1178 = tpu.matmul %1177, %1148, %cst_289 {dimension_numbers = #tpu.dot_dimension_numbers<[1], [0], [0], [1], [0, 0, 1, 1], [], []>} : vector<8x8xf32>, vector<8x32xf32>, vector<8x32xf32> -> vector<8x32xf32>
    %1179 = vector.extract_strided_slice %1097 {offsets = [0, 0], sizes = [32, 32], strides = [1, 1]} : vector<64x32xf32> to vector<32x32xf32>
    %cst_290 = arith.constant dense<0.000000e+00> : vector<8x32xf32>
    %1180 = tpu.matmul %1150, %1179, %cst_290 {dimension_numbers = #tpu.dot_dimension_numbers<[1], [0], [0], [1], [0, 0, 1, 1], [], []>} : vector<8x32xf32>, vector<32x32xf32>, vector<8x32xf32> -> vector<8x32xf32>
    %1181 = vector.extract_strided_slice %1097 {offsets = [32, 0], sizes = [32, 32], strides = [1, 1]} : vector<64x32xf32> to vector<32x32xf32>
    %cst_291 = arith.constant dense<0.000000e+00> : vector<8x32xf32>
    %1182 = tpu.matmul %1178, %1181, %cst_291 {dimension_numbers = #tpu.dot_dimension_numbers<[1], [0], [0], [1], [0, 0, 1, 1], [], []>} : vector<8x32xf32>, vector<32x32xf32>, vector<8x32xf32> -> vector<8x32xf32>
    %1183 = arith.addf %1180, %1182 : vector<8x32xf32>
    %1184 = vector.broadcast %1098 : vector<1x32xf32> to vector<8x32xf32>
    %1185 = arith.addf %1183, %1184 : vector<8x32xf32>
    %1186 = math.tanh %1185 : vector<8x32xf32>
    %cst_292 = arith.constant dense<0.000000e+00> : vector<8x128xf32>
    %1187 = tpu.matmul %1186, %1099, %cst_292 {dimension_numbers = #tpu.dot_dimension_numbers<[1], [0], [0], [1], [0, 0, 1, 1], [], []>} : vector<8x32xf32>, vector<32x128xf32>, vector<8x128xf32> -> vector<8x128xf32>
    %1188 = vector.broadcast %1100 : vector<1x128xf32> to vector<8x128xf32>
    %1189 = arith.addf %1187, %1188 : vector<8x128xf32>
    %c1_293 = arith.constant 1 : index
    %c0_294 = arith.constant 0 : index
    %c0_295 = arith.constant 0 : index
    %1190 = vector.load %arg13[%c1_293, %c0_294, %c0_295] : memref<2x8x128xf32, #tpu.memory_space<vmem>>, vector<1x8x128xf32>
    %1191 = vector.shape_cast %1190 : vector<1x8x128xf32> to vector<8x128xf32>
    %1192 = vector.shape_cast %1189 : vector<8x128xf32> to vector<1x8x128xf32>
    tpu.vector_store %arg13[%c1_293, %c0_294, %c0_295], %1192 {strides = array<i32>} : memref<2x8x128xf32, #tpu.memory_space<vmem>>, vector<1x8x128xf32>,
    return
  }
  func.func @transform_0(%arg0: i32) -> (i32, i32) {
    %c0_i32 = arith.constant 0 : i32
    %c0_i32_0 = arith.constant 0 : i32
    %c0_i32_1 = arith.constant 0 : i32
    return %c0_i32, %c0_i32_0 : i32, i32
  }
  func.func @transform_1(%arg0: i32) -> (i32, i32) {
    %c0_i32 = arith.constant 0 : i32
    %c0_i32_0 = arith.constant 0 : i32
    %c0_i32_1 = arith.constant 0 : i32
    return %c0_i32, %c0_i32_0 : i32, i32
  }
  func.func @transform_2(%arg0: i32) -> (i32, i32, i32) {
    %c0_i32 = arith.constant 0 : i32
    %c0_i32_0 = arith.constant 0 : i32
    %c0_i32_1 = arith.constant 0 : i32
    %c0_i32_2 = arith.constant 0 : i32
    return %c0_i32, %c0_i32_0, %c0_i32_1 : i32, i32, i32
  }
  func.func @transform_3(%arg0: i32) -> (i32, i32, i32) {
    %c0_i32 = arith.constant 0 : i32
    %c0_i32_0 = arith.constant 0 : i32
    %c0_i32_1 = arith.constant 0 : i32
    %c0_i32_2 = arith.constant 0 : i32
    return %c0_i32, %c0_i32_0, %c0_i32_1 : i32, i32, i32
  }
  func.func @transform_4(%arg0: i32) -> (i32, i32, i32) {
    %c0_i32 = arith.constant 0 : i32
    %c0_i32_0 = arith.constant 0 : i32
    %c0_i32_1 = arith.constant 0 : i32
    %c0_i32_2 = arith.constant 0 : i32
    return %c0_i32, %c0_i32_0, %c0_i32_1 : i32, i32, i32
  }
  func.func @transform_5(%arg0: i32) -> (i32, i32, i32) {
    %c0_i32 = arith.constant 0 : i32
    %c0_i32_0 = arith.constant 0 : i32
    %c0_i32_1 = arith.constant 0 : i32
    %c0_i32_2 = arith.constant 0 : i32
    return %c0_i32, %c0_i32_0, %c0_i32_1 : i32, i32, i32
  }
  func.func @transform_6(%arg0: i32) -> (i32, i32, i32) {
    %c0_i32 = arith.constant 0 : i32
    %c0_i32_0 = arith.constant 0 : i32
    %c0_i32_1 = arith.constant 0 : i32
    %c0_i32_2 = arith.constant 0 : i32
    return %c0_i32, %c0_i32_0, %c0_i32_1 : i32, i32, i32
  }
  func.func @transform_7(%arg0: i32) -> (i32, i32) {
    %c0_i32 = arith.constant 0 : i32
    %c0_i32_0 = arith.constant 0 : i32
    %c0_i32_1 = arith.constant 0 : i32
    return %c0_i32, %c0_i32_0 : i32, i32
  }
  func.func @transform_8(%arg0: i32) -> (i32, i32) {
    %c0_i32 = arith.constant 0 : i32
    %c0_i32_0 = arith.constant 0 : i32
    %c0_i32_1 = arith.constant 0 : i32
    return %c0_i32, %c0_i32_0 : i32, i32
  }
  func.func @transform_9(%arg0: i32) -> (i32, i32) {
    %c0_i32 = arith.constant 0 : i32
    %c0_i32_0 = arith.constant 0 : i32
    %c0_i32_1 = arith.constant 0 : i32
    return %c0_i32, %c0_i32_0 : i32, i32
  }
  func.func @transform_10(%arg0: i32) -> (i32, i32) {
    %c0_i32 = arith.constant 0 : i32
    %c0_i32_0 = arith.constant 0 : i32
    %c0_i32_1 = arith.constant 0 : i32
    return %c0_i32, %c0_i32_0 : i32, i32
  }
  func.func @transform_11(%arg0: i32) -> (i32, i32, i32) {
    %c0_i32 = arith.constant 0 : i32
    %c0_i32_0 = arith.constant 0 : i32
    %c0_i32_1 = arith.constant 0 : i32
    %c0_i32_2 = arith.constant 0 : i32
    return %c0_i32, %c0_i32_0, %c0_i32_1 : i32, i32, i32
  }
  func.func @transform_12(%arg0: i32) -> (i32, i32, i32) {
    %c0_i32 = arith.constant 0 : i32
    %c0_i32_0 = arith.constant 0 : i32
    %c0_i32_1 = arith.constant 0 : i32
    %c0_i32_2 = arith.constant 0 : i32
    return %c0_i32, %c0_i32_0, %c0_i32_1 : i32, i32, i32
  }
}

</mosaic_0001>

<llo_original>
// kernel: seq2seq_forward.1
$region0: #{seq2seq_forward.1}
  #allocation0 [shape = 'u32[]', space=smem, size = 0x4, offset = 0x4, fixed_abs, tag = 'smem constant byte address 0x4 - core index']
  #allocation1 [shape = 'u32[144,128]{1,0:T(1,128)}', space=vmem, size = 0x12000, scoped, tag = 'internal scratch']
  #allocation2 [shape = 'f32[2,8,32]{2,1,0:T(8,128)}', space=vmem, size = 0x2000, scoped, tag = 'scratch operand']
  #allocation3 [shape = 'f32[2,8,32]{2,1,0:T(8,128)}', space=vmem, size = 0x2000, scoped, tag = 'scratch operand']
  %s0 = inlined_call_operand.vmem [shape: f32[16,32], index: 0, kind: input, shape index: {}]
  %s1 = inlined_call_operand.vmem [shape: f32[16,32], index: 1, kind: input, shape index: {}]
  %s2 = inlined_call_operand.vmem [shape: f32[2,2,8], index: 2, kind: input, shape index: {}]
  %s3 = inlined_call_operand.vmem [shape: f32[2,8,1], index: 3, kind: input, shape index: {}]
  %s4 = inlined_call_operand.vmem [shape: f32[4,32,128], index: 4, kind: input, shape index: {}]
  %s5 = inlined_call_operand.vmem [shape: f32[4,32,128], index: 5, kind: input, shape index: {}]
  %s6 = inlined_call_operand.vmem [shape: f32[4,1,128], index: 6, kind: input, shape index: {}]
  %s7 = inlined_call_operand.vmem [shape: f32[64,32], index: 7, kind: input, shape index: {}]
  %s8 = inlined_call_operand.vmem [shape: f32[1,32], index: 8, kind: input, shape index: {}]
  %s9 = inlined_call_operand.vmem [shape: f32[32,128], index: 9, kind: input, shape index: {}]
  %s10 = inlined_call_operand.vmem [shape: f32[1,128], index: 10, kind: input, shape index: {}]
  %s11 = inlined_call_operand.hbm [shape: f32[2,8,128], index: 11, kind: output, shape index: {0}]
  %s12 = inlined_call_operand.vmem [shape: f32[2,8,128], index: 12, kind: output, shape index: {1}]
  %13 = xla_tuple %s11, %s12
  %s14 = sld [smem:[#allocation0]]
  $region62: #{seq2seq_forward.1} parent=0
    _
  %s16 = ssub.s32 1, %s14
  %s17 = scalar_select 0, %s16, %s14
  $region1: #{seq2seq_forward.1} parent=0
    #allocation4 [shape = 'u8[8192]{0}', space=vmem, size = 0x2000, scoped, tag = 'output window, operand 0, single buffered']
    #allocation5 [shape = 's32[1]{0}', space=sflag, size = 0x4, scoped, tag = 'scoped memory for seq2seq_forward.1']
    %18 = vsyncpa [#allocation5], 0
    // Predicated region
    $region2: #{seq2seq_forward.1} parent=1 // pred_check
      _
    $region3: #{seq2seq_forward.1} parent=1 // pred_check_branch
      %20 = sbr.rel (0) target = $region5
    $region4: #{seq2seq_forward.1} parent=1 // pred_region
      _
    $region5: #{seq2seq_forward.1} parent=1 // pred_fallthru
      _
    // Predicated region
    $region6: #{seq2seq_forward.1} parent=1 // pred_check
      _
    $region7: #{seq2seq_forward.1} parent=1 // pred_check_branch
      %22 = sbr.rel (0) target = $region9
    $region8: #{seq2seq_forward.1} parent=1 // pred_region
      _
    $region9: #{seq2seq_forward.1} parent=1 // pred_fallthru
      _
    // Predicated region
    $region10: #{seq2seq_forward.1} parent=1 // pred_check
      _
    $region11: #{seq2seq_forward.1} parent=1 // pred_check_branch
      %24 = sbr.rel (0) target = $region13
    $region12: #{seq2seq_forward.1} parent=1 // pred_region
      _
    $region13: #{seq2seq_forward.1} parent=1 // pred_fallthru
      _
    // Predicated region
    $region14: #{seq2seq_forward.1} parent=1 // pred_check
      _
    $region15: #{seq2seq_forward.1} parent=1 // pred_check_branch
      %26 = sbr.rel (0) target = $region17
    $region16: #{seq2seq_forward.1} parent=1 // pred_region
      _
    $region17: #{seq2seq_forward.1} parent=1 // pred_fallthru
      _
    // Predicated region
    $region18: #{seq2seq_forward.1} parent=1 // pred_check
      _
    $region19: #{seq2seq_forward.1} parent=1 // pred_check_branch
      %28 = sbr.rel (0) target = $region21
    $region20: #{seq2seq_forward.1} parent=1 // pred_region
      _
    $region21: #{seq2seq_forward.1} parent=1 // pred_fallthru
      _
    // Predicated region
    $region22: #{seq2seq_forward.1} parent=1 // pred_check
      _
    $region23: #{seq2seq_forward.1} parent=1 // pred_check_branch
      %30 = sbr.rel (0) target = $region25
    $region24: #{seq2seq_forward.1} parent=1 // pred_region
      _
    $region25: #{seq2seq_forward.1} parent=1 // pred_fallthru
      _
    // Predicated region
    $region26: #{seq2seq_forward.1} parent=1 // pred_check
      _
    $region27: #{seq2seq_forward.1} parent=1 // pred_check_branch
      %32 = sbr.rel (0) target = $region29
    $region28: #{seq2seq_forward.1} parent=1 // pred_region
      _
    $region29: #{seq2seq_forward.1} parent=1 // pred_fallthru
      _
    // Predicated region
    $region30: #{seq2seq_forward.1} parent=1 // pred_check
      _
    $region31: #{seq2seq_forward.1} parent=1 // pred_check_branch
      %34 = sbr.rel (0) target = $region33
    $region32: #{seq2seq_forward.1} parent=1 // pred_region
      _
    $region33: #{seq2seq_forward.1} parent=1 // pred_fallthru
      _
    // Predicated region
    $region34: #{seq2seq_forward.1} parent=1 // pred_check
      _
    $region35: #{seq2seq_forward.1} parent=1 // pred_check_branch
      %36 = sbr.rel (0) target = $region37
    $region36: #{seq2seq_forward.1} parent=1 // pred_region
      _
    $region37: #{seq2seq_forward.1} parent=1 // pred_fallthru
      _
    // Predicated region
    $region38: #{seq2seq_forward.1} parent=1 // pred_check
      _
    $region39: #{seq2seq_forward.1} parent=1 // pred_check_branch
      %38 = sbr.rel (0) target = $region41
    $region40: #{seq2seq_forward.1} parent=1 // pred_region
      _
    $region41: #{seq2seq_forward.1} parent=1 // pred_fallthru
      _
    // Predicated region
    $region42: #{seq2seq_forward.1} parent=1 // pred_check
      _
    $region43: #{seq2seq_forward.1} parent=1 // pred_check_branch
      %40 = sbr.rel (0) target = $region45
    $region44: #{seq2seq_forward.1} parent=1 // pred_region
      _
    $region45: #{seq2seq_forward.1} parent=1 // pred_fallthru
      _
    %v41 = vld [vmem:[%s2] sm:$0x3]
    %s42 = scalar_lea.vmem %s2, 2
    %v43 = vld [vmem:[%s42] sm:$0x3]
    %v44 = vld [vmem:[%s0] sm:$0xff]
    %v45 = vld [vmem:[%s0 + $0x8] sm:$0xff]
    %v46 = vld [vmem:[%s4] sm:$0xff]
    %v47 = vld [vmem:[%s4 + $0x8] sm:$0xff]
    %v48 = vld [vmem:[%s4 + $0x10] sm:$0xff]
    %v49 = vld [vmem:[%s4 + $0x18] sm:$0xff]
    %v50 = vld [vmem:[%s6] sm:$0x1]
    %v52 = vlaneseq
    %v53 = vshrl.u32 %v52, 7
    %v54 = vsub.s32 0, %v53
    %v55 = vrot.slane %v50, %v54
    %vm57 = vcmask 261120
    %v59 = vsel %vm57, %v44, 0
    %v62 = vsel %vm57, %v45, 0
    %64 = vmatprep.subr.mxu0 0.0
    %65 = vmatpush1.msra.mxu0 %v46
    %66 = vmatprep.subr.mxu0 0.0
    %67 = vmatpush1.msra.mxu0 %v47
    %68 = vmatprep.subr.mxu0 0.0
    %69 = vmatpush1.msra.mxu0 %v48
    %70 = vmatprep.subr.mxu0 0.0
    %71 = vmatpush1.msra.mxu0 %v49
    %72 = vmatprep.subr.mxu0 0.0
    %73 = vmatpush1.msra.mxu0 0.0
    %74 = vmatprep.subr.mxu0 0.0
    %75 = vmatpush1.msra.mxu0 0.0
    %76 = vmatprep.subr.mxu0 0.0
    %77 = vmatpush1.msra.mxu0 0.0
    %78 = vmatprep.subr.mxu0 0.0
    %79 = vmatpush1.msra.mxu0 0.0
    %80 = vmatprep.subr.mxu0 0.0
    %81 = vmatpush1.msra.mxu0 0.0
    %82 = vmatprep.subr.mxu0 0.0
    %83 = vmatpush1.msra.mxu0 0.0
    %84 = vmatprep.subr.mxu0 0.0
    %85 = vmatpush1.msra.mxu0 0.0
    %86 = vmatprep.subr.mxu0 0.0
    %87 = vmatpush1.msra.mxu0 0.0
    %88 = vmatprep.subr.mxu0 0.0
    %89 = vmatpush1.msra.mxu0 0.0
    %90 = vmatprep.subr.mxu0 0.0
    %91 = vmatpush1.msra.mxu0 0.0
    %92 = vmatprep.subr.mxu0 0.0
    %93 = vmatpush1.msra.mxu0 0.0
    %94 = vmatprep.subr.mxu0 0.0
    %95 = vmatpush1.msra.mxu0 0.0
    %96 = vmatprep.subr.mxu0 0.0
    %97 = vmatpush1.msra.mxu0 0.0
    %98 = vmatprep.subr.mxu0 0.0
    %99 = vmatpush1.msra.mxu0 0.0
    %100 = vmatprep.subr.mxu0 0.0
    %101 = vmatpush1.msra.mxu0 0.0
    %102 = vmatprep.subr.mxu0 0.0
    %103 = vmatpush1.msra.mxu0 0.0
    %104 = vmatprep.subr.mxu0 0.0
    %105 = vmatpush1.msra.mxu0 0.0
    %106 = vmatprep.subr.mxu0 0.0
    %107 = vmatpush1.msra.mxu0 0.0
    %108 = vmatprep.subr.mxu0 0.0
    %109 = vmatpush1.msra.mxu0 0.0
    %110 = vmatprep.subr.mxu0 0.0
    %111 = vmatpush1.msra.mxu0 0.0
    %112 = vmatprep.subr.mxu0 0.0
    %113 = vmatpush1.msra.mxu0 0.0
    %114 = vmatprep.subr.mxu0 0.0
    %115 = vmatpush1.msra.mxu0 0.0
    %116 = vmatprep.subr.mxu0 0.0
    %117 = vmatpush1.msra.mxu0 0.0
    %118 = vmatprep.subr.mxu0 0.0
    %119 = vmatpush1.msra.mxu0 0.0
    %120 = vmatprep.subr.mxu0 0.0
    %121 = vmatpush1.msra.mxu0 0.0
    %122 = vmatprep.subr.mxu0 0.0
    %123 = vmatpush1.msra.mxu0 0.0
    %124 = vmatprep.subr.mxu0 0.0
    %125 = vmatpush1.msra.mxu0 0.0
    %126 = vmatprep.subr.mxu0 0.0
    %127 = vmatpush1.msra.mxu0 0.0
    %128 = vmatprep.mubr.f32.mxu0 0.0
    %129 = vmatmul.mubr.f32.gmra.mrb[0].mxu0 %v59
    %v130 = vpop.f32.mrb[0].mxu0
    %v131 = vadd.f32 %v55, %v130
    %v132 = vpop.f32.mrb[0].mxu0
    %133 = vmatprep.mubr.f32.mxu0 0.0
    %134 = vmatmul.mubr.f32.gmra.mrb[0].mxu0 %v62
    %v135 = vpop.f32.mrb[0].mxu0
    %v136 = vadd.f32 %v55, %v135
    %v137 = vpop.f32.mrb[0].mxu0
    %138 = vdwg.mxu0
    %v139 = vld [vmem:[%s1] sm:$0xff]
    %v140 = vld [vmem:[%s1 + $0x8] sm:$0xff]
    %s141 = scalar_lea.vmem %s4, 64
    %v142 = vld [vmem:[%s141] sm:$0xff]
    %v143 = vld [vmem:[%s141 + $0x8] sm:$0xff]
    %v144 = vld [vmem:[%s141 + $0x10] sm:$0xff]
    %v145 = vld [vmem:[%s141 + $0x18] sm:$0xff]
    %s146 = scalar_lea.vmem %s6, 2
    %v147 = vld [vmem:[%s146] sm:$0x1]
    %v149 = vlaneseq
    %v150 = vshrl.u32 %v149, 7
    %v151 = vsub.s32 0, %v150
    %v152 = vrot.slane %v147, %v151
    %v155 = vsel %vm57, %v139, 0
    %v158 = vsel %vm57, %v140, 0
    %160 = vmatprep.subr.mxu0 0.0
    %161 = vmatpush1.msra.mxu0 %v142
    %162 = vmatprep.subr.mxu0 0.0
    %163 = vmatpush1.msra.mxu0 %v143
    %164 = vmatprep.subr.mxu0 0.0
    %165 = vmatpush1.msra.mxu0 %v144
    %166 = vmatprep.subr.mxu0 0.0
    %167 = vmatpush1.msra.mxu0 %v145
    %168 = vmatprep.subr.mxu0 0.0
    %169 = vmatpush1.msra.mxu0 0.0
    %170 = vmatprep.subr.mxu0 0.0
    %171 = vmatpush1.msra.mxu0 0.0
    %172 = vmatprep.subr.mxu0 0.0
    %173 = vmatpush1.msra.mxu0 0.0
    %174 = vmatprep.subr.mxu0 0.0
    %175 = vmatpush1.msra.mxu0 0.0
    %176 = vmatprep.subr.mxu0 0.0
    %177 = vmatpush1.msra.mxu0 0.0
    %178 = vmatprep.subr.mxu0 0.0
    %179 = vmatpush1.msra.mxu0 0.0
    %180 = vmatprep.subr.mxu0 0.0
    %181 = vmatpush1.msra.mxu0 0.0
    %182 = vmatprep.subr.mxu0 0.0
    %183 = vmatpush1.msra.mxu0 0.0
    %184 = vmatprep.subr.mxu0 0.0
    %185 = vmatpush1.msra.mxu0 0.0
    %186 = vmatprep.subr.mxu0 0.0
    %187 = vmatpush1.msra.mxu0 0.0
    %188 = vmatprep.subr.mxu0 0.0
    %189 = vmatpush1.msra.mxu0 0.0
    %190 = vmatprep.subr.mxu0 0.0
    %191 = vmatpush1.msra.mxu0 0.0
    %192 = vmatprep.subr.mxu0 0.0
    %193 = vmatpush1.msra.mxu0 0.0
    %194 = vmatprep.subr.mxu0 0.0
    %195 = vmatpush1.msra.mxu0 0.0
    %196 = vmatprep.subr.mxu0 0.0
    %197 = vmatpush1.msra.mxu0 0.0
    %198 = vmatprep.subr.mxu0 0.0
    %199 = vmatpush1.msra.mxu0 0.0
    %200 = vmatprep.subr.mxu0 0.0
    %201 = vmatpush1.msra.mxu0 0.0
    %202 = vmatprep.subr.mxu0 0.0
    %203 = vmatpush1.msra.mxu0 0.0
    %204 = vmatprep.subr.mxu0 0.0
    %205 = vmatpush1.msra.mxu0 0.0
    %206 = vmatprep.subr.mxu0 0.0
    %207 = vmatpush1.msra.mxu0 0.0
    %208 = vmatprep.subr.mxu0 0.0
    %209 = vmatpush1.msra.mxu0 0.0
    %210 = vmatprep.subr.mxu0 0.0
    %211 = vmatpush1.msra.mxu0 0.0
    %212 = vmatprep.subr.mxu0 0.0
    %213 = vmatpush1.msra.mxu0 0.0
    %214 = vmatprep.subr.mxu0 0.0
    %215 = vmatpush1.msra.mxu0 0.0
    %216 = vmatprep.subr.mxu0 0.0
    %217 = vmatpush1.msra.mxu0 0.0
    %218 = vmatprep.subr.mxu0 0.0
    %219 = vmatpush1.msra.mxu0 0.0
    %220 = vmatprep.subr.mxu0 0.0
    %221 = vmatpush1.msra.mxu0 0.0
    %222 = vmatprep.subr.mxu0 0.0
    %223 = vmatpush1.msra.mxu0 0.0
    %224 = vmatprep.mubr.f32.mxu0 0.0
    %225 = vmatmul.mubr.f32.gmra.mrb[0].mxu0 %v155
    %v226 = vpop.f32.mrb[0].mxu0
    %v227 = vadd.f32 %v152, %v226
    %v228 = vpop.f32.mrb[0].mxu0
    %229 = vmatprep.mubr.f32.mxu0 0.0
    %230 = vmatmul.mubr.f32.gmra.mrb[0].mxu0 %v158
    %v231 = vpop.f32.mrb[0].mxu0
    %v232 = vadd.f32 %v152, %v231
    %v233 = vpop.f32.mrb[0].mxu0
    %234 = vdwg.mxu0
    %s235 = scalar_lea.vmem %s4, 32
    %v236 = vld [vmem:[%s235] sm:$0xff]
    %v237 = vld [vmem:[%s235 + $0x8] sm:$0xff]
    %v238 = vld [vmem:[%s235 + $0x10] sm:$0xff]
    %v239 = vld [vmem:[%s235 + $0x18] sm:$0xff]
    %s240 = scalar_lea.vmem %s6, 1
    %v241 = vld [vmem:[%s240] sm:$0x1]
    %v242 = vld [vmem:[%s5] sm:$0xff]
    %v243 = vld [vmem:[%s5 + $0x8] sm:$0xff]
    %v244 = vld [vmem:[%s5 + $0x10] sm:$0xff]
    %v245 = vld [vmem:[%s5 + $0x18] sm:$0xff]
    %s246 = scalar_lea.vmem %s5, 32
    %v247 = vld [vmem:[%s246] sm:$0xff]
    %v248 = vld [vmem:[%s246 + $0x8] sm:$0xff]
    %v249 = vld [vmem:[%s246 + $0x10] sm:$0xff]
    %v250 = vld [vmem:[%s246 + $0x18] sm:$0xff]
    %v252 = vsel %vm57, 0.0, 0
    %254 = vmatprep.subr.mxu0 0.0
    %255 = vmatpush1.msra.mxu0 %v242
    %256 = vmatprep.subr.mxu0 0.0
    %257 = vmatpush1.msra.mxu0 %v243
    %258 = vmatprep.subr.mxu0 0.0
    %259 = vmatpush1.msra.mxu0 %v244
    %260 = vmatprep.subr.mxu0 0.0
    %261 = vmatpush1.msra.mxu0 %v245
    %262 = vmatprep.subr.mxu0 0.0
    %263 = vmatpush1.msra.mxu0 0.0
    %264 = vmatprep.subr.mxu0 0.0
    %265 = vmatpush1.msra.mxu0 0.0
    %266 = vmatprep.subr.mxu0 0.0
    %267 = vmatpush1.msra.mxu0 0.0
    %268 = vmatprep.subr.mxu0 0.0
    %269 = vmatpush1.msra.mxu0 0.0
    %270 = vmatprep.subr.mxu0 0.0
    %271 = vmatpush1.msra.mxu0 0.0
    %272 = vmatprep.subr.mxu0 0.0
    %273 = vmatpush1.msra.mxu0 0.0
    %274 = vmatprep.subr.mxu0 0.0
    %275 = vmatpush1.msra.mxu0 0.0
    %276 = vmatprep.subr.mxu0 0.0
    %277 = vmatpush1.msra.mxu0 0.0
    %278 = vmatprep.subr.mxu0 0.0
    %279 = vmatpush1.msra.mxu0 0.0
    %280 = vmatprep.subr.mxu0 0.0
    %281 = vmatpush1.msra.mxu0 0.0
    %282 = vmatprep.subr.mxu0 0.0
    %283 = vmatpush1.msra.mxu0 0.0
    %284 = vmatprep.subr.mxu0 0.0
    %285 = vmatpush1.msra.mxu0 0.0
    %286 = vmatprep.subr.mxu0 0.0
    %287 = vmatpush1.msra.mxu0 0.0
    %288 = vmatprep.subr.mxu0 0.0
    %289 = vmatpush1.msra.mxu0 0.0
    %290 = vmatprep.subr.mxu0 0.0
    %291 = vmatpush1.msra.mxu0 0.0
    %292 = vmatprep.subr.mxu0 0.0
    %293 = vmatpush1.msra.mxu0 0.0
    %294 = vmatprep.subr.mxu0 0.0
    %295 = vmatpush1.msra.mxu0 0.0
    %296 = vmatprep.subr.mxu0 0.0
    %297 = vmatpush1.msra.mxu0 0.0
    %298 = vmatprep.subr.mxu0 0.0
    %299 = vmatpush1.msra.mxu0 0.0
    %300 = vmatprep.subr.mxu0 0.0
    %301 = vmatpush1.msra.mxu0 0.0
    %302 = vmatprep.subr.mxu0 0.0
    %303 = vmatpush1.msra.mxu0 0.0
    %304 = vmatprep.subr.mxu0 0.0
    %305 = vmatpush1.msra.mxu0 0.0
    %306 = vmatprep.subr.mxu0 0.0
    %307 = vmatpush1.msra.mxu0 0.0
    %308 = vmatprep.subr.mxu0 0.0
    %309 = vmatpush1.msra.mxu0 0.0
    %310 = vmatprep.subr.mxu0 0.0
    %311 = vmatpush1.msra.mxu0 0.0
    %312 = vmatprep.subr.mxu0 0.0
    %313 = vmatpush1.msra.mxu0 0.0
    %314 = vmatprep.subr.mxu0 0.0
    %315 = vmatpush1.msra.mxu0 0.0
    %316 = vmatprep.subr.mxu0 0.0
    %317 = vmatpush1.msra.mxu0 0.0
    %318 = vmatprep.mubr.f32.mxu0 0.0
    %319 = vmatmul.mubr.f32.gmra.mrb[0].mxu0 %v252
    %v320 = vpop.f32.mrb[0].mxu0
    %v321 = vadd.f32 0.0, %v320
    %v322 = vpop.f32.mrb[0].mxu0
    %323 = vdwg.mxu0
    %v324 = vadd.f32 %v131, %v321
    %v325 = vxor.u32 %v324, 2147483648
    %v326 = vmul.f32 %v325, 1.442695
    %v327 = vpow.pop %v326
    %v328 = vadd.f32 %v327, 1.0
    %v329 = vrcp.pop %v328
    %v330 = vmul.f32 1.0, %v329
    %v331 = vtanh.pop %v324
    %v332 = vmul.f32 %v330, 0.0
    %334 = vrot.lane.b32.xlu0 %v331, 64
    %v335 = vpop.permute.xlu0 %334
    %v337 = vmul.f32 %v330, %v335
    %339 = vrot.lane.b32.xlu0 %v337, 32
    %v340 = vpop.permute.xlu0 %339
    %v342 = vadd.f32 %v332, %v340
    %v343 = vtanh.pop %v342
    %345 = vrot.lane.b32.xlu0 %v343, 64
    %v346 = vpop.permute.xlu0 %345
    %v348 = vmul.f32 %v330, %v346
    %vm349 = vcmp.gt.f32.partialorder %v41, 0.5
    %v350 = vsel %vm349, 1, 0
    %351 = vset.pattern.permute.xlu0 0
    %352 = vperm.xlu0 %351, %v350
    %v353 = vpop.permute.xlu0 %352
    %vm354 = vcmp.eq.s32.totalorder %v353, 1
    %v355 = vsel %vm354, %v348, 0.0
    %v356 = vsel %vm354, %v342, 0.0
    %358 = vrot.lane.b32.xlu0 %v355, 32
    %v359 = vpop.permute.xlu0 %358
    %v360 = vsel %vm57, %v359, 0
    %362 = vmatprep.subr.mxu0 0.0
    %363 = vmatpush1.msra.mxu0 %v242
    %364 = vmatprep.subr.mxu0 0.0
    %365 = vmatpush1.msra.mxu0 %v243
    %366 = vmatprep.subr.mxu0 0.0
    %367 = vmatpush1.msra.mxu0 %v244
    %368 = vmatprep.subr.mxu0 0.0
    %369 = vmatpush1.msra.mxu0 %v245
    %370 = vmatprep.subr.mxu0 0.0
    %371 = vmatpush1.msra.mxu0 0.0
    %372 = vmatprep.subr.mxu0 0.0
    %373 = vmatpush1.msra.mxu0 0.0
    %374 = vmatprep.subr.mxu0 0.0
    %375 = vmatpush1.msra.mxu0 0.0
    %376 = vmatprep.subr.mxu0 0.0
    %377 = vmatpush1.msra.mxu0 0.0
    %378 = vmatprep.subr.mxu0 0.0
    %379 = vmatpush1.msra.mxu0 0.0
    %380 = vmatprep.subr.mxu0 0.0
    %381 = vmatpush1.msra.mxu0 0.0
    %382 = vmatprep.subr.mxu0 0.0
    %383 = vmatpush1.msra.mxu0 0.0
    %384 = vmatprep.subr.mxu0 0.0
    %385 = vmatpush1.msra.mxu0 0.0
    %386 = vmatprep.subr.mxu0 0.0
    %387 = vmatpush1.msra.mxu0 0.0
    %388 = vmatprep.subr.mxu0 0.0
    %389 = vmatpush1.msra.mxu0 0.0
    %390 = vmatprep.subr.mxu0 0.0
    %391 = vmatpush1.msra.mxu0 0.0
    %392 = vmatprep.subr.mxu0 0.0
    %393 = vmatpush1.msra.mxu0 0.0
    %394 = vmatprep.subr.mxu0 0.0
    %395 = vmatpush1.msra.mxu0 0.0
    %396 = vmatprep.subr.mxu0 0.0
    %397 = vmatpush1.msra.mxu0 0.0
    %398 = vmatprep.subr.mxu0 0.0
    %399 = vmatpush1.msra.mxu0 0.0
    %400 = vmatprep.subr.mxu0 0.0
    %401 = vmatpush1.msra.mxu0 0.0
    %402 = vmatprep.subr.mxu0 0.0
    %403 = vmatpush1.msra.mxu0 0.0
    %404 = vmatprep.subr.mxu0 0.0
    %405 = vmatpush1.msra.mxu0 0.0
    %406 = vmatprep.subr.mxu0 0.0
    %407 = vmatpush1.msra.mxu0 0.0
    %408 = vmatprep.subr.mxu0 0.0
    %409 = vmatpush1.msra.mxu0 0.0
    %410 = vmatprep.subr.mxu0 0.0
    %411 = vmatpush1.msra.mxu0 0.0
    %412 = vmatprep.subr.mxu0 0.0
    %413 = vmatpush1.msra.mxu0 0.0
    %414 = vmatprep.subr.mxu0 0.0
    %415 = vmatpush1.msra.mxu0 0.0
    %416 = vmatprep.subr.mxu0 0.0
    %417 = vmatpush1.msra.mxu0 0.0
    %418 = vmatprep.subr.mxu0 0.0
    %419 = vmatpush1.msra.mxu0 0.0
    %420 = vmatprep.subr.mxu0 0.0
    %421 = vmatpush1.msra.mxu0 0.0
    %422 = vmatprep.subr.mxu0 0.0
    %423 = vmatpush1.msra.mxu0 0.0
    %424 = vmatprep.subr.mxu0 0.0
    %425 = vmatpush1.msra.mxu0 0.0
    %426 = vmatprep.mubr.f32.mxu0 0.0
    %427 = vmatmul.mubr.f32.gmra.mrb[0].mxu0 %v360
    %v428 = vpop.f32.mrb[0].mxu0
    %v429 = vadd.f32 0.0, %v428
    %v430 = vpop.f32.mrb[0].mxu0
    %431 = vdwg.mxu0
    %v433 = vrot.slane %v429, 6
    %v435 = vadd.f32 %v131, %v433
    %436 = vmatprep.subr.mxu0 0.0
    %437 = vmatpush1.msra.mxu0 %v247
    %438 = vmatprep.subr.mxu0 0.0
    %439 = vmatpush1.msra.mxu0 %v248
    %440 = vmatprep.subr.mxu0 0.0
    %441 = vmatpush1.msra.mxu0 %v249
    %442 = vmatprep.subr.mxu0 0.0
    %443 = vmatpush1.msra.mxu0 %v250
    %444 = vmatprep.subr.mxu0 0.0
    %445 = vmatpush1.msra.mxu0 0.0
    %446 = vmatprep.subr.mxu0 0.0
    %447 = vmatpush1.msra.mxu0 0.0
    %448 = vmatprep.subr.mxu0 0.0
    %449 = vmatpush1.msra.mxu0 0.0
    %450 = vmatprep.subr.mxu0 0.0
    %451 = vmatpush1.msra.mxu0 0.0
    %452 = vmatprep.subr.mxu0 0.0
    %453 = vmatpush1.msra.mxu0 0.0
    %454 = vmatprep.subr.mxu0 0.0
    %455 = vmatpush1.msra.mxu0 0.0
    %456 = vmatprep.subr.mxu0 0.0
    %457 = vmatpush1.msra.mxu0 0.0
    %458 = vmatprep.subr.mxu0 0.0
    %459 = vmatpush1.msra.mxu0 0.0
    %460 = vmatprep.subr.mxu0 0.0
    %461 = vmatpush1.msra.mxu0 0.0
    %462 = vmatprep.subr.mxu0 0.0
    %463 = vmatpush1.msra.mxu0 0.0
    %464 = vmatprep.subr.mxu0 0.0
    %465 = vmatpush1.msra.mxu0 0.0
    %466 = vmatprep.subr.mxu0 0.0
    %467 = vmatpush1.msra.mxu0 0.0
    %468 = vmatprep.subr.mxu0 0.0
    %469 = vmatpush1.msra.mxu0 0.0
    %470 = vmatprep.subr.mxu0 0.0
    %471 = vmatpush1.msra.mxu0 0.0
    %472 = vmatprep.subr.mxu0 0.0
    %473 = vmatpush1.msra.mxu0 0.0
    %474 = vmatprep.subr.mxu0 0.0
    %475 = vmatpush1.msra.mxu0 0.0
    %476 = vmatprep.subr.mxu0 0.0
    %477 = vmatpush1.msra.mxu0 0.0
    %478 = vmatprep.subr.mxu0 0.0
    %479 = vmatpush1.msra.mxu0 0.0
    %480 = vmatprep.subr.mxu0 0.0
    %481 = vmatpush1.msra.mxu0 0.0
    %482 = vmatprep.subr.mxu0 0.0
    %483 = vmatpush1.msra.mxu0 0.0
    %484 = vmatprep.subr.mxu0 0.0
    %485 = vmatpush1.msra.mxu0 0.0
    %486 = vmatprep.subr.mxu0 0.0
    %487 = vmatpush1.msra.mxu0 0.0
    %488 = vmatprep.subr.mxu0 0.0
    %489 = vmatpush1.msra.mxu0 0.0
    %490 = vmatprep.subr.mxu0 0.0
    %491 = vmatpush1.msra.mxu0 0.0
    %492 = vmatprep.subr.mxu0 0.0
    %493 = vmatpush1.msra.mxu0 0.0
    %494 = vmatprep.subr.mxu0 0.0
    %495 = vmatpush1.msra.mxu0 0.0
    %496 = vmatprep.subr.mxu0 0.0
    %497 = vmatpush1.msra.mxu0 0.0
    %498 = vmatprep.subr.mxu0 0.0
    %499 = vmatpush1.msra.mxu0 0.0
    %500 = vmatprep.mubr.f32.mxu0 0.0
    %501 = vmatmul.mubr.f32.gmra.mrb[0].mxu0 %v252
    %v502 = vpop.f32.mrb[0].mxu0
    %v503 = vadd.f32 0.0, %v502
    %v504 = vpop.f32.mrb[0].mxu0
    %505 = vdwg.mxu0
    %506 = vmatprep.subr.mxu0 0.0
    %507 = vmatpush1.msra.mxu0 %v236
    %508 = vmatprep.subr.mxu0 0.0
    %509 = vmatpush1.msra.mxu0 %v237
    %510 = vmatprep.subr.mxu0 0.0
    %511 = vmatpush1.msra.mxu0 %v238
    %512 = vmatprep.subr.mxu0 0.0
    %513 = vmatpush1.msra.mxu0 %v239
    %514 = vmatprep.subr.mxu0 0.0
    %515 = vmatpush1.msra.mxu0 0.0
    %516 = vmatprep.subr.mxu0 0.0
    %517 = vmatpush1.msra.mxu0 0.0
    %518 = vmatprep.subr.mxu0 0.0
    %519 = vmatpush1.msra.mxu0 0.0
    %520 = vmatprep.subr.mxu0 0.0
    %521 = vmatpush1.msra.mxu0 0.0
    %522 = vmatprep.subr.mxu0 0.0
    %523 = vmatpush1.msra.mxu0 0.0
    %524 = vmatprep.subr.mxu0 0.0
    %525 = vmatpush1.msra.mxu0 0.0
    %526 = vmatprep.subr.mxu0 0.0
    %527 = vmatpush1.msra.mxu0 0.0
    %528 = vmatprep.subr.mxu0 0.0
    %529 = vmatpush1.msra.mxu0 0.0
    %530 = vmatprep.subr.mxu0 0.0
    %531 = vmatpush1.msra.mxu0 0.0
    %532 = vmatprep.subr.mxu0 0.0
    %533 = vmatpush1.msra.mxu0 0.0
    %534 = vmatprep.subr.mxu0 0.0
    %535 = vmatpush1.msra.mxu0 0.0
    %536 = vmatprep.subr.mxu0 0.0
    %537 = vmatpush1.msra.mxu0 0.0
    %538 = vmatprep.subr.mxu0 0.0
    %539 = vmatpush1.msra.mxu0 0.0
    %540 = vmatprep.subr.mxu0 0.0
    %541 = vmatpush1.msra.mxu0 0.0
    %542 = vmatprep.subr.mxu0 0.0
    %543 = vmatpush1.msra.mxu0 0.0
    %544 = vmatprep.subr.mxu0 0.0
    %545 = vmatpush1.msra.mxu0 0.0
    %546 = vmatprep.subr.mxu0 0.0
    %547 = vmatpush1.msra.mxu0 0.0
    %548 = vmatprep.subr.mxu0 0.0
    %549 = vmatpush1.msra.mxu0 0.0
    %550 = vmatprep.subr.mxu0 0.0
    %551 = vmatpush1.msra.mxu0 0.0
    %552 = vmatprep.subr.mxu0 0.0
    %553 = vmatpush1.msra.mxu0 0.0
    %554 = vmatprep.subr.mxu0 0.0
    %555 = vmatpush1.msra.mxu0 0.0
    %556 = vmatprep.subr.mxu0 0.0
    %557 = vmatpush1.msra.mxu0 0.0
    %558 = vmatprep.subr.mxu0 0.0
    %559 = vmatpush1.msra.mxu0 0.0
    %560 = vmatprep.subr.mxu0 0.0
    %561 = vmatpush1.msra.mxu0 0.0
    %562 = vmatprep.subr.mxu0 0.0
    %563 = vmatpush1.msra.mxu0 0.0
    %564 = vmatprep.subr.mxu0 0.0
    %565 = vmatpush1.msra.mxu0 0.0
    %566 = vmatprep.subr.mxu0 0.0
    %567 = vmatpush1.msra.mxu0 0.0
    %568 = vmatprep.subr.mxu0 0.0
    %569 = vmatpush1.msra.mxu0 0.0
    %570 = vmatprep.mubr.f32.mxu0 0.0
    %571 = vmatmul.mubr.f32.gmra.mrb[0].mxu0 %v360
    %v572 = vpop.f32.mrb[0].mxu0
    %v573 = vadd.f32 %v503, %v572
    %v574 = vpop.f32.mrb[0].mxu0
    %575 = vdwg.mxu0
    %v577 = vlaneseq
    %v578 = vshrl.u32 %v577, 7
    %v579 = vsub.s32 0, %v578
    %v580 = vrot.slane %v241, %v579
    %v582 = vadd.f32 %v573, %v580
    %v583 = vxor.u32 %v582, 2147483648
    %v584 = vmul.f32 %v583, 1.442695
    %v585 = vpow.pop %v584
    %v586 = vadd.f32 %v585, 1.0
    %v587 = vrcp.pop %v586
    %v588 = vmul.f32 1.0, %v587
    %v589 = vtanh.pop %v582
    %v590 = vmul.f32 %v588, 0.0
    %592 = vrot.lane.b32.xlu0 %v589, 64
    %v593 = vpop.permute.xlu0 %592
    %v595 = vmul.f32 %v588, %v593
    %597 = vrot.lane.b32.xlu0 %v595, 32
    %v598 = vpop.permute.xlu0 %597
    %v600 = vadd.f32 %v590, %v598
    %v601 = vtanh.pop %v600
    %603 = vrot.lane.b32.xlu0 %v601, 64
    %v604 = vpop.permute.xlu0 %603
    %v606 = vmul.f32 %v588, %v604
    %v607 = vsel %vm354, %v606, 0.0
    %v608 = vsel %vm354, %v600, 0.0
    %v611 = vunpack.c.l.s4 1966171168
    %v612 = vunpack.c.0.s8 %v611
    %v613 = vlaneseq
    %v614 = vshrl.u32 %v613, 7
    %v615 = vsub.s32 %v612, %v614
    %v616 = vrot.slane %v607, %v615
    %v617 = vcombine.high %v616, %v616
    %v619 = vunpack.c.l.s4 1966171168
    %v620 = vunpack.c.0.s8 %v619
    %v621 = vlaneseq
    %v622 = vshrl.u32 %v621, 7
    %v623 = vsub.s32 %v620, %v622
    %v624 = vrot.slane %v616, %v623
    %v626 = vunpack.c.l.s4 1966171168
    %v627 = vunpack.c.0.s8 %v626
    %v628 = vlaneseq
    %v629 = vshrl.u32 %v628, 7
    %v630 = vsub.s32 %v627, %v629
    %v631 = vrot.slane %v617, %v630
    %v632 = vlaneseq
    %v633 = vshrl.u32 %v632, 7
    %v634 = vsub.s32 0, %v633
    %v635 = vrot.slane %v624, %v634
    %v636 = vlaneseq
    %v637 = vshrl.u32 %v636, 7
    %v638 = vsub.s32 0, %v637
    %v639 = vrot.slane %v631, %v638
    %640 = vrot.lane.b32.xlu0 %v635, 32
    %v641 = vpop.permute.xlu0 %640
    %642 = vrot.lane.b32.xlu0 %v639, 32
    %v643 = vpop.permute.xlu0 %642
    %vm646 = vcmask 253952
    %647 = vst.msk [vmem:[#allocation2] sm:$0x1] %vm646, %v641
    %648 = vst.msk [vmem:[#allocation2 + $0x8] sm:$0x1] %vm646, %v643
    %v649 = vxor.u32 %v435, 2147483648
    %v650 = vmul.f32 %v649, 1.442695
    %v651 = vpow.pop %v650
    %v652 = vadd.f32 %v651, 1.0
    %v653 = vrcp.pop %v652
    %v654 = vmul.f32 1.0, %v653
    %v655 = vtanh.pop %v435
    %v657 = vrot.slane %v356, 6
    %v659 = vmul.f32 %v654, %v657
    %661 = vrot.lane.b32.xlu0 %v655, 64
    %v662 = vpop.permute.xlu0 %661
    %v664 = vmul.f32 %v654, %v662
    %666 = vrot.lane.b32.xlu0 %v664, 32
    %v667 = vpop.permute.xlu0 %666
    %v669 = vadd.f32 %v659, %v667
    %v670 = vtanh.pop %v669
    %672 = vrot.lane.b32.xlu0 %v670, 64
    %v673 = vpop.permute.xlu0 %672
    %v675 = vmul.f32 %v654, %v673
    %676 = vset.pattern.permute.xlu0 1
    %677 = vperm.xlu0 %676, %v350
    %v678 = vpop.permute.xlu0 %677
    %vm679 = vcmp.eq.s32.totalorder %v678, 1
    %v681 = vrot.slane %v675, 2
    %682 = vrot.lane.b32.xlu0 %v681, 32
    %v683 = vpop.permute.xlu0 %682
    %v686 = vsel %vm679, %v683, %v359
    %v688 = vrot.slane %v669, 2
    %689 = vrot.lane.b32.xlu0 %v688, 96
    %v690 = vpop.permute.xlu0 %689
    %692 = vrot.lane.b32.xlu0 %v356, 96
    %v693 = vpop.permute.xlu0 %692
    %v695 = vsel %vm679, %v690, %v693
    %v696 = vsel %vm679, %v683, 0.0
    %v698 = vsel %vm57, %v686, 0
    %700 = vmatprep.subr.mxu0 0.0
    %701 = vmatpush1.msra.mxu0 %v242
    %702 = vmatprep.subr.mxu0 0.0
    %703 = vmatpush1.msra.mxu0 %v243
    %704 = vmatprep.subr.mxu0 0.0
    %705 = vmatpush1.msra.mxu0 %v244
    %706 = vmatprep.subr.mxu0 0.0
    %707 = vmatpush1.msra.mxu0 %v245
    %708 = vmatprep.subr.mxu0 0.0
    %709 = vmatpush1.msra.mxu0 0.0
    %710 = vmatprep.subr.mxu0 0.0
    %711 = vmatpush1.msra.mxu0 0.0
    %712 = vmatprep.subr.mxu0 0.0
    %713 = vmatpush1.msra.mxu0 0.0
    %714 = vmatprep.subr.mxu0 0.0
    %715 = vmatpush1.msra.mxu0 0.0
    %716 = vmatprep.subr.mxu0 0.0
    %717 = vmatpush1.msra.mxu0 0.0
    %718 = vmatprep.subr.mxu0 0.0
    %719 = vmatpush1.msra.mxu0 0.0
    %720 = vmatprep.subr.mxu0 0.0
    %721 = vmatpush1.msra.mxu0 0.0
    %722 = vmatprep.subr.mxu0 0.0
    %723 = vmatpush1.msra.mxu0 0.0
    %724 = vmatprep.subr.mxu0 0.0
    %725 = vmatpush1.msra.mxu0 0.0
    %726 = vmatprep.subr.mxu0 0.0
    %727 = vmatpush1.msra.mxu0 0.0
    %728 = vmatprep.subr.mxu0 0.0
    %729 = vmatpush1.msra.mxu0 0.0
    %730 = vmatprep.subr.mxu0 0.0
    %731 = vmatpush1.msra.mxu0 0.0
    %732 = vmatprep.subr.mxu0 0.0
    %733 = vmatpush1.msra.mxu0 0.0
    %734 = vmatprep.subr.mxu0 0.0
    %735 = vmatpush1.msra.mxu0 0.0
    %736 = vmatprep.subr.mxu0 0.0
    %737 = vmatpush1.msra.mxu0 0.0
    %738 = vmatprep.subr.mxu0 0.0
    %739 = vmatpush1.msra.mxu0 0.0
    %740 = vmatprep.subr.mxu0 0.0
    %741 = vmatpush1.msra.mxu0 0.0
    %742 = vmatprep.subr.mxu0 0.0
    %743 = vmatpush1.msra.mxu0 0.0
    %744 = vmatprep.subr.mxu0 0.0
    %745 = vmatpush1.msra.mxu0 0.0
    %746 = vmatprep.subr.mxu0 0.0
    %747 = vmatpush1.msra.mxu0 0.0
    %748 = vmatprep.subr.mxu0 0.0
    %749 = vmatpush1.msra.mxu0 0.0
    %750 = vmatprep.subr.mxu0 0.0
    %751 = vmatpush1.msra.mxu0 0.0
    %752 = vmatprep.subr.mxu0 0.0
    %753 = vmatpush1.msra.mxu0 0.0
    %754 = vmatprep.subr.mxu0 0.0
    %755 = vmatpush1.msra.mxu0 0.0
    %756 = vmatprep.subr.mxu0 0.0
    %757 = vmatpush1.msra.mxu0 0.0
    %758 = vmatprep.subr.mxu0 0.0
    %759 = vmatpush1.msra.mxu0 0.0
    %760 = vmatprep.subr.mxu0 0.0
    %761 = vmatpush1.msra.mxu0 0.0
    %762 = vmatprep.subr.mxu0 0.0
    %763 = vmatpush1.msra.mxu0 0.0
    %764 = vmatprep.mubr.f32.mxu0 0.0
    %765 = vmatmul.mubr.f32.gmra.mrb[0].mxu0 %v698
    %v766 = vpop.f32.mrb[0].mxu0
    %v767 = vadd.f32 0.0, %v766
    %v768 = vpop.f32.mrb[0].mxu0
    %769 = vdwg.mxu0
    %v771 = vrot.slane %v767, 4
    %v773 = vadd.f32 %v131, %v771
    %774 = vrot.lane.b32.xlu0 %v607, 32
    %v775 = vpop.permute.xlu0 %774
    %v776 = vsel %vm57, %v775, 0
    %778 = vmatprep.subr.mxu0 0.0
    %779 = vmatpush1.msra.mxu0 %v247
    %780 = vmatprep.subr.mxu0 0.0
    %781 = vmatpush1.msra.mxu0 %v248
    %782 = vmatprep.subr.mxu0 0.0
    %783 = vmatpush1.msra.mxu0 %v249
    %784 = vmatprep.subr.mxu0 0.0
    %785 = vmatpush1.msra.mxu0 %v250
    %786 = vmatprep.subr.mxu0 0.0
    %787 = vmatpush1.msra.mxu0 0.0
    %788 = vmatprep.subr.mxu0 0.0
    %789 = vmatpush1.msra.mxu0 0.0
    %790 = vmatprep.subr.mxu0 0.0
    %791 = vmatpush1.msra.mxu0 0.0
    %792 = vmatprep.subr.mxu0 0.0
    %793 = vmatpush1.msra.mxu0 0.0
    %794 = vmatprep.subr.mxu0 0.0
    %795 = vmatpush1.msra.mxu0 0.0
    %796 = vmatprep.subr.mxu0 0.0
    %797 = vmatpush1.msra.mxu0 0.0
    %798 = vmatprep.subr.mxu0 0.0
    %799 = vmatpush1.msra.mxu0 0.0
    %800 = vmatprep.subr.mxu0 0.0
    %801 = vmatpush1.msra.mxu0 0.0
    %802 = vmatprep.subr.mxu0 0.0
    %803 = vmatpush1.msra.mxu0 0.0
    %804 = vmatprep.subr.mxu0 0.0
    %805 = vmatpush1.msra.mxu0 0.0
    %806 = vmatprep.subr.mxu0 0.0
    %807 = vmatpush1.msra.mxu0 0.0
    %808 = vmatprep.subr.mxu0 0.0
    %809 = vmatpush1.msra.mxu0 0.0
    %810 = vmatprep.subr.mxu0 0.0
    %811 = vmatpush1.msra.mxu0 0.0
    %812 = vmatprep.subr.mxu0 0.0
    %813 = vmatpush1.msra.mxu0 0.0
    %814 = vmatprep.subr.mxu0 0.0
    %815 = vmatpush1.msra.mxu0 0.0
    %816 = vmatprep.subr.mxu0 0.0
    %817 = vmatpush1.msra.mxu0 0.0
    %818 = vmatprep.subr.mxu0 0.0
    %819 = vmatpush1.msra.mxu0 0.0
    %820 = vmatprep.subr.mxu0 0.0
    %821 = vmatpush1.msra.mxu0 0.0
    %822 = vmatprep.subr.mxu0 0.0
    %823 = vmatpush1.msra.mxu0 0.0
    %824 = vmatprep.subr.mxu0 0.0
    %825 = vmatpush1.msra.mxu0 0.0
    %826 = vmatprep.subr.mxu0 0.0
    %827 = vmatpush1.msra.mxu0 0.0
    %828 = vmatprep.subr.mxu0 0.0
    %829 = vmatpush1.msra.mxu0 0.0
    %830 = vmatprep.subr.mxu0 0.0
    %831 = vmatpush1.msra.mxu0 0.0
    %832 = vmatprep.subr.mxu0 0.0
    %833 = vmatpush1.msra.mxu0 0.0
    %834 = vmatprep.subr.mxu0 0.0
    %835 = vmatpush1.msra.mxu0 0.0
    %836 = vmatprep.subr.mxu0 0.0
    %837 = vmatpush1.msra.mxu0 0.0
    %838 = vmatprep.subr.mxu0 0.0
    %839 = vmatpush1.msra.mxu0 0.0
    %840 = vmatprep.subr.mxu0 0.0
    %841 = vmatpush1.msra.mxu0 0.0
    %842 = vmatprep.mubr.f32.mxu0 0.0
    %843 = vmatmul.mubr.f32.gmra.mrb[0].mxu0 %v776
    %v844 = vpop.f32.mrb[0].mxu0
    %v845 = vadd.f32 0.0, %v844
    %v846 = vpop.f32.mrb[0].mxu0
    %847 = vdwg.mxu0
    %v849 = vsel %vm57, %v696, 0
    %851 = vmatprep.subr.mxu0 0.0
    %852 = vmatpush1.msra.mxu0 %v236
    %853 = vmatprep.subr.mxu0 0.0
    %854 = vmatpush1.msra.mxu0 %v237
    %855 = vmatprep.subr.mxu0 0.0
    %856 = vmatpush1.msra.mxu0 %v238
    %857 = vmatprep.subr.mxu0 0.0
    %858 = vmatpush1.msra.mxu0 %v239
    %859 = vmatprep.subr.mxu0 0.0
    %860 = vmatpush1.msra.mxu0 0.0
    %861 = vmatprep.subr.mxu0 0.0
    %862 = vmatpush1.msra.mxu0 0.0
    %863 = vmatprep.subr.mxu0 0.0
    %864 = vmatpush1.msra.mxu0 0.0
    %865 = vmatprep.subr.mxu0 0.0
    %866 = vmatpush1.msra.mxu0 0.0
    %867 = vmatprep.subr.mxu0 0.0
    %868 = vmatpush1.msra.mxu0 0.0
    %869 = vmatprep.subr.mxu0 0.0
    %870 = vmatpush1.msra.mxu0 0.0
    %871 = vmatprep.subr.mxu0 0.0
    %872 = vmatpush1.msra.mxu0 0.0
    %873 = vmatprep.subr.mxu0 0.0
    %874 = vmatpush1.msra.mxu0 0.0
    %875 = vmatprep.subr.mxu0 0.0
    %876 = vmatpush1.msra.mxu0 0.0
    %877 = vmatprep.subr.mxu0 0.0
    %878 = vmatpush1.msra.mxu0 0.0
    %879 = vmatprep.subr.mxu0 0.0
    %880 = vmatpush1.msra.mxu0 0.0
    %881 = vmatprep.subr.mxu0 0.0
    %882 = vmatpush1.msra.mxu0 0.0
    %883 = vmatprep.subr.mxu0 0.0
    %884 = vmatpush1.msra.mxu0 0.0
    %885 = vmatprep.subr.mxu0 0.0
    %886 = vmatpush1.msra.mxu0 0.0
    %887 = vmatprep.subr.mxu0 0.0
    %888 = vmatpush1.msra.mxu0 0.0
    %889 = vmatprep.subr.mxu0 0.0
    %890 = vmatpush1.msra.mxu0 0.0
    %891 = vmatprep.subr.mxu0 0.0
    %892 = vmatpush1.msra.mxu0 0.0
    %893 = vmatprep.subr.mxu0 0.0
    %894 = vmatpush1.msra.mxu0 0.0
    %895 = vmatprep.subr.mxu0 0.0
    %896 = vmatpush1.msra.mxu0 0.0
    %897 = vmatprep.subr.mxu0 0.0
    %898 = vmatpush1.msra.mxu0 0.0
    %899 = vmatprep.subr.mxu0 0.0
    %900 = vmatpush1.msra.mxu0 0.0
    %901 = vmatprep.subr.mxu0 0.0
    %902 = vmatpush1.msra.mxu0 0.0
    %903 = vmatprep.subr.mxu0 0.0
    %904 = vmatpush1.msra.mxu0 0.0
    %905 = vmatprep.subr.mxu0 0.0
    %906 = vmatpush1.msra.mxu0 0.0
    %907 = vmatprep.subr.mxu0 0.0
    %908 = vmatpush1.msra.mxu0 0.0
    %909 = vmatprep.subr.mxu0 0.0
    %910 = vmatpush1.msra.mxu0 0.0
    %911 = vmatprep.subr.mxu0 0.0
    %912 = vmatpush1.msra.mxu0 0.0
    %913 = vmatprep.subr.mxu0 0.0
    %914 = vmatpush1.msra.mxu0 0.0
    %915 = vmatprep.mubr.f32.mxu0 0.0
    %916 = vmatmul.mubr.f32.gmra.mrb[0].mxu0 %v849
    %v917 = vpop.f32.mrb[0].mxu0
    %v918 = vadd.f32 %v845, %v917
    %v919 = vpop.f32.mrb[0].mxu0
    %920 = vdwg.mxu0
    %v921 = vadd.f32 %v918, %v580
    %v922 = vxor.u32 %v921, 2147483648
    %v923 = vmul.f32 %v922, 1.442695
    %v924 = vpow.pop %v923
    %v925 = vadd.f32 %v924, 1.0
    %v926 = vrcp.pop %v925
    %v927 = vmul.f32 1.0, %v926
    %v928 = vtanh.pop %v921
    %v929 = vmul.f32 %v927, %v608
    %931 = vrot.lane.b32.xlu0 %v928, 64
    %v932 = vpop.permute.xlu0 %931
    %v934 = vmul.f32 %v927, %v932
    %936 = vrot.lane.b32.xlu0 %v934, 32
    %v937 = vpop.permute.xlu0 %936
    %v939 = vadd.f32 %v929, %v937
    %v940 = vtanh.pop %v939
    %942 = vrot.lane.b32.xlu0 %v940, 64
    %v943 = vpop.permute.xlu0 %942
    %v945 = vmul.f32 %v927, %v943
    %v946 = vsel %vm679, %v945, %v607
    %v947 = vsel %vm679, %v939, %v608
    %v948 = vsel %vm679, %v945, 0.0
    %v951 = vunpack.c.l.s4 1966171168
    %v952 = vunpack.c.0.s8 %v951
    %v953 = vlaneseq
    %v954 = vshrl.u32 %v953, 7
    %v955 = vsub.s32 %v952, %v954
    %v956 = vrot.slane %v948, %v955
    %v957 = vcombine.high %v956, %v956
    %v959 = vunpack.c.l.s4 1966171168
    %v960 = vunpack.c.0.s8 %v959
    %v961 = vlaneseq
    %v962 = vshrl.u32 %v961, 7
    %v963 = vsub.s32 %v960, %v962
    %v964 = vrot.slane %v956, %v963
    %v966 = vunpack.c.l.s4 1966171168
    %v967 = vunpack.c.0.s8 %v966
    %v968 = vlaneseq
    %v969 = vshrl.u32 %v968, 7
    %v970 = vsub.s32 %v967, %v969
    %v971 = vrot.slane %v957, %v970
    %v972 = vlaneseq
    %v973 = vshrl.u32 %v972, 7
    %v974 = vsub.s32 0, %v973
    %v975 = vrot.slane %v964, %v974
    %v976 = vlaneseq
    %v977 = vshrl.u32 %v976, 7
    %v978 = vsub.s32 0, %v977
    %v979 = vrot.slane %v971, %v978
    %980 = vrot.lane.b32.xlu0 %v975, 32
    %v981 = vpop.permute.xlu0 %980
    %982 = vrot.lane.b32.xlu0 %v979, 32
    %v983 = vpop.permute.xlu0 %982
    %986 = vst.msk [vmem:[#allocation2 + $0x1] sm:$0x1] %vm646, %v981
    %987 = vst.msk [vmem:[#allocation2 + $0x9] sm:$0x1] %vm646, %v983
    %v988 = vxor.u32 %v773, 2147483648
    %v989 = vmul.f32 %v988, 1.442695
    %v990 = vpow.pop %v989
    %v991 = vadd.f32 %v990, 1.0
    %v992 = vrcp.pop %v991
    %v993 = vmul.f32 1.0, %v992
    %v994 = vtanh.pop %v773
    %v996 = vrot.slane %v695, 4
    %997 = vrot.lane.b32.xlu0 %v996, 32
    %v998 = vpop.permute.xlu0 %997
    %v1000 = vmul.f32 %v993, %v998
    %1002 = vrot.lane.b32.xlu0 %v994, 64
    %v1003 = vpop.permute.xlu0 %1002
    %v1005 = vmul.f32 %v993, %v1003
    %1007 = vrot.lane.b32.xlu0 %v1005, 32
    %v1008 = vpop.permute.xlu0 %1007
    %v1010 = vadd.f32 %v1000, %v1008
    %v1011 = vtanh.pop %v1010
    %1013 = vrot.lane.b32.xlu0 %v1011, 64
    %v1014 = vpop.permute.xlu0 %1013
    %v1016 = vmul.f32 %v993, %v1014
    %1017 = vset.pattern.permute.xlu0 2
    %1018 = vperm.xlu0 %1017, %v350
    %v1019 = vpop.permute.xlu0 %1018
    %vm1020 = vcmp.eq.s32.totalorder %v1019, 1
    %v1022 = vrot.slane %v1016, 4
    %1023 = vrot.lane.b32.xlu0 %v1022, 32
    %v1024 = vpop.permute.xlu0 %1023
    %v1026 = vsel %vm1020, %v1024, %v686
    %v1028 = vrot.slane %v1010, 4
    %1029 = vrot.lane.b32.xlu0 %v1028, 96
    %v1030 = vpop.permute.xlu0 %1029
    %v1032 = vsel %vm1020, %v1030, %v695
    %v1033 = vsel %vm1020, %v1024, 0.0
    %v1035 = vsel %vm57, %v1026, 0
    %1037 = vmatprep.subr.mxu0 0.0
    %1038 = vmatpush1.msra.mxu0 %v242
    %1039 = vmatprep.subr.mxu0 0.0
    %1040 = vmatpush1.msra.mxu0 %v243
    %1041 = vmatprep.subr.mxu0 0.0
    %1042 = vmatpush1.msra.mxu0 %v244
    %1043 = vmatprep.subr.mxu0 0.0
    %1044 = vmatpush1.msra.mxu0 %v245
    %1045 = vmatprep.subr.mxu0 0.0
    %1046 = vmatpush1.msra.mxu0 0.0
    %1047 = vmatprep.subr.mxu0 0.0
    %1048 = vmatpush1.msra.mxu0 0.0
    %1049 = vmatprep.subr.mxu0 0.0
    %1050 = vmatpush1.msra.mxu0 0.0
    %1051 = vmatprep.subr.mxu0 0.0
    %1052 = vmatpush1.msra.mxu0 0.0
    %1053 = vmatprep.subr.mxu0 0.0
    %1054 = vmatpush1.msra.mxu0 0.0
    %1055 = vmatprep.subr.mxu0 0.0
    %1056 = vmatpush1.msra.mxu0 0.0
    %1057 = vmatprep.subr.mxu0 0.0
    %1058 = vmatpush1.msra.mxu0 0.0
    %1059 = vmatprep.subr.mxu0 0.0
    %1060 = vmatpush1.msra.mxu0 0.0
    %1061 = vmatprep.subr.mxu0 0.0
    %1062 = vmatpush1.msra.mxu0 0.0
    %1063 = vmatprep.subr.mxu0 0.0
    %1064 = vmatpush1.msra.mxu0 0.0
    %1065 = vmatprep.subr.mxu0 0.0
    %1066 = vmatpush1.msra.mxu0 0.0
    %1067 = vmatprep.subr.mxu0 0.0
    %1068 = vmatpush1.msra.mxu0 0.0
    %1069 = vmatprep.subr.mxu0 0.0
    %1070 = vmatpush1.msra.mxu0 0.0
    %1071 = vmatprep.subr.mxu0 0.0
    %1072 = vmatpush1.msra.mxu0 0.0
    %1073 = vmatprep.subr.mxu0 0.0
    %1074 = vmatpush1.msra.mxu0 0.0
    %1075 = vmatprep.subr.mxu0 0.0
    %1076 = vmatpush1.msra.mxu0 0.0
    %1077 = vmatprep.subr.mxu0 0.0
    %1078 = vmatpush1.msra.mxu0 0.0
    %1079 = vmatprep.subr.mxu0 0.0
    %1080 = vmatpush1.msra.mxu0 0.0
    %1081 = vmatprep.subr.mxu0 0.0
    %1082 = vmatpush1.msra.mxu0 0.0
    %1083 = vmatprep.subr.mxu0 0.0
    %1084 = vmatpush1.msra.mxu0 0.0
    %1085 = vmatprep.subr.mxu0 0.0
    %1086 = vmatpush1.msra.mxu0 0.0
    %1087 = vmatprep.subr.mxu0 0.0
    %1088 = vmatpush1.msra.mxu0 0.0
    %1089 = vmatprep.subr.mxu0 0.0
    %1090 = vmatpush1.msra.mxu0 0.0
    %1091 = vmatprep.subr.mxu0 0.0
    %1092 = vmatpush1.msra.mxu0 0.0
    %1093 = vmatprep.subr.mxu0 0.0
    %1094 = vmatpush1.msra.mxu0 0.0
    %1095 = vmatprep.subr.mxu0 0.0
    %1096 = vmatpush1.msra.mxu0 0.0
    %1097 = vmatprep.subr.mxu0 0.0
    %1098 = vmatpush1.msra.mxu0 0.0
    %1099 = vmatprep.subr.mxu0 0.0
    %1100 = vmatpush1.msra.mxu0 0.0
    %1101 = vmatprep.mubr.f32.mxu0 0.0
    %1102 = vmatmul.mubr.f32.gmra.mrb[0].mxu0 %v1035
    %v1103 = vpop.f32.mrb[0].mxu0
    %v1104 = vadd.f32 0.0, %v1103
    %v1105 = vpop.f32.mrb[0].mxu0
    %1106 = vdwg.mxu0
    %v1108 = vrot.slane %v1104, 2
    %v1110 = vadd.f32 %v131, %v1108
    %1112 = vrot.lane.b32.xlu0 %v946, 32
    %v1113 = vpop.permute.xlu0 %1112
    %v1114 = vsel %vm57, %v1113, 0
    %1116 = vmatprep.subr.mxu0 0.0
    %1117 = vmatpush1.msra.mxu0 %v247
    %1118 = vmatprep.subr.mxu0 0.0
    %1119 = vmatpush1.msra.mxu0 %v248
    %1120 = vmatprep.subr.mxu0 0.0
    %1121 = vmatpush1.msra.mxu0 %v249
    %1122 = vmatprep.subr.mxu0 0.0
    %1123 = vmatpush1.msra.mxu0 %v250
    %1124 = vmatprep.subr.mxu0 0.0
    %1125 = vmatpush1.msra.mxu0 0.0
    %1126 = vmatprep.subr.mxu0 0.0
    %1127 = vmatpush1.msra.mxu0 0.0
    %1128 = vmatprep.subr.mxu0 0.0
    %1129 = vmatpush1.msra.mxu0 0.0
    %1130 = vmatprep.subr.mxu0 0.0
    %1131 = vmatpush1.msra.mxu0 0.0
    %1132 = vmatprep.subr.mxu0 0.0
    %1133 = vmatpush1.msra.mxu0 0.0
    %1134 = vmatprep.subr.mxu0 0.0
    %1135 = vmatpush1.msra.mxu0 0.0
    %1136 = vmatprep.subr.mxu0 0.0
    %1137 = vmatpush1.msra.mxu0 0.0
    %1138 = vmatprep.subr.mxu0 0.0
    %1139 = vmatpush1.msra.mxu0 0.0
    %1140 = vmatprep.subr.mxu0 0.0
    %1141 = vmatpush1.msra.mxu0 0.0
    %1142 = vmatprep.subr.mxu0 0.0
    %1143 = vmatpush1.msra.mxu0 0.0
    %1144 = vmatprep.subr.mxu0 0.0
    %1145 = vmatpush1.msra.mxu0 0.0
    %1146 = vmatprep.subr.mxu0 0.0
    %1147 = vmatpush1.msra.mxu0 0.0
    %1148 = vmatprep.subr.mxu0 0.0
    %1149 = vmatpush1.msra.mxu0 0.0
    %1150 = vmatprep.subr.mxu0 0.0
    %1151 = vmatpush1.msra.mxu0 0.0
    %1152 = vmatprep.subr.mxu0 0.0
    %1153 = vmatpush1.msra.mxu0 0.0
    %1154 = vmatprep.subr.mxu0 0.0
    %1155 = vmatpush1.msra.mxu0 0.0
    %1156 = vmatprep.subr.mxu0 0.0
    %1157 = vmatpush1.msra.mxu0 0.0
    %1158 = vmatprep.subr.mxu0 0.0
    %1159 = vmatpush1.msra.mxu0 0.0
    %1160 = vmatprep.subr.mxu0 0.0
    %1161 = vmatpush1.msra.mxu0 0.0
    %1162 = vmatprep.subr.mxu0 0.0
    %1163 = vmatpush1.msra.mxu0 0.0
    %1164 = vmatprep.subr.mxu0 0.0
    %1165 = vmatpush1.msra.mxu0 0.0
    %1166 = vmatprep.subr.mxu0 0.0
    %1167 = vmatpush1.msra.mxu0 0.0
    %1168 = vmatprep.subr.mxu0 0.0
    %1169 = vmatpush1.msra.mxu0 0.0
    %1170 = vmatprep.subr.mxu0 0.0
    %1171 = vmatpush1.msra.mxu0 0.0
    %1172 = vmatprep.subr.mxu0 0.0
    %1173 = vmatpush1.msra.mxu0 0.0
    %1174 = vmatprep.subr.mxu0 0.0
    %1175 = vmatpush1.msra.mxu0 0.0
    %1176 = vmatprep.subr.mxu0 0.0
    %1177 = vmatpush1.msra.mxu0 0.0
    %1178 = vmatprep.subr.mxu0 0.0
    %1179 = vmatpush1.msra.mxu0 0.0
    %1180 = vmatprep.mubr.f32.mxu0 0.0
    %1181 = vmatmul.mubr.f32.gmra.mrb[0].mxu0 %v1114
    %v1182 = vpop.f32.mrb[0].mxu0
    %v1183 = vadd.f32 0.0, %v1182
    %v1184 = vpop.f32.mrb[0].mxu0
    %1185 = vdwg.mxu0
    %v1187 = vsel %vm57, %v1033, 0
    %1189 = vmatprep.subr.mxu0 0.0
    %1190 = vmatpush1.msra.mxu0 %v236
    %1191 = vmatprep.subr.mxu0 0.0
    %1192 = vmatpush1.msra.mxu0 %v237
    %1193 = vmatprep.subr.mxu0 0.0
    %1194 = vmatpush1.msra.mxu0 %v238
    %1195 = vmatprep.subr.mxu0 0.0
    %1196 = vmatpush1.msra.mxu0 %v239
    %1197 = vmatprep.subr.mxu0 0.0
    %1198 = vmatpush1.msra.mxu0 0.0
    %1199 = vmatprep.subr.mxu0 0.0
    %1200 = vmatpush1.msra.mxu0 0.0
    %1201 = vmatprep.subr.mxu0 0.0
    %1202 = vmatpush1.msra.mxu0 0.0
    %1203 = vmatprep.subr.mxu0 0.0
    %1204 = vmatpush1.msra.mxu0 0.0
    %1205 = vmatprep.subr.mxu0 0.0
    %1206 = vmatpush1.msra.mxu0 0.0
    %1207 = vmatprep.subr.mxu0 0.0
    %1208 = vmatpush1.msra.mxu0 0.0
    %1209 = vmatprep.subr.mxu0 0.0
    %1210 = vmatpush1.msra.mxu0 0.0
    %1211 = vmatprep.subr.mxu0 0.0
    %1212 = vmatpush1.msra.mxu0 0.0
    %1213 = vmatprep.subr.mxu0 0.0
    %1214 = vmatpush1.msra.mxu0 0.0
    %1215 = vmatprep.subr.mxu0 0.0
    %1216 = vmatpush1.msra.mxu0 0.0
    %1217 = vmatprep.subr.mxu0 0.0
    %1218 = vmatpush1.msra.mxu0 0.0
    %1219 = vmatprep.subr.mxu0 0.0
    %1220 = vmatpush1.msra.mxu0 0.0
    %1221 = vmatprep.subr.mxu0 0.0
    %1222 = vmatpush1.msra.mxu0 0.0
    %1223 = vmatprep.subr.mxu0 0.0
    %1224 = vmatpush1.msra.mxu0 0.0
    %1225 = vmatprep.subr.mxu0 0.0
    %1226 = vmatpush1.msra.mxu0 0.0
    %1227 = vmatprep.subr.mxu0 0.0
    %1228 = vmatpush1.msra.mxu0 0.0
    %1229 = vmatprep.subr.mxu0 0.0
    %1230 = vmatpush1.msra.mxu0 0.0
    %1231 = vmatprep.subr.mxu0 0.0
    %1232 = vmatpush1.msra.mxu0 0.0
    %1233 = vmatprep.subr.mxu0 0.0
    %1234 = vmatpush1.msra.mxu0 0.0
    %1235 = vmatprep.subr.mxu0 0.0
    %1236 = vmatpush1.msra.mxu0 0.0
    %1237 = vmatprep.subr.mxu0 0.0
    %1238 = vmatpush1.msra.mxu0 0.0
    %1239 = vmatprep.subr.mxu0 0.0
    %1240 = vmatpush1.msra.mxu0 0.0
    %1241 = vmatprep.subr.mxu0 0.0
    %1242 = vmatpush1.msra.mxu0 0.0
    %1243 = vmatprep.subr.mxu0 0.0
    %1244 = vmatpush1.msra.mxu0 0.0
    %1245 = vmatprep.subr.mxu0 0.0
    %1246 = vmatpush1.msra.mxu0 0.0
    %1247 = vmatprep.subr.mxu0 0.0
    %1248 = vmatpush1.msra.mxu0 0.0
    %1249 = vmatprep.subr.mxu0 0.0
    %1250 = vmatpush1.msra.mxu0 0.0
    %1251 = vmatprep.subr.mxu0 0.0
    %1252 = vmatpush1.msra.mxu0 0.0
    %1253 = vmatprep.mubr.f32.mxu0 0.0
    %1254 = vmatmul.mubr.f32.gmra.mrb[0].mxu0 %v1187
    %v1255 = vpop.f32.mrb[0].mxu0
    %v1256 = vadd.f32 %v1183, %v1255
    %v1257 = vpop.f32.mrb[0].mxu0
    %1258 = vdwg.mxu0
    %v1259 = vadd.f32 %v1256, %v580
    %v1260 = vxor.u32 %v1259, 2147483648
    %v1261 = vmul.f32 %v1260, 1.442695
    %v1262 = vpow.pop %v1261
    %v1263 = vadd.f32 %v1262, 1.0
    %v1264 = vrcp.pop %v1263
    %v1265 = vmul.f32 1.0, %v1264
    %v1266 = vtanh.pop %v1259
    %v1267 = vmul.f32 %v1265, %v947
    %1269 = vrot.lane.b32.xlu0 %v1266, 64
    %v1270 = vpop.permute.xlu0 %1269
    %v1272 = vmul.f32 %v1265, %v1270
    %1274 = vrot.lane.b32.xlu0 %v1272, 32
    %v1275 = vpop.permute.xlu0 %1274
    %v1277 = vadd.f32 %v1267, %v1275
    %v1278 = vtanh.pop %v1277
    %1280 = vrot.lane.b32.xlu0 %v1278, 64
    %v1281 = vpop.permute.xlu0 %1280
    %v1283 = vmul.f32 %v1265, %v1281
    %v1284 = vsel %vm1020, %v1283, %v946
    %v1285 = vsel %vm1020, %v1277, %v947
    %v1286 = vsel %vm1020, %v1283, 0.0
    %v1289 = vunpack.c.l.s4 1966171168
    %v1290 = vunpack.c.0.s8 %v1289
    %v1291 = vlaneseq
    %v1292 = vshrl.u32 %v1291, 7
    %v1293 = vsub.s32 %v1290, %v1292
    %v1294 = vrot.slane %v1286, %v1293
    %v1295 = vcombine.high %v1294, %v1294
    %v1297 = vunpack.c.l.s4 1966171168
    %v1298 = vunpack.c.0.s8 %v1297
    %v1299 = vlaneseq
    %v1300 = vshrl.u32 %v1299, 7
    %v1301 = vsub.s32 %v1298, %v1300
    %v1302 = vrot.slane %v1294, %v1301
    %v1304 = vunpack.c.l.s4 1966171168
    %v1305 = vunpack.c.0.s8 %v1304
    %v1306 = vlaneseq
    %v1307 = vshrl.u32 %v1306, 7
    %v1308 = vsub.s32 %v1305, %v1307
    %v1309 = vrot.slane %v1295, %v1308
    %v1310 = vlaneseq
    %v1311 = vshrl.u32 %v1310, 7
    %v1312 = vsub.s32 0, %v1311
    %v1313 = vrot.slane %v1302, %v1312
    %v1314 = vlaneseq
    %v1315 = vshrl.u32 %v1314, 7
    %v1316 = vsub.s32 0, %v1315
    %v1317 = vrot.slane %v1309, %v1316
    %1318 = vrot.lane.b32.xlu0 %v1313, 32
    %v1319 = vpop.permute.xlu0 %1318
    %1320 = vrot.lane.b32.xlu0 %v1317, 32
    %v1321 = vpop.permute.xlu0 %1320
    %1324 = vst.msk [vmem:[#allocation2 + $0x2] sm:$0x1] %vm646, %v1319
    %1325 = vst.msk [vmem:[#allocation2 + $0xa] sm:$0x1] %vm646, %v1321
    %v1326 = vxor.u32 %v1110, 2147483648
    %v1327 = vmul.f32 %v1326, 1.442695
    %v1328 = vpow.pop %v1327
    %v1329 = vadd.f32 %v1328, 1.0
    %v1330 = vrcp.pop %v1329
    %v1331 = vmul.f32 1.0, %v1330
    %v1332 = vtanh.pop %v1110
    %v1334 = vrot.slane %v1032, 2
    %1335 = vrot.lane.b32.xlu0 %v1334, 32
    %v1336 = vpop.permute.xlu0 %1335
    %v1338 = vmul.f32 %v1331, %v1336
    %1340 = vrot.lane.b32.xlu0 %v1332, 64
    %v1341 = vpop.permute.xlu0 %1340
    %v1343 = vmul.f32 %v1331, %v1341
    %1345 = vrot.lane.b32.xlu0 %v1343, 32
    %v1346 = vpop.permute.xlu0 %1345
    %v1348 = vadd.f32 %v1338, %v1346
    %v1349 = vtanh.pop %v1348
    %1351 = vrot.lane.b32.xlu0 %v1349, 64
    %v1352 = vpop.permute.xlu0 %1351
    %v1354 = vmul.f32 %v1331, %v1352
    %1355 = vset.pattern.permute.xlu0 3
    %1356 = vperm.xlu0 %1355, %v350
    %v1357 = vpop.permute.xlu0 %1356
    %vm1358 = vcmp.eq.s32.totalorder %v1357, 1
    %v1360 = vrot.slane %v1354, 6
    %1361 = vrot.lane.b32.xlu0 %v1360, 32
    %v1362 = vpop.permute.xlu0 %1361
    %v1364 = vsel %vm1358, %v1362, %v1026
    %v1366 = vrot.slane %v1348, 6
    %1367 = vrot.lane.b32.xlu0 %v1366, 96
    %v1368 = vpop.permute.xlu0 %1367
    %v1370 = vsel %vm1358, %v1368, %v1032
    %v1371 = vsel %vm1358, %v1362, 0.0
    %v1373 = vsel %vm57, %v1364, 0
    %1375 = vmatprep.subr.mxu0 0.0
    %1376 = vmatpush1.msra.mxu0 %v242
    %1377 = vmatprep.subr.mxu0 0.0
    %1378 = vmatpush1.msra.mxu0 %v243
    %1379 = vmatprep.subr.mxu0 0.0
    %1380 = vmatpush1.msra.mxu0 %v244
    %1381 = vmatprep.subr.mxu0 0.0
    %1382 = vmatpush1.msra.mxu0 %v245
    %1383 = vmatprep.subr.mxu0 0.0
    %1384 = vmatpush1.msra.mxu0 0.0
    %1385 = vmatprep.subr.mxu0 0.0
    %1386 = vmatpush1.msra.mxu0 0.0
    %1387 = vmatprep.subr.mxu0 0.0
    %1388 = vmatpush1.msra.mxu0 0.0
    %1389 = vmatprep.subr.mxu0 0.0
    %1390 = vmatpush1.msra.mxu0 0.0
    %1391 = vmatprep.subr.mxu0 0.0
    %1392 = vmatpush1.msra.mxu0 0.0
    %1393 = vmatprep.subr.mxu0 0.0
    %1394 = vmatpush1.msra.mxu0 0.0
    %1395 = vmatprep.subr.mxu0 0.0
    %1396 = vmatpush1.msra.mxu0 0.0
    %1397 = vmatprep.subr.mxu0 0.0
    %1398 = vmatpush1.msra.mxu0 0.0
    %1399 = vmatprep.subr.mxu0 0.0
    %1400 = vmatpush1.msra.mxu0 0.0
    %1401 = vmatprep.subr.mxu0 0.0
    %1402 = vmatpush1.msra.mxu0 0.0
    %1403 = vmatprep.subr.mxu0 0.0
    %1404 = vmatpush1.msra.mxu0 0.0
    %1405 = vmatprep.subr.mxu0 0.0
    %1406 = vmatpush1.msra.mxu0 0.0
    %1407 = vmatprep.subr.mxu0 0.0
    %1408 = vmatpush1.msra.mxu0 0.0
    %1409 = vmatprep.subr.mxu0 0.0
    %1410 = vmatpush1.msra.mxu0 0.0
    %1411 = vmatprep.subr.mxu0 0.0
    %1412 = vmatpush1.msra.mxu0 0.0
    %1413 = vmatprep.subr.mxu0 0.0
    %1414 = vmatpush1.msra.mxu0 0.0
    %1415 = vmatprep.subr.mxu0 0.0
    %1416 = vmatpush1.msra.mxu0 0.0
    %1417 = vmatprep.subr.mxu0 0.0
    %1418 = vmatpush1.msra.mxu0 0.0
    %1419 = vmatprep.subr.mxu0 0.0
    %1420 = vmatpush1.msra.mxu0 0.0
    %1421 = vmatprep.subr.mxu0 0.0
    %1422 = vmatpush1.msra.mxu0 0.0
    %1423 = vmatprep.subr.mxu0 0.0
    %1424 = vmatpush1.msra.mxu0 0.0
    %1425 = vmatprep.subr.mxu0 0.0
    %1426 = vmatpush1.msra.mxu0 0.0
    %1427 = vmatprep.subr.mxu0 0.0
    %1428 = vmatpush1.msra.mxu0 0.0
    %1429 = vmatprep.subr.mxu0 0.0
    %1430 = vmatpush1.msra.mxu0 0.0
    %1431 = vmatprep.subr.mxu0 0.0
    %1432 = vmatpush1.msra.mxu0 0.0
    %1433 = vmatprep.subr.mxu0 0.0
    %1434 = vmatpush1.msra.mxu0 0.0
    %1435 = vmatprep.subr.mxu0 0.0
    %1436 = vmatpush1.msra.mxu0 0.0
    %1437 = vmatprep.subr.mxu0 0.0
    %1438 = vmatpush1.msra.mxu0 0.0
    %1439 = vmatprep.mubr.f32.mxu0 0.0
    %1440 = vmatmul.mubr.f32.gmra.mrb[0].mxu0 %v1373
    %v1441 = vpop.f32.mrb[0].mxu0
    %v1442 = vadd.f32 0.0, %v1441
    %v1443 = vpop.f32.mrb[0].mxu0
    %1444 = vdwg.mxu0
    %v1445 = vadd.f32 %v136, %v1442
    %1447 = vrot.lane.b32.xlu0 %v1284, 32
    %v1448 = vpop.permute.xlu0 %1447
    %v1449 = vsel %vm57, %v1448, 0
    %1451 = vmatprep.subr.mxu0 0.0
    %1452 = vmatpush1.msra.mxu0 %v247
    %1453 = vmatprep.subr.mxu0 0.0
    %1454 = vmatpush1.msra.mxu0 %v248
    %1455 = vmatprep.subr.mxu0 0.0
    %1456 = vmatpush1.msra.mxu0 %v249
    %1457 = vmatprep.subr.mxu0 0.0
    %1458 = vmatpush1.msra.mxu0 %v250
    %1459 = vmatprep.subr.mxu0 0.0
    %1460 = vmatpush1.msra.mxu0 0.0
    %1461 = vmatprep.subr.mxu0 0.0
    %1462 = vmatpush1.msra.mxu0 0.0
    %1463 = vmatprep.subr.mxu0 0.0
    %1464 = vmatpush1.msra.mxu0 0.0
    %1465 = vmatprep.subr.mxu0 0.0
    %1466 = vmatpush1.msra.mxu0 0.0
    %1467 = vmatprep.subr.mxu0 0.0
    %1468 = vmatpush1.msra.mxu0 0.0
    %1469 = vmatprep.subr.mxu0 0.0
    %1470 = vmatpush1.msra.mxu0 0.0
    %1471 = vmatprep.subr.mxu0 0.0
    %1472 = vmatpush1.msra.mxu0 0.0
    %1473 = vmatprep.subr.mxu0 0.0
    %1474 = vmatpush1.msra.mxu0 0.0
    %1475 = vmatprep.subr.mxu0 0.0
    %1476 = vmatpush1.msra.mxu0 0.0
    %1477 = vmatprep.subr.mxu0 0.0
    %1478 = vmatpush1.msra.mxu0 0.0
    %1479 = vmatprep.subr.mxu0 0.0
    %1480 = vmatpush1.msra.mxu0 0.0
    %1481 = vmatprep.subr.mxu0 0.0
    %1482 = vmatpush1.msra.mxu0 0.0
    %1483 = vmatprep.subr.mxu0 0.0
    %1484 = vmatpush1.msra.mxu0 0.0
    %1485 = vmatprep.subr.mxu0 0.0
    %1486 = vmatpush1.msra.mxu0 0.0
    %1487 = vmatprep.subr.mxu0 0.0
    %1488 = vmatpush1.msra.mxu0 0.0
    %1489 = vmatprep.subr.mxu0 0.0
    %1490 = vmatpush1.msra.mxu0 0.0
    %1491 = vmatprep.subr.mxu0 0.0
    %1492 = vmatpush1.msra.mxu0 0.0
    %1493 = vmatprep.subr.mxu0 0.0
    %1494 = vmatpush1.msra.mxu0 0.0
    %1495 = vmatprep.subr.mxu0 0.0
    %1496 = vmatpush1.msra.mxu0 0.0
    %1497 = vmatprep.subr.mxu0 0.0
    %1498 = vmatpush1.msra.mxu0 0.0
    %1499 = vmatprep.subr.mxu0 0.0
    %1500 = vmatpush1.msra.mxu0 0.0
    %1501 = vmatprep.subr.mxu0 0.0
    %1502 = vmatpush1.msra.mxu0 0.0
    %1503 = vmatprep.subr.mxu0 0.0
    %1504 = vmatpush1.msra.mxu0 0.0
    %1505 = vmatprep.subr.mxu0 0.0
    %1506 = vmatpush1.msra.mxu0 0.0
    %1507 = vmatprep.subr.mxu0 0.0
    %1508 = vmatpush1.msra.mxu0 0.0
    %1509 = vmatprep.subr.mxu0 0.0
    %1510 = vmatpush1.msra.mxu0 0.0
    %1511 = vmatprep.subr.mxu0 0.0
    %1512 = vmatpush1.msra.mxu0 0.0
    %1513 = vmatprep.subr.mxu0 0.0
    %1514 = vmatpush1.msra.mxu0 0.0
    %1515 = vmatprep.mubr.f32.mxu0 0.0
    %1516 = vmatmul.mubr.f32.gmra.mrb[0].mxu0 %v1449
    %v1517 = vpop.f32.mrb[0].mxu0
    %v1518 = vadd.f32 0.0, %v1517
    %v1519 = vpop.f32.mrb[0].mxu0
    %1520 = vdwg.mxu0
    %v1522 = vsel %vm57, %v1371, 0
    %1524 = vmatprep.subr.mxu0 0.0
    %1525 = vmatpush1.msra.mxu0 %v236
    %1526 = vmatprep.subr.mxu0 0.0
    %1527 = vmatpush1.msra.mxu0 %v237
    %1528 = vmatprep.subr.mxu0 0.0
    %1529 = vmatpush1.msra.mxu0 %v238
    %1530 = vmatprep.subr.mxu0 0.0
    %1531 = vmatpush1.msra.mxu0 %v239
    %1532 = vmatprep.subr.mxu0 0.0
    %1533 = vmatpush1.msra.mxu0 0.0
    %1534 = vmatprep.subr.mxu0 0.0
    %1535 = vmatpush1.msra.mxu0 0.0
    %1536 = vmatprep.subr.mxu0 0.0
    %1537 = vmatpush1.msra.mxu0 0.0
    %1538 = vmatprep.subr.mxu0 0.0
    %1539 = vmatpush1.msra.mxu0 0.0
    %1540 = vmatprep.subr.mxu0 0.0
    %1541 = vmatpush1.msra.mxu0 0.0
    %1542 = vmatprep.subr.mxu0 0.0
    %1543 = vmatpush1.msra.mxu0 0.0
    %1544 = vmatprep.subr.mxu0 0.0
    %1545 = vmatpush1.msra.mxu0 0.0
    %1546 = vmatprep.subr.mxu0 0.0
    %1547 = vmatpush1.msra.mxu0 0.0
    %1548 = vmatprep.subr.mxu0 0.0
    %1549 = vmatpush1.msra.mxu0 0.0
    %1550 = vmatprep.subr.mxu0 0.0
    %1551 = vmatpush1.msra.mxu0 0.0
    %1552 = vmatprep.subr.mxu0 0.0
    %1553 = vmatpush1.msra.mxu0 0.0
    %1554 = vmatprep.subr.mxu0 0.0
    %1555 = vmatpush1.msra.mxu0 0.0
    %1556 = vmatprep.subr.mxu0 0.0
    %1557 = vmatpush1.msra.mxu0 0.0
    %1558 = vmatprep.subr.mxu0 0.0
    %1559 = vmatpush1.msra.mxu0 0.0
    %1560 = vmatprep.subr.mxu0 0.0
    %1561 = vmatpush1.msra.mxu0 0.0
    %1562 = vmatprep.subr.mxu0 0.0
    %1563 = vmatpush1.msra.mxu0 0.0
    %1564 = vmatprep.subr.mxu0 0.0
    %1565 = vmatpush1.msra.mxu0 0.0
    %1566 = vmatprep.subr.mxu0 0.0
    %1567 = vmatpush1.msra.mxu0 0.0
    %1568 = vmatprep.subr.mxu0 0.0
    %1569 = vmatpush1.msra.mxu0 0.0
    %1570 = vmatprep.subr.mxu0 0.0
    %1571 = vmatpush1.msra.mxu0 0.0
    %1572 = vmatprep.subr.mxu0 0.0
    %1573 = vmatpush1.msra.mxu0 0.0
    %1574 = vmatprep.subr.mxu0 0.0
    %1575 = vmatpush1.msra.mxu0 0.0
    %1576 = vmatprep.subr.mxu0 0.0
    %1577 = vmatpush1.msra.mxu0 0.0
    %1578 = vmatprep.subr.mxu0 0.0
    %1579 = vmatpush1.msra.mxu0 0.0
    %1580 = vmatprep.subr.mxu0 0.0
    %1581 = vmatpush1.msra.mxu0 0.0
    %1582 = vmatprep.subr.mxu0 0.0
    %1583 = vmatpush1.msra.mxu0 0.0
    %1584 = vmatprep.subr.mxu0 0.0
    %1585 = vmatpush1.msra.mxu0 0.0
    %1586 = vmatprep.subr.mxu0 0.0
    %1587 = vmatpush1.msra.mxu0 0.0
    %1588 = vmatprep.mubr.f32.mxu0 0.0
    %1589 = vmatmul.mubr.f32.gmra.mrb[0].mxu0 %v1522
    %v1590 = vpop.f32.mrb[0].mxu0
    %v1591 = vadd.f32 %v1518, %v1590
    %v1592 = vpop.f32.mrb[0].mxu0
    %1593 = vdwg.mxu0
    %v1594 = vadd.f32 %v1591, %v580
    %v1595 = vxor.u32 %v1594, 2147483648
    %v1596 = vmul.f32 %v1595, 1.442695
    %v1597 = vpow.pop %v1596
    %v1598 = vadd.f32 %v1597, 1.0
    %v1599 = vrcp.pop %v1598
    %v1600 = vmul.f32 1.0, %v1599
    %v1601 = vtanh.pop %v1594
    %v1602 = vmul.f32 %v1600, %v1285
    %1604 = vrot.lane.b32.xlu0 %v1601, 64
    %v1605 = vpop.permute.xlu0 %1604
    %v1607 = vmul.f32 %v1600, %v1605
    %1609 = vrot.lane.b32.xlu0 %v1607, 32
    %v1610 = vpop.permute.xlu0 %1609
    %v1612 = vadd.f32 %v1602, %v1610
    %v1613 = vtanh.pop %v1612
    %1615 = vrot.lane.b32.xlu0 %v1613, 64
    %v1616 = vpop.permute.xlu0 %1615
    %v1618 = vmul.f32 %v1600, %v1616
    %v1619 = vsel %vm1358, %v1618, %v1284
    %v1620 = vsel %vm1358, %v1612, %v1285
    %v1621 = vsel %vm1358, %v1618, 0.0
    %v1624 = vunpack.c.l.s4 1966171168
    %v1625 = vunpack.c.0.s8 %v1624
    %v1626 = vlaneseq
    %v1627 = vshrl.u32 %v1626, 7
    %v1628 = vsub.s32 %v1625, %v1627
    %v1629 = vrot.slane %v1621, %v1628
    %v1630 = vcombine.high %v1629, %v1629
    %v1632 = vunpack.c.l.s4 1966171168
    %v1633 = vunpack.c.0.s8 %v1632
    %v1634 = vlaneseq
    %v1635 = vshrl.u32 %v1634, 7
    %v1636 = vsub.s32 %v1633, %v1635
    %v1637 = vrot.slane %v1629, %v1636
    %v1639 = vunpack.c.l.s4 1966171168
    %v1640 = vunpack.c.0.s8 %v1639
    %v1641 = vlaneseq
    %v1642 = vshrl.u32 %v1641, 7
    %v1643 = vsub.s32 %v1640, %v1642
    %v1644 = vrot.slane %v1630, %v1643
    %v1645 = vlaneseq
    %v1646 = vshrl.u32 %v1645, 7
    %v1647 = vsub.s32 0, %v1646
    %v1648 = vrot.slane %v1637, %v1647
    %v1649 = vlaneseq
    %v1650 = vshrl.u32 %v1649, 7
    %v1651 = vsub.s32 0, %v1650
    %v1652 = vrot.slane %v1644, %v1651
    %1653 = vrot.lane.b32.xlu0 %v1648, 32
    %v1654 = vpop.permute.xlu0 %1653
    %1655 = vrot.lane.b32.xlu0 %v1652, 32
    %v1656 = vpop.permute.xlu0 %1655
    %1659 = vst.msk [vmem:[#allocation2 + $0x3] sm:$0x1] %vm646, %v1654
    %1660 = vst.msk [vmem:[#allocation2 + $0xb] sm:$0x1] %vm646, %v1656
    %v1661 = vxor.u32 %v1445, 2147483648
    %v1662 = vmul.f32 %v1661, 1.442695
    %v1663 = vpow.pop %v1662
    %v1664 = vadd.f32 %v1663, 1.0
    %v1665 = vrcp.pop %v1664
    %v1666 = vmul.f32 1.0, %v1665
    %v1667 = vtanh.pop %v1445
    %1669 = vrot.lane.b32.xlu0 %v1370, 32
    %v1670 = vpop.permute.xlu0 %1669
    %v1672 = vmul.f32 %v1666, %v1670
    %1674 = vrot.lane.b32.xlu0 %v1667, 64
    %v1675 = vpop.permute.xlu0 %1674
    %v1677 = vmul.f32 %v1666, %v1675
    %1679 = vrot.lane.b32.xlu0 %v1677, 32
    %v1680 = vpop.permute.xlu0 %1679
    %v1682 = vadd.f32 %v1672, %v1680
    %v1683 = vtanh.pop %v1682
    %1685 = vrot.lane.b32.xlu0 %v1683, 64
    %v1686 = vpop.permute.xlu0 %1685
    %v1688 = vmul.f32 %v1666, %v1686
    %1689 = vset.pattern.permute.xlu0 4
    %1690 = vperm.xlu0 %1689, %v350
    %v1691 = vpop.permute.xlu0 %1690
    %vm1692 = vcmp.eq.s32.totalorder %v1691, 1
    %1693 = vrot.lane.b32.xlu0 %v1364, 96
    %v1694 = vpop.permute.xlu0 %1693
    %v1696 = vsel %vm1692, %v1688, %v1694
    %v1697 = vsel %vm1692, %v1682, %v1670
    %v1698 = vsel %vm1692, %v1688, 0.0
    %1700 = vrot.lane.b32.xlu0 %v1696, 32
    %v1701 = vpop.permute.xlu0 %1700
    %v1702 = vsel %vm57, %v1701, 0
    %1704 = vmatprep.subr.mxu0 0.0
    %1705 = vmatpush1.msra.mxu0 %v242
    %1706 = vmatprep.subr.mxu0 0.0
    %1707 = vmatpush1.msra.mxu0 %v243
    %1708 = vmatprep.subr.mxu0 0.0
    %1709 = vmatpush1.msra.mxu0 %v244
    %1710 = vmatprep.subr.mxu0 0.0
    %1711 = vmatpush1.msra.mxu0 %v245
    %1712 = vmatprep.subr.mxu0 0.0
    %1713 = vmatpush1.msra.mxu0 0.0
    %1714 = vmatprep.subr.mxu0 0.0
    %1715 = vmatpush1.msra.mxu0 0.0
    %1716 = vmatprep.subr.mxu0 0.0
    %1717 = vmatpush1.msra.mxu0 0.0
    %1718 = vmatprep.subr.mxu0 0.0
    %1719 = vmatpush1.msra.mxu0 0.0
    %1720 = vmatprep.subr.mxu0 0.0
    %1721 = vmatpush1.msra.mxu0 0.0
    %1722 = vmatprep.subr.mxu0 0.0
    %1723 = vmatpush1.msra.mxu0 0.0
    %1724 = vmatprep.subr.mxu0 0.0
    %1725 = vmatpush1.msra.mxu0 0.0
    %1726 = vmatprep.subr.mxu0 0.0
    %1727 = vmatpush1.msra.mxu0 0.0
    %1728 = vmatprep.subr.mxu0 0.0
    %1729 = vmatpush1.msra.mxu0 0.0
    %1730 = vmatprep.subr.mxu0 0.0
    %1731 = vmatpush1.msra.mxu0 0.0
    %1732 = vmatprep.subr.mxu0 0.0
    %1733 = vmatpush1.msra.mxu0 0.0
    %1734 = vmatprep.subr.mxu0 0.0
    %1735 = vmatpush1.msra.mxu0 0.0
    %1736 = vmatprep.subr.mxu0 0.0
    %1737 = vmatpush1.msra.mxu0 0.0
    %1738 = vmatprep.subr.mxu0 0.0
    %1739 = vmatpush1.msra.mxu0 0.0
    %1740 = vmatprep.subr.mxu0 0.0
    %1741 = vmatpush1.msra.mxu0 0.0
    %1742 = vmatprep.subr.mxu0 0.0
    %1743 = vmatpush1.msra.mxu0 0.0
    %1744 = vmatprep.subr.mxu0 0.0
    %1745 = vmatpush1.msra.mxu0 0.0
    %1746 = vmatprep.subr.mxu0 0.0
    %1747 = vmatpush1.msra.mxu0 0.0
    %1748 = vmatprep.subr.mxu0 0.0
    %1749 = vmatpush1.msra.mxu0 0.0
    %1750 = vmatprep.subr.mxu0 0.0
    %1751 = vmatpush1.msra.mxu0 0.0
    %1752 = vmatprep.subr.mxu0 0.0
    %1753 = vmatpush1.msra.mxu0 0.0
    %1754 = vmatprep.subr.mxu0 0.0
    %1755 = vmatpush1.msra.mxu0 0.0
    %1756 = vmatprep.subr.mxu0 0.0
    %1757 = vmatpush1.msra.mxu0 0.0
    %1758 = vmatprep.subr.mxu0 0.0
    %1759 = vmatpush1.msra.mxu0 0.0
    %1760 = vmatprep.subr.mxu0 0.0
    %1761 = vmatpush1.msra.mxu0 0.0
    %1762 = vmatprep.subr.mxu0 0.0
    %1763 = vmatpush1.msra.mxu0 0.0
    %1764 = vmatprep.subr.mxu0 0.0
    %1765 = vmatpush1.msra.mxu0 0.0
    %1766 = vmatprep.subr.mxu0 0.0
    %1767 = vmatpush1.msra.mxu0 0.0
    %1768 = vmatprep.mubr.f32.mxu0 0.0
    %1769 = vmatmul.mubr.f32.gmra.mrb[0].mxu0 %v1702
    %v1770 = vpop.f32.mrb[0].mxu0
    %v1771 = vadd.f32 0.0, %v1770
    %v1772 = vpop.f32.mrb[0].mxu0
    %1773 = vdwg.mxu0
    %v1775 = vrot.slane %v1771, 6
    %v1777 = vadd.f32 %v136, %v1775
    %1779 = vrot.lane.b32.xlu0 %v1619, 32
    %v1780 = vpop.permute.xlu0 %1779
    %v1781 = vsel %vm57, %v1780, 0
    %1783 = vmatprep.subr.mxu0 0.0
    %1784 = vmatpush1.msra.mxu0 %v247
    %1785 = vmatprep.subr.mxu0 0.0
    %1786 = vmatpush1.msra.mxu0 %v248
    %1787 = vmatprep.subr.mxu0 0.0
    %1788 = vmatpush1.msra.mxu0 %v249
    %1789 = vmatprep.subr.mxu0 0.0
    %1790 = vmatpush1.msra.mxu0 %v250
    %1791 = vmatprep.subr.mxu0 0.0
    %1792 = vmatpush1.msra.mxu0 0.0
    %1793 = vmatprep.subr.mxu0 0.0
    %1794 = vmatpush1.msra.mxu0 0.0
    %1795 = vmatprep.subr.mxu0 0.0
    %1796 = vmatpush1.msra.mxu0 0.0
    %1797 = vmatprep.subr.mxu0 0.0
    %1798 = vmatpush1.msra.mxu0 0.0
    %1799 = vmatprep.subr.mxu0 0.0
    %1800 = vmatpush1.msra.mxu0 0.0
    %1801 = vmatprep.subr.mxu0 0.0
    %1802 = vmatpush1.msra.mxu0 0.0
    %1803 = vmatprep.subr.mxu0 0.0
    %1804 = vmatpush1.msra.mxu0 0.0
    %1805 = vmatprep.subr.mxu0 0.0
    %1806 = vmatpush1.msra.mxu0 0.0
    %1807 = vmatprep.subr.mxu0 0.0
    %1808 = vmatpush1.msra.mxu0 0.0
    %1809 = vmatprep.subr.mxu0 0.0
    %1810 = vmatpush1.msra.mxu0 0.0
    %1811 = vmatprep.subr.mxu0 0.0
    %1812 = vmatpush1.msra.mxu0 0.0
    %1813 = vmatprep.subr.mxu0 0.0
    %1814 = vmatpush1.msra.mxu0 0.0
    %1815 = vmatprep.subr.mxu0 0.0
    %1816 = vmatpush1.msra.mxu0 0.0
    %1817 = vmatprep.subr.mxu0 0.0
    %1818 = vmatpush1.msra.mxu0 0.0
    %1819 = vmatprep.subr.mxu0 0.0
    %1820 = vmatpush1.msra.mxu0 0.0
    %1821 = vmatprep.subr.mxu0 0.0
    %1822 = vmatpush1.msra.mxu0 0.0
    %1823 = vmatprep.subr.mxu0 0.0
    %1824 = vmatpush1.msra.mxu0 0.0
    %1825 = vmatprep.subr.mxu0 0.0
    %1826 = vmatpush1.msra.mxu0 0.0
    %1827 = vmatprep.subr.mxu0 0.0
    %1828 = vmatpush1.msra.mxu0 0.0
    %1829 = vmatprep.subr.mxu0 0.0
    %1830 = vmatpush1.msra.mxu0 0.0
    %1831 = vmatprep.subr.mxu0 0.0
    %1832 = vmatpush1.msra.mxu0 0.0
    %1833 = vmatprep.subr.mxu0 0.0
    %1834 = vmatpush1.msra.mxu0 0.0
    %1835 = vmatprep.subr.mxu0 0.0
    %1836 = vmatpush1.msra.mxu0 0.0
    %1837 = vmatprep.subr.mxu0 0.0
    %1838 = vmatpush1.msra.mxu0 0.0
    %1839 = vmatprep.subr.mxu0 0.0
    %1840 = vmatpush1.msra.mxu0 0.0
    %1841 = vmatprep.subr.mxu0 0.0
    %1842 = vmatpush1.msra.mxu0 0.0
    %1843 = vmatprep.subr.mxu0 0.0
    %1844 = vmatpush1.msra.mxu0 0.0
    %1845 = vmatprep.subr.mxu0 0.0
    %1846 = vmatpush1.msra.mxu0 0.0
    %1847 = vmatprep.mubr.f32.mxu0 0.0
    %1848 = vmatmul.mubr.f32.gmra.mrb[0].mxu0 %v1781
    %v1849 = vpop.f32.mrb[0].mxu0
    %v1850 = vadd.f32 0.0, %v1849
    %v1851 = vpop.f32.mrb[0].mxu0
    %1852 = vdwg.mxu0
    %1854 = vrot.lane.b32.xlu0 %v1698, 32
    %v1855 = vpop.permute.xlu0 %1854
    %v1856 = vsel %vm57, %v1855, 0
    %1858 = vmatprep.subr.mxu0 0.0
    %1859 = vmatpush1.msra.mxu0 %v236
    %1860 = vmatprep.subr.mxu0 0.0
    %1861 = vmatpush1.msra.mxu0 %v237
    %1862 = vmatprep.subr.mxu0 0.0
    %1863 = vmatpush1.msra.mxu0 %v238
    %1864 = vmatprep.subr.mxu0 0.0
    %1865 = vmatpush1.msra.mxu0 %v239
    %1866 = vmatprep.subr.mxu0 0.0
    %1867 = vmatpush1.msra.mxu0 0.0
    %1868 = vmatprep.subr.mxu0 0.0
    %1869 = vmatpush1.msra.mxu0 0.0
    %1870 = vmatprep.subr.mxu0 0.0
    %1871 = vmatpush1.msra.mxu0 0.0
    %1872 = vmatprep.subr.mxu0 0.0
    %1873 = vmatpush1.msra.mxu0 0.0
    %1874 = vmatprep.subr.mxu0 0.0
    %1875 = vmatpush1.msra.mxu0 0.0
    %1876 = vmatprep.subr.mxu0 0.0
    %1877 = vmatpush1.msra.mxu0 0.0
    %1878 = vmatprep.subr.mxu0 0.0
    %1879 = vmatpush1.msra.mxu0 0.0
    %1880 = vmatprep.subr.mxu0 0.0
    %1881 = vmatpush1.msra.mxu0 0.0
    %1882 = vmatprep.subr.mxu0 0.0
    %1883 = vmatpush1.msra.mxu0 0.0
    %1884 = vmatprep.subr.mxu0 0.0
    %1885 = vmatpush1.msra.mxu0 0.0
    %1886 = vmatprep.subr.mxu0 0.0
    %1887 = vmatpush1.msra.mxu0 0.0
    %1888 = vmatprep.subr.mxu0 0.0
    %1889 = vmatpush1.msra.mxu0 0.0
    %1890 = vmatprep.subr.mxu0 0.0
    %1891 = vmatpush1.msra.mxu0 0.0
    %1892 = vmatprep.subr.mxu0 0.0
    %1893 = vmatpush1.msra.mxu0 0.0
    %1894 = vmatprep.subr.mxu0 0.0
    %1895 = vmatpush1.msra.mxu0 0.0
    %1896 = vmatprep.subr.mxu0 0.0
    %1897 = vmatpush1.msra.mxu0 0.0
    %1898 = vmatprep.subr.mxu0 0.0
    %1899 = vmatpush1.msra.mxu0 0.0
    %1900 = vmatprep.subr.mxu0 0.0
    %1901 = vmatpush1.msra.mxu0 0.0
    %1902 = vmatprep.subr.mxu0 0.0
    %1903 = vmatpush1.msra.mxu0 0.0
    %1904 = vmatprep.subr.mxu0 0.0
    %1905 = vmatpush1.msra.mxu0 0.0
    %1906 = vmatprep.subr.mxu0 0.0
    %1907 = vmatpush1.msra.mxu0 0.0
    %1908 = vmatprep.subr.mxu0 0.0
    %1909 = vmatpush1.msra.mxu0 0.0
    %1910 = vmatprep.subr.mxu0 0.0
    %1911 = vmatpush1.msra.mxu0 0.0
    %1912 = vmatprep.subr.mxu0 0.0
    %1913 = vmatpush1.msra.mxu0 0.0
    %1914 = vmatprep.subr.mxu0 0.0
    %1915 = vmatpush1.msra.mxu0 0.0
    %1916 = vmatprep.subr.mxu0 0.0
    %1917 = vmatpush1.msra.mxu0 0.0
    %1918 = vmatprep.subr.mxu0 0.0
    %1919 = vmatpush1.msra.mxu0 0.0
    %1920 = vmatprep.subr.mxu0 0.0
    %1921 = vmatpush1.msra.mxu0 0.0
    %1922 = vmatprep.mubr.f32.mxu0 0.0
    %1923 = vmatmul.mubr.f32.gmra.mrb[0].mxu0 %v1856
    %v1924 = vpop.f32.mrb[0].mxu0
    %v1925 = vadd.f32 %v1850, %v1924
    %v1926 = vpop.f32.mrb[0].mxu0
    %1927 = vdwg.mxu0
    %v1928 = vadd.f32 %v1925, %v580
    %v1929 = vxor.u32 %v1928, 2147483648
    %v1930 = vmul.f32 %v1929, 1.442695
    %v1931 = vpow.pop %v1930
    %v1932 = vadd.f32 %v1931, 1.0
    %v1933 = vrcp.pop %v1932
    %v1934 = vmul.f32 1.0, %v1933
    %v1935 = vtanh.pop %v1928
    %v1936 = vmul.f32 %v1934, %v1620
    %1938 = vrot.lane.b32.xlu0 %v1935, 64
    %v1939 = vpop.permute.xlu0 %1938
    %v1941 = vmul.f32 %v1934, %v1939
    %1943 = vrot.lane.b32.xlu0 %v1941, 32
    %v1944 = vpop.permute.xlu0 %1943
    %v1946 = vadd.f32 %v1936, %v1944
    %v1947 = vtanh.pop %v1946
    %1949 = vrot.lane.b32.xlu0 %v1947, 64
    %v1950 = vpop.permute.xlu0 %1949
    %v1952 = vmul.f32 %v1934, %v1950
    %v1953 = vsel %vm1692, %v1952, %v1619
    %v1954 = vsel %vm1692, %v1946, %v1620
    %v1955 = vsel %vm1692, %v1952, 0.0
    %v1958 = vunpack.c.l.s4 1966171168
    %v1959 = vunpack.c.0.s8 %v1958
    %v1960 = vlaneseq
    %v1961 = vshrl.u32 %v1960, 7
    %v1962 = vsub.s32 %v1959, %v1961
    %v1963 = vrot.slane %v1955, %v1962
    %v1964 = vcombine.high %v1963, %v1963
    %v1966 = vunpack.c.l.s4 1966171168
    %v1967 = vunpack.c.0.s8 %v1966
    %v1968 = vlaneseq
    %v1969 = vshrl.u32 %v1968, 7
    %v1970 = vsub.s32 %v1967, %v1969
    %v1971 = vrot.slane %v1963, %v1970
    %v1973 = vunpack.c.l.s4 1966171168
    %v1974 = vunpack.c.0.s8 %v1973
    %v1975 = vlaneseq
    %v1976 = vshrl.u32 %v1975, 7
    %v1977 = vsub.s32 %v1974, %v1976
    %v1978 = vrot.slane %v1964, %v1977
    %v1979 = vlaneseq
    %v1980 = vshrl.u32 %v1979, 7
    %v1981 = vsub.s32 0, %v1980
    %v1982 = vrot.slane %v1971, %v1981
    %v1983 = vlaneseq
    %v1984 = vshrl.u32 %v1983, 7
    %v1985 = vsub.s32 0, %v1984
    %v1986 = vrot.slane %v1978, %v1985
    %1987 = vrot.lane.b32.xlu0 %v1982, 32
    %v1988 = vpop.permute.xlu0 %1987
    %1989 = vrot.lane.b32.xlu0 %v1986, 32
    %v1990 = vpop.permute.xlu0 %1989
    %1993 = vst.msk [vmem:[#allocation2 + $0x4] sm:$0x1] %vm646, %v1988
    %1994 = vst.msk [vmem:[#allocation2 + $0xc] sm:$0x1] %vm646, %v1990
    %v1995 = vxor.u32 %v1777, 2147483648
    %v1996 = vmul.f32 %v1995, 1.442695
    %v1997 = vpow.pop %v1996
    %v1998 = vadd.f32 %v1997, 1.0
    %v1999 = vrcp.pop %v1998
    %v2000 = vmul.f32 1.0, %v1999
    %v2001 = vtanh.pop %v1777
    %v2003 = vrot.slane %v1697, 6
    %v2005 = vmul.f32 %v2000, %v2003
    %2007 = vrot.lane.b32.xlu0 %v2001, 64
    %v2008 = vpop.permute.xlu0 %2007
    %v2010 = vmul.f32 %v2000, %v2008
    %2012 = vrot.lane.b32.xlu0 %v2010, 32
    %v2013 = vpop.permute.xlu0 %2012
    %v2015 = vadd.f32 %v2005, %v2013
    %v2016 = vtanh.pop %v2015
    %2018 = vrot.lane.b32.xlu0 %v2016, 64
    %v2019 = vpop.permute.xlu0 %2018
    %v2021 = vmul.f32 %v2000, %v2019
    %2022 = vset.pattern.permute.xlu0 5
    %2023 = vperm.xlu0 %2022, %v350
    %v2024 = vpop.permute.xlu0 %2023
    %vm2025 = vcmp.eq.s32.totalorder %v2024, 1
    %v2027 = vrot.slane %v2021, 2
    %2028 = vrot.lane.b32.xlu0 %v2027, 32
    %v2029 = vpop.permute.xlu0 %2028
    %v2032 = vsel %vm2025, %v2029, %v1701
    %v2034 = vrot.slane %v2015, 2
    %2035 = vrot.lane.b32.xlu0 %v2034, 96
    %v2036 = vpop.permute.xlu0 %2035
    %2038 = vrot.lane.b32.xlu0 %v1697, 96
    %v2039 = vpop.permute.xlu0 %2038
    %v2041 = vsel %vm2025, %v2036, %v2039
    %v2042 = vsel %vm2025, %v2029, 0.0
    %v2044 = vsel %vm57, %v2032, 0
    %2046 = vmatprep.subr.mxu0 0.0
    %2047 = vmatpush1.msra.mxu0 %v242
    %2048 = vmatprep.subr.mxu0 0.0
    %2049 = vmatpush1.msra.mxu0 %v243
    %2050 = vmatprep.subr.mxu0 0.0
    %2051 = vmatpush1.msra.mxu0 %v244
    %2052 = vmatprep.subr.mxu0 0.0
    %2053 = vmatpush1.msra.mxu0 %v245
    %2054 = vmatprep.subr.mxu0 0.0
    %2055 = vmatpush1.msra.mxu0 0.0
    %2056 = vmatprep.subr.mxu0 0.0
    %2057 = vmatpush1.msra.mxu0 0.0
    %2058 = vmatprep.subr.mxu0 0.0
    %2059 = vmatpush1.msra.mxu0 0.0
    %2060 = vmatprep.subr.mxu0 0.0
    %2061 = vmatpush1.msra.mxu0 0.0
    %2062 = vmatprep.subr.mxu0 0.0
    %2063 = vmatpush1.msra.mxu0 0.0
    %2064 = vmatprep.subr.mxu0 0.0
    %2065 = vmatpush1.msra.mxu0 0.0
    %2066 = vmatprep.subr.mxu0 0.0
    %2067 = vmatpush1.msra.mxu0 0.0
    %2068 = vmatprep.subr.mxu0 0.0
    %2069 = vmatpush1.msra.mxu0 0.0
    %2070 = vmatprep.subr.mxu0 0.0
    %2071 = vmatpush1.msra.mxu0 0.0
    %2072 = vmatprep.subr.mxu0 0.0
    %2073 = vmatpush1.msra.mxu0 0.0
    %2074 = vmatprep.subr.mxu0 0.0
    %2075 = vmatpush1.msra.mxu0 0.0
    %2076 = vmatprep.subr.mxu0 0.0
    %2077 = vmatpush1.msra.mxu0 0.0
    %2078 = vmatprep.subr.mxu0 0.0
    %2079 = vmatpush1.msra.mxu0 0.0
    %2080 = vmatprep.subr.mxu0 0.0
    %2081 = vmatpush1.msra.mxu0 0.0
    %2082 = vmatprep.subr.mxu0 0.0
    %2083 = vmatpush1.msra.mxu0 0.0
    %2084 = vmatprep.subr.mxu0 0.0
    %2085 = vmatpush1.msra.mxu0 0.0
    %2086 = vmatprep.subr.mxu0 0.0
    %2087 = vmatpush1.msra.mxu0 0.0
    %2088 = vmatprep.subr.mxu0 0.0
    %2089 = vmatpush1.msra.mxu0 0.0
    %2090 = vmatprep.subr.mxu0 0.0
    %2091 = vmatpush1.msra.mxu0 0.0
    %2092 = vmatprep.subr.mxu0 0.0
    %2093 = vmatpush1.msra.mxu0 0.0
    %2094 = vmatprep.subr.mxu0 0.0
    %2095 = vmatpush1.msra.mxu0 0.0
    %2096 = vmatprep.subr.mxu0 0.0
    %2097 = vmatpush1.msra.mxu0 0.0
    %2098 = vmatprep.subr.mxu0 0.0
    %2099 = vmatpush1.msra.mxu0 0.0
    %2100 = vmatprep.subr.mxu0 0.0
    %2101 = vmatpush1.msra.mxu0 0.0
    %2102 = vmatprep.subr.mxu0 0.0
    %2103 = vmatpush1.msra.mxu0 0.0
    %2104 = vmatprep.subr.mxu0 0.0
    %2105 = vmatpush1.msra.mxu0 0.0
    %2106 = vmatprep.subr.mxu0 0.0
    %2107 = vmatpush1.msra.mxu0 0.0
    %2108 = vmatprep.subr.mxu0 0.0
    %2109 = vmatpush1.msra.mxu0 0.0
    %2110 = vmatprep.mubr.f32.mxu0 0.0
    %2111 = vmatmul.mubr.f32.gmra.mrb[0].mxu0 %v2044
    %v2112 = vpop.f32.mrb[0].mxu0
    %v2113 = vadd.f32 0.0, %v2112
    %v2114 = vpop.f32.mrb[0].mxu0
    %2115 = vdwg.mxu0
    %v2117 = vrot.slane %v2113, 4
    %v2119 = vadd.f32 %v136, %v2117
    %2121 = vrot.lane.b32.xlu0 %v1953, 32
    %v2122 = vpop.permute.xlu0 %2121
    %v2123 = vsel %vm57, %v2122, 0
    %2125 = vmatprep.subr.mxu0 0.0
    %2126 = vmatpush1.msra.mxu0 %v247
    %2127 = vmatprep.subr.mxu0 0.0
    %2128 = vmatpush1.msra.mxu0 %v248
    %2129 = vmatprep.subr.mxu0 0.0
    %2130 = vmatpush1.msra.mxu0 %v249
    %2131 = vmatprep.subr.mxu0 0.0
    %2132 = vmatpush1.msra.mxu0 %v250
    %2133 = vmatprep.subr.mxu0 0.0
    %2134 = vmatpush1.msra.mxu0 0.0
    %2135 = vmatprep.subr.mxu0 0.0
    %2136 = vmatpush1.msra.mxu0 0.0
    %2137 = vmatprep.subr.mxu0 0.0
    %2138 = vmatpush1.msra.mxu0 0.0
    %2139 = vmatprep.subr.mxu0 0.0
    %2140 = vmatpush1.msra.mxu0 0.0
    %2141 = vmatprep.subr.mxu0 0.0
    %2142 = vmatpush1.msra.mxu0 0.0
    %2143 = vmatprep.subr.mxu0 0.0
    %2144 = vmatpush1.msra.mxu0 0.0
    %2145 = vmatprep.subr.mxu0 0.0
    %2146 = vmatpush1.msra.mxu0 0.0
    %2147 = vmatprep.subr.mxu0 0.0
    %2148 = vmatpush1.msra.mxu0 0.0
    %2149 = vmatprep.subr.mxu0 0.0
    %2150 = vmatpush1.msra.mxu0 0.0
    %2151 = vmatprep.subr.mxu0 0.0
    %2152 = vmatpush1.msra.mxu0 0.0
    %2153 = vmatprep.subr.mxu0 0.0
    %2154 = vmatpush1.msra.mxu0 0.0
    %2155 = vmatprep.subr.mxu0 0.0
    %2156 = vmatpush1.msra.mxu0 0.0
    %2157 = vmatprep.subr.mxu0 0.0
    %2158 = vmatpush1.msra.mxu0 0.0
    %2159 = vmatprep.subr.mxu0 0.0
    %2160 = vmatpush1.msra.mxu0 0.0
    %2161 = vmatprep.subr.mxu0 0.0
    %2162 = vmatpush1.msra.mxu0 0.0
    %2163 = vmatprep.subr.mxu0 0.0
    %2164 = vmatpush1.msra.mxu0 0.0
    %2165 = vmatprep.subr.mxu0 0.0
    %2166 = vmatpush1.msra.mxu0 0.0
    %2167 = vmatprep.subr.mxu0 0.0
    %2168 = vmatpush1.msra.mxu0 0.0
    %2169 = vmatprep.subr.mxu0 0.0
    %2170 = vmatpush1.msra.mxu0 0.0
    %2171 = vmatprep.subr.mxu0 0.0
    %2172 = vmatpush1.msra.mxu0 0.0
    %2173 = vmatprep.subr.mxu0 0.0
    %2174 = vmatpush1.msra.mxu0 0.0
    %2175 = vmatprep.subr.mxu0 0.0
    %2176 = vmatpush1.msra.mxu0 0.0
    %2177 = vmatprep.subr.mxu0 0.0
    %2178 = vmatpush1.msra.mxu0 0.0
    %2179 = vmatprep.subr.mxu0 0.0
    %2180 = vmatpush1.msra.mxu0 0.0
    %2181 = vmatprep.subr.mxu0 0.0
    %2182 = vmatpush1.msra.mxu0 0.0
    %2183 = vmatprep.subr.mxu0 0.0
    %2184 = vmatpush1.msra.mxu0 0.0
    %2185 = vmatprep.subr.mxu0 0.0
    %2186 = vmatpush1.msra.mxu0 0.0
    %2187 = vmatprep.subr.mxu0 0.0
    %2188 = vmatpush1.msra.mxu0 0.0
    %2189 = vmatprep.mubr.f32.mxu0 0.0
    %2190 = vmatmul.mubr.f32.gmra.mrb[0].mxu0 %v2123
    %v2191 = vpop.f32.mrb[0].mxu0
    %v2192 = vadd.f32 0.0, %v2191
    %v2193 = vpop.f32.mrb[0].mxu0
    %2194 = vdwg.mxu0
    %v2196 = vsel %vm57, %v2042, 0
    %2198 = vmatprep.subr.mxu0 0.0
    %2199 = vmatpush1.msra.mxu0 %v236
    %2200 = vmatprep.subr.mxu0 0.0
    %2201 = vmatpush1.msra.mxu0 %v237
    %2202 = vmatprep.subr.mxu0 0.0
    %2203 = vmatpush1.msra.mxu0 %v238
    %2204 = vmatprep.subr.mxu0 0.0
    %2205 = vmatpush1.msra.mxu0 %v239
    %2206 = vmatprep.subr.mxu0 0.0
    %2207 = vmatpush1.msra.mxu0 0.0
    %2208 = vmatprep.subr.mxu0 0.0
    %2209 = vmatpush1.msra.mxu0 0.0
    %2210 = vmatprep.subr.mxu0 0.0
    %2211 = vmatpush1.msra.mxu0 0.0
    %2212 = vmatprep.subr.mxu0 0.0
    %2213 = vmatpush1.msra.mxu0 0.0
    %2214 = vmatprep.subr.mxu0 0.0
    %2215 = vmatpush1.msra.mxu0 0.0
    %2216 = vmatprep.subr.mxu0 0.0
    %2217 = vmatpush1.msra.mxu0 0.0
    %2218 = vmatprep.subr.mxu0 0.0
    %2219 = vmatpush1.msra.mxu0 0.0
    %2220 = vmatprep.subr.mxu0 0.0
    %2221 = vmatpush1.msra.mxu0 0.0
    %2222 = vmatprep.subr.mxu0 0.0
    %2223 = vmatpush1.msra.mxu0 0.0
    %2224 = vmatprep.subr.mxu0 0.0
    %2225 = vmatpush1.msra.mxu0 0.0
    %2226 = vmatprep.subr.mxu0 0.0
    %2227 = vmatpush1.msra.mxu0 0.0
    %2228 = vmatprep.subr.mxu0 0.0
    %2229 = vmatpush1.msra.mxu0 0.0
    %2230 = vmatprep.subr.mxu0 0.0
    %2231 = vmatpush1.msra.mxu0 0.0
    %2232 = vmatprep.subr.mxu0 0.0
    %2233 = vmatpush1.msra.mxu0 0.0
    %2234 = vmatprep.subr.mxu0 0.0
    %2235 = vmatpush1.msra.mxu0 0.0
    %2236 = vmatprep.subr.mxu0 0.0
    %2237 = vmatpush1.msra.mxu0 0.0
    %2238 = vmatprep.subr.mxu0 0.0
    %2239 = vmatpush1.msra.mxu0 0.0
    %2240 = vmatprep.subr.mxu0 0.0
    %2241 = vmatpush1.msra.mxu0 0.0
    %2242 = vmatprep.subr.mxu0 0.0
    %2243 = vmatpush1.msra.mxu0 0.0
    %2244 = vmatprep.subr.mxu0 0.0
    %2245 = vmatpush1.msra.mxu0 0.0
    %2246 = vmatprep.subr.mxu0 0.0
    %2247 = vmatpush1.msra.mxu0 0.0
    %2248 = vmatprep.subr.mxu0 0.0
    %2249 = vmatpush1.msra.mxu0 0.0
    %2250 = vmatprep.subr.mxu0 0.0
    %2251 = vmatpush1.msra.mxu0 0.0
    %2252 = vmatprep.subr.mxu0 0.0
    %2253 = vmatpush1.msra.mxu0 0.0
    %2254 = vmatprep.subr.mxu0 0.0
    %2255 = vmatpush1.msra.mxu0 0.0
    %2256 = vmatprep.subr.mxu0 0.0
    %2257 = vmatpush1.msra.mxu0 0.0
    %2258 = vmatprep.subr.mxu0 0.0
    %2259 = vmatpush1.msra.mxu0 0.0
    %2260 = vmatprep.subr.mxu0 0.0
    %2261 = vmatpush1.msra.mxu0 0.0
    %2262 = vmatprep.mubr.f32.mxu0 0.0
    %2263 = vmatmul.mubr.f32.gmra.mrb[0].mxu0 %v2196
    %v2264 = vpop.f32.mrb[0].mxu0
    %v2265 = vadd.f32 %v2192, %v2264
    %v2266 = vpop.f32.mrb[0].mxu0
    %2267 = vdwg.mxu0
    %v2268 = vadd.f32 %v2265, %v580
    %v2269 = vxor.u32 %v2268, 2147483648
    %v2270 = vmul.f32 %v2269, 1.442695
    %v2271 = vpow.pop %v2270
    %v2272 = vadd.f32 %v2271, 1.0
    %v2273 = vrcp.pop %v2272
    %v2274 = vmul.f32 1.0, %v2273
    %v2275 = vtanh.pop %v2268
    %v2276 = vmul.f32 %v2274, %v1954
    %2278 = vrot.lane.b32.xlu0 %v2275, 64
    %v2279 = vpop.permute.xlu0 %2278
    %v2281 = vmul.f32 %v2274, %v2279
    %2283 = vrot.lane.b32.xlu0 %v2281, 32
    %v2284 = vpop.permute.xlu0 %2283
    %v2286 = vadd.f32 %v2276, %v2284
    %v2287 = vtanh.pop %v2286
    %2289 = vrot.lane.b32.xlu0 %v2287, 64
    %v2290 = vpop.permute.xlu0 %2289
    %v2292 = vmul.f32 %v2274, %v2290
    %v2293 = vsel %vm2025, %v2292, %v1953
    %v2294 = vsel %vm2025, %v2286, %v1954
    %v2295 = vsel %vm2025, %v2292, 0.0
    %v2298 = vunpack.c.l.s4 1966171168
    %v2299 = vunpack.c.0.s8 %v2298
    %v2300 = vlaneseq
    %v2301 = vshrl.u32 %v2300, 7
    %v2302 = vsub.s32 %v2299, %v2301
    %v2303 = vrot.slane %v2295, %v2302
    %v2304 = vcombine.high %v2303, %v2303
    %v2306 = vunpack.c.l.s4 1966171168
    %v2307 = vunpack.c.0.s8 %v2306
    %v2308 = vlaneseq
    %v2309 = vshrl.u32 %v2308, 7
    %v2310 = vsub.s32 %v2307, %v2309
    %v2311 = vrot.slane %v2303, %v2310
    %v2313 = vunpack.c.l.s4 1966171168
    %v2314 = vunpack.c.0.s8 %v2313
    %v2315 = vlaneseq
    %v2316 = vshrl.u32 %v2315, 7
    %v2317 = vsub.s32 %v2314, %v2316
    %v2318 = vrot.slane %v2304, %v2317
    %v2319 = vlaneseq
    %v2320 = vshrl.u32 %v2319, 7
    %v2321 = vsub.s32 0, %v2320
    %v2322 = vrot.slane %v2311, %v2321
    %v2323 = vlaneseq
    %v2324 = vshrl.u32 %v2323, 7
    %v2325 = vsub.s32 0, %v2324
    %v2326 = vrot.slane %v2318, %v2325
    %2327 = vrot.lane.b32.xlu0 %v2322, 32
    %v2328 = vpop.permute.xlu0 %2327
    %2329 = vrot.lane.b32.xlu0 %v2326, 32
    %v2330 = vpop.permute.xlu0 %2329
    %2333 = vst.msk [vmem:[#allocation2 + $0x5] sm:$0x1] %vm646, %v2328
    %2334 = vst.msk [vmem:[#allocation2 + $0xd] sm:$0x1] %vm646, %v2330
    %v2335 = vxor.u32 %v2119, 2147483648
    %v2336 = vmul.f32 %v2335, 1.442695
    %v2337 = vpow.pop %v2336
    %v2338 = vadd.f32 %v2337, 1.0
    %v2339 = vrcp.pop %v2338
    %v2340 = vmul.f32 1.0, %v2339
    %v2341 = vtanh.pop %v2119
    %v2343 = vrot.slane %v2041, 4
    %2344 = vrot.lane.b32.xlu0 %v2343, 32
    %v2345 = vpop.permute.xlu0 %2344
    %v2347 = vmul.f32 %v2340, %v2345
    %2349 = vrot.lane.b32.xlu0 %v2341, 64
    %v2350 = vpop.permute.xlu0 %2349
    %v2352 = vmul.f32 %v2340, %v2350
    %2354 = vrot.lane.b32.xlu0 %v2352, 32
    %v2355 = vpop.permute.xlu0 %2354
    %v2357 = vadd.f32 %v2347, %v2355
    %v2358 = vtanh.pop %v2357
    %2360 = vrot.lane.b32.xlu0 %v2358, 64
    %v2361 = vpop.permute.xlu0 %2360
    %v2363 = vmul.f32 %v2340, %v2361
    %2364 = vset.pattern.permute.xlu0 6
    %2365 = vperm.xlu0 %2364, %v350
    %v2366 = vpop.permute.xlu0 %2365
    %vm2367 = vcmp.eq.s32.totalorder %v2366, 1
    %v2369 = vrot.slane %v2363, 4
    %2370 = vrot.lane.b32.xlu0 %v2369, 32
    %v2371 = vpop.permute.xlu0 %2370
    %v2373 = vsel %vm2367, %v2371, %v2032
    %v2375 = vrot.slane %v2357, 4
    %2376 = vrot.lane.b32.xlu0 %v2375, 96
    %v2377 = vpop.permute.xlu0 %2376
    %v2379 = vsel %vm2367, %v2377, %v2041
    %v2380 = vsel %vm2367, %v2371, 0.0
    %v2382 = vsel %vm57, %v2373, 0
    %2384 = vmatprep.subr.mxu0 0.0
    %2385 = vmatpush1.msra.mxu0 %v242
    %2386 = vmatprep.subr.mxu0 0.0
    %2387 = vmatpush1.msra.mxu0 %v243
    %2388 = vmatprep.subr.mxu0 0.0
    %2389 = vmatpush1.msra.mxu0 %v244
    %2390 = vmatprep.subr.mxu0 0.0
    %2391 = vmatpush1.msra.mxu0 %v245
    %2392 = vmatprep.subr.mxu0 0.0
    %2393 = vmatpush1.msra.mxu0 0.0
    %2394 = vmatprep.subr.mxu0 0.0
    %2395 = vmatpush1.msra.mxu0 0.0
    %2396 = vmatprep.subr.mxu0 0.0
    %2397 = vmatpush1.msra.mxu0 0.0
    %2398 = vmatprep.subr.mxu0 0.0
    %2399 = vmatpush1.msra.mxu0 0.0
    %2400 = vmatprep.subr.mxu0 0.0
    %2401 = vmatpush1.msra.mxu0 0.0
    %2402 = vmatprep.subr.mxu0 0.0
    %2403 = vmatpush1.msra.mxu0 0.0
    %2404 = vmatprep.subr.mxu0 0.0
    %2405 = vmatpush1.msra.mxu0 0.0
    %2406 = vmatprep.subr.mxu0 0.0
    %2407 = vmatpush1.msra.mxu0 0.0
    %2408 = vmatprep.subr.mxu0 0.0
    %2409 = vmatpush1.msra.mxu0 0.0
    %2410 = vmatprep.subr.mxu0 0.0
    %2411 = vmatpush1.msra.mxu0 0.0
    %2412 = vmatprep.subr.mxu0 0.0
    %2413 = vmatpush1.msra.mxu0 0.0
    %2414 = vmatprep.subr.mxu0 0.0
    %2415 = vmatpush1.msra.mxu0 0.0
    %2416 = vmatprep.subr.mxu0 0.0
    %2417 = vmatpush1.msra.mxu0 0.0
    %2418 = vmatprep.subr.mxu0 0.0
    %2419 = vmatpush1.msra.mxu0 0.0
    %2420 = vmatprep.subr.mxu0 0.0
    %2421 = vmatpush1.msra.mxu0 0.0
    %2422 = vmatprep.subr.mxu0 0.0
    %2423 = vmatpush1.msra.mxu0 0.0
    %2424 = vmatprep.subr.mxu0 0.0
    %2425 = vmatpush1.msra.mxu0 0.0
    %2426 = vmatprep.subr.mxu0 0.0
    %2427 = vmatpush1.msra.mxu0 0.0
    %2428 = vmatprep.subr.mxu0 0.0
    %2429 = vmatpush1.msra.mxu0 0.0
    %2430 = vmatprep.subr.mxu0 0.0
    %2431 = vmatpush1.msra.mxu0 0.0
    %2432 = vmatprep.subr.mxu0 0.0
    %2433 = vmatpush1.msra.mxu0 0.0
    %2434 = vmatprep.subr.mxu0 0.0
    %2435 = vmatpush1.msra.mxu0 0.0
    %2436 = vmatprep.subr.mxu0 0.0
    %2437 = vmatpush1.msra.mxu0 0.0
    %2438 = vmatprep.subr.mxu0 0.0
    %2439 = vmatpush1.msra.mxu0 0.0
    %2440 = vmatprep.subr.mxu0 0.0
    %2441 = vmatpush1.msra.mxu0 0.0
    %2442 = vmatprep.subr.mxu0 0.0
    %2443 = vmatpush1.msra.mxu0 0.0
    %2444 = vmatprep.subr.mxu0 0.0
    %2445 = vmatpush1.msra.mxu0 0.0
    %2446 = vmatprep.subr.mxu0 0.0
    %2447 = vmatpush1.msra.mxu0 0.0
    %2448 = vmatprep.mubr.f32.mxu0 0.0
    %2449 = vmatmul.mubr.f32.gmra.mrb[0].mxu0 %v2382
    %v2450 = vpop.f32.mrb[0].mxu0
    %v2451 = vadd.f32 0.0, %v2450
    %v2452 = vpop.f32.mrb[0].mxu0
    %2453 = vdwg.mxu0
    %v2455 = vrot.slane %v2451, 2
    %v2457 = vadd.f32 %v136, %v2455
    %2459 = vrot.lane.b32.xlu0 %v2293, 32
    %v2460 = vpop.permute.xlu0 %2459
    %v2461 = vsel %vm57, %v2460, 0
    %2463 = vmatprep.subr.mxu0 0.0
    %2464 = vmatpush1.msra.mxu0 %v247
    %2465 = vmatprep.subr.mxu0 0.0
    %2466 = vmatpush1.msra.mxu0 %v248
    %2467 = vmatprep.subr.mxu0 0.0
    %2468 = vmatpush1.msra.mxu0 %v249
    %2469 = vmatprep.subr.mxu0 0.0
    %2470 = vmatpush1.msra.mxu0 %v250
    %2471 = vmatprep.subr.mxu0 0.0
    %2472 = vmatpush1.msra.mxu0 0.0
    %2473 = vmatprep.subr.mxu0 0.0
    %2474 = vmatpush1.msra.mxu0 0.0
    %2475 = vmatprep.subr.mxu0 0.0
    %2476 = vmatpush1.msra.mxu0 0.0
    %2477 = vmatprep.subr.mxu0 0.0
    %2478 = vmatpush1.msra.mxu0 0.0
    %2479 = vmatprep.subr.mxu0 0.0
    %2480 = vmatpush1.msra.mxu0 0.0
    %2481 = vmatprep.subr.mxu0 0.0
    %2482 = vmatpush1.msra.mxu0 0.0
    %2483 = vmatprep.subr.mxu0 0.0
    %2484 = vmatpush1.msra.mxu0 0.0
    %2485 = vmatprep.subr.mxu0 0.0
    %2486 = vmatpush1.msra.mxu0 0.0
    %2487 = vmatprep.subr.mxu0 0.0
    %2488 = vmatpush1.msra.mxu0 0.0
    %2489 = vmatprep.subr.mxu0 0.0
    %2490 = vmatpush1.msra.mxu0 0.0
    %2491 = vmatprep.subr.mxu0 0.0
    %2492 = vmatpush1.msra.mxu0 0.0
    %2493 = vmatprep.subr.mxu0 0.0
    %2494 = vmatpush1.msra.mxu0 0.0
    %2495 = vmatprep.subr.mxu0 0.0
    %2496 = vmatpush1.msra.mxu0 0.0
    %2497 = vmatprep.subr.mxu0 0.0
    %2498 = vmatpush1.msra.mxu0 0.0
    %2499 = vmatprep.subr.mxu0 0.0
    %2500 = vmatpush1.msra.mxu0 0.0
    %2501 = vmatprep.subr.mxu0 0.0
    %2502 = vmatpush1.msra.mxu0 0.0
    %2503 = vmatprep.subr.mxu0 0.0
    %2504 = vmatpush1.msra.mxu0 0.0
    %2505 = vmatprep.subr.mxu0 0.0
    %2506 = vmatpush1.msra.mxu0 0.0
    %2507 = vmatprep.subr.mxu0 0.0
    %2508 = vmatpush1.msra.mxu0 0.0
    %2509 = vmatprep.subr.mxu0 0.0
    %2510 = vmatpush1.msra.mxu0 0.0
    %2511 = vmatprep.subr.mxu0 0.0
    %2512 = vmatpush1.msra.mxu0 0.0
    %2513 = vmatprep.subr.mxu0 0.0
    %2514 = vmatpush1.msra.mxu0 0.0
    %2515 = vmatprep.subr.mxu0 0.0
    %2516 = vmatpush1.msra.mxu0 0.0
    %2517 = vmatprep.subr.mxu0 0.0
    %2518 = vmatpush1.msra.mxu0 0.0
    %2519 = vmatprep.subr.mxu0 0.0
    %2520 = vmatpush1.msra.mxu0 0.0
    %2521 = vmatprep.subr.mxu0 0.0
    %2522 = vmatpush1.msra.mxu0 0.0
    %2523 = vmatprep.subr.mxu0 0.0
    %2524 = vmatpush1.msra.mxu0 0.0
    %2525 = vmatprep.subr.mxu0 0.0
    %2526 = vmatpush1.msra.mxu0 0.0
    %2527 = vmatprep.mubr.f32.mxu0 0.0
    %2528 = vmatmul.mubr.f32.gmra.mrb[0].mxu0 %v2461
    %v2529 = vpop.f32.mrb[0].mxu0
    %v2530 = vadd.f32 0.0, %v2529
    %v2531 = vpop.f32.mrb[0].mxu0
    %2532 = vdwg.mxu0
    %v2534 = vsel %vm57, %v2380, 0
    %2536 = vmatprep.subr.mxu0 0.0
    %2537 = vmatpush1.msra.mxu0 %v236
    %2538 = vmatprep.subr.mxu0 0.0
    %2539 = vmatpush1.msra.mxu0 %v237
    %2540 = vmatprep.subr.mxu0 0.0
    %2541 = vmatpush1.msra.mxu0 %v238
    %2542 = vmatprep.subr.mxu0 0.0
    %2543 = vmatpush1.msra.mxu0 %v239
    %2544 = vmatprep.subr.mxu0 0.0
    %2545 = vmatpush1.msra.mxu0 0.0
    %2546 = vmatprep.subr.mxu0 0.0
    %2547 = vmatpush1.msra.mxu0 0.0
    %2548 = vmatprep.subr.mxu0 0.0
    %2549 = vmatpush1.msra.mxu0 0.0
    %2550 = vmatprep.subr.mxu0 0.0
    %2551 = vmatpush1.msra.mxu0 0.0
    %2552 = vmatprep.subr.mxu0 0.0
    %2553 = vmatpush1.msra.mxu0 0.0
    %2554 = vmatprep.subr.mxu0 0.0
    %2555 = vmatpush1.msra.mxu0 0.0
    %2556 = vmatprep.subr.mxu0 0.0
    %2557 = vmatpush1.msra.mxu0 0.0
    %2558 = vmatprep.subr.mxu0 0.0
    %2559 = vmatpush1.msra.mxu0 0.0
    %2560 = vmatprep.subr.mxu0 0.0
    %2561 = vmatpush1.msra.mxu0 0.0
    %2562 = vmatprep.subr.mxu0 0.0
    %2563 = vmatpush1.msra.mxu0 0.0
    %2564 = vmatprep.subr.mxu0 0.0
    %2565 = vmatpush1.msra.mxu0 0.0
    %2566 = vmatprep.subr.mxu0 0.0
    %2567 = vmatpush1.msra.mxu0 0.0
    %2568 = vmatprep.subr.mxu0 0.0
    %2569 = vmatpush1.msra.mxu0 0.0
    %2570 = vmatprep.subr.mxu0 0.0
    %2571 = vmatpush1.msra.mxu0 0.0
    %2572 = vmatprep.subr.mxu0 0.0
    %2573 = vmatpush1.msra.mxu0 0.0
    %2574 = vmatprep.subr.mxu0 0.0
    %2575 = vmatpush1.msra.mxu0 0.0
    %2576 = vmatprep.subr.mxu0 0.0
    %2577 = vmatpush1.msra.mxu0 0.0
    %2578 = vmatprep.subr.mxu0 0.0
    %2579 = vmatpush1.msra.mxu0 0.0
    %2580 = vmatprep.subr.mxu0 0.0
    %2581 = vmatpush1.msra.mxu0 0.0
    %2582 = vmatprep.subr.mxu0 0.0
    %2583 = vmatpush1.msra.mxu0 0.0
    %2584 = vmatprep.subr.mxu0 0.0
    %2585 = vmatpush1.msra.mxu0 0.0
    %2586 = vmatprep.subr.mxu0 0.0
    %2587 = vmatpush1.msra.mxu0 0.0
    %2588 = vmatprep.subr.mxu0 0.0
    %2589 = vmatpush1.msra.mxu0 0.0
    %2590 = vmatprep.subr.mxu0 0.0
    %2591 = vmatpush1.msra.mxu0 0.0
    %2592 = vmatprep.subr.mxu0 0.0
    %2593 = vmatpush1.msra.mxu0 0.0
    %2594 = vmatprep.subr.mxu0 0.0
    %2595 = vmatpush1.msra.mxu0 0.0
    %2596 = vmatprep.subr.mxu0 0.0
    %2597 = vmatpush1.msra.mxu0 0.0
    %2598 = vmatprep.subr.mxu0 0.0
    %2599 = vmatpush1.msra.mxu0 0.0
    %2600 = vmatprep.mubr.f32.mxu0 0.0
    %2601 = vmatmul.mubr.f32.gmra.mrb[0].mxu0 %v2534
    %v2602 = vpop.f32.mrb[0].mxu0
    %v2603 = vadd.f32 %v2530, %v2602
    %v2604 = vpop.f32.mrb[0].mxu0
    %2605 = vdwg.mxu0
    %v2606 = vadd.f32 %v2603, %v580
    %v2607 = vxor.u32 %v2606, 2147483648
    %v2608 = vmul.f32 %v2607, 1.442695
    %v2609 = vpow.pop %v2608
    %v2610 = vadd.f32 %v2609, 1.0
    %v2611 = vrcp.pop %v2610
    %v2612 = vmul.f32 1.0, %v2611
    %v2613 = vtanh.pop %v2606
    %v2614 = vmul.f32 %v2612, %v2294
    %2616 = vrot.lane.b32.xlu0 %v2613, 64
    %v2617 = vpop.permute.xlu0 %2616
    %v2619 = vmul.f32 %v2612, %v2617
    %2621 = vrot.lane.b32.xlu0 %v2619, 32
    %v2622 = vpop.permute.xlu0 %2621
    %v2624 = vadd.f32 %v2614, %v2622
    %v2625 = vtanh.pop %v2624
    %2627 = vrot.lane.b32.xlu0 %v2625, 64
    %v2628 = vpop.permute.xlu0 %2627
    %v2630 = vmul.f32 %v2612, %v2628
    %v2631 = vsel %vm2367, %v2630, %v2293
    %v2632 = vsel %vm2367, %v2624, %v2294
    %v2633 = vsel %vm2367, %v2630, 0.0
    %v2636 = vunpack.c.l.s4 1966171168
    %v2637 = vunpack.c.0.s8 %v2636
    %v2638 = vlaneseq
    %v2639 = vshrl.u32 %v2638, 7
    %v2640 = vsub.s32 %v2637, %v2639
    %v2641 = vrot.slane %v2633, %v2640
    %v2642 = vcombine.high %v2641, %v2641
    %v2644 = vunpack.c.l.s4 1966171168
    %v2645 = vunpack.c.0.s8 %v2644
    %v2646 = vlaneseq
    %v2647 = vshrl.u32 %v2646, 7
    %v2648 = vsub.s32 %v2645, %v2647
    %v2649 = vrot.slane %v2641, %v2648
    %v2651 = vunpack.c.l.s4 1966171168
    %v2652 = vunpack.c.0.s8 %v2651
    %v2653 = vlaneseq
    %v2654 = vshrl.u32 %v2653, 7
    %v2655 = vsub.s32 %v2652, %v2654
    %v2656 = vrot.slane %v2642, %v2655
    %v2657 = vlaneseq
    %v2658 = vshrl.u32 %v2657, 7
    %v2659 = vsub.s32 0, %v2658
    %v2660 = vrot.slane %v2649, %v2659
    %v2661 = vlaneseq
    %v2662 = vshrl.u32 %v2661, 7
    %v2663 = vsub.s32 0, %v2662
    %v2664 = vrot.slane %v2656, %v2663
    %2665 = vrot.lane.b32.xlu0 %v2660, 32
    %v2666 = vpop.permute.xlu0 %2665
    %2667 = vrot.lane.b32.xlu0 %v2664, 32
    %v2668 = vpop.permute.xlu0 %2667
    %2671 = vst.msk [vmem:[#allocation2 + $0x6] sm:$0x1] %vm646, %v2666
    %2672 = vst.msk [vmem:[#allocation2 + $0xe] sm:$0x1] %vm646, %v2668
    %v2673 = vxor.u32 %v2457, 2147483648
    %v2674 = vmul.f32 %v2673, 1.442695
    %v2675 = vpow.pop %v2674
    %v2676 = vadd.f32 %v2675, 1.0
    %v2677 = vrcp.pop %v2676
    %v2678 = vmul.f32 1.0, %v2677
    %v2679 = vtanh.pop %v2457
    %v2681 = vrot.slane %v2379, 2
    %2682 = vrot.lane.b32.xlu0 %v2681, 32
    %v2683 = vpop.permute.xlu0 %2682
    %v2685 = vmul.f32 %v2678, %v2683
    %2687 = vrot.lane.b32.xlu0 %v2679, 64
    %v2688 = vpop.permute.xlu0 %2687
    %v2690 = vmul.f32 %v2678, %v2688
    %2692 = vrot.lane.b32.xlu0 %v2690, 32
    %v2693 = vpop.permute.xlu0 %2692
    %v2695 = vadd.f32 %v2685, %v2693
    %v2696 = vtanh.pop %v2695
    %2698 = vrot.lane.b32.xlu0 %v2696, 64
    %v2699 = vpop.permute.xlu0 %2698
    %v2701 = vmul.f32 %v2678, %v2699
    %2702 = vset.pattern.permute.xlu0 7
    %2703 = vperm.xlu0 %2702, %v350
    %v2704 = vpop.permute.xlu0 %2703
    %vm2705 = vcmp.eq.s32.totalorder %v2704, 1
    %v2707 = vrot.slane %v2701, 6
    %2708 = vrot.lane.b32.xlu0 %v2707, 32
    %v2709 = vpop.permute.xlu0 %2708
    %v2711 = vsel %vm2705, %v2709, %v2373
    %v2713 = vrot.slane %v2695, 6
    %2714 = vrot.lane.b32.xlu0 %v2713, 96
    %v2715 = vpop.permute.xlu0 %2714
    %v2717 = vsel %vm2705, %v2715, %v2379
    %v2718 = vsel %vm2705, %v2709, 0.0
    %2720 = vrot.lane.b32.xlu0 %v2631, 32
    %v2721 = vpop.permute.xlu0 %2720
    %v2722 = vsel %vm57, %v2721, 0
    %2724 = vmatprep.subr.mxu0 0.0
    %2725 = vmatpush1.msra.mxu0 %v247
    %2726 = vmatprep.subr.mxu0 0.0
    %2727 = vmatpush1.msra.mxu0 %v248
    %2728 = vmatprep.subr.mxu0 0.0
    %2729 = vmatpush1.msra.mxu0 %v249
    %2730 = vmatprep.subr.mxu0 0.0
    %2731 = vmatpush1.msra.mxu0 %v250
    %2732 = vmatprep.subr.mxu0 0.0
    %2733 = vmatpush1.msra.mxu0 0.0
    %2734 = vmatprep.subr.mxu0 0.0
    %2735 = vmatpush1.msra.mxu0 0.0
    %2736 = vmatprep.subr.mxu0 0.0
    %2737 = vmatpush1.msra.mxu0 0.0
    %2738 = vmatprep.subr.mxu0 0.0
    %2739 = vmatpush1.msra.mxu0 0.0
    %2740 = vmatprep.subr.mxu0 0.0
    %2741 = vmatpush1.msra.mxu0 0.0
    %2742 = vmatprep.subr.mxu0 0.0
    %2743 = vmatpush1.msra.mxu0 0.0
    %2744 = vmatprep.subr.mxu0 0.0
    %2745 = vmatpush1.msra.mxu0 0.0
    %2746 = vmatprep.subr.mxu0 0.0
    %2747 = vmatpush1.msra.mxu0 0.0
    %2748 = vmatprep.subr.mxu0 0.0
    %2749 = vmatpush1.msra.mxu0 0.0
    %2750 = vmatprep.subr.mxu0 0.0
    %2751 = vmatpush1.msra.mxu0 0.0
    %2752 = vmatprep.subr.mxu0 0.0
    %2753 = vmatpush1.msra.mxu0 0.0
    %2754 = vmatprep.subr.mxu0 0.0
    %2755 = vmatpush1.msra.mxu0 0.0
    %2756 = vmatprep.subr.mxu0 0.0
    %2757 = vmatpush1.msra.mxu0 0.0
    %2758 = vmatprep.subr.mxu0 0.0
    %2759 = vmatpush1.msra.mxu0 0.0
    %2760 = vmatprep.subr.mxu0 0.0
    %2761 = vmatpush1.msra.mxu0 0.0
    %2762 = vmatprep.subr.mxu0 0.0
    %2763 = vmatpush1.msra.mxu0 0.0
    %2764 = vmatprep.subr.mxu0 0.0
    %2765 = vmatpush1.msra.mxu0 0.0
    %2766 = vmatprep.subr.mxu0 0.0
    %2767 = vmatpush1.msra.mxu0 0.0
    %2768 = vmatprep.subr.mxu0 0.0
    %2769 = vmatpush1.msra.mxu0 0.0
    %2770 = vmatprep.subr.mxu0 0.0
    %2771 = vmatpush1.msra.mxu0 0.0
    %2772 = vmatprep.subr.mxu0 0.0
    %2773 = vmatpush1.msra.mxu0 0.0
    %2774 = vmatprep.subr.mxu0 0.0
    %2775 = vmatpush1.msra.mxu0 0.0
    %2776 = vmatprep.subr.mxu0 0.0
    %2777 = vmatpush1.msra.mxu0 0.0
    %2778 = vmatprep.subr.mxu0 0.0
    %2779 = vmatpush1.msra.mxu0 0.0
    %2780 = vmatprep.subr.mxu0 0.0
    %2781 = vmatpush1.msra.mxu0 0.0
    %2782 = vmatprep.subr.mxu0 0.0
    %2783 = vmatpush1.msra.mxu0 0.0
    %2784 = vmatprep.subr.mxu0 0.0
    %2785 = vmatpush1.msra.mxu0 0.0
    %2786 = vmatprep.subr.mxu0 0.0
    %2787 = vmatpush1.msra.mxu0 0.0
    %2788 = vmatprep.mubr.f32.mxu0 0.0
    %2789 = vmatmul.mubr.f32.gmra.mrb[0].mxu0 %v2722
    %v2790 = vpop.f32.mrb[0].mxu0
    %v2791 = vadd.f32 0.0, %v2790
    %v2792 = vpop.f32.mrb[0].mxu0
    %2793 = vdwg.mxu0
    %v2795 = vsel %vm57, %v2718, 0
    %2797 = vmatprep.subr.mxu0 0.0
    %2798 = vmatpush1.msra.mxu0 %v236
    %2799 = vmatprep.subr.mxu0 0.0
    %2800 = vmatpush1.msra.mxu0 %v237
    %2801 = vmatprep.subr.mxu0 0.0
    %2802 = vmatpush1.msra.mxu0 %v238
    %2803 = vmatprep.subr.mxu0 0.0
    %2804 = vmatpush1.msra.mxu0 %v239
    %2805 = vmatprep.subr.mxu0 0.0
    %2806 = vmatpush1.msra.mxu0 0.0
    %2807 = vmatprep.subr.mxu0 0.0
    %2808 = vmatpush1.msra.mxu0 0.0
    %2809 = vmatprep.subr.mxu0 0.0
    %2810 = vmatpush1.msra.mxu0 0.0
    %2811 = vmatprep.subr.mxu0 0.0
    %2812 = vmatpush1.msra.mxu0 0.0
    %2813 = vmatprep.subr.mxu0 0.0
    %2814 = vmatpush1.msra.mxu0 0.0
    %2815 = vmatprep.subr.mxu0 0.0
    %2816 = vmatpush1.msra.mxu0 0.0
    %2817 = vmatprep.subr.mxu0 0.0
    %2818 = vmatpush1.msra.mxu0 0.0
    %2819 = vmatprep.subr.mxu0 0.0
    %2820 = vmatpush1.msra.mxu0 0.0
    %2821 = vmatprep.subr.mxu0 0.0
    %2822 = vmatpush1.msra.mxu0 0.0
    %2823 = vmatprep.subr.mxu0 0.0
    %2824 = vmatpush1.msra.mxu0 0.0
    %2825 = vmatprep.subr.mxu0 0.0
    %2826 = vmatpush1.msra.mxu0 0.0
    %2827 = vmatprep.subr.mxu0 0.0
    %2828 = vmatpush1.msra.mxu0 0.0
    %2829 = vmatprep.subr.mxu0 0.0
    %2830 = vmatpush1.msra.mxu0 0.0
    %2831 = vmatprep.subr.mxu0 0.0
    %2832 = vmatpush1.msra.mxu0 0.0
    %2833 = vmatprep.subr.mxu0 0.0
    %2834 = vmatpush1.msra.mxu0 0.0
    %2835 = vmatprep.subr.mxu0 0.0
    %2836 = vmatpush1.msra.mxu0 0.0
    %2837 = vmatprep.subr.mxu0 0.0
    %2838 = vmatpush1.msra.mxu0 0.0
    %2839 = vmatprep.subr.mxu0 0.0
    %2840 = vmatpush1.msra.mxu0 0.0
    %2841 = vmatprep.subr.mxu0 0.0
    %2842 = vmatpush1.msra.mxu0 0.0
    %2843 = vmatprep.subr.mxu0 0.0
    %2844 = vmatpush1.msra.mxu0 0.0
    %2845 = vmatprep.subr.mxu0 0.0
    %2846 = vmatpush1.msra.mxu0 0.0
    %2847 = vmatprep.subr.mxu0 0.0
    %2848 = vmatpush1.msra.mxu0 0.0
    %2849 = vmatprep.subr.mxu0 0.0
    %2850 = vmatpush1.msra.mxu0 0.0
    %2851 = vmatprep.subr.mxu0 0.0
    %2852 = vmatpush1.msra.mxu0 0.0
    %2853 = vmatprep.subr.mxu0 0.0
    %2854 = vmatpush1.msra.mxu0 0.0
    %2855 = vmatprep.subr.mxu0 0.0
    %2856 = vmatpush1.msra.mxu0 0.0
    %2857 = vmatprep.subr.mxu0 0.0
    %2858 = vmatpush1.msra.mxu0 0.0
    %2859 = vmatprep.subr.mxu0 0.0
    %2860 = vmatpush1.msra.mxu0 0.0
    %2861 = vmatprep.mubr.f32.mxu0 0.0
    %2862 = vmatmul.mubr.f32.gmra.mrb[0].mxu0 %v2795
    %v2863 = vpop.f32.mrb[0].mxu0
    %v2864 = vadd.f32 %v2791, %v2863
    %v2865 = vpop.f32.mrb[0].mxu0
    %2866 = vdwg.mxu0
    %v2867 = vadd.f32 %v2864, %v580
    %v2868 = vxor.u32 %v2867, 2147483648
    %v2869 = vmul.f32 %v2868, 1.442695
    %v2870 = vpow.pop %v2869
    %v2871 = vadd.f32 %v2870, 1.0
    %v2872 = vrcp.pop %v2871
    %v2873 = vmul.f32 1.0, %v2872
    %v2874 = vtanh.pop %v2867
    %v2875 = vmul.f32 %v2873, %v2632
    %2877 = vrot.lane.b32.xlu0 %v2874, 64
    %v2878 = vpop.permute.xlu0 %2877
    %v2880 = vmul.f32 %v2873, %v2878
    %2882 = vrot.lane.b32.xlu0 %v2880, 32
    %v2883 = vpop.permute.xlu0 %2882
    %v2885 = vadd.f32 %v2875, %v2883
    %v2886 = vtanh.pop %v2885
    %2888 = vrot.lane.b32.xlu0 %v2886, 64
    %v2889 = vpop.permute.xlu0 %2888
    %v2891 = vmul.f32 %v2873, %v2889
    %v2892 = vsel %vm2705, %v2891, %v2631
    %v2893 = vsel %vm2705, %v2885, %v2632
    %v2894 = vsel %vm2705, %v2891, 0.0
    %v2897 = vunpack.c.l.s4 1966171168
    %v2898 = vunpack.c.0.s8 %v2897
    %v2899 = vlaneseq
    %v2900 = vshrl.u32 %v2899, 7
    %v2901 = vsub.s32 %v2898, %v2900
    %v2902 = vrot.slane %v2894, %v2901
    %v2903 = vcombine.high %v2902, %v2902
    %v2905 = vunpack.c.l.s4 1966171168
    %v2906 = vunpack.c.0.s8 %v2905
    %v2907 = vlaneseq
    %v2908 = vshrl.u32 %v2907, 7
    %v2909 = vsub.s32 %v2906, %v2908
    %v2910 = vrot.slane %v2902, %v2909
    %v2912 = vunpack.c.l.s4 1966171168
    %v2913 = vunpack.c.0.s8 %v2912
    %v2914 = vlaneseq
    %v2915 = vshrl.u32 %v2914, 7
    %v2916 = vsub.s32 %v2913, %v2915
    %v2917 = vrot.slane %v2903, %v2916
    %v2918 = vlaneseq
    %v2919 = vshrl.u32 %v2918, 7
    %v2920 = vsub.s32 0, %v2919
    %v2921 = vrot.slane %v2910, %v2920
    %v2922 = vlaneseq
    %v2923 = vshrl.u32 %v2922, 7
    %v2924 = vsub.s32 0, %v2923
    %v2925 = vrot.slane %v2917, %v2924
    %2926 = vrot.lane.b32.xlu0 %v2921, 32
    %v2927 = vpop.permute.xlu0 %2926
    %2928 = vrot.lane.b32.xlu0 %v2925, 32
    %v2929 = vpop.permute.xlu0 %2928
    %2932 = vst.msk [vmem:[#allocation2 + $0x7] sm:$0x1] %vm646, %v2927
    %2933 = vst.msk [vmem:[#allocation2 + $0xf] sm:$0x1] %vm646, %v2929
    %s2934 = scalar_lea.vmem %s4, 96
    %v2935 = vld [vmem:[%s2934] sm:$0xff]
    %v2936 = vld [vmem:[%s2934 + $0x8] sm:$0xff]
    %v2937 = vld [vmem:[%s2934 + $0x10] sm:$0xff]
    %v2938 = vld [vmem:[%s2934 + $0x18] sm:$0xff]
    %s2939 = scalar_lea.vmem %s6, 3
    %v2940 = vld [vmem:[%s2939] sm:$0x1]
    %s2941 = scalar_lea.vmem %s5, 64
    %v2942 = vld [vmem:[%s2941] sm:$0xff]
    %v2943 = vld [vmem:[%s2941 + $0x8] sm:$0xff]
    %v2944 = vld [vmem:[%s2941 + $0x10] sm:$0xff]
    %v2945 = vld [vmem:[%s2941 + $0x18] sm:$0xff]
    %s2946 = scalar_lea.vmem %s5, 96
    %v2947 = vld [vmem:[%s2946] sm:$0xff]
    %v2948 = vld [vmem:[%s2946 + $0x8] sm:$0xff]
    %v2949 = vld [vmem:[%s2946 + $0x10] sm:$0xff]
    %v2950 = vld [vmem:[%s2946 + $0x18] sm:$0xff]
    %v2952 = vsel %vm57, %v2711, 0
    %2954 = vmatprep.subr.mxu0 0.0
    %2955 = vmatpush1.msra.mxu0 %v2942
    %2956 = vmatprep.subr.mxu0 0.0
    %2957 = vmatpush1.msra.mxu0 %v2943
    %2958 = vmatprep.subr.mxu0 0.0
    %2959 = vmatpush1.msra.mxu0 %v2944
    %2960 = vmatprep.subr.mxu0 0.0
    %2961 = vmatpush1.msra.mxu0 %v2945
    %2962 = vmatprep.subr.mxu0 0.0
    %2963 = vmatpush1.msra.mxu0 0.0
    %2964 = vmatprep.subr.mxu0 0.0
    %2965 = vmatpush1.msra.mxu0 0.0
    %2966 = vmatprep.subr.mxu0 0.0
    %2967 = vmatpush1.msra.mxu0 0.0
    %2968 = vmatprep.subr.mxu0 0.0
    %2969 = vmatpush1.msra.mxu0 0.0
    %2970 = vmatprep.subr.mxu0 0.0
    %2971 = vmatpush1.msra.mxu0 0.0
    %2972 = vmatprep.subr.mxu0 0.0
    %2973 = vmatpush1.msra.mxu0 0.0
    %2974 = vmatprep.subr.mxu0 0.0
    %2975 = vmatpush1.msra.mxu0 0.0
    %2976 = vmatprep.subr.mxu0 0.0
    %2977 = vmatpush1.msra.mxu0 0.0
    %2978 = vmatprep.subr.mxu0 0.0
    %2979 = vmatpush1.msra.mxu0 0.0
    %2980 = vmatprep.subr.mxu0 0.0
    %2981 = vmatpush1.msra.mxu0 0.0
    %2982 = vmatprep.subr.mxu0 0.0
    %2983 = vmatpush1.msra.mxu0 0.0
    %2984 = vmatprep.subr.mxu0 0.0
    %2985 = vmatpush1.msra.mxu0 0.0
    %2986 = vmatprep.subr.mxu0 0.0
    %2987 = vmatpush1.msra.mxu0 0.0
    %2988 = vmatprep.subr.mxu0 0.0
    %2989 = vmatpush1.msra.mxu0 0.0
    %2990 = vmatprep.subr.mxu0 0.0
    %2991 = vmatpush1.msra.mxu0 0.0
    %2992 = vmatprep.subr.mxu0 0.0
    %2993 = vmatpush1.msra.mxu0 0.0
    %2994 = vmatprep.subr.mxu0 0.0
    %2995 = vmatpush1.msra.mxu0 0.0
    %2996 = vmatprep.subr.mxu0 0.0
    %2997 = vmatpush1.msra.mxu0 0.0
    %2998 = vmatprep.subr.mxu0 0.0
    %2999 = vmatpush1.msra.mxu0 0.0
    %3000 = vmatprep.subr.mxu0 0.0
    %3001 = vmatpush1.msra.mxu0 0.0
    %3002 = vmatprep.subr.mxu0 0.0
    %3003 = vmatpush1.msra.mxu0 0.0
    %3004 = vmatprep.subr.mxu0 0.0
    %3005 = vmatpush1.msra.mxu0 0.0
    %3006 = vmatprep.subr.mxu0 0.0
    %3007 = vmatpush1.msra.mxu0 0.0
    %3008 = vmatprep.subr.mxu0 0.0
    %3009 = vmatpush1.msra.mxu0 0.0
    %3010 = vmatprep.subr.mxu0 0.0
    %3011 = vmatpush1.msra.mxu0 0.0
    %3012 = vmatprep.subr.mxu0 0.0
    %3013 = vmatpush1.msra.mxu0 0.0
    %3014 = vmatprep.subr.mxu0 0.0
    %3015 = vmatpush1.msra.mxu0 0.0
    %3016 = vmatprep.subr.mxu0 0.0
    %3017 = vmatpush1.msra.mxu0 0.0
    %3018 = vmatprep.mubr.f32.mxu0 0.0
    %3019 = vmatmul.mubr.f32.gmra.mrb[0].mxu0 %v2952
    %v3020 = vpop.f32.mrb[0].mxu0
    %v3021 = vadd.f32 0.0, %v3020
    %v3022 = vpop.f32.mrb[0].mxu0
    %3023 = vdwg.mxu0
    %v3024 = vadd.f32 %v227, %v3021
    %v3025 = vxor.u32 %v3024, 2147483648
    %v3026 = vmul.f32 %v3025, 1.442695
    %v3027 = vpow.pop %v3026
    %v3028 = vadd.f32 %v3027, 1.0
    %v3029 = vrcp.pop %v3028
    %v3030 = vmul.f32 1.0, %v3029
    %v3031 = vtanh.pop %v3024
    %3033 = vrot.lane.b32.xlu0 %v2717, 32
    %v3034 = vpop.permute.xlu0 %3033
    %v3036 = vmul.f32 %v3030, %v3034
    %3038 = vrot.lane.b32.xlu0 %v3031, 64
    %v3039 = vpop.permute.xlu0 %3038
    %v3041 = vmul.f32 %v3030, %v3039
    %3043 = vrot.lane.b32.xlu0 %v3041, 32
    %v3044 = vpop.permute.xlu0 %3043
    %v3046 = vadd.f32 %v3036, %v3044
    %v3047 = vtanh.pop %v3046
    %3049 = vrot.lane.b32.xlu0 %v3047, 64
    %v3050 = vpop.permute.xlu0 %3049
    %v3052 = vmul.f32 %v3030, %v3050
    %vm3053 = vcmp.gt.f32.partialorder %v43, 0.5
    %v3054 = vsel %vm3053, 1, 0
    %3055 = vset.pattern.permute.xlu0 0
    %3056 = vperm.xlu0 %3055, %v3054
    %v3057 = vpop.permute.xlu0 %3056
    %vm3058 = vcmp.eq.s32.totalorder %v3057, 1
    %3059 = vrot.lane.b32.xlu0 %v2711, 96
    %v3060 = vpop.permute.xlu0 %3059
    %v3062 = vsel %vm3058, %v3052, %v3060
    %v3063 = vsel %vm3058, %v3046, %v3034
    %v3064 = vsel %vm3058, %v3052, 0.0
    %3066 = vrot.lane.b32.xlu0 %v3062, 32
    %v3067 = vpop.permute.xlu0 %3066
    %v3068 = vsel %vm57, %v3067, 0
    %3070 = vmatprep.subr.mxu0 0.0
    %3071 = vmatpush1.msra.mxu0 %v2942
    %3072 = vmatprep.subr.mxu0 0.0
    %3073 = vmatpush1.msra.mxu0 %v2943
    %3074 = vmatprep.subr.mxu0 0.0
    %3075 = vmatpush1.msra.mxu0 %v2944
    %3076 = vmatprep.subr.mxu0 0.0
    %3077 = vmatpush1.msra.mxu0 %v2945
    %3078 = vmatprep.subr.mxu0 0.0
    %3079 = vmatpush1.msra.mxu0 0.0
    %3080 = vmatprep.subr.mxu0 0.0
    %3081 = vmatpush1.msra.mxu0 0.0
    %3082 = vmatprep.subr.mxu0 0.0
    %3083 = vmatpush1.msra.mxu0 0.0
    %3084 = vmatprep.subr.mxu0 0.0
    %3085 = vmatpush1.msra.mxu0 0.0
    %3086 = vmatprep.subr.mxu0 0.0
    %3087 = vmatpush1.msra.mxu0 0.0
    %3088 = vmatprep.subr.mxu0 0.0
    %3089 = vmatpush1.msra.mxu0 0.0
    %3090 = vmatprep.subr.mxu0 0.0
    %3091 = vmatpush1.msra.mxu0 0.0
    %3092 = vmatprep.subr.mxu0 0.0
    %3093 = vmatpush1.msra.mxu0 0.0
    %3094 = vmatprep.subr.mxu0 0.0
    %3095 = vmatpush1.msra.mxu0 0.0
    %3096 = vmatprep.subr.mxu0 0.0
    %3097 = vmatpush1.msra.mxu0 0.0
    %3098 = vmatprep.subr.mxu0 0.0
    %3099 = vmatpush1.msra.mxu0 0.0
    %3100 = vmatprep.subr.mxu0 0.0
    %3101 = vmatpush1.msra.mxu0 0.0
    %3102 = vmatprep.subr.mxu0 0.0
    %3103 = vmatpush1.msra.mxu0 0.0
    %3104 = vmatprep.subr.mxu0 0.0
    %3105 = vmatpush1.msra.mxu0 0.0
    %3106 = vmatprep.subr.mxu0 0.0
    %3107 = vmatpush1.msra.mxu0 0.0
    %3108 = vmatprep.subr.mxu0 0.0
    %3109 = vmatpush1.msra.mxu0 0.0
    %3110 = vmatprep.subr.mxu0 0.0
    %3111 = vmatpush1.msra.mxu0 0.0
    %3112 = vmatprep.subr.mxu0 0.0
    %3113 = vmatpush1.msra.mxu0 0.0
    %3114 = vmatprep.subr.mxu0 0.0
    %3115 = vmatpush1.msra.mxu0 0.0
    %3116 = vmatprep.subr.mxu0 0.0
    %3117 = vmatpush1.msra.mxu0 0.0
    %3118 = vmatprep.subr.mxu0 0.0
    %3119 = vmatpush1.msra.mxu0 0.0
    %3120 = vmatprep.subr.mxu0 0.0
    %3121 = vmatpush1.msra.mxu0 0.0
    %3122 = vmatprep.subr.mxu0 0.0
    %3123 = vmatpush1.msra.mxu0 0.0
    %3124 = vmatprep.subr.mxu0 0.0
    %3125 = vmatpush1.msra.mxu0 0.0
    %3126 = vmatprep.subr.mxu0 0.0
    %3127 = vmatpush1.msra.mxu0 0.0
    %3128 = vmatprep.subr.mxu0 0.0
    %3129 = vmatpush1.msra.mxu0 0.0
    %3130 = vmatprep.subr.mxu0 0.0
    %3131 = vmatpush1.msra.mxu0 0.0
    %3132 = vmatprep.subr.mxu0 0.0
    %3133 = vmatpush1.msra.mxu0 0.0
    %3134 = vmatprep.mubr.f32.mxu0 0.0
    %3135 = vmatmul.mubr.f32.gmra.mrb[0].mxu0 %v3068
    %v3136 = vpop.f32.mrb[0].mxu0
    %v3137 = vadd.f32 0.0, %v3136
    %v3138 = vpop.f32.mrb[0].mxu0
    %3139 = vdwg.mxu0
    %v3141 = vrot.slane %v3137, 6
    %v3143 = vadd.f32 %v227, %v3141
    %3145 = vrot.lane.b32.xlu0 %v2892, 32
    %v3146 = vpop.permute.xlu0 %3145
    %v3147 = vsel %vm57, %v3146, 0
    %3149 = vmatprep.subr.mxu0 0.0
    %3150 = vmatpush1.msra.mxu0 %v2947
    %3151 = vmatprep.subr.mxu0 0.0
    %3152 = vmatpush1.msra.mxu0 %v2948
    %3153 = vmatprep.subr.mxu0 0.0
    %3154 = vmatpush1.msra.mxu0 %v2949
    %3155 = vmatprep.subr.mxu0 0.0
    %3156 = vmatpush1.msra.mxu0 %v2950
    %3157 = vmatprep.subr.mxu0 0.0
    %3158 = vmatpush1.msra.mxu0 0.0
    %3159 = vmatprep.subr.mxu0 0.0
    %3160 = vmatpush1.msra.mxu0 0.0
    %3161 = vmatprep.subr.mxu0 0.0
    %3162 = vmatpush1.msra.mxu0 0.0
    %3163 = vmatprep.subr.mxu0 0.0
    %3164 = vmatpush1.msra.mxu0 0.0
    %3165 = vmatprep.subr.mxu0 0.0
    %3166 = vmatpush1.msra.mxu0 0.0
    %3167 = vmatprep.subr.mxu0 0.0
    %3168 = vmatpush1.msra.mxu0 0.0
    %3169 = vmatprep.subr.mxu0 0.0
    %3170 = vmatpush1.msra.mxu0 0.0
    %3171 = vmatprep.subr.mxu0 0.0
    %3172 = vmatpush1.msra.mxu0 0.0
    %3173 = vmatprep.subr.mxu0 0.0
    %3174 = vmatpush1.msra.mxu0 0.0
    %3175 = vmatprep.subr.mxu0 0.0
    %3176 = vmatpush1.msra.mxu0 0.0
    %3177 = vmatprep.subr.mxu0 0.0
    %3178 = vmatpush1.msra.mxu0 0.0
    %3179 = vmatprep.subr.mxu0 0.0
    %3180 = vmatpush1.msra.mxu0 0.0
    %3181 = vmatprep.subr.mxu0 0.0
    %3182 = vmatpush1.msra.mxu0 0.0
    %3183 = vmatprep.subr.mxu0 0.0
    %3184 = vmatpush1.msra.mxu0 0.0
    %3185 = vmatprep.subr.mxu0 0.0
    %3186 = vmatpush1.msra.mxu0 0.0
    %3187 = vmatprep.subr.mxu0 0.0
    %3188 = vmatpush1.msra.mxu0 0.0
    %3189 = vmatprep.subr.mxu0 0.0
    %3190 = vmatpush1.msra.mxu0 0.0
    %3191 = vmatprep.subr.mxu0 0.0
    %3192 = vmatpush1.msra.mxu0 0.0
    %3193 = vmatprep.subr.mxu0 0.0
    %3194 = vmatpush1.msra.mxu0 0.0
    %3195 = vmatprep.subr.mxu0 0.0
    %3196 = vmatpush1.msra.mxu0 0.0
    %3197 = vmatprep.subr.mxu0 0.0
    %3198 = vmatpush1.msra.mxu0 0.0
    %3199 = vmatprep.subr.mxu0 0.0
    %3200 = vmatpush1.msra.mxu0 0.0
    %3201 = vmatprep.subr.mxu0 0.0
    %3202 = vmatpush1.msra.mxu0 0.0
    %3203 = vmatprep.subr.mxu0 0.0
    %3204 = vmatpush1.msra.mxu0 0.0
    %3205 = vmatprep.subr.mxu0 0.0
    %3206 = vmatpush1.msra.mxu0 0.0
    %3207 = vmatprep.subr.mxu0 0.0
    %3208 = vmatpush1.msra.mxu0 0.0
    %3209 = vmatprep.subr.mxu0 0.0
    %3210 = vmatpush1.msra.mxu0 0.0
    %3211 = vmatprep.subr.mxu0 0.0
    %3212 = vmatpush1.msra.mxu0 0.0
    %3213 = vmatprep.mubr.f32.mxu0 0.0
    %3214 = vmatmul.mubr.f32.gmra.mrb[0].mxu0 %v3147
    %v3215 = vpop.f32.mrb[0].mxu0
    %v3216 = vadd.f32 0.0, %v3215
    %v3217 = vpop.f32.mrb[0].mxu0
    %3218 = vdwg.mxu0
    %3220 = vrot.lane.b32.xlu0 %v3064, 32
    %v3221 = vpop.permute.xlu0 %3220
    %v3222 = vsel %vm57, %v3221, 0
    %3224 = vmatprep.subr.mxu0 0.0
    %3225 = vmatpush1.msra.mxu0 %v2935
    %3226 = vmatprep.subr.mxu0 0.0
    %3227 = vmatpush1.msra.mxu0 %v2936
    %3228 = vmatprep.subr.mxu0 0.0
    %3229 = vmatpush1.msra.mxu0 %v2937
    %3230 = vmatprep.subr.mxu0 0.0
    %3231 = vmatpush1.msra.mxu0 %v2938
    %3232 = vmatprep.subr.mxu0 0.0
    %3233 = vmatpush1.msra.mxu0 0.0
    %3234 = vmatprep.subr.mxu0 0.0
    %3235 = vmatpush1.msra.mxu0 0.0
    %3236 = vmatprep.subr.mxu0 0.0
    %3237 = vmatpush1.msra.mxu0 0.0
    %3238 = vmatprep.subr.mxu0 0.0
    %3239 = vmatpush1.msra.mxu0 0.0
    %3240 = vmatprep.subr.mxu0 0.0
    %3241 = vmatpush1.msra.mxu0 0.0
    %3242 = vmatprep.subr.mxu0 0.0
    %3243 = vmatpush1.msra.mxu0 0.0
    %3244 = vmatprep.subr.mxu0 0.0
    %3245 = vmatpush1.msra.mxu0 0.0
    %3246 = vmatprep.subr.mxu0 0.0
    %3247 = vmatpush1.msra.mxu0 0.0
    %3248 = vmatprep.subr.mxu0 0.0
    %3249 = vmatpush1.msra.mxu0 0.0
    %3250 = vmatprep.subr.mxu0 0.0
    %3251 = vmatpush1.msra.mxu0 0.0
    %3252 = vmatprep.subr.mxu0 0.0
    %3253 = vmatpush1.msra.mxu0 0.0
    %3254 = vmatprep.subr.mxu0 0.0
    %3255 = vmatpush1.msra.mxu0 0.0
    %3256 = vmatprep.subr.mxu0 0.0
    %3257 = vmatpush1.msra.mxu0 0.0
    %3258 = vmatprep.subr.mxu0 0.0
    %3259 = vmatpush1.msra.mxu0 0.0
    %3260 = vmatprep.subr.mxu0 0.0
    %3261 = vmatpush1.msra.mxu0 0.0
    %3262 = vmatprep.subr.mxu0 0.0
    %3263 = vmatpush1.msra.mxu0 0.0
    %3264 = vmatprep.subr.mxu0 0.0
    %3265 = vmatpush1.msra.mxu0 0.0
    %3266 = vmatprep.subr.mxu0 0.0
    %3267 = vmatpush1.msra.mxu0 0.0
    %3268 = vmatprep.subr.mxu0 0.0
    %3269 = vmatpush1.msra.mxu0 0.0
    %3270 = vmatprep.subr.mxu0 0.0
    %3271 = vmatpush1.msra.mxu0 0.0
    %3272 = vmatprep.subr.mxu0 0.0
    %3273 = vmatpush1.msra.mxu0 0.0
    %3274 = vmatprep.subr.mxu0 0.0
    %3275 = vmatpush1.msra.mxu0 0.0
    %3276 = vmatprep.subr.mxu0 0.0
    %3277 = vmatpush1.msra.mxu0 0.0
    %3278 = vmatprep.subr.mxu0 0.0
    %3279 = vmatpush1.msra.mxu0 0.0
    %3280 = vmatprep.subr.mxu0 0.0
    %3281 = vmatpush1.msra.mxu0 0.0
    %3282 = vmatprep.subr.mxu0 0.0
    %3283 = vmatpush1.msra.mxu0 0.0
    %3284 = vmatprep.subr.mxu0 0.0
    %3285 = vmatpush1.msra.mxu0 0.0
    %3286 = vmatprep.subr.mxu0 0.0
    %3287 = vmatpush1.msra.mxu0 0.0
    %3288 = vmatprep.mubr.f32.mxu0 0.0
    %3289 = vmatmul.mubr.f32.gmra.mrb[0].mxu0 %v3222
    %v3290 = vpop.f32.mrb[0].mxu0
    %v3291 = vadd.f32 %v3216, %v3290
    %v3292 = vpop.f32.mrb[0].mxu0
    %3293 = vdwg.mxu0
    %v3295 = vlaneseq
    %v3296 = vshrl.u32 %v3295, 7
    %v3297 = vsub.s32 0, %v3296
    %v3298 = vrot.slane %v2940, %v3297
    %v3300 = vadd.f32 %v3291, %v3298
    %v3301 = vxor.u32 %v3300, 2147483648
    %v3302 = vmul.f32 %v3301, 1.442695
    %v3303 = vpow.pop %v3302
    %v3304 = vadd.f32 %v3303, 1.0
    %v3305 = vrcp.pop %v3304
    %v3306 = vmul.f32 1.0, %v3305
    %v3307 = vtanh.pop %v3300
    %v3308 = vmul.f32 %v3306, %v2893
    %3310 = vrot.lane.b32.xlu0 %v3307, 64
    %v3311 = vpop.permute.xlu0 %3310
    %v3313 = vmul.f32 %v3306, %v3311
    %3315 = vrot.lane.b32.xlu0 %v3313, 32
    %v3316 = vpop.permute.xlu0 %3315
    %v3318 = vadd.f32 %v3308, %v3316
    %v3319 = vtanh.pop %v3318
    %3321 = vrot.lane.b32.xlu0 %v3319, 64
    %v3322 = vpop.permute.xlu0 %3321
    %v3324 = vmul.f32 %v3306, %v3322
    %v3325 = vsel %vm3058, %v3324, %v2892
    %v3326 = vsel %vm3058, %v3318, %v2893
    %v3327 = vsel %vm3058, %v3324, 0.0
    %v3330 = vunpack.c.l.s4 1966171168
    %v3331 = vunpack.c.0.s8 %v3330
    %v3332 = vlaneseq
    %v3333 = vshrl.u32 %v3332, 7
    %v3334 = vsub.s32 %v3331, %v3333
    %v3335 = vrot.slane %v3327, %v3334
    %v3336 = vcombine.high %v3335, %v3335
    %v3338 = vunpack.c.l.s4 1966171168
    %v3339 = vunpack.c.0.s8 %v3338
    %v3340 = vlaneseq
    %v3341 = vshrl.u32 %v3340, 7
    %v3342 = vsub.s32 %v3339, %v3341
    %v3343 = vrot.slane %v3335, %v3342
    %v3345 = vunpack.c.l.s4 1966171168
    %v3346 = vunpack.c.0.s8 %v3345
    %v3347 = vlaneseq
    %v3348 = vshrl.u32 %v3347, 7
    %v3349 = vsub.s32 %v3346, %v3348
    %v3350 = vrot.slane %v3336, %v3349
    %v3351 = vlaneseq
    %v3352 = vshrl.u32 %v3351, 7
    %v3353 = vsub.s32 0, %v3352
    %v3354 = vrot.slane %v3343, %v3353
    %v3355 = vlaneseq
    %v3356 = vshrl.u32 %v3355, 7
    %v3357 = vsub.s32 0, %v3356
    %v3358 = vrot.slane %v3350, %v3357
    %3359 = vrot.lane.b32.xlu0 %v3354, 32
    %v3360 = vpop.permute.xlu0 %3359
    %3361 = vrot.lane.b32.xlu0 %v3358, 32
    %v3362 = vpop.permute.xlu0 %3361
    %3365 = vst.msk [vmem:[#allocation3] sm:$0x1] %vm646, %v3360
    %3366 = vst.msk [vmem:[#allocation3 + $0x8] sm:$0x1] %vm646, %v3362
    %v3367 = vxor.u32 %v3143, 2147483648
    %v3368 = vmul.f32 %v3367, 1.442695
    %v3369 = vpow.pop %v3368
    %v3370 = vadd.f32 %v3369, 1.0
    %v3371 = vrcp.pop %v3370
    %v3372 = vmul.f32 1.0, %v3371
    %v3373 = vtanh.pop %v3143
    %v3375 = vrot.slane %v3063, 6
    %v3377 = vmul.f32 %v3372, %v3375
    %3379 = vrot.lane.b32.xlu0 %v3373, 64
    %v3380 = vpop.permute.xlu0 %3379
    %v3382 = vmul.f32 %v3372, %v3380
    %3384 = vrot.lane.b32.xlu0 %v3382, 32
    %v3385 = vpop.permute.xlu0 %3384
    %v3387 = vadd.f32 %v3377, %v3385
    %v3388 = vtanh.pop %v3387
    %3390 = vrot.lane.b32.xlu0 %v3388, 64
    %v3391 = vpop.permute.xlu0 %3390
    %v3393 = vmul.f32 %v3372, %v3391
    %3394 = vset.pattern.permute.xlu0 1
    %3395 = vperm.xlu0 %3394, %v3054
    %v3396 = vpop.permute.xlu0 %3395
    %vm3397 = vcmp.eq.s32.totalorder %v3396, 1
    %v3399 = vrot.slane %v3393, 2
    %3400 = vrot.lane.b32.xlu0 %v3399, 32
    %v3401 = vpop.permute.xlu0 %3400
    %v3404 = vsel %vm3397, %v3401, %v3067
    %v3406 = vrot.slane %v3387, 2
    %3407 = vrot.lane.b32.xlu0 %v3406, 96
    %v3408 = vpop.permute.xlu0 %3407
    %3410 = vrot.lane.b32.xlu0 %v3063, 96
    %v3411 = vpop.permute.xlu0 %3410
    %v3413 = vsel %vm3397, %v3408, %v3411
    %v3414 = vsel %vm3397, %v3401, 0.0
    %v3416 = vsel %vm57, %v3404, 0
    %3418 = vmatprep.subr.mxu0 0.0
    %3419 = vmatpush1.msra.mxu0 %v2942
    %3420 = vmatprep.subr.mxu0 0.0
    %3421 = vmatpush1.msra.mxu0 %v2943
    %3422 = vmatprep.subr.mxu0 0.0
    %3423 = vmatpush1.msra.mxu0 %v2944
    %3424 = vmatprep.subr.mxu0 0.0
    %3425 = vmatpush1.msra.mxu0 %v2945
    %3426 = vmatprep.subr.mxu0 0.0
    %3427 = vmatpush1.msra.mxu0 0.0
    %3428 = vmatprep.subr.mxu0 0.0
    %3429 = vmatpush1.msra.mxu0 0.0
    %3430 = vmatprep.subr.mxu0 0.0
    %3431 = vmatpush1.msra.mxu0 0.0
    %3432 = vmatprep.subr.mxu0 0.0
    %3433 = vmatpush1.msra.mxu0 0.0
    %3434 = vmatprep.subr.mxu0 0.0
    %3435 = vmatpush1.msra.mxu0 0.0
    %3436 = vmatprep.subr.mxu0 0.0
    %3437 = vmatpush1.msra.mxu0 0.0
    %3438 = vmatprep.subr.mxu0 0.0
    %3439 = vmatpush1.msra.mxu0 0.0
    %3440 = vmatprep.subr.mxu0 0.0
    %3441 = vmatpush1.msra.mxu0 0.0
    %3442 = vmatprep.subr.mxu0 0.0
    %3443 = vmatpush1.msra.mxu0 0.0
    %3444 = vmatprep.subr.mxu0 0.0
    %3445 = vmatpush1.msra.mxu0 0.0
    %3446 = vmatprep.subr.mxu0 0.0
    %3447 = vmatpush1.msra.mxu0 0.0
    %3448 = vmatprep.subr.mxu0 0.0
    %3449 = vmatpush1.msra.mxu0 0.0
    %3450 = vmatprep.subr.mxu0 0.0
    %3451 = vmatpush1.msra.mxu0 0.0
    %3452 = vmatprep.subr.mxu0 0.0
    %3453 = vmatpush1.msra.mxu0 0.0
    %3454 = vmatprep.subr.mxu0 0.0
    %3455 = vmatpush1.msra.mxu0 0.0
    %3456 = vmatprep.subr.mxu0 0.0
    %3457 = vmatpush1.msra.mxu0 0.0
    %3458 = vmatprep.subr.mxu0 0.0
    %3459 = vmatpush1.msra.mxu0 0.0
    %3460 = vmatprep.subr.mxu0 0.0
    %3461 = vmatpush1.msra.mxu0 0.0
    %3462 = vmatprep.subr.mxu0 0.0
    %3463 = vmatpush1.msra.mxu0 0.0
    %3464 = vmatprep.subr.mxu0 0.0
    %3465 = vmatpush1.msra.mxu0 0.0
    %3466 = vmatprep.subr.mxu0 0.0
    %3467 = vmatpush1.msra.mxu0 0.0
    %3468 = vmatprep.subr.mxu0 0.0
    %3469 = vmatpush1.msra.mxu0 0.0
    %3470 = vmatprep.subr.mxu0 0.0
    %3471 = vmatpush1.msra.mxu0 0.0
    %3472 = vmatprep.subr.mxu0 0.0
    %3473 = vmatpush1.msra.mxu0 0.0
    %3474 = vmatprep.subr.mxu0 0.0
    %3475 = vmatpush1.msra.mxu0 0.0
    %3476 = vmatprep.subr.mxu0 0.0
    %3477 = vmatpush1.msra.mxu0 0.0
    %3478 = vmatprep.subr.mxu0 0.0
    %3479 = vmatpush1.msra.mxu0 0.0
    %3480 = vmatprep.subr.mxu0 0.0
    %3481 = vmatpush1.msra.mxu0 0.0
    %3482 = vmatprep.mubr.f32.mxu0 0.0
    %3483 = vmatmul.mubr.f32.gmra.mrb[0].mxu0 %v3416
    %v3484 = vpop.f32.mrb[0].mxu0
    %v3485 = vadd.f32 0.0, %v3484
    %v3486 = vpop.f32.mrb[0].mxu0
    %3487 = vdwg.mxu0
    %v3489 = vrot.slane %v3485, 4
    %v3491 = vadd.f32 %v227, %v3489
    %3493 = vrot.lane.b32.xlu0 %v3325, 32
    %v3494 = vpop.permute.xlu0 %3493
    %v3495 = vsel %vm57, %v3494, 0
    %3497 = vmatprep.subr.mxu0 0.0
    %3498 = vmatpush1.msra.mxu0 %v2947
    %3499 = vmatprep.subr.mxu0 0.0
    %3500 = vmatpush1.msra.mxu0 %v2948
    %3501 = vmatprep.subr.mxu0 0.0
    %3502 = vmatpush1.msra.mxu0 %v2949
    %3503 = vmatprep.subr.mxu0 0.0
    %3504 = vmatpush1.msra.mxu0 %v2950
    %3505 = vmatprep.subr.mxu0 0.0
    %3506 = vmatpush1.msra.mxu0 0.0
    %3507 = vmatprep.subr.mxu0 0.0
    %3508 = vmatpush1.msra.mxu0 0.0
    %3509 = vmatprep.subr.mxu0 0.0
    %3510 = vmatpush1.msra.mxu0 0.0
    %3511 = vmatprep.subr.mxu0 0.0
    %3512 = vmatpush1.msra.mxu0 0.0
    %3513 = vmatprep.subr.mxu0 0.0
    %3514 = vmatpush1.msra.mxu0 0.0
    %3515 = vmatprep.subr.mxu0 0.0
    %3516 = vmatpush1.msra.mxu0 0.0
    %3517 = vmatprep.subr.mxu0 0.0
    %3518 = vmatpush1.msra.mxu0 0.0
    %3519 = vmatprep.subr.mxu0 0.0
    %3520 = vmatpush1.msra.mxu0 0.0
    %3521 = vmatprep.subr.mxu0 0.0
    %3522 = vmatpush1.msra.mxu0 0.0
    %3523 = vmatprep.subr.mxu0 0.0
    %3524 = vmatpush1.msra.mxu0 0.0
    %3525 = vmatprep.subr.mxu0 0.0
    %3526 = vmatpush1.msra.mxu0 0.0
    %3527 = vmatprep.subr.mxu0 0.0
    %3528 = vmatpush1.msra.mxu0 0.0
    %3529 = vmatprep.subr.mxu0 0.0
    %3530 = vmatpush1.msra.mxu0 0.0
    %3531 = vmatprep.subr.mxu0 0.0
    %3532 = vmatpush1.msra.mxu0 0.0
    %3533 = vmatprep.subr.mxu0 0.0
    %3534 = vmatpush1.msra.mxu0 0.0
    %3535 = vmatprep.subr.mxu0 0.0
    %3536 = vmatpush1.msra.mxu0 0.0
    %3537 = vmatprep.subr.mxu0 0.0
    %3538 = vmatpush1.msra.mxu0 0.0
    %3539 = vmatprep.subr.mxu0 0.0
    %3540 = vmatpush1.msra.mxu0 0.0
    %3541 = vmatprep.subr.mxu0 0.0
    %3542 = vmatpush1.msra.mxu0 0.0
    %3543 = vmatprep.subr.mxu0 0.0
    %3544 = vmatpush1.msra.mxu0 0.0
    %3545 = vmatprep.subr.mxu0 0.0
    %3546 = vmatpush1.msra.mxu0 0.0
    %3547 = vmatprep.subr.mxu0 0.0
    %3548 = vmatpush1.msra.mxu0 0.0
    %3549 = vmatprep.subr.mxu0 0.0
    %3550 = vmatpush1.msra.mxu0 0.0
    %3551 = vmatprep.subr.mxu0 0.0
    %3552 = vmatpush1.msra.mxu0 0.0
    %3553 = vmatprep.subr.mxu0 0.0
    %3554 = vmatpush1.msra.mxu0 0.0
    %3555 = vmatprep.subr.mxu0 0.0
    %3556 = vmatpush1.msra.mxu0 0.0
    %3557 = vmatprep.subr.mxu0 0.0
    %3558 = vmatpush1.msra.mxu0 0.0
    %3559 = vmatprep.subr.mxu0 0.0
    %3560 = vmatpush1.msra.mxu0 0.0
    %3561 = vmatprep.mubr.f32.mxu0 0.0
    %3562 = vmatmul.mubr.f32.gmra.mrb[0].mxu0 %v3495
    %v3563 = vpop.f32.mrb[0].mxu0
    %v3564 = vadd.f32 0.0, %v3563
    %v3565 = vpop.f32.mrb[0].mxu0
    %3566 = vdwg.mxu0
    %v3568 = vsel %vm57, %v3414, 0
    %3570 = vmatprep.subr.mxu0 0.0
    %3571 = vmatpush1.msra.mxu0 %v2935
    %3572 = vmatprep.subr.mxu0 0.0
    %3573 = vmatpush1.msra.mxu0 %v2936
    %3574 = vmatprep.subr.mxu0 0.0
    %3575 = vmatpush1.msra.mxu0 %v2937
    %3576 = vmatprep.subr.mxu0 0.0
    %3577 = vmatpush1.msra.mxu0 %v2938
    %3578 = vmatprep.subr.mxu0 0.0
    %3579 = vmatpush1.msra.mxu0 0.0
    %3580 = vmatprep.subr.mxu0 0.0
    %3581 = vmatpush1.msra.mxu0 0.0
    %3582 = vmatprep.subr.mxu0 0.0
    %3583 = vmatpush1.msra.mxu0 0.0
    %3584 = vmatprep.subr.mxu0 0.0
    %3585 = vmatpush1.msra.mxu0 0.0
    %3586 = vmatprep.subr.mxu0 0.0
    %3587 = vmatpush1.msra.mxu0 0.0
    %3588 = vmatprep.subr.mxu0 0.0
    %3589 = vmatpush1.msra.mxu0 0.0
    %3590 = vmatprep.subr.mxu0 0.0
    %3591 = vmatpush1.msra.mxu0 0.0
    %3592 = vmatprep.subr.mxu0 0.0
    %3593 = vmatpush1.msra.mxu0 0.0
    %3594 = vmatprep.subr.mxu0 0.0
    %3595 = vmatpush1.msra.mxu0 0.0
    %3596 = vmatprep.subr.mxu0 0.0
    %3597 = vmatpush1.msra.mxu0 0.0
    %3598 = vmatprep.subr.mxu0 0.0
    %3599 = vmatpush1.msra.mxu0 0.0
    %3600 = vmatprep.subr.mxu0 0.0
    %3601 = vmatpush1.msra.mxu0 0.0
    %3602 = vmatprep.subr.mxu0 0.0
    %3603 = vmatpush1.msra.mxu0 0.0
    %3604 = vmatprep.subr.mxu0 0.0
    %3605 = vmatpush1.msra.mxu0 0.0
    %3606 = vmatprep.subr.mxu0 0.0
    %3607 = vmatpush1.msra.mxu0 0.0
    %3608 = vmatprep.subr.mxu0 0.0
    %3609 = vmatpush1.msra.mxu0 0.0
    %3610 = vmatprep.subr.mxu0 0.0
    %3611 = vmatpush1.msra.mxu0 0.0
    %3612 = vmatprep.subr.mxu0 0.0
    %3613 = vmatpush1.msra.mxu0 0.0
    %3614 = vmatprep.subr.mxu0 0.0
    %3615 = vmatpush1.msra.mxu0 0.0
    %3616 = vmatprep.subr.mxu0 0.0
    %3617 = vmatpush1.msra.mxu0 0.0
    %3618 = vmatprep.subr.mxu0 0.0
    %3619 = vmatpush1.msra.mxu0 0.0
    %3620 = vmatprep.subr.mxu0 0.0
    %3621 = vmatpush1.msra.mxu0 0.0
    %3622 = vmatprep.subr.mxu0 0.0
    %3623 = vmatpush1.msra.mxu0 0.0
    %3624 = vmatprep.subr.mxu0 0.0
    %3625 = vmatpush1.msra.mxu0 0.0
    %3626 = vmatprep.subr.mxu0 0.0
    %3627 = vmatpush1.msra.mxu0 0.0
    %3628 = vmatprep.subr.mxu0 0.0
    %3629 = vmatpush1.msra.mxu0 0.0
    %3630 = vmatprep.subr.mxu0 0.0
    %3631 = vmatpush1.msra.mxu0 0.0
    %3632 = vmatprep.subr.mxu0 0.0
    %3633 = vmatpush1.msra.mxu0 0.0
    %3634 = vmatprep.mubr.f32.mxu0 0.0
    %3635 = vmatmul.mubr.f32.gmra.mrb[0].mxu0 %v3568
    %v3636 = vpop.f32.mrb[0].mxu0
    %v3637 = vadd.f32 %v3564, %v3636
    %v3638 = vpop.f32.mrb[0].mxu0
    %3639 = vdwg.mxu0
    %v3640 = vadd.f32 %v3637, %v3298
    %v3641 = vxor.u32 %v3640, 2147483648
    %v3642 = vmul.f32 %v3641, 1.442695
    %v3643 = vpow.pop %v3642
    %v3644 = vadd.f32 %v3643, 1.0
    %v3645 = vrcp.pop %v3644
    %v3646 = vmul.f32 1.0, %v3645
    %v3647 = vtanh.pop %v3640
    %v3648 = vmul.f32 %v3646, %v3326
    %3650 = vrot.lane.b32.xlu0 %v3647, 64
    %v3651 = vpop.permute.xlu0 %3650
    %v3653 = vmul.f32 %v3646, %v3651
    %3655 = vrot.lane.b32.xlu0 %v3653, 32
    %v3656 = vpop.permute.xlu0 %3655
    %v3658 = vadd.f32 %v3648, %v3656
    %v3659 = vtanh.pop %v3658
    %3661 = vrot.lane.b32.xlu0 %v3659, 64
    %v3662 = vpop.permute.xlu0 %3661
    %v3664 = vmul.f32 %v3646, %v3662
    %v3665 = vsel %vm3397, %v3664, %v3325
    %v3666 = vsel %vm3397, %v3658, %v3326
    %v3667 = vsel %vm3397, %v3664, 0.0
    %v3670 = vunpack.c.l.s4 1966171168
    %v3671 = vunpack.c.0.s8 %v3670
    %v3672 = vlaneseq
    %v3673 = vshrl.u32 %v3672, 7
    %v3674 = vsub.s32 %v3671, %v3673
    %v3675 = vrot.slane %v3667, %v3674
    %v3676 = vcombine.high %v3675, %v3675
    %v3678 = vunpack.c.l.s4 1966171168
    %v3679 = vunpack.c.0.s8 %v3678
    %v3680 = vlaneseq
    %v3681 = vshrl.u32 %v3680, 7
    %v3682 = vsub.s32 %v3679, %v3681
    %v3683 = vrot.slane %v3675, %v3682
    %v3685 = vunpack.c.l.s4 1966171168
    %v3686 = vunpack.c.0.s8 %v3685
    %v3687 = vlaneseq
    %v3688 = vshrl.u32 %v3687, 7
    %v3689 = vsub.s32 %v3686, %v3688
    %v3690 = vrot.slane %v3676, %v3689
    %v3691 = vlaneseq
    %v3692 = vshrl.u32 %v3691, 7
    %v3693 = vsub.s32 0, %v3692
    %v3694 = vrot.slane %v3683, %v3693
    %v3695 = vlaneseq
    %v3696 = vshrl.u32 %v3695, 7
    %v3697 = vsub.s32 0, %v3696
    %v3698 = vrot.slane %v3690, %v3697
    %3699 = vrot.lane.b32.xlu0 %v3694, 32
    %v3700 = vpop.permute.xlu0 %3699
    %3701 = vrot.lane.b32.xlu0 %v3698, 32
    %v3702 = vpop.permute.xlu0 %3701
    %3705 = vst.msk [vmem:[#allocation3 + $0x1] sm:$0x1] %vm646, %v3700
    %3706 = vst.msk [vmem:[#allocation3 + $0x9] sm:$0x1] %vm646, %v3702
    %v3707 = vxor.u32 %v3491, 2147483648
    %v3708 = vmul.f32 %v3707, 1.442695
    %v3709 = vpow.pop %v3708
    %v3710 = vadd.f32 %v3709, 1.0
    %v3711 = vrcp.pop %v3710
    %v3712 = vmul.f32 1.0, %v3711
    %v3713 = vtanh.pop %v3491
    %v3715 = vrot.slane %v3413, 4
    %3716 = vrot.lane.b32.xlu0 %v3715, 32
    %v3717 = vpop.permute.xlu0 %3716
    %v3719 = vmul.f32 %v3712, %v3717
    %3721 = vrot.lane.b32.xlu0 %v3713, 64
    %v3722 = vpop.permute.xlu0 %3721
    %v3724 = vmul.f32 %v3712, %v3722
    %3726 = vrot.lane.b32.xlu0 %v3724, 32
    %v3727 = vpop.permute.xlu0 %3726
    %v3729 = vadd.f32 %v3719, %v3727
    %v3730 = vtanh.pop %v3729
    %3732 = vrot.lane.b32.xlu0 %v3730, 64
    %v3733 = vpop.permute.xlu0 %3732
    %v3735 = vmul.f32 %v3712, %v3733
    %3736 = vset.pattern.permute.xlu0 2
    %3737 = vperm.xlu0 %3736, %v3054
    %v3738 = vpop.permute.xlu0 %3737
    %vm3739 = vcmp.eq.s32.totalorder %v3738, 1
    %v3741 = vrot.slane %v3735, 4
    %3742 = vrot.lane.b32.xlu0 %v3741, 32
    %v3743 = vpop.permute.xlu0 %3742
    %v3745 = vsel %vm3739, %v3743, %v3404
    %v3747 = vrot.slane %v3729, 4
    %3748 = vrot.lane.b32.xlu0 %v3747, 96
    %v3749 = vpop.permute.xlu0 %3748
    %v3751 = vsel %vm3739, %v3749, %v3413
    %v3752 = vsel %vm3739, %v3743, 0.0
    %v3754 = vsel %vm57, %v3745, 0
    %3756 = vmatprep.subr.mxu0 0.0
    %3757 = vmatpush1.msra.mxu0 %v2942
    %3758 = vmatprep.subr.mxu0 0.0
    %3759 = vmatpush1.msra.mxu0 %v2943
    %3760 = vmatprep.subr.mxu0 0.0
    %3761 = vmatpush1.msra.mxu0 %v2944
    %3762 = vmatprep.subr.mxu0 0.0
    %3763 = vmatpush1.msra.mxu0 %v2945
    %3764 = vmatprep.subr.mxu0 0.0
    %3765 = vmatpush1.msra.mxu0 0.0
    %3766 = vmatprep.subr.mxu0 0.0
    %3767 = vmatpush1.msra.mxu0 0.0
    %3768 = vmatprep.subr.mxu0 0.0
    %3769 = vmatpush1.msra.mxu0 0.0
    %3770 = vmatprep.subr.mxu0 0.0
    %3771 = vmatpush1.msra.mxu0 0.0
    %3772 = vmatprep.subr.mxu0 0.0
    %3773 = vmatpush1.msra.mxu0 0.0
    %3774 = vmatprep.subr.mxu0 0.0
    %3775 = vmatpush1.msra.mxu0 0.0
    %3776 = vmatprep.subr.mxu0 0.0
    %3777 = vmatpush1.msra.mxu0 0.0
    %3778 = vmatprep.subr.mxu0 0.0
    %3779 = vmatpush1.msra.mxu0 0.0
    %3780 = vmatprep.subr.mxu0 0.0
    %3781 = vmatpush1.msra.mxu0 0.0
    %3782 = vmatprep.subr.mxu0 0.0
    %3783 = vmatpush1.msra.mxu0 0.0
    %3784 = vmatprep.subr.mxu0 0.0
    %3785 = vmatpush1.msra.mxu0 0.0
    %3786 = vmatprep.subr.mxu0 0.0
    %3787 = vmatpush1.msra.mxu0 0.0
    %3788 = vmatprep.subr.mxu0 0.0
    %3789 = vmatpush1.msra.mxu0 0.0
    %3790 = vmatprep.subr.mxu0 0.0
    %3791 = vmatpush1.msra.mxu0 0.0
    %3792 = vmatprep.subr.mxu0 0.0
    %3793 = vmatpush1.msra.mxu0 0.0
    %3794 = vmatprep.subr.mxu0 0.0
    %3795 = vmatpush1.msra.mxu0 0.0
    %3796 = vmatprep.subr.mxu0 0.0
    %3797 = vmatpush1.msra.mxu0 0.0
    %3798 = vmatprep.subr.mxu0 0.0
    %3799 = vmatpush1.msra.mxu0 0.0
    %3800 = vmatprep.subr.mxu0 0.0
    %3801 = vmatpush1.msra.mxu0 0.0
    %3802 = vmatprep.subr.mxu0 0.0
    %3803 = vmatpush1.msra.mxu0 0.0
    %3804 = vmatprep.subr.mxu0 0.0
    %3805 = vmatpush1.msra.mxu0 0.0
    %3806 = vmatprep.subr.mxu0 0.0
    %3807 = vmatpush1.msra.mxu0 0.0
    %3808 = vmatprep.subr.mxu0 0.0
    %3809 = vmatpush1.msra.mxu0 0.0
    %3810 = vmatprep.subr.mxu0 0.0
    %3811 = vmatpush1.msra.mxu0 0.0
    %3812 = vmatprep.subr.mxu0 0.0
    %3813 = vmatpush1.msra.mxu0 0.0
    %3814 = vmatprep.subr.mxu0 0.0
    %3815 = vmatpush1.msra.mxu0 0.0
    %3816 = vmatprep.subr.mxu0 0.0
    %3817 = vmatpush1.msra.mxu0 0.0
    %3818 = vmatprep.subr.mxu0 0.0
    %3819 = vmatpush1.msra.mxu0 0.0
    %3820 = vmatprep.mubr.f32.mxu0 0.0
    %3821 = vmatmul.mubr.f32.gmra.mrb[0].mxu0 %v3754
    %v3822 = vpop.f32.mrb[0].mxu0
    %v3823 = vadd.f32 0.0, %v3822
    %v3824 = vpop.f32.mrb[0].mxu0
    %3825 = vdwg.mxu0
    %v3827 = vrot.slane %v3823, 2
    %v3829 = vadd.f32 %v227, %v3827
    %3831 = vrot.lane.b32.xlu0 %v3665, 32
    %v3832 = vpop.permute.xlu0 %3831
    %v3833 = vsel %vm57, %v3832, 0
    %3835 = vmatprep.subr.mxu0 0.0
    %3836 = vmatpush1.msra.mxu0 %v2947
    %3837 = vmatprep.subr.mxu0 0.0
    %3838 = vmatpush1.msra.mxu0 %v2948
    %3839 = vmatprep.subr.mxu0 0.0
    %3840 = vmatpush1.msra.mxu0 %v2949
    %3841 = vmatprep.subr.mxu0 0.0
    %3842 = vmatpush1.msra.mxu0 %v2950
    %3843 = vmatprep.subr.mxu0 0.0
    %3844 = vmatpush1.msra.mxu0 0.0
    %3845 = vmatprep.subr.mxu0 0.0
    %3846 = vmatpush1.msra.mxu0 0.0
    %3847 = vmatprep.subr.mxu0 0.0
    %3848 = vmatpush1.msra.mxu0 0.0
    %3849 = vmatprep.subr.mxu0 0.0
    %3850 = vmatpush1.msra.mxu0 0.0
    %3851 = vmatprep.subr.mxu0 0.0
    %3852 = vmatpush1.msra.mxu0 0.0
    %3853 = vmatprep.subr.mxu0 0.0
    %3854 = vmatpush1.msra.mxu0 0.0
    %3855 = vmatprep.subr.mxu0 0.0
    %3856 = vmatpush1.msra.mxu0 0.0
    %3857 = vmatprep.subr.mxu0 0.0
    %3858 = vmatpush1.msra.mxu0 0.0
    %3859 = vmatprep.subr.mxu0 0.0
    %3860 = vmatpush1.msra.mxu0 0.0
    %3861 = vmatprep.subr.mxu0 0.0
    %3862 = vmatpush1.msra.mxu0 0.0
    %3863 = vmatprep.subr.mxu0 0.0
    %3864 = vmatpush1.msra.mxu0 0.0
    %3865 = vmatprep.subr.mxu0 0.0
    %3866 = vmatpush1.msra.mxu0 0.0
    %3867 = vmatprep.subr.mxu0 0.0
    %3868 = vmatpush1.msra.mxu0 0.0
    %3869 = vmatprep.subr.mxu0 0.0
    %3870 = vmatpush1.msra.mxu0 0.0
    %3871 = vmatprep.subr.mxu0 0.0
    %3872 = vmatpush1.msra.mxu0 0.0
    %3873 = vmatprep.subr.mxu0 0.0
    %3874 = vmatpush1.msra.mxu0 0.0
    %3875 = vmatprep.subr.mxu0 0.0
    %3876 = vmatpush1.msra.mxu0 0.0
    %3877 = vmatprep.subr.mxu0 0.0
    %3878 = vmatpush1.msra.mxu0 0.0
    %3879 = vmatprep.subr.mxu0 0.0
    %3880 = vmatpush1.msra.mxu0 0.0
    %3881 = vmatprep.subr.mxu0 0.0
    %3882 = vmatpush1.msra.mxu0 0.0
    %3883 = vmatprep.subr.mxu0 0.0
    %3884 = vmatpush1.msra.mxu0 0.0
    %3885 = vmatprep.subr.mxu0 0.0
    %3886 = vmatpush1.msra.mxu0 0.0
    %3887 = vmatprep.subr.mxu0 0.0
    %3888 = vmatpush1.msra.mxu0 0.0
    %3889 = vmatprep.subr.mxu0 0.0
    %3890 = vmatpush1.msra.mxu0 0.0
    %3891 = vmatprep.subr.mxu0 0.0
    %3892 = vmatpush1.msra.mxu0 0.0
    %3893 = vmatprep.subr.mxu0 0.0
    %3894 = vmatpush1.msra.mxu0 0.0
    %3895 = vmatprep.subr.mxu0 0.0
    %3896 = vmatpush1.msra.mxu0 0.0
    %3897 = vmatprep.subr.mxu0 0.0
    %3898 = vmatpush1.msra.mxu0 0.0
    %3899 = vmatprep.mubr.f32.mxu0 0.0
    %3900 = vmatmul.mubr.f32.gmra.mrb[0].mxu0 %v3833
    %v3901 = vpop.f32.mrb[0].mxu0
    %v3902 = vadd.f32 0.0, %v3901
    %v3903 = vpop.f32.mrb[0].mxu0
    %3904 = vdwg.mxu0
    %v3906 = vsel %vm57, %v3752, 0
    %3908 = vmatprep.subr.mxu0 0.0
    %3909 = vmatpush1.msra.mxu0 %v2935
    %3910 = vmatprep.subr.mxu0 0.0
    %3911 = vmatpush1.msra.mxu0 %v2936
    %3912 = vmatprep.subr.mxu0 0.0
    %3913 = vmatpush1.msra.mxu0 %v2937
    %3914 = vmatprep.subr.mxu0 0.0
    %3915 = vmatpush1.msra.mxu0 %v2938
    %3916 = vmatprep.subr.mxu0 0.0
    %3917 = vmatpush1.msra.mxu0 0.0
    %3918 = vmatprep.subr.mxu0 0.0
    %3919 = vmatpush1.msra.mxu0 0.0
    %3920 = vmatprep.subr.mxu0 0.0
    %3921 = vmatpush1.msra.mxu0 0.0
    %3922 = vmatprep.subr.mxu0 0.0
    %3923 = vmatpush1.msra.mxu0 0.0
    %3924 = vmatprep.subr.mxu0 0.0
    %3925 = vmatpush1.msra.mxu0 0.0
    %3926 = vmatprep.subr.mxu0 0.0
    %3927 = vmatpush1.msra.mxu0 0.0
    %3928 = vmatprep.subr.mxu0 0.0
    %3929 = vmatpush1.msra.mxu0 0.0
    %3930 = vmatprep.subr.mxu0 0.0
    %3931 = vmatpush1.msra.mxu0 0.0
    %3932 = vmatprep.subr.mxu0 0.0
    %3933 = vmatpush1.msra.mxu0 0.0
    %3934 = vmatprep.subr.mxu0 0.0
    %3935 = vmatpush1.msra.mxu0 0.0
    %3936 = vmatprep.subr.mxu0 0.0
    %3937 = vmatpush1.msra.mxu0 0.0
    %3938 = vmatprep.subr.mxu0 0.0
    %3939 = vmatpush1.msra.mxu0 0.0
    %3940 = vmatprep.subr.mxu0 0.0
    %3941 = vmatpush1.msra.mxu0 0.0
    %3942 = vmatprep.subr.mxu0 0.0
    %3943 = vmatpush1.msra.mxu0 0.0
    %3944 = vmatprep.subr.mxu0 0.0
    %3945 = vmatpush1.msra.mxu0 0.0
    %3946 = vmatprep.subr.mxu0 0.0
    %3947 = vmatpush1.msra.mxu0 0.0
    %3948 = vmatprep.subr.mxu0 0.0
    %3949 = vmatpush1.msra.mxu0 0.0
    %3950 = vmatprep.subr.mxu0 0.0
    %3951 = vmatpush1.msra.mxu0 0.0
    %3952 = vmatprep.subr.mxu0 0.0
    %3953 = vmatpush1.msra.mxu0 0.0
    %3954 = vmatprep.subr.mxu0 0.0
    %3955 = vmatpush1.msra.mxu0 0.0
    %3956 = vmatprep.subr.mxu0 0.0
    %3957 = vmatpush1.msra.mxu0 0.0
    %3958 = vmatprep.subr.mxu0 0.0
    %3959 = vmatpush1.msra.mxu0 0.0
    %3960 = vmatprep.subr.mxu0 0.0
    %3961 = vmatpush1.msra.mxu0 0.0
    %3962 = vmatprep.subr.mxu0 0.0
    %3963 = vmatpush1.msra.mxu0 0.0
    %3964 = vmatprep.subr.mxu0 0.0
    %3965 = vmatpush1.msra.mxu0 0.0
    %3966 = vmatprep.subr.mxu0 0.0
    %3967 = vmatpush1.msra.mxu0 0.0
    %3968 = vmatprep.subr.mxu0 0.0
    %3969 = vmatpush1.msra.mxu0 0.0
    %3970 = vmatprep.subr.mxu0 0.0
    %3971 = vmatpush1.msra.mxu0 0.0
    %3972 = vmatprep.mubr.f32.mxu0 0.0
    %3973 = vmatmul.mubr.f32.gmra.mrb[0].mxu0 %v3906
    %v3974 = vpop.f32.mrb[0].mxu0
    %v3975 = vadd.f32 %v3902, %v3974
    %v3976 = vpop.f32.mrb[0].mxu0
    %3977 = vdwg.mxu0
    %v3978 = vadd.f32 %v3975, %v3298
    %v3979 = vxor.u32 %v3978, 2147483648
    %v3980 = vmul.f32 %v3979, 1.442695
    %v3981 = vpow.pop %v3980
    %v3982 = vadd.f32 %v3981, 1.0
    %v3983 = vrcp.pop %v3982
    %v3984 = vmul.f32 1.0, %v3983
    %v3985 = vtanh.pop %v3978
    %v3986 = vmul.f32 %v3984, %v3666
    %3988 = vrot.lane.b32.xlu0 %v3985, 64
    %v3989 = vpop.permute.xlu0 %3988
    %v3991 = vmul.f32 %v3984, %v3989
    %3993 = vrot.lane.b32.xlu0 %v3991, 32
    %v3994 = vpop.permute.xlu0 %3993
    %v3996 = vadd.f32 %v3986, %v3994
    %v3997 = vtanh.pop %v3996
    %3999 = vrot.lane.b32.xlu0 %v3997, 64
    %v4000 = vpop.permute.xlu0 %3999
    %v4002 = vmul.f32 %v3984, %v4000
    %v4003 = vsel %vm3739, %v4002, %v3665
    %v4004 = vsel %vm3739, %v3996, %v3666
    %v4005 = vsel %vm3739, %v4002, 0.0
    %v4008 = vunpack.c.l.s4 1966171168
    %v4009 = vunpack.c.0.s8 %v4008
    %v4010 = vlaneseq
    %v4011 = vshrl.u32 %v4010, 7
    %v4012 = vsub.s32 %v4009, %v4011
    %v4013 = vrot.slane %v4005, %v4012
    %v4014 = vcombine.high %v4013, %v4013
    %v4016 = vunpack.c.l.s4 1966171168
    %v4017 = vunpack.c.0.s8 %v4016
    %v4018 = vlaneseq
    %v4019 = vshrl.u32 %v4018, 7
    %v4020 = vsub.s32 %v4017, %v4019
    %v4021 = vrot.slane %v4013, %v4020
    %v4023 = vunpack.c.l.s4 1966171168
    %v4024 = vunpack.c.0.s8 %v4023
    %v4025 = vlaneseq
    %v4026 = vshrl.u32 %v4025, 7
    %v4027 = vsub.s32 %v4024, %v4026
    %v4028 = vrot.slane %v4014, %v4027
    %v4029 = vlaneseq
    %v4030 = vshrl.u32 %v4029, 7
    %v4031 = vsub.s32 0, %v4030
    %v4032 = vrot.slane %v4021, %v4031
    %v4033 = vlaneseq
    %v4034 = vshrl.u32 %v4033, 7
    %v4035 = vsub.s32 0, %v4034
    %v4036 = vrot.slane %v4028, %v4035
    %4037 = vrot.lane.b32.xlu0 %v4032, 32
    %v4038 = vpop.permute.xlu0 %4037
    %4039 = vrot.lane.b32.xlu0 %v4036, 32
    %v4040 = vpop.permute.xlu0 %4039
    %4043 = vst.msk [vmem:[#allocation3 + $0x2] sm:$0x1] %vm646, %v4038
    %4044 = vst.msk [vmem:[#allocation3 + $0xa] sm:$0x1] %vm646, %v4040
    %v4045 = vxor.u32 %v3829, 2147483648
    %v4046 = vmul.f32 %v4045, 1.442695
    %v4047 = vpow.pop %v4046
    %v4048 = vadd.f32 %v4047, 1.0
    %v4049 = vrcp.pop %v4048
    %v4050 = vmul.f32 1.0, %v4049
    %v4051 = vtanh.pop %v3829
    %v4053 = vrot.slane %v3751, 2
    %4054 = vrot.lane.b32.xlu0 %v4053, 32
    %v4055 = vpop.permute.xlu0 %4054
    %v4057 = vmul.f32 %v4050, %v4055
    %4059 = vrot.lane.b32.xlu0 %v4051, 64
    %v4060 = vpop.permute.xlu0 %4059
    %v4062 = vmul.f32 %v4050, %v4060
    %4064 = vrot.lane.b32.xlu0 %v4062, 32
    %v4065 = vpop.permute.xlu0 %4064
    %v4067 = vadd.f32 %v4057, %v4065
    %v4068 = vtanh.pop %v4067
    %4070 = vrot.lane.b32.xlu0 %v4068, 64
    %v4071 = vpop.permute.xlu0 %4070
    %v4073 = vmul.f32 %v4050, %v4071
    %4074 = vset.pattern.permute.xlu0 3
    %4075 = vperm.xlu0 %4074, %v3054
    %v4076 = vpop.permute.xlu0 %4075
    %vm4077 = vcmp.eq.s32.totalorder %v4076, 1
    %v4079 = vrot.slane %v4073, 6
    %4080 = vrot.lane.b32.xlu0 %v4079, 32
    %v4081 = vpop.permute.xlu0 %4080
    %v4083 = vsel %vm4077, %v4081, %v3745
    %v4085 = vrot.slane %v4067, 6
    %4086 = vrot.lane.b32.xlu0 %v4085, 96
    %v4087 = vpop.permute.xlu0 %4086
    %v4089 = vsel %vm4077, %v4087, %v3751
    %v4090 = vsel %vm4077, %v4081, 0.0
    %v4092 = vsel %vm57, %v4083, 0
    %4094 = vmatprep.subr.mxu0 0.0
    %4095 = vmatpush1.msra.mxu0 %v2942
    %4096 = vmatprep.subr.mxu0 0.0
    %4097 = vmatpush1.msra.mxu0 %v2943
    %4098 = vmatprep.subr.mxu0 0.0
    %4099 = vmatpush1.msra.mxu0 %v2944
    %4100 = vmatprep.subr.mxu0 0.0
    %4101 = vmatpush1.msra.mxu0 %v2945
    %4102 = vmatprep.subr.mxu0 0.0
    %4103 = vmatpush1.msra.mxu0 0.0
    %4104 = vmatprep.subr.mxu0 0.0
    %4105 = vmatpush1.msra.mxu0 0.0
    %4106 = vmatprep.subr.mxu0 0.0
    %4107 = vmatpush1.msra.mxu0 0.0
    %4108 = vmatprep.subr.mxu0 0.0
    %4109 = vmatpush1.msra.mxu0 0.0
    %4110 = vmatprep.subr.mxu0 0.0
    %4111 = vmatpush1.msra.mxu0 0.0
    %4112 = vmatprep.subr.mxu0 0.0
    %4113 = vmatpush1.msra.mxu0 0.0
    %4114 = vmatprep.subr.mxu0 0.0
    %4115 = vmatpush1.msra.mxu0 0.0
    %4116 = vmatprep.subr.mxu0 0.0
    %4117 = vmatpush1.msra.mxu0 0.0
    %4118 = vmatprep.subr.mxu0 0.0
    %4119 = vmatpush1.msra.mxu0 0.0
    %4120 = vmatprep.subr.mxu0 0.0
    %4121 = vmatpush1.msra.mxu0 0.0
    %4122 = vmatprep.subr.mxu0 0.0
    %4123 = vmatpush1.msra.mxu0 0.0
    %4124 = vmatprep.subr.mxu0 0.0
    %4125 = vmatpush1.msra.mxu0 0.0
    %4126 = vmatprep.subr.mxu0 0.0
    %4127 = vmatpush1.msra.mxu0 0.0
    %4128 = vmatprep.subr.mxu0 0.0
    %4129 = vmatpush1.msra.mxu0 0.0
    %4130 = vmatprep.subr.mxu0 0.0
    %4131 = vmatpush1.msra.mxu0 0.0
    %4132 = vmatprep.subr.mxu0 0.0
    %4133 = vmatpush1.msra.mxu0 0.0
    %4134 = vmatprep.subr.mxu0 0.0
    %4135 = vmatpush1.msra.mxu0 0.0
    %4136 = vmatprep.subr.mxu0 0.0
    %4137 = vmatpush1.msra.mxu0 0.0
    %4138 = vmatprep.subr.mxu0 0.0
    %4139 = vmatpush1.msra.mxu0 0.0
    %4140 = vmatprep.subr.mxu0 0.0
    %4141 = vmatpush1.msra.mxu0 0.0
    %4142 = vmatprep.subr.mxu0 0.0
    %4143 = vmatpush1.msra.mxu0 0.0
    %4144 = vmatprep.subr.mxu0 0.0
    %4145 = vmatpush1.msra.mxu0 0.0
    %4146 = vmatprep.subr.mxu0 0.0
    %4147 = vmatpush1.msra.mxu0 0.0
    %4148 = vmatprep.subr.mxu0 0.0
    %4149 = vmatpush1.msra.mxu0 0.0
    %4150 = vmatprep.subr.mxu0 0.0
    %4151 = vmatpush1.msra.mxu0 0.0
    %4152 = vmatprep.subr.mxu0 0.0
    %4153 = vmatpush1.msra.mxu0 0.0
    %4154 = vmatprep.subr.mxu0 0.0
    %4155 = vmatpush1.msra.mxu0 0.0
    %4156 = vmatprep.subr.mxu0 0.0
    %4157 = vmatpush1.msra.mxu0 0.0
    %4158 = vmatprep.mubr.f32.mxu0 0.0
    %4159 = vmatmul.mubr.f32.gmra.mrb[0].mxu0 %v4092
    %v4160 = vpop.f32.mrb[0].mxu0
    %v4161 = vadd.f32 0.0, %v4160
    %v4162 = vpop.f32.mrb[0].mxu0
    %4163 = vdwg.mxu0
    %v4164 = vadd.f32 %v232, %v4161
    %4166 = vrot.lane.b32.xlu0 %v4003, 32
    %v4167 = vpop.permute.xlu0 %4166
    %v4168 = vsel %vm57, %v4167, 0
    %4170 = vmatprep.subr.mxu0 0.0
    %4171 = vmatpush1.msra.mxu0 %v2947
    %4172 = vmatprep.subr.mxu0 0.0
    %4173 = vmatpush1.msra.mxu0 %v2948
    %4174 = vmatprep.subr.mxu0 0.0
    %4175 = vmatpush1.msra.mxu0 %v2949
    %4176 = vmatprep.subr.mxu0 0.0
    %4177 = vmatpush1.msra.mxu0 %v2950
    %4178 = vmatprep.subr.mxu0 0.0
    %4179 = vmatpush1.msra.mxu0 0.0
    %4180 = vmatprep.subr.mxu0 0.0
    %4181 = vmatpush1.msra.mxu0 0.0
    %4182 = vmatprep.subr.mxu0 0.0
    %4183 = vmatpush1.msra.mxu0 0.0
    %4184 = vmatprep.subr.mxu0 0.0
    %4185 = vmatpush1.msra.mxu0 0.0
    %4186 = vmatprep.subr.mxu0 0.0
    %4187 = vmatpush1.msra.mxu0 0.0
    %4188 = vmatprep.subr.mxu0 0.0
    %4189 = vmatpush1.msra.mxu0 0.0
    %4190 = vmatprep.subr.mxu0 0.0
    %4191 = vmatpush1.msra.mxu0 0.0
    %4192 = vmatprep.subr.mxu0 0.0
    %4193 = vmatpush1.msra.mxu0 0.0
    %4194 = vmatprep.subr.mxu0 0.0
    %4195 = vmatpush1.msra.mxu0 0.0
    %4196 = vmatprep.subr.mxu0 0.0
    %4197 = vmatpush1.msra.mxu0 0.0
    %4198 = vmatprep.subr.mxu0 0.0
    %4199 = vmatpush1.msra.mxu0 0.0
    %4200 = vmatprep.subr.mxu0 0.0
    %4201 = vmatpush1.msra.mxu0 0.0
    %4202 = vmatprep.subr.mxu0 0.0
    %4203 = vmatpush1.msra.mxu0 0.0
    %4204 = vmatprep.subr.mxu0 0.0
    %4205 = vmatpush1.msra.mxu0 0.0
    %4206 = vmatprep.subr.mxu0 0.0
    %4207 = vmatpush1.msra.mxu0 0.0
    %4208 = vmatprep.subr.mxu0 0.0
    %4209 = vmatpush1.msra.mxu0 0.0
    %4210 = vmatprep.subr.mxu0 0.0
    %4211 = vmatpush1.msra.mxu0 0.0
    %4212 = vmatprep.subr.mxu0 0.0
    %4213 = vmatpush1.msra.mxu0 0.0
    %4214 = vmatprep.subr.mxu0 0.0
    %4215 = vmatpush1.msra.mxu0 0.0
    %4216 = vmatprep.subr.mxu0 0.0
    %4217 = vmatpush1.msra.mxu0 0.0
    %4218 = vmatprep.subr.mxu0 0.0
    %4219 = vmatpush1.msra.mxu0 0.0
    %4220 = vmatprep.subr.mxu0 0.0
    %4221 = vmatpush1.msra.mxu0 0.0
    %4222 = vmatprep.subr.mxu0 0.0
    %4223 = vmatpush1.msra.mxu0 0.0
    %4224 = vmatprep.subr.mxu0 0.0
    %4225 = vmatpush1.msra.mxu0 0.0
    %4226 = vmatprep.subr.mxu0 0.0
    %4227 = vmatpush1.msra.mxu0 0.0
    %4228 = vmatprep.subr.mxu0 0.0
    %4229 = vmatpush1.msra.mxu0 0.0
    %4230 = vmatprep.subr.mxu0 0.0
    %4231 = vmatpush1.msra.mxu0 0.0
    %4232 = vmatprep.subr.mxu0 0.0
    %4233 = vmatpush1.msra.mxu0 0.0
    %4234 = vmatprep.mubr.f32.mxu0 0.0
    %4235 = vmatmul.mubr.f32.gmra.mrb[0].mxu0 %v4168
    %v4236 = vpop.f32.mrb[0].mxu0
    %v4237 = vadd.f32 0.0, %v4236
    %v4238 = vpop.f32.mrb[0].mxu0
    %4239 = vdwg.mxu0
    %v4241 = vsel %vm57, %v4090, 0
    %4243 = vmatprep.subr.mxu0 0.0
    %4244 = vmatpush1.msra.mxu0 %v2935
    %4245 = vmatprep.subr.mxu0 0.0
    %4246 = vmatpush1.msra.mxu0 %v2936
    %4247 = vmatprep.subr.mxu0 0.0
    %4248 = vmatpush1.msra.mxu0 %v2937
    %4249 = vmatprep.subr.mxu0 0.0
    %4250 = vmatpush1.msra.mxu0 %v2938
    %4251 = vmatprep.subr.mxu0 0.0
    %4252 = vmatpush1.msra.mxu0 0.0
    %4253 = vmatprep.subr.mxu0 0.0
    %4254 = vmatpush1.msra.mxu0 0.0
    %4255 = vmatprep.subr.mxu0 0.0
    %4256 = vmatpush1.msra.mxu0 0.0
    %4257 = vmatprep.subr.mxu0 0.0
    %4258 = vmatpush1.msra.mxu0 0.0
    %4259 = vmatprep.subr.mxu0 0.0
    %4260 = vmatpush1.msra.mxu0 0.0
    %4261 = vmatprep.subr.mxu0 0.0
    %4262 = vmatpush1.msra.mxu0 0.0
    %4263 = vmatprep.subr.mxu0 0.0
    %4264 = vmatpush1.msra.mxu0 0.0
    %4265 = vmatprep.subr.mxu0 0.0
    %4266 = vmatpush1.msra.mxu0 0.0
    %4267 = vmatprep.subr.mxu0 0.0
    %4268 = vmatpush1.msra.mxu0 0.0
    %4269 = vmatprep.subr.mxu0 0.0
    %4270 = vmatpush1.msra.mxu0 0.0
    %4271 = vmatprep.subr.mxu0 0.0
    %4272 = vmatpush1.msra.mxu0 0.0
    %4273 = vmatprep.subr.mxu0 0.0
    %4274 = vmatpush1.msra.mxu0 0.0
    %4275 = vmatprep.subr.mxu0 0.0
    %4276 = vmatpush1.msra.mxu0 0.0
    %4277 = vmatprep.subr.mxu0 0.0
    %4278 = vmatpush1.msra.mxu0 0.0
    %4279 = vmatprep.subr.mxu0 0.0
    %4280 = vmatpush1.msra.mxu0 0.0
    %4281 = vmatprep.subr.mxu0 0.0
    %4282 = vmatpush1.msra.mxu0 0.0
    %4283 = vmatprep.subr.mxu0 0.0
    %4284 = vmatpush1.msra.mxu0 0.0
    %4285 = vmatprep.subr.mxu0 0.0
    %4286 = vmatpush1.msra.mxu0 0.0
    %4287 = vmatprep.subr.mxu0 0.0
    %4288 = vmatpush1.msra.mxu0 0.0
    %4289 = vmatprep.subr.mxu0 0.0
    %4290 = vmatpush1.msra.mxu0 0.0
    %4291 = vmatprep.subr.mxu0 0.0
    %4292 = vmatpush1.msra.mxu0 0.0
    %4293 = vmatprep.subr.mxu0 0.0
    %4294 = vmatpush1.msra.mxu0 0.0
    %4295 = vmatprep.subr.mxu0 0.0
    %4296 = vmatpush1.msra.mxu0 0.0
    %4297 = vmatprep.subr.mxu0 0.0
    %4298 = vmatpush1.msra.mxu0 0.0
    %4299 = vmatprep.subr.mxu0 0.0
    %4300 = vmatpush1.msra.mxu0 0.0
    %4301 = vmatprep.subr.mxu0 0.0
    %4302 = vmatpush1.msra.mxu0 0.0
    %4303 = vmatprep.subr.mxu0 0.0
    %4304 = vmatpush1.msra.mxu0 0.0
    %4305 = vmatprep.subr.mxu0 0.0
    %4306 = vmatpush1.msra.mxu0 0.0
    %4307 = vmatprep.mubr.f32.mxu0 0.0
    %4308 = vmatmul.mubr.f32.gmra.mrb[0].mxu0 %v4241
    %v4309 = vpop.f32.mrb[0].mxu0
    %v4310 = vadd.f32 %v4237, %v4309
    %v4311 = vpop.f32.mrb[0].mxu0
    %4312 = vdwg.mxu0
    %v4313 = vadd.f32 %v4310, %v3298
    %v4314 = vxor.u32 %v4313, 2147483648
    %v4315 = vmul.f32 %v4314, 1.442695
    %v4316 = vpow.pop %v4315
    %v4317 = vadd.f32 %v4316, 1.0
    %v4318 = vrcp.pop %v4317
    %v4319 = vmul.f32 1.0, %v4318
    %v4320 = vtanh.pop %v4313
    %v4321 = vmul.f32 %v4319, %v4004
    %4323 = vrot.lane.b32.xlu0 %v4320, 64
    %v4324 = vpop.permute.xlu0 %4323
    %v4326 = vmul.f32 %v4319, %v4324
    %4328 = vrot.lane.b32.xlu0 %v4326, 32
    %v4329 = vpop.permute.xlu0 %4328
    %v4331 = vadd.f32 %v4321, %v4329
    %v4332 = vtanh.pop %v4331
    %4334 = vrot.lane.b32.xlu0 %v4332, 64
    %v4335 = vpop.permute.xlu0 %4334
    %v4337 = vmul.f32 %v4319, %v4335
    %v4338 = vsel %vm4077, %v4337, %v4003
    %v4339 = vsel %vm4077, %v4331, %v4004
    %v4340 = vsel %vm4077, %v4337, 0.0
    %v4343 = vunpack.c.l.s4 1966171168
    %v4344 = vunpack.c.0.s8 %v4343
    %v4345 = vlaneseq
    %v4346 = vshrl.u32 %v4345, 7
    %v4347 = vsub.s32 %v4344, %v4346
    %v4348 = vrot.slane %v4340, %v4347
    %v4349 = vcombine.high %v4348, %v4348
    %v4351 = vunpack.c.l.s4 1966171168
    %v4352 = vunpack.c.0.s8 %v4351
    %v4353 = vlaneseq
    %v4354 = vshrl.u32 %v4353, 7
    %v4355 = vsub.s32 %v4352, %v4354
    %v4356 = vrot.slane %v4348, %v4355
    %v4358 = vunpack.c.l.s4 1966171168
    %v4359 = vunpack.c.0.s8 %v4358
    %v4360 = vlaneseq
    %v4361 = vshrl.u32 %v4360, 7
    %v4362 = vsub.s32 %v4359, %v4361
    %v4363 = vrot.slane %v4349, %v4362
    %v4364 = vlaneseq
    %v4365 = vshrl.u32 %v4364, 7
    %v4366 = vsub.s32 0, %v4365
    %v4367 = vrot.slane %v4356, %v4366
    %v4368 = vlaneseq
    %v4369 = vshrl.u32 %v4368, 7
    %v4370 = vsub.s32 0, %v4369
    %v4371 = vrot.slane %v4363, %v4370
    %4372 = vrot.lane.b32.xlu0 %v4367, 32
    %v4373 = vpop.permute.xlu0 %4372
    %4374 = vrot.lane.b32.xlu0 %v4371, 32
    %v4375 = vpop.permute.xlu0 %4374
    %4378 = vst.msk [vmem:[#allocation3 + $0x3] sm:$0x1] %vm646, %v4373
    %4379 = vst.msk [vmem:[#allocation3 + $0xb] sm:$0x1] %vm646, %v4375
    %v4380 = vxor.u32 %v4164, 2147483648
    %v4381 = vmul.f32 %v4380, 1.442695
    %v4382 = vpow.pop %v4381
    %v4383 = vadd.f32 %v4382, 1.0
    %v4384 = vrcp.pop %v4383
    %v4385 = vmul.f32 1.0, %v4384
    %v4386 = vtanh.pop %v4164
    %4388 = vrot.lane.b32.xlu0 %v4089, 32
    %v4389 = vpop.permute.xlu0 %4388
    %v4391 = vmul.f32 %v4385, %v4389
    %4393 = vrot.lane.b32.xlu0 %v4386, 64
    %v4394 = vpop.permute.xlu0 %4393
    %v4396 = vmul.f32 %v4385, %v4394
    %4398 = vrot.lane.b32.xlu0 %v4396, 32
    %v4399 = vpop.permute.xlu0 %4398
    %v4401 = vadd.f32 %v4391, %v4399
    %v4402 = vtanh.pop %v4401
    %4404 = vrot.lane.b32.xlu0 %v4402, 64
    %v4405 = vpop.permute.xlu0 %4404
    %v4407 = vmul.f32 %v4385, %v4405
    %4408 = vset.pattern.permute.xlu0 4
    %4409 = vperm.xlu0 %4408, %v3054
    %v4410 = vpop.permute.xlu0 %4409
    %vm4411 = vcmp.eq.s32.totalorder %v4410, 1
    %4412 = vrot.lane.b32.xlu0 %v4083, 96
    %v4413 = vpop.permute.xlu0 %4412
    %v4415 = vsel %vm4411, %v4407, %v4413
    %v4416 = vsel %vm4411, %v4401, %v4389
    %v4417 = vsel %vm4411, %v4407, 0.0
    %4419 = vrot.lane.b32.xlu0 %v4415, 32
    %v4420 = vpop.permute.xlu0 %4419
    %v4421 = vsel %vm57, %v4420, 0
    %4423 = vmatprep.subr.mxu0 0.0
    %4424 = vmatpush1.msra.mxu0 %v2942
    %4425 = vmatprep.subr.mxu0 0.0
    %4426 = vmatpush1.msra.mxu0 %v2943
    %4427 = vmatprep.subr.mxu0 0.0
    %4428 = vmatpush1.msra.mxu0 %v2944
    %4429 = vmatprep.subr.mxu0 0.0
    %4430 = vmatpush1.msra.mxu0 %v2945
    %4431 = vmatprep.subr.mxu0 0.0
    %4432 = vmatpush1.msra.mxu0 0.0
    %4433 = vmatprep.subr.mxu0 0.0
    %4434 = vmatpush1.msra.mxu0 0.0
    %4435 = vmatprep.subr.mxu0 0.0
    %4436 = vmatpush1.msra.mxu0 0.0
    %4437 = vmatprep.subr.mxu0 0.0
    %4438 = vmatpush1.msra.mxu0 0.0
    %4439 = vmatprep.subr.mxu0 0.0
    %4440 = vmatpush1.msra.mxu0 0.0
    %4441 = vmatprep.subr.mxu0 0.0
    %4442 = vmatpush1.msra.mxu0 0.0
    %4443 = vmatprep.subr.mxu0 0.0
    %4444 = vmatpush1.msra.mxu0 0.0
    %4445 = vmatprep.subr.mxu0 0.0
    %4446 = vmatpush1.msra.mxu0 0.0
    %4447 = vmatprep.subr.mxu0 0.0
    %4448 = vmatpush1.msra.mxu0 0.0
    %4449 = vmatprep.subr.mxu0 0.0
    %4450 = vmatpush1.msra.mxu0 0.0
    %4451 = vmatprep.subr.mxu0 0.0
    %4452 = vmatpush1.msra.mxu0 0.0
    %4453 = vmatprep.subr.mxu0 0.0
    %4454 = vmatpush1.msra.mxu0 0.0
    %4455 = vmatprep.subr.mxu0 0.0
    %4456 = vmatpush1.msra.mxu0 0.0
    %4457 = vmatprep.subr.mxu0 0.0
    %4458 = vmatpush1.msra.mxu0 0.0
    %4459 = vmatprep.subr.mxu0 0.0
    %4460 = vmatpush1.msra.mxu0 0.0
    %4461 = vmatprep.subr.mxu0 0.0
    %4462 = vmatpush1.msra.mxu0 0.0
    %4463 = vmatprep.subr.mxu0 0.0
    %4464 = vmatpush1.msra.mxu0 0.0
    %4465 = vmatprep.subr.mxu0 0.0
    %4466 = vmatpush1.msra.mxu0 0.0
    %4467 = vmatprep.subr.mxu0 0.0
    %4468 = vmatpush1.msra.mxu0 0.0
    %4469 = vmatprep.subr.mxu0 0.0
    %4470 = vmatpush1.msra.mxu0 0.0
    %4471 = vmatprep.subr.mxu0 0.0
    %4472 = vmatpush1.msra.mxu0 0.0
    %4473 = vmatprep.subr.mxu0 0.0
    %4474 = vmatpush1.msra.mxu0 0.0
    %4475 = vmatprep.subr.mxu0 0.0
    %4476 = vmatpush1.msra.mxu0 0.0
    %4477 = vmatprep.subr.mxu0 0.0
    %4478 = vmatpush1.msra.mxu0 0.0
    %4479 = vmatprep.subr.mxu0 0.0
    %4480 = vmatpush1.msra.mxu0 0.0
    %4481 = vmatprep.subr.mxu0 0.0
    %4482 = vmatpush1.msra.mxu0 0.0
    %4483 = vmatprep.subr.mxu0 0.0
    %4484 = vmatpush1.msra.mxu0 0.0
    %4485 = vmatprep.subr.mxu0 0.0
    %4486 = vmatpush1.msra.mxu0 0.0
    %4487 = vmatprep.mubr.f32.mxu0 0.0
    %4488 = vmatmul.mubr.f32.gmra.mrb[0].mxu0 %v4421
    %v4489 = vpop.f32.mrb[0].mxu0
    %v4490 = vadd.f32 0.0, %v4489
    %v4491 = vpop.f32.mrb[0].mxu0
    %4492 = vdwg.mxu0
    %v4494 = vrot.slane %v4490, 6
    %v4496 = vadd.f32 %v232, %v4494
    %4498 = vrot.lane.b32.xlu0 %v4338, 32
    %v4499 = vpop.permute.xlu0 %4498
    %v4500 = vsel %vm57, %v4499, 0
    %4502 = vmatprep.subr.mxu0 0.0
    %4503 = vmatpush1.msra.mxu0 %v2947
    %4504 = vmatprep.subr.mxu0 0.0
    %4505 = vmatpush1.msra.mxu0 %v2948
    %4506 = vmatprep.subr.mxu0 0.0
    %4507 = vmatpush1.msra.mxu0 %v2949
    %4508 = vmatprep.subr.mxu0 0.0
    %4509 = vmatpush1.msra.mxu0 %v2950
    %4510 = vmatprep.subr.mxu0 0.0
    %4511 = vmatpush1.msra.mxu0 0.0
    %4512 = vmatprep.subr.mxu0 0.0
    %4513 = vmatpush1.msra.mxu0 0.0
    %4514 = vmatprep.subr.mxu0 0.0
    %4515 = vmatpush1.msra.mxu0 0.0
    %4516 = vmatprep.subr.mxu0 0.0
    %4517 = vmatpush1.msra.mxu0 0.0
    %4518 = vmatprep.subr.mxu0 0.0
    %4519 = vmatpush1.msra.mxu0 0.0
    %4520 = vmatprep.subr.mxu0 0.0
    %4521 = vmatpush1.msra.mxu0 0.0
    %4522 = vmatprep.subr.mxu0 0.0
    %4523 = vmatpush1.msra.mxu0 0.0
    %4524 = vmatprep.subr.mxu0 0.0
    %4525 = vmatpush1.msra.mxu0 0.0
    %4526 = vmatprep.subr.mxu0 0.0
    %4527 = vmatpush1.msra.mxu0 0.0
    %4528 = vmatprep.subr.mxu0 0.0
    %4529 = vmatpush1.msra.mxu0 0.0
    %4530 = vmatprep.subr.mxu0 0.0
    %4531 = vmatpush1.msra.mxu0 0.0
    %4532 = vmatprep.subr.mxu0 0.0
    %4533 = vmatpush1.msra.mxu0 0.0
    %4534 = vmatprep.subr.mxu0 0.0
    %4535 = vmatpush1.msra.mxu0 0.0
    %4536 = vmatprep.subr.mxu0 0.0
    %4537 = vmatpush1.msra.mxu0 0.0
    %4538 = vmatprep.subr.mxu0 0.0
    %4539 = vmatpush1.msra.mxu0 0.0
    %4540 = vmatprep.subr.mxu0 0.0
    %4541 = vmatpush1.msra.mxu0 0.0
    %4542 = vmatprep.subr.mxu0 0.0
    %4543 = vmatpush1.msra.mxu0 0.0
    %4544 = vmatprep.subr.mxu0 0.0
    %4545 = vmatpush1.msra.mxu0 0.0
    %4546 = vmatprep.subr.mxu0 0.0
    %4547 = vmatpush1.msra.mxu0 0.0
    %4548 = vmatprep.subr.mxu0 0.0
    %4549 = vmatpush1.msra.mxu0 0.0
    %4550 = vmatprep.subr.mxu0 0.0
    %4551 = vmatpush1.msra.mxu0 0.0
    %4552 = vmatprep.subr.mxu0 0.0
    %4553 = vmatpush1.msra.mxu0 0.0
    %4554 = vmatprep.subr.mxu0 0.0
    %4555 = vmatpush1.msra.mxu0 0.0
    %4556 = vmatprep.subr.mxu0 0.0
    %4557 = vmatpush1.msra.mxu0 0.0
    %4558 = vmatprep.subr.mxu0 0.0
    %4559 = vmatpush1.msra.mxu0 0.0
    %4560 = vmatprep.subr.mxu0 0.0
    %4561 = vmatpush1.msra.mxu0 0.0
    %4562 = vmatprep.subr.mxu0 0.0
    %4563 = vmatpush1.msra.mxu0 0.0
    %4564 = vmatprep.subr.mxu0 0.0
    %4565 = vmatpush1.msra.mxu0 0.0
    %4566 = vmatprep.mubr.f32.mxu0 0.0
    %4567 = vmatmul.mubr.f32.gmra.mrb[0].mxu0 %v4500
    %v4568 = vpop.f32.mrb[0].mxu0
    %v4569 = vadd.f32 0.0, %v4568
    %v4570 = vpop.f32.mrb[0].mxu0
    %4571 = vdwg.mxu0
    %4573 = vrot.lane.b32.xlu0 %v4417, 32
    %v4574 = vpop.permute.xlu0 %4573
    %v4575 = vsel %vm57, %v4574, 0
    %4577 = vmatprep.subr.mxu0 0.0
    %4578 = vmatpush1.msra.mxu0 %v2935
    %4579 = vmatprep.subr.mxu0 0.0
    %4580 = vmatpush1.msra.mxu0 %v2936
    %4581 = vmatprep.subr.mxu0 0.0
    %4582 = vmatpush1.msra.mxu0 %v2937
    %4583 = vmatprep.subr.mxu0 0.0
    %4584 = vmatpush1.msra.mxu0 %v2938
    %4585 = vmatprep.subr.mxu0 0.0
    %4586 = vmatpush1.msra.mxu0 0.0
    %4587 = vmatprep.subr.mxu0 0.0
    %4588 = vmatpush1.msra.mxu0 0.0
    %4589 = vmatprep.subr.mxu0 0.0
    %4590 = vmatpush1.msra.mxu0 0.0
    %4591 = vmatprep.subr.mxu0 0.0
    %4592 = vmatpush1.msra.mxu0 0.0
    %4593 = vmatprep.subr.mxu0 0.0
    %4594 = vmatpush1.msra.mxu0 0.0
    %4595 = vmatprep.subr.mxu0 0.0
    %4596 = vmatpush1.msra.mxu0 0.0
    %4597 = vmatprep.subr.mxu0 0.0
    %4598 = vmatpush1.msra.mxu0 0.0
    %4599 = vmatprep.subr.mxu0 0.0
    %4600 = vmatpush1.msra.mxu0 0.0
    %4601 = vmatprep.subr.mxu0 0.0
    %4602 = vmatpush1.msra.mxu0 0.0
    %4603 = vmatprep.subr.mxu0 0.0
    %4604 = vmatpush1.msra.mxu0 0.0
    %4605 = vmatprep.subr.mxu0 0.0
    %4606 = vmatpush1.msra.mxu0 0.0
    %4607 = vmatprep.subr.mxu0 0.0
    %4608 = vmatpush1.msra.mxu0 0.0
    %4609 = vmatprep.subr.mxu0 0.0
    %4610 = vmatpush1.msra.mxu0 0.0
    %4611 = vmatprep.subr.mxu0 0.0
    %4612 = vmatpush1.msra.mxu0 0.0
    %4613 = vmatprep.subr.mxu0 0.0
    %4614 = vmatpush1.msra.mxu0 0.0
    %4615 = vmatprep.subr.mxu0 0.0
    %4616 = vmatpush1.msra.mxu0 0.0
    %4617 = vmatprep.subr.mxu0 0.0
    %4618 = vmatpush1.msra.mxu0 0.0
    %4619 = vmatprep.subr.mxu0 0.0
    %4620 = vmatpush1.msra.mxu0 0.0
    %4621 = vmatprep.subr.mxu0 0.0
    %4622 = vmatpush1.msra.mxu0 0.0
    %4623 = vmatprep.subr.mxu0 0.0
    %4624 = vmatpush1.msra.mxu0 0.0
    %4625 = vmatprep.subr.mxu0 0.0
    %4626 = vmatpush1.msra.mxu0 0.0
    %4627 = vmatprep.subr.mxu0 0.0
    %4628 = vmatpush1.msra.mxu0 0.0
    %4629 = vmatprep.subr.mxu0 0.0
    %4630 = vmatpush1.msra.mxu0 0.0
    %4631 = vmatprep.subr.mxu0 0.0
    %4632 = vmatpush1.msra.mxu0 0.0
    %4633 = vmatprep.subr.mxu0 0.0
    %4634 = vmatpush1.msra.mxu0 0.0
    %4635 = vmatprep.subr.mxu0 0.0
    %4636 = vmatpush1.msra.mxu0 0.0
    %4637 = vmatprep.subr.mxu0 0.0
    %4638 = vmatpush1.msra.mxu0 0.0
    %4639 = vmatprep.subr.mxu0 0.0
    %4640 = vmatpush1.msra.mxu0 0.0
    %4641 = vmatprep.mubr.f32.mxu0 0.0
    %4642 = vmatmul.mubr.f32.gmra.mrb[0].mxu0 %v4575
    %v4643 = vpop.f32.mrb[0].mxu0
    %v4644 = vadd.f32 %v4569, %v4643
    %v4645 = vpop.f32.mrb[0].mxu0
    %4646 = vdwg.mxu0
    %v4647 = vadd.f32 %v4644, %v3298
    %v4648 = vxor.u32 %v4647, 2147483648
    %v4649 = vmul.f32 %v4648, 1.442695
    %v4650 = vpow.pop %v4649
    %v4651 = vadd.f32 %v4650, 1.0
    %v4652 = vrcp.pop %v4651
    %v4653 = vmul.f32 1.0, %v4652
    %v4654 = vtanh.pop %v4647
    %v4655 = vmul.f32 %v4653, %v4339
    %4657 = vrot.lane.b32.xlu0 %v4654, 64
    %v4658 = vpop.permute.xlu0 %4657
    %v4660 = vmul.f32 %v4653, %v4658
    %4662 = vrot.lane.b32.xlu0 %v4660, 32
    %v4663 = vpop.permute.xlu0 %4662
    %v4665 = vadd.f32 %v4655, %v4663
    %v4666 = vtanh.pop %v4665
    %4668 = vrot.lane.b32.xlu0 %v4666, 64
    %v4669 = vpop.permute.xlu0 %4668
    %v4671 = vmul.f32 %v4653, %v4669
    %v4672 = vsel %vm4411, %v4671, %v4338
    %v4673 = vsel %vm4411, %v4665, %v4339
    %v4674 = vsel %vm4411, %v4671, 0.0
    %v4677 = vunpack.c.l.s4 1966171168
    %v4678 = vunpack.c.0.s8 %v4677
    %v4679 = vlaneseq
    %v4680 = vshrl.u32 %v4679, 7
    %v4681 = vsub.s32 %v4678, %v4680
    %v4682 = vrot.slane %v4674, %v4681
    %v4683 = vcombine.high %v4682, %v4682
    %v4685 = vunpack.c.l.s4 1966171168
    %v4686 = vunpack.c.0.s8 %v4685
    %v4687 = vlaneseq
    %v4688 = vshrl.u32 %v4687, 7
    %v4689 = vsub.s32 %v4686, %v4688
    %v4690 = vrot.slane %v4682, %v4689
    %v4692 = vunpack.c.l.s4 1966171168
    %v4693 = vunpack.c.0.s8 %v4692
    %v4694 = vlaneseq
    %v4695 = vshrl.u32 %v4694, 7
    %v4696 = vsub.s32 %v4693, %v4695
    %v4697 = vrot.slane %v4683, %v4696
    %v4698 = vlaneseq
    %v4699 = vshrl.u32 %v4698, 7
    %v4700 = vsub.s32 0, %v4699
    %v4701 = vrot.slane %v4690, %v4700
    %v4702 = vlaneseq
    %v4703 = vshrl.u32 %v4702, 7
    %v4704 = vsub.s32 0, %v4703
    %v4705 = vrot.slane %v4697, %v4704
    %4706 = vrot.lane.b32.xlu0 %v4701, 32
    %v4707 = vpop.permute.xlu0 %4706
    %4708 = vrot.lane.b32.xlu0 %v4705, 32
    %v4709 = vpop.permute.xlu0 %4708
    %4712 = vst.msk [vmem:[#allocation3 + $0x4] sm:$0x1] %vm646, %v4707
    %4713 = vst.msk [vmem:[#allocation3 + $0xc] sm:$0x1] %vm646, %v4709
    %v4714 = vxor.u32 %v4496, 2147483648
    %v4715 = vmul.f32 %v4714, 1.442695
    %v4716 = vpow.pop %v4715
    %v4717 = vadd.f32 %v4716, 1.0
    %v4718 = vrcp.pop %v4717
    %v4719 = vmul.f32 1.0, %v4718
    %v4720 = vtanh.pop %v4496
    %v4722 = vrot.slane %v4416, 6
    %v4724 = vmul.f32 %v4719, %v4722
    %4726 = vrot.lane.b32.xlu0 %v4720, 64
    %v4727 = vpop.permute.xlu0 %4726
    %v4729 = vmul.f32 %v4719, %v4727
    %4731 = vrot.lane.b32.xlu0 %v4729, 32
    %v4732 = vpop.permute.xlu0 %4731
    %v4734 = vadd.f32 %v4724, %v4732
    %v4735 = vtanh.pop %v4734
    %4737 = vrot.lane.b32.xlu0 %v4735, 64
    %v4738 = vpop.permute.xlu0 %4737
    %v4740 = vmul.f32 %v4719, %v4738
    %4741 = vset.pattern.permute.xlu0 5
    %4742 = vperm.xlu0 %4741, %v3054
    %v4743 = vpop.permute.xlu0 %4742
    %vm4744 = vcmp.eq.s32.totalorder %v4743, 1
    %v4746 = vrot.slane %v4740, 2
    %4747 = vrot.lane.b32.xlu0 %v4746, 32
    %v4748 = vpop.permute.xlu0 %4747
    %v4751 = vsel %vm4744, %v4748, %v4420
    %v4753 = vrot.slane %v4734, 2
    %4754 = vrot.lane.b32.xlu0 %v4753, 96
    %v4755 = vpop.permute.xlu0 %4754
    %4757 = vrot.lane.b32.xlu0 %v4416, 96
    %v4758 = vpop.permute.xlu0 %4757
    %v4760 = vsel %vm4744, %v4755, %v4758
    %v4761 = vsel %vm4744, %v4748, 0.0
    %v4763 = vsel %vm57, %v4751, 0
    %4765 = vmatprep.subr.mxu0 0.0
    %4766 = vmatpush1.msra.mxu0 %v2942
    %4767 = vmatprep.subr.mxu0 0.0
    %4768 = vmatpush1.msra.mxu0 %v2943
    %4769 = vmatprep.subr.mxu0 0.0
    %4770 = vmatpush1.msra.mxu0 %v2944
    %4771 = vmatprep.subr.mxu0 0.0
    %4772 = vmatpush1.msra.mxu0 %v2945
    %4773 = vmatprep.subr.mxu0 0.0
    %4774 = vmatpush1.msra.mxu0 0.0
    %4775 = vmatprep.subr.mxu0 0.0
    %4776 = vmatpush1.msra.mxu0 0.0
    %4777 = vmatprep.subr.mxu0 0.0
    %4778 = vmatpush1.msra.mxu0 0.0
    %4779 = vmatprep.subr.mxu0 0.0
    %4780 = vmatpush1.msra.mxu0 0.0
    %4781 = vmatprep.subr.mxu0 0.0
    %4782 = vmatpush1.msra.mxu0 0.0
    %4783 = vmatprep.subr.mxu0 0.0
    %4784 = vmatpush1.msra.mxu0 0.0
    %4785 = vmatprep.subr.mxu0 0.0
    %4786 = vmatpush1.msra.mxu0 0.0
    %4787 = vmatprep.subr.mxu0 0.0
    %4788 = vmatpush1.msra.mxu0 0.0
    %4789 = vmatprep.subr.mxu0 0.0
    %4790 = vmatpush1.msra.mxu0 0.0
    %4791 = vmatprep.subr.mxu0 0.0
    %4792 = vmatpush1.msra.mxu0 0.0
    %4793 = vmatprep.subr.mxu0 0.0
    %4794 = vmatpush1.msra.mxu0 0.0
    %4795 = vmatprep.subr.mxu0 0.0
    %4796 = vmatpush1.msra.mxu0 0.0
    %4797 = vmatprep.subr.mxu0 0.0
    %4798 = vmatpush1.msra.mxu0 0.0
    %4799 = vmatprep.subr.mxu0 0.0
    %4800 = vmatpush1.msra.mxu0 0.0
    %4801 = vmatprep.subr.mxu0 0.0
    %4802 = vmatpush1.msra.mxu0 0.0
    %4803 = vmatprep.subr.mxu0 0.0
    %4804 = vmatpush1.msra.mxu0 0.0
    %4805 = vmatprep.subr.mxu0 0.0
    %4806 = vmatpush1.msra.mxu0 0.0
    %4807 = vmatprep.subr.mxu0 0.0
    %4808 = vmatpush1.msra.mxu0 0.0
    %4809 = vmatprep.subr.mxu0 0.0
    %4810 = vmatpush1.msra.mxu0 0.0
    %4811 = vmatprep.subr.mxu0 0.0
    %4812 = vmatpush1.msra.mxu0 0.0
    %4813 = vmatprep.subr.mxu0 0.0
    %4814 = vmatpush1.msra.mxu0 0.0
    %4815 = vmatprep.subr.mxu0 0.0
    %4816 = vmatpush1.msra.mxu0 0.0
    %4817 = vmatprep.subr.mxu0 0.0
    %4818 = vmatpush1.msra.mxu0 0.0
    %4819 = vmatprep.subr.mxu0 0.0
    %4820 = vmatpush1.msra.mxu0 0.0
    %4821 = vmatprep.subr.mxu0 0.0
    %4822 = vmatpush1.msra.mxu0 0.0
    %4823 = vmatprep.subr.mxu0 0.0
    %4824 = vmatpush1.msra.mxu0 0.0
    %4825 = vmatprep.subr.mxu0 0.0
    %4826 = vmatpush1.msra.mxu0 0.0
    %4827 = vmatprep.subr.mxu0 0.0
    %4828 = vmatpush1.msra.mxu0 0.0
    %4829 = vmatprep.mubr.f32.mxu0 0.0
    %4830 = vmatmul.mubr.f32.gmra.mrb[0].mxu0 %v4763
    %v4831 = vpop.f32.mrb[0].mxu0
    %v4832 = vadd.f32 0.0, %v4831
    %v4833 = vpop.f32.mrb[0].mxu0
    %4834 = vdwg.mxu0
    %v4836 = vrot.slane %v4832, 4
    %v4838 = vadd.f32 %v232, %v4836
    %4840 = vrot.lane.b32.xlu0 %v4672, 32
    %v4841 = vpop.permute.xlu0 %4840
    %v4842 = vsel %vm57, %v4841, 0
    %4844 = vmatprep.subr.mxu0 0.0
    %4845 = vmatpush1.msra.mxu0 %v2947
    %4846 = vmatprep.subr.mxu0 0.0
    %4847 = vmatpush1.msra.mxu0 %v2948
    %4848 = vmatprep.subr.mxu0 0.0
    %4849 = vmatpush1.msra.mxu0 %v2949
    %4850 = vmatprep.subr.mxu0 0.0
    %4851 = vmatpush1.msra.mxu0 %v2950
    %4852 = vmatprep.subr.mxu0 0.0
    %4853 = vmatpush1.msra.mxu0 0.0
    %4854 = vmatprep.subr.mxu0 0.0
    %4855 = vmatpush1.msra.mxu0 0.0
    %4856 = vmatprep.subr.mxu0 0.0
    %4857 = vmatpush1.msra.mxu0 0.0
    %4858 = vmatprep.subr.mxu0 0.0
    %4859 = vmatpush1.msra.mxu0 0.0
    %4860 = vmatprep.subr.mxu0 0.0
    %4861 = vmatpush1.msra.mxu0 0.0
    %4862 = vmatprep.subr.mxu0 0.0
    %4863 = vmatpush1.msra.mxu0 0.0
    %4864 = vmatprep.subr.mxu0 0.0
    %4865 = vmatpush1.msra.mxu0 0.0
    %4866 = vmatprep.subr.mxu0 0.0
    %4867 = vmatpush1.msra.mxu0 0.0
    %4868 = vmatprep.subr.mxu0 0.0
    %4869 = vmatpush1.msra.mxu0 0.0
    %4870 = vmatprep.subr.mxu0 0.0
    %4871 = vmatpush1.msra.mxu0 0.0
    %4872 = vmatprep.subr.mxu0 0.0
    %4873 = vmatpush1.msra.mxu0 0.0
    %4874 = vmatprep.subr.mxu0 0.0
    %4875 = vmatpush1.msra.mxu0 0.0
    %4876 = vmatprep.subr.mxu0 0.0
    %4877 = vmatpush1.msra.mxu0 0.0
    %4878 = vmatprep.subr.mxu0 0.0
    %4879 = vmatpush1.msra.mxu0 0.0
    %4880 = vmatprep.subr.mxu0 0.0
    %4881 = vmatpush1.msra.mxu0 0.0
    %4882 = vmatprep.subr.mxu0 0.0
    %4883 = vmatpush1.msra.mxu0 0.0
    %4884 = vmatprep.subr.mxu0 0.0
    %4885 = vmatpush1.msra.mxu0 0.0
    %4886 = vmatprep.subr.mxu0 0.0
    %4887 = vmatpush1.msra.mxu0 0.0
    %4888 = vmatprep.subr.mxu0 0.0
    %4889 = vmatpush1.msra.mxu0 0.0
    %4890 = vmatprep.subr.mxu0 0.0
    %4891 = vmatpush1.msra.mxu0 0.0
    %4892 = vmatprep.subr.mxu0 0.0
    %4893 = vmatpush1.msra.mxu0 0.0
    %4894 = vmatprep.subr.mxu0 0.0
    %4895 = vmatpush1.msra.mxu0 0.0
    %4896 = vmatprep.subr.mxu0 0.0
    %4897 = vmatpush1.msra.mxu0 0.0
    %4898 = vmatprep.subr.mxu0 0.0
    %4899 = vmatpush1.msra.mxu0 0.0
    %4900 = vmatprep.subr.mxu0 0.0
    %4901 = vmatpush1.msra.mxu0 0.0
    %4902 = vmatprep.subr.mxu0 0.0
    %4903 = vmatpush1.msra.mxu0 0.0
    %4904 = vmatprep.subr.mxu0 0.0
    %4905 = vmatpush1.msra.mxu0 0.0
    %4906 = vmatprep.subr.mxu0 0.0
    %4907 = vmatpush1.msra.mxu0 0.0
    %4908 = vmatprep.mubr.f32.mxu0 0.0
    %4909 = vmatmul.mubr.f32.gmra.mrb[0].mxu0 %v4842
    %v4910 = vpop.f32.mrb[0].mxu0
    %v4911 = vadd.f32 0.0, %v4910
    %v4912 = vpop.f32.mrb[0].mxu0
    %4913 = vdwg.mxu0
    %v4915 = vsel %vm57, %v4761, 0
    %4917 = vmatprep.subr.mxu0 0.0
    %4918 = vmatpush1.msra.mxu0 %v2935
    %4919 = vmatprep.subr.mxu0 0.0
    %4920 = vmatpush1.msra.mxu0 %v2936
    %4921 = vmatprep.subr.mxu0 0.0
    %4922 = vmatpush1.msra.mxu0 %v2937
    %4923 = vmatprep.subr.mxu0 0.0
    %4924 = vmatpush1.msra.mxu0 %v2938
    %4925 = vmatprep.subr.mxu0 0.0
    %4926 = vmatpush1.msra.mxu0 0.0
    %4927 = vmatprep.subr.mxu0 0.0
    %4928 = vmatpush1.msra.mxu0 0.0
    %4929 = vmatprep.subr.mxu0 0.0
    %4930 = vmatpush1.msra.mxu0 0.0
    %4931 = vmatprep.subr.mxu0 0.0
    %4932 = vmatpush1.msra.mxu0 0.0
    %4933 = vmatprep.subr.mxu0 0.0
    %4934 = vmatpush1.msra.mxu0 0.0
    %4935 = vmatprep.subr.mxu0 0.0
    %4936 = vmatpush1.msra.mxu0 0.0
    %4937 = vmatprep.subr.mxu0 0.0
    %4938 = vmatpush1.msra.mxu0 0.0
    %4939 = vmatprep.subr.mxu0 0.0
    %4940 = vmatpush1.msra.mxu0 0.0
    %4941 = vmatprep.subr.mxu0 0.0
    %4942 = vmatpush1.msra.mxu0 0.0
    %4943 = vmatprep.subr.mxu0 0.0
    %4944 = vmatpush1.msra.mxu0 0.0
    %4945 = vmatprep.subr.mxu0 0.0
    %4946 = vmatpush1.msra.mxu0 0.0
    %4947 = vmatprep.subr.mxu0 0.0
    %4948 = vmatpush1.msra.mxu0 0.0
    %4949 = vmatprep.subr.mxu0 0.0
    %4950 = vmatpush1.msra.mxu0 0.0
    %4951 = vmatprep.subr.mxu0 0.0
    %4952 = vmatpush1.msra.mxu0 0.0
    %4953 = vmatprep.subr.mxu0 0.0
    %4954 = vmatpush1.msra.mxu0 0.0
    %4955 = vmatprep.subr.mxu0 0.0
    %4956 = vmatpush1.msra.mxu0 0.0
    %4957 = vmatprep.subr.mxu0 0.0
    %4958 = vmatpush1.msra.mxu0 0.0
    %4959 = vmatprep.subr.mxu0 0.0
    %4960 = vmatpush1.msra.mxu0 0.0
    %4961 = vmatprep.subr.mxu0 0.0
    %4962 = vmatpush1.msra.mxu0 0.0
    %4963 = vmatprep.subr.mxu0 0.0
    %4964 = vmatpush1.msra.mxu0 0.0
    %4965 = vmatprep.subr.mxu0 0.0
    %4966 = vmatpush1.msra.mxu0 0.0
    %4967 = vmatprep.subr.mxu0 0.0
    %4968 = vmatpush1.msra.mxu0 0.0
    %4969 = vmatprep.subr.mxu0 0.0
    %4970 = vmatpush1.msra.mxu0 0.0
    %4971 = vmatprep.subr.mxu0 0.0
    %4972 = vmatpush1.msra.mxu0 0.0
    %4973 = vmatprep.subr.mxu0 0.0
    %4974 = vmatpush1.msra.mxu0 0.0
    %4975 = vmatprep.subr.mxu0 0.0
    %4976 = vmatpush1.msra.mxu0 0.0
    %4977 = vmatprep.subr.mxu0 0.0
    %4978 = vmatpush1.msra.mxu0 0.0
    %4979 = vmatprep.subr.mxu0 0.0
    %4980 = vmatpush1.msra.mxu0 0.0
    %4981 = vmatprep.mubr.f32.mxu0 0.0
    %4982 = vmatmul.mubr.f32.gmra.mrb[0].mxu0 %v4915
    %v4983 = vpop.f32.mrb[0].mxu0
    %v4984 = vadd.f32 %v4911, %v4983
    %v4985 = vpop.f32.mrb[0].mxu0
    %4986 = vdwg.mxu0
    %v4987 = vadd.f32 %v4984, %v3298
    %v4988 = vxor.u32 %v4987, 2147483648
    %v4989 = vmul.f32 %v4988, 1.442695
    %v4990 = vpow.pop %v4989
    %v4991 = vadd.f32 %v4990, 1.0
    %v4992 = vrcp.pop %v4991
    %v4993 = vmul.f32 1.0, %v4992
    %v4994 = vtanh.pop %v4987
    %v4995 = vmul.f32 %v4993, %v4673
    %4997 = vrot.lane.b32.xlu0 %v4994, 64
    %v4998 = vpop.permute.xlu0 %4997
    %v5000 = vmul.f32 %v4993, %v4998
    %5002 = vrot.lane.b32.xlu0 %v5000, 32
    %v5003 = vpop.permute.xlu0 %5002
    %v5005 = vadd.f32 %v4995, %v5003
    %v5006 = vtanh.pop %v5005
    %5008 = vrot.lane.b32.xlu0 %v5006, 64
    %v5009 = vpop.permute.xlu0 %5008
    %v5011 = vmul.f32 %v4993, %v5009
    %v5012 = vsel %vm4744, %v5011, %v4672
    %v5013 = vsel %vm4744, %v5005, %v4673
    %v5014 = vsel %vm4744, %v5011, 0.0
    %v5017 = vunpack.c.l.s4 1966171168
    %v5018 = vunpack.c.0.s8 %v5017
    %v5019 = vlaneseq
    %v5020 = vshrl.u32 %v5019, 7
    %v5021 = vsub.s32 %v5018, %v5020
    %v5022 = vrot.slane %v5014, %v5021
    %v5023 = vcombine.high %v5022, %v5022
    %v5025 = vunpack.c.l.s4 1966171168
    %v5026 = vunpack.c.0.s8 %v5025
    %v5027 = vlaneseq
    %v5028 = vshrl.u32 %v5027, 7
    %v5029 = vsub.s32 %v5026, %v5028
    %v5030 = vrot.slane %v5022, %v5029
    %v5032 = vunpack.c.l.s4 1966171168
    %v5033 = vunpack.c.0.s8 %v5032
    %v5034 = vlaneseq
    %v5035 = vshrl.u32 %v5034, 7
    %v5036 = vsub.s32 %v5033, %v5035
    %v5037 = vrot.slane %v5023, %v5036
    %v5038 = vlaneseq
    %v5039 = vshrl.u32 %v5038, 7
    %v5040 = vsub.s32 0, %v5039
    %v5041 = vrot.slane %v5030, %v5040
    %v5042 = vlaneseq
    %v5043 = vshrl.u32 %v5042, 7
    %v5044 = vsub.s32 0, %v5043
    %v5045 = vrot.slane %v5037, %v5044
    %5046 = vrot.lane.b32.xlu0 %v5041, 32
    %v5047 = vpop.permute.xlu0 %5046
    %5048 = vrot.lane.b32.xlu0 %v5045, 32
    %v5049 = vpop.permute.xlu0 %5048
    %5052 = vst.msk [vmem:[#allocation3 + $0x5] sm:$0x1] %vm646, %v5047
    %5053 = vst.msk [vmem:[#allocation3 + $0xd] sm:$0x1] %vm646, %v5049
    %v5054 = vxor.u32 %v4838, 2147483648
    %v5055 = vmul.f32 %v5054, 1.442695
    %v5056 = vpow.pop %v5055
    %v5057 = vadd.f32 %v5056, 1.0
    %v5058 = vrcp.pop %v5057
    %v5059 = vmul.f32 1.0, %v5058
    %v5060 = vtanh.pop %v4838
    %v5062 = vrot.slane %v4760, 4
    %5063 = vrot.lane.b32.xlu0 %v5062, 32
    %v5064 = vpop.permute.xlu0 %5063
    %v5066 = vmul.f32 %v5059, %v5064
    %5068 = vrot.lane.b32.xlu0 %v5060, 64
    %v5069 = vpop.permute.xlu0 %5068
    %v5071 = vmul.f32 %v5059, %v5069
    %5073 = vrot.lane.b32.xlu0 %v5071, 32
    %v5074 = vpop.permute.xlu0 %5073
    %v5076 = vadd.f32 %v5066, %v5074
    %v5077 = vtanh.pop %v5076
    %5079 = vrot.lane.b32.xlu0 %v5077, 64
    %v5080 = vpop.permute.xlu0 %5079
    %v5082 = vmul.f32 %v5059, %v5080
    %5083 = vset.pattern.permute.xlu0 6
    %5084 = vperm.xlu0 %5083, %v3054
    %v5085 = vpop.permute.xlu0 %5084
    %vm5086 = vcmp.eq.s32.totalorder %v5085, 1
    %v5088 = vrot.slane %v5082, 4
    %5089 = vrot.lane.b32.xlu0 %v5088, 32
    %v5090 = vpop.permute.xlu0 %5089
    %v5092 = vsel %vm5086, %v5090, %v4751
    %v5094 = vrot.slane %v5076, 4
    %5095 = vrot.lane.b32.xlu0 %v5094, 96
    %v5096 = vpop.permute.xlu0 %5095
    %v5098 = vsel %vm5086, %v5096, %v4760
    %v5099 = vsel %vm5086, %v5090, 0.0
    %v5101 = vsel %vm57, %v5092, 0
    %5103 = vmatprep.subr.mxu0 0.0
    %5104 = vmatpush1.msra.mxu0 %v2942
    %5105 = vmatprep.subr.mxu0 0.0
    %5106 = vmatpush1.msra.mxu0 %v2943
    %5107 = vmatprep.subr.mxu0 0.0
    %5108 = vmatpush1.msra.mxu0 %v2944
    %5109 = vmatprep.subr.mxu0 0.0
    %5110 = vmatpush1.msra.mxu0 %v2945
    %5111 = vmatprep.subr.mxu0 0.0
    %5112 = vmatpush1.msra.mxu0 0.0
    %5113 = vmatprep.subr.mxu0 0.0
    %5114 = vmatpush1.msra.mxu0 0.0
    %5115 = vmatprep.subr.mxu0 0.0
    %5116 = vmatpush1.msra.mxu0 0.0
    %5117 = vmatprep.subr.mxu0 0.0
    %5118 = vmatpush1.msra.mxu0 0.0
    %5119 = vmatprep.subr.mxu0 0.0
    %5120 = vmatpush1.msra.mxu0 0.0
    %5121 = vmatprep.subr.mxu0 0.0
    %5122 = vmatpush1.msra.mxu0 0.0
    %5123 = vmatprep.subr.mxu0 0.0
    %5124 = vmatpush1.msra.mxu0 0.0
    %5125 = vmatprep.subr.mxu0 0.0
    %5126 = vmatpush1.msra.mxu0 0.0
    %5127 = vmatprep.subr.mxu0 0.0
    %5128 = vmatpush1.msra.mxu0 0.0
    %5129 = vmatprep.subr.mxu0 0.0
    %5130 = vmatpush1.msra.mxu0 0.0
    %5131 = vmatprep.subr.mxu0 0.0
    %5132 = vmatpush1.msra.mxu0 0.0
    %5133 = vmatprep.subr.mxu0 0.0
    %5134 = vmatpush1.msra.mxu0 0.0
    %5135 = vmatprep.subr.mxu0 0.0
    %5136 = vmatpush1.msra.mxu0 0.0
    %5137 = vmatprep.subr.mxu0 0.0
    %5138 = vmatpush1.msra.mxu0 0.0
    %5139 = vmatprep.subr.mxu0 0.0
    %5140 = vmatpush1.msra.mxu0 0.0
    %5141 = vmatprep.subr.mxu0 0.0
    %5142 = vmatpush1.msra.mxu0 0.0
    %5143 = vmatprep.subr.mxu0 0.0
    %5144 = vmatpush1.msra.mxu0 0.0
    %5145 = vmatprep.subr.mxu0 0.0
    %5146 = vmatpush1.msra.mxu0 0.0
    %5147 = vmatprep.subr.mxu0 0.0
    %5148 = vmatpush1.msra.mxu0 0.0
    %5149 = vmatprep.subr.mxu0 0.0
    %5150 = vmatpush1.msra.mxu0 0.0
    %5151 = vmatprep.subr.mxu0 0.0
    %5152 = vmatpush1.msra.mxu0 0.0
    %5153 = vmatprep.subr.mxu0 0.0
    %5154 = vmatpush1.msra.mxu0 0.0
    %5155 = vmatprep.subr.mxu0 0.0
    %5156 = vmatpush1.msra.mxu0 0.0
    %5157 = vmatprep.subr.mxu0 0.0
    %5158 = vmatpush1.msra.mxu0 0.0
    %5159 = vmatprep.subr.mxu0 0.0
    %5160 = vmatpush1.msra.mxu0 0.0
    %5161 = vmatprep.subr.mxu0 0.0
    %5162 = vmatpush1.msra.mxu0 0.0
    %5163 = vmatprep.subr.mxu0 0.0
    %5164 = vmatpush1.msra.mxu0 0.0
    %5165 = vmatprep.subr.mxu0 0.0
    %5166 = vmatpush1.msra.mxu0 0.0
    %5167 = vmatprep.mubr.f32.mxu0 0.0
    %5168 = vmatmul.mubr.f32.gmra.mrb[0].mxu0 %v5101
    %v5169 = vpop.f32.mrb[0].mxu0
    %v5170 = vadd.f32 0.0, %v5169
    %v5171 = vpop.f32.mrb[0].mxu0
    %5172 = vdwg.mxu0
    %v5174 = vrot.slane %v5170, 2
    %v5176 = vadd.f32 %v232, %v5174
    %5178 = vrot.lane.b32.xlu0 %v5012, 32
    %v5179 = vpop.permute.xlu0 %5178
    %v5180 = vsel %vm57, %v5179, 0
    %5182 = vmatprep.subr.mxu0 0.0
    %5183 = vmatpush1.msra.mxu0 %v2947
    %5184 = vmatprep.subr.mxu0 0.0
    %5185 = vmatpush1.msra.mxu0 %v2948
    %5186 = vmatprep.subr.mxu0 0.0
    %5187 = vmatpush1.msra.mxu0 %v2949
    %5188 = vmatprep.subr.mxu0 0.0
    %5189 = vmatpush1.msra.mxu0 %v2950
    %5190 = vmatprep.subr.mxu0 0.0
    %5191 = vmatpush1.msra.mxu0 0.0
    %5192 = vmatprep.subr.mxu0 0.0
    %5193 = vmatpush1.msra.mxu0 0.0
    %5194 = vmatprep.subr.mxu0 0.0
    %5195 = vmatpush1.msra.mxu0 0.0
    %5196 = vmatprep.subr.mxu0 0.0
    %5197 = vmatpush1.msra.mxu0 0.0
    %5198 = vmatprep.subr.mxu0 0.0
    %5199 = vmatpush1.msra.mxu0 0.0
    %5200 = vmatprep.subr.mxu0 0.0
    %5201 = vmatpush1.msra.mxu0 0.0
    %5202 = vmatprep.subr.mxu0 0.0
    %5203 = vmatpush1.msra.mxu0 0.0
    %5204 = vmatprep.subr.mxu0 0.0
    %5205 = vmatpush1.msra.mxu0 0.0
    %5206 = vmatprep.subr.mxu0 0.0
    %5207 = vmatpush1.msra.mxu0 0.0
    %5208 = vmatprep.subr.mxu0 0.0
    %5209 = vmatpush1.msra.mxu0 0.0
    %5210 = vmatprep.subr.mxu0 0.0
    %5211 = vmatpush1.msra.mxu0 0.0
    %5212 = vmatprep.subr.mxu0 0.0
    %5213 = vmatpush1.msra.mxu0 0.0
    %5214 = vmatprep.subr.mxu0 0.0
    %5215 = vmatpush1.msra.mxu0 0.0
    %5216 = vmatprep.subr.mxu0 0.0
    %5217 = vmatpush1.msra.mxu0 0.0
    %5218 = vmatprep.subr.mxu0 0.0
    %5219 = vmatpush1.msra.mxu0 0.0
    %5220 = vmatprep.subr.mxu0 0.0
    %5221 = vmatpush1.msra.mxu0 0.0
    %5222 = vmatprep.subr.mxu0 0.0
    %5223 = vmatpush1.msra.mxu0 0.0
    %5224 = vmatprep.subr.mxu0 0.0
    %5225 = vmatpush1.msra.mxu0 0.0
    %5226 = vmatprep.subr.mxu0 0.0
    %5227 = vmatpush1.msra.mxu0 0.0
    %5228 = vmatprep.subr.mxu0 0.0
    %5229 = vmatpush1.msra.mxu0 0.0
    %5230 = vmatprep.subr.mxu0 0.0
    %5231 = vmatpush1.msra.mxu0 0.0
    %5232 = vmatprep.subr.mxu0 0.0
    %5233 = vmatpush1.msra.mxu0 0.0
    %5234 = vmatprep.subr.mxu0 0.0
    %5235 = vmatpush1.msra.mxu0 0.0
    %5236 = vmatprep.subr.mxu0 0.0
    %5237 = vmatpush1.msra.mxu0 0.0
    %5238 = vmatprep.subr.mxu0 0.0
    %5239 = vmatpush1.msra.mxu0 0.0
    %5240 = vmatprep.subr.mxu0 0.0
    %5241 = vmatpush1.msra.mxu0 0.0
    %5242 = vmatprep.subr.mxu0 0.0
    %5243 = vmatpush1.msra.mxu0 0.0
    %5244 = vmatprep.subr.mxu0 0.0
    %5245 = vmatpush1.msra.mxu0 0.0
    %5246 = vmatprep.mubr.f32.mxu0 0.0
    %5247 = vmatmul.mubr.f32.gmra.mrb[0].mxu0 %v5180
    %v5248 = vpop.f32.mrb[0].mxu0
    %v5249 = vadd.f32 0.0, %v5248
    %v5250 = vpop.f32.mrb[0].mxu0
    %5251 = vdwg.mxu0
    %v5253 = vsel %vm57, %v5099, 0
    %5255 = vmatprep.subr.mxu0 0.0
    %5256 = vmatpush1.msra.mxu0 %v2935
    %5257 = vmatprep.subr.mxu0 0.0
    %5258 = vmatpush1.msra.mxu0 %v2936
    %5259 = vmatprep.subr.mxu0 0.0
    %5260 = vmatpush1.msra.mxu0 %v2937
    %5261 = vmatprep.subr.mxu0 0.0
    %5262 = vmatpush1.msra.mxu0 %v2938
    %5263 = vmatprep.subr.mxu0 0.0
    %5264 = vmatpush1.msra.mxu0 0.0
    %5265 = vmatprep.subr.mxu0 0.0
    %5266 = vmatpush1.msra.mxu0 0.0
    %5267 = vmatprep.subr.mxu0 0.0
    %5268 = vmatpush1.msra.mxu0 0.0
    %5269 = vmatprep.subr.mxu0 0.0
    %5270 = vmatpush1.msra.mxu0 0.0
    %5271 = vmatprep.subr.mxu0 0.0
    %5272 = vmatpush1.msra.mxu0 0.0
    %5273 = vmatprep.subr.mxu0 0.0
    %5274 = vmatpush1.msra.mxu0 0.0
    %5275 = vmatprep.subr.mxu0 0.0
    %5276 = vmatpush1.msra.mxu0 0.0
    %5277 = vmatprep.subr.mxu0 0.0
    %5278 = vmatpush1.msra.mxu0 0.0
    %5279 = vmatprep.subr.mxu0 0.0
    %5280 = vmatpush1.msra.mxu0 0.0
    %5281 = vmatprep.subr.mxu0 0.0
    %5282 = vmatpush1.msra.mxu0 0.0
    %5283 = vmatprep.subr.mxu0 0.0
    %5284 = vmatpush1.msra.mxu0 0.0
    %5285 = vmatprep.subr.mxu0 0.0
    %5286 = vmatpush1.msra.mxu0 0.0
    %5287 = vmatprep.subr.mxu0 0.0
    %5288 = vmatpush1.msra.mxu0 0.0
    %5289 = vmatprep.subr.mxu0 0.0
    %5290 = vmatpush1.msra.mxu0 0.0
    %5291 = vmatprep.subr.mxu0 0.0
    %5292 = vmatpush1.msra.mxu0 0.0
    %5293 = vmatprep.subr.mxu0 0.0
    %5294 = vmatpush1.msra.mxu0 0.0
    %5295 = vmatprep.subr.mxu0 0.0
    %5296 = vmatpush1.msra.mxu0 0.0
    %5297 = vmatprep.subr.mxu0 0.0
    %5298 = vmatpush1.msra.mxu0 0.0
    %5299 = vmatprep.subr.mxu0 0.0
    %5300 = vmatpush1.msra.mxu0 0.0
    %5301 = vmatprep.subr.mxu0 0.0
    %5302 = vmatpush1.msra.mxu0 0.0
    %5303 = vmatprep.subr.mxu0 0.0
    %5304 = vmatpush1.msra.mxu0 0.0
    %5305 = vmatprep.subr.mxu0 0.0
    %5306 = vmatpush1.msra.mxu0 0.0
    %5307 = vmatprep.subr.mxu0 0.0
    %5308 = vmatpush1.msra.mxu0 0.0
    %5309 = vmatprep.subr.mxu0 0.0
    %5310 = vmatpush1.msra.mxu0 0.0
    %5311 = vmatprep.subr.mxu0 0.0
    %5312 = vmatpush1.msra.mxu0 0.0
    %5313 = vmatprep.subr.mxu0 0.0
    %5314 = vmatpush1.msra.mxu0 0.0
    %5315 = vmatprep.subr.mxu0 0.0
    %5316 = vmatpush1.msra.mxu0 0.0
    %5317 = vmatprep.subr.mxu0 0.0
    %5318 = vmatpush1.msra.mxu0 0.0
    %5319 = vmatprep.mubr.f32.mxu0 0.0
    %5320 = vmatmul.mubr.f32.gmra.mrb[0].mxu0 %v5253
    %v5321 = vpop.f32.mrb[0].mxu0
    %v5322 = vadd.f32 %v5249, %v5321
    %v5323 = vpop.f32.mrb[0].mxu0
    %5324 = vdwg.mxu0
    %v5325 = vadd.f32 %v5322, %v3298
    %v5326 = vxor.u32 %v5325, 2147483648
    %v5327 = vmul.f32 %v5326, 1.442695
    %v5328 = vpow.pop %v5327
    %v5329 = vadd.f32 %v5328, 1.0
    %v5330 = vrcp.pop %v5329
    %v5331 = vmul.f32 1.0, %v5330
    %v5332 = vtanh.pop %v5325
    %v5333 = vmul.f32 %v5331, %v5013
    %5335 = vrot.lane.b32.xlu0 %v5332, 64
    %v5336 = vpop.permute.xlu0 %5335
    %v5338 = vmul.f32 %v5331, %v5336
    %5340 = vrot.lane.b32.xlu0 %v5338, 32
    %v5341 = vpop.permute.xlu0 %5340
    %v5343 = vadd.f32 %v5333, %v5341
    %v5344 = vtanh.pop %v5343
    %5346 = vrot.lane.b32.xlu0 %v5344, 64
    %v5347 = vpop.permute.xlu0 %5346
    %v5349 = vmul.f32 %v5331, %v5347
    %v5350 = vsel %vm5086, %v5349, %v5012
    %v5351 = vsel %vm5086, %v5343, %v5013
    %v5352 = vsel %vm5086, %v5349, 0.0
    %v5355 = vunpack.c.l.s4 1966171168
    %v5356 = vunpack.c.0.s8 %v5355
    %v5357 = vlaneseq
    %v5358 = vshrl.u32 %v5357, 7
    %v5359 = vsub.s32 %v5356, %v5358
    %v5360 = vrot.slane %v5352, %v5359
    %v5361 = vcombine.high %v5360, %v5360
    %v5363 = vunpack.c.l.s4 1966171168
    %v5364 = vunpack.c.0.s8 %v5363
    %v5365 = vlaneseq
    %v5366 = vshrl.u32 %v5365, 7
    %v5367 = vsub.s32 %v5364, %v5366
    %v5368 = vrot.slane %v5360, %v5367
    %v5370 = vunpack.c.l.s4 1966171168
    %v5371 = vunpack.c.0.s8 %v5370
    %v5372 = vlaneseq
    %v5373 = vshrl.u32 %v5372, 7
    %v5374 = vsub.s32 %v5371, %v5373
    %v5375 = vrot.slane %v5361, %v5374
    %v5376 = vlaneseq
    %v5377 = vshrl.u32 %v5376, 7
    %v5378 = vsub.s32 0, %v5377
    %v5379 = vrot.slane %v5368, %v5378
    %v5380 = vlaneseq
    %v5381 = vshrl.u32 %v5380, 7
    %v5382 = vsub.s32 0, %v5381
    %v5383 = vrot.slane %v5375, %v5382
    %5384 = vrot.lane.b32.xlu0 %v5379, 32
    %v5385 = vpop.permute.xlu0 %5384
    %5386 = vrot.lane.b32.xlu0 %v5383, 32
    %v5387 = vpop.permute.xlu0 %5386
    %5390 = vst.msk [vmem:[#allocation3 + $0x6] sm:$0x1] %vm646, %v5385
    %5391 = vst.msk [vmem:[#allocation3 + $0xe] sm:$0x1] %vm646, %v5387
    %v5392 = vxor.u32 %v5176, 2147483648
    %v5393 = vmul.f32 %v5392, 1.442695
    %v5394 = vpow.pop %v5393
    %v5395 = vadd.f32 %v5394, 1.0
    %v5396 = vrcp.pop %v5395
    %v5397 = vmul.f32 1.0, %v5396
    %v5398 = vtanh.pop %v5176
    %v5400 = vrot.slane %v5098, 2
    %5401 = vrot.lane.b32.xlu0 %v5400, 32
    %v5402 = vpop.permute.xlu0 %5401
    %v5404 = vmul.f32 %v5397, %v5402
    %5406 = vrot.lane.b32.xlu0 %v5398, 64
    %v5407 = vpop.permute.xlu0 %5406
    %v5409 = vmul.f32 %v5397, %v5407
    %5411 = vrot.lane.b32.xlu0 %v5409, 32
    %v5412 = vpop.permute.xlu0 %5411
    %v5414 = vadd.f32 %v5404, %v5412
    %v5415 = vtanh.pop %v5414
    %5417 = vrot.lane.b32.xlu0 %v5415, 64
    %v5418 = vpop.permute.xlu0 %5417
    %v5420 = vmul.f32 %v5397, %v5418
    %5421 = vset.pattern.permute.xlu0 7
    %5422 = vperm.xlu0 %5421, %v3054
    %v5423 = vpop.permute.xlu0 %5422
    %vm5424 = vcmp.eq.s32.totalorder %v5423, 1
    %v5426 = vrot.slane %v5420, 6
    %5427 = vrot.lane.b32.xlu0 %v5426, 32
    %v5428 = vpop.permute.xlu0 %5427
    %v5430 = vsel %vm5424, %v5428, 0.0
    %5432 = vrot.lane.b32.xlu0 %v5350, 32
    %v5433 = vpop.permute.xlu0 %5432
    %v5434 = vsel %vm57, %v5433, 0
    %5436 = vmatprep.subr.mxu0 0.0
    %5437 = vmatpush1.msra.mxu0 %v2947
    %5438 = vmatprep.subr.mxu0 0.0
    %5439 = vmatpush1.msra.mxu0 %v2948
    %5440 = vmatprep.subr.mxu0 0.0
    %5441 = vmatpush1.msra.mxu0 %v2949
    %5442 = vmatprep.subr.mxu0 0.0
    %5443 = vmatpush1.msra.mxu0 %v2950
    %5444 = vmatprep.subr.mxu0 0.0
    %5445 = vmatpush1.msra.mxu0 0.0
    %5446 = vmatprep.subr.mxu0 0.0
    %5447 = vmatpush1.msra.mxu0 0.0
    %5448 = vmatprep.subr.mxu0 0.0
    %5449 = vmatpush1.msra.mxu0 0.0
    %5450 = vmatprep.subr.mxu0 0.0
    %5451 = vmatpush1.msra.mxu0 0.0
    %5452 = vmatprep.subr.mxu0 0.0
    %5453 = vmatpush1.msra.mxu0 0.0
    %5454 = vmatprep.subr.mxu0 0.0
    %5455 = vmatpush1.msra.mxu0 0.0
    %5456 = vmatprep.subr.mxu0 0.0
    %5457 = vmatpush1.msra.mxu0 0.0
    %5458 = vmatprep.subr.mxu0 0.0
    %5459 = vmatpush1.msra.mxu0 0.0
    %5460 = vmatprep.subr.mxu0 0.0
    %5461 = vmatpush1.msra.mxu0 0.0
    %5462 = vmatprep.subr.mxu0 0.0
    %5463 = vmatpush1.msra.mxu0 0.0
    %5464 = vmatprep.subr.mxu0 0.0
    %5465 = vmatpush1.msra.mxu0 0.0
    %5466 = vmatprep.subr.mxu0 0.0
    %5467 = vmatpush1.msra.mxu0 0.0
    %5468 = vmatprep.subr.mxu0 0.0
    %5469 = vmatpush1.msra.mxu0 0.0
    %5470 = vmatprep.subr.mxu0 0.0
    %5471 = vmatpush1.msra.mxu0 0.0
    %5472 = vmatprep.subr.mxu0 0.0
    %5473 = vmatpush1.msra.mxu0 0.0
    %5474 = vmatprep.subr.mxu0 0.0
    %5475 = vmatpush1.msra.mxu0 0.0
    %5476 = vmatprep.subr.mxu0 0.0
    %5477 = vmatpush1.msra.mxu0 0.0
    %5478 = vmatprep.subr.mxu0 0.0
    %5479 = vmatpush1.msra.mxu0 0.0
    %5480 = vmatprep.subr.mxu0 0.0
    %5481 = vmatpush1.msra.mxu0 0.0
    %5482 = vmatprep.subr.mxu0 0.0
    %5483 = vmatpush1.msra.mxu0 0.0
    %5484 = vmatprep.subr.mxu0 0.0
    %5485 = vmatpush1.msra.mxu0 0.0
    %5486 = vmatprep.subr.mxu0 0.0
    %5487 = vmatpush1.msra.mxu0 0.0
    %5488 = vmatprep.subr.mxu0 0.0
    %5489 = vmatpush1.msra.mxu0 0.0
    %5490 = vmatprep.subr.mxu0 0.0
    %5491 = vmatpush1.msra.mxu0 0.0
    %5492 = vmatprep.subr.mxu0 0.0
    %5493 = vmatpush1.msra.mxu0 0.0
    %5494 = vmatprep.subr.mxu0 0.0
    %5495 = vmatpush1.msra.mxu0 0.0
    %5496 = vmatprep.subr.mxu0 0.0
    %5497 = vmatpush1.msra.mxu0 0.0
    %5498 = vmatprep.subr.mxu0 0.0
    %5499 = vmatpush1.msra.mxu0 0.0
    %5500 = vmatprep.mubr.f32.mxu0 0.0
    %5501 = vmatmul.mubr.f32.gmra.mrb[0].mxu0 %v5434
    %v5502 = vpop.f32.mrb[0].mxu0
    %v5503 = vadd.f32 0.0, %v5502
    %v5504 = vpop.f32.mrb[0].mxu0
    %5505 = vdwg.mxu0
    %v5507 = vsel %vm57, %v5430, 0
    %5509 = vmatprep.subr.mxu0 0.0
    %5510 = vmatpush1.msra.mxu0 %v2935
    %5511 = vmatprep.subr.mxu0 0.0
    %5512 = vmatpush1.msra.mxu0 %v2936
    %5513 = vmatprep.subr.mxu0 0.0
    %5514 = vmatpush1.msra.mxu0 %v2937
    %5515 = vmatprep.subr.mxu0 0.0
    %5516 = vmatpush1.msra.mxu0 %v2938
    %5517 = vmatprep.subr.mxu0 0.0
    %5518 = vmatpush1.msra.mxu0 0.0
    %5519 = vmatprep.subr.mxu0 0.0
    %5520 = vmatpush1.msra.mxu0 0.0
    %5521 = vmatprep.subr.mxu0 0.0
    %5522 = vmatpush1.msra.mxu0 0.0
    %5523 = vmatprep.subr.mxu0 0.0
    %5524 = vmatpush1.msra.mxu0 0.0
    %5525 = vmatprep.subr.mxu0 0.0
    %5526 = vmatpush1.msra.mxu0 0.0
    %5527 = vmatprep.subr.mxu0 0.0
    %5528 = vmatpush1.msra.mxu0 0.0
    %5529 = vmatprep.subr.mxu0 0.0
    %5530 = vmatpush1.msra.mxu0 0.0
    %5531 = vmatprep.subr.mxu0 0.0
    %5532 = vmatpush1.msra.mxu0 0.0
    %5533 = vmatprep.subr.mxu0 0.0
    %5534 = vmatpush1.msra.mxu0 0.0
    %5535 = vmatprep.subr.mxu0 0.0
    %5536 = vmatpush1.msra.mxu0 0.0
    %5537 = vmatprep.subr.mxu0 0.0
    %5538 = vmatpush1.msra.mxu0 0.0
    %5539 = vmatprep.subr.mxu0 0.0
    %5540 = vmatpush1.msra.mxu0 0.0
    %5541 = vmatprep.subr.mxu0 0.0
    %5542 = vmatpush1.msra.mxu0 0.0
    %5543 = vmatprep.subr.mxu0 0.0
    %5544 = vmatpush1.msra.mxu0 0.0
    %5545 = vmatprep.subr.mxu0 0.0
    %5546 = vmatpush1.msra.mxu0 0.0
    %5547 = vmatprep.subr.mxu0 0.0
    %5548 = vmatpush1.msra.mxu0 0.0
    %5549 = vmatprep.subr.mxu0 0.0
    %5550 = vmatpush1.msra.mxu0 0.0
    %5551 = vmatprep.subr.mxu0 0.0
    %5552 = vmatpush1.msra.mxu0 0.0
    %5553 = vmatprep.subr.mxu0 0.0
    %5554 = vmatpush1.msra.mxu0 0.0
    %5555 = vmatprep.subr.mxu0 0.0
    %5556 = vmatpush1.msra.mxu0 0.0
    %5557 = vmatprep.subr.mxu0 0.0
    %5558 = vmatpush1.msra.mxu0 0.0
    %5559 = vmatprep.subr.mxu0 0.0
    %5560 = vmatpush1.msra.mxu0 0.0
    %5561 = vmatprep.subr.mxu0 0.0
    %5562 = vmatpush1.msra.mxu0 0.0
    %5563 = vmatprep.subr.mxu0 0.0
    %5564 = vmatpush1.msra.mxu0 0.0
    %5565 = vmatprep.subr.mxu0 0.0
    %5566 = vmatpush1.msra.mxu0 0.0
    %5567 = vmatprep.subr.mxu0 0.0
    %5568 = vmatpush1.msra.mxu0 0.0
    %5569 = vmatprep.subr.mxu0 0.0
    %5570 = vmatpush1.msra.mxu0 0.0
    %5571 = vmatprep.subr.mxu0 0.0
    %5572 = vmatpush1.msra.mxu0 0.0
    %5573 = vmatprep.mubr.f32.mxu0 0.0
    %5574 = vmatmul.mubr.f32.gmra.mrb[0].mxu0 %v5507
    %v5575 = vpop.f32.mrb[0].mxu0
    %v5576 = vadd.f32 %v5503, %v5575
    %v5577 = vpop.f32.mrb[0].mxu0
    %5578 = vdwg.mxu0
    %v5579 = vadd.f32 %v5576, %v3298
    %v5580 = vxor.u32 %v5579, 2147483648
    %v5581 = vmul.f32 %v5580, 1.442695
    %v5582 = vpow.pop %v5581
    %v5583 = vadd.f32 %v5582, 1.0
    %v5584 = vrcp.pop %v5583
    %v5585 = vmul.f32 1.0, %v5584
    %v5586 = vtanh.pop %v5579
    %v5587 = vmul.f32 %v5585, %v5351
    %5589 = vrot.lane.b32.xlu0 %v5586, 64
    %v5590 = vpop.permute.xlu0 %5589
    %v5592 = vmul.f32 %v5585, %v5590
    %5594 = vrot.lane.b32.xlu0 %v5592, 32
    %v5595 = vpop.permute.xlu0 %5594
    %v5597 = vadd.f32 %v5587, %v5595
    %v5598 = vtanh.pop %v5597
    %5600 = vrot.lane.b32.xlu0 %v5598, 64
    %v5601 = vpop.permute.xlu0 %5600
    %v5603 = vmul.f32 %v5585, %v5601
    %v5604 = vsel %vm5424, %v5603, 0.0
    %v5607 = vunpack.c.l.s4 1966171168
    %v5608 = vunpack.c.0.s8 %v5607
    %v5609 = vlaneseq
    %v5610 = vshrl.u32 %v5609, 7
    %v5611 = vsub.s32 %v5608, %v5610
    %v5612 = vrot.slane %v5604, %v5611
    %v5613 = vcombine.high %v5612, %v5612
    %v5615 = vunpack.c.l.s4 1966171168
    %v5616 = vunpack.c.0.s8 %v5615
    %v5617 = vlaneseq
    %v5618 = vshrl.u32 %v5617, 7
    %v5619 = vsub.s32 %v5616, %v5618
    %v5620 = vrot.slane %v5612, %v5619
    %v5622 = vunpack.c.l.s4 1966171168
    %v5623 = vunpack.c.0.s8 %v5622
    %v5624 = vlaneseq
    %v5625 = vshrl.u32 %v5624, 7
    %v5626 = vsub.s32 %v5623, %v5625
    %v5627 = vrot.slane %v5613, %v5626
    %v5628 = vlaneseq
    %v5629 = vshrl.u32 %v5628, 7
    %v5630 = vsub.s32 0, %v5629
    %v5631 = vrot.slane %v5620, %v5630
    %v5632 = vlaneseq
    %v5633 = vshrl.u32 %v5632, 7
    %v5634 = vsub.s32 0, %v5633
    %v5635 = vrot.slane %v5627, %v5634
    %5636 = vrot.lane.b32.xlu0 %v5631, 32
    %v5637 = vpop.permute.xlu0 %5636
    %5638 = vrot.lane.b32.xlu0 %v5635, 32
    %v5639 = vpop.permute.xlu0 %5638
    %5642 = vst.msk [vmem:[#allocation3 + $0x7] sm:$0x1] %vm646, %v5637
    %5643 = vst.msk [vmem:[#allocation3 + $0xf] sm:$0x1] %vm646, %v5639
    %v5644 = vld [vmem:[%s7] sm:$0xff]
    %v5645 = vld [vmem:[%s7 + $0x8] sm:$0xff]
    %v5646 = vld [vmem:[%s7 + $0x10] sm:$0xff]
    %v5647 = vld [vmem:[%s7 + $0x18] sm:$0xff]
    %v5648 = vld [vmem:[%s7 + $0x20] sm:$0xff]
    %v5649 = vld [vmem:[%s7 + $0x28] sm:$0xff]
    %v5650 = vld [vmem:[%s7 + $0x30] sm:$0xff]
    %v5651 = vld [vmem:[%s7 + $0x38] sm:$0xff]
    %v5652 = vld [vmem:[%s8] sm:$0x1]
    %v5653 = vld [vmem:[%s9] sm:$0xff]
    %v5654 = vld [vmem:[%s9 + $0x8] sm:$0xff]
    %v5655 = vld [vmem:[%s9 + $0x10] sm:$0xff]
    %v5656 = vld [vmem:[%s9 + $0x18] sm:$0xff]
    %v5657 = vld [vmem:[%s10] sm:$0x1]
    %v5658 = vld [vmem:[#allocation2] sm:$0xff]
    %v5659 = vld [vmem:[#allocation3] sm:$0xff]
    %v5661 = vsel %vm57, %v5658, 0
    %v5664 = vsel %vm57, %v5659, 0
    %5666 = vmatprep.subr.mxu0 0.0
    %5667 = vmatpush1.xpose.msra.mxu0 %v5664
    %5668 = vmatprep.subr.mxu0 0.0
    %5669 = vmatpush1.xpose.msra.mxu0 0.0
    %5670 = vmatprep.subr.mxu0 0.0
    %5671 = vmatpush1.xpose.msra.mxu0 0.0
    %5672 = vmatprep.subr.mxu0 0.0
    %5673 = vmatpush1.xpose.msra.mxu0 0.0
    %5674 = vmatprep.subr.mxu0 0.0
    %5675 = vmatpush1.xpose.msra.mxu0 0.0
    %5676 = vmatprep.subr.mxu0 0.0
    %5677 = vmatpush1.xpose.msra.mxu0 0.0
    %5678 = vmatprep.subr.mxu0 0.0
    %5679 = vmatpush1.xpose.msra.mxu0 0.0
    %5680 = vmatprep.subr.mxu0 0.0
    %5681 = vmatpush1.xpose.msra.mxu0 0.0
    %5682 = vmatprep.subr.mxu0 0.0
    %5683 = vmatpush1.xpose.msra.mxu0 0.0
    %5684 = vmatprep.subr.mxu0 0.0
    %5685 = vmatpush1.xpose.msra.mxu0 0.0
    %5686 = vmatprep.subr.mxu0 0.0
    %5687 = vmatpush1.xpose.msra.mxu0 0.0
    %5688 = vmatprep.subr.mxu0 0.0
    %5689 = vmatpush1.xpose.msra.mxu0 0.0
    %5690 = vmatprep.subr.mxu0 0.0
    %5691 = vmatpush1.xpose.msra.mxu0 0.0
    %5692 = vmatprep.subr.mxu0 0.0
    %5693 = vmatpush1.xpose.msra.mxu0 0.0
    %5694 = vmatprep.subr.mxu0 0.0
    %5695 = vmatpush1.xpose.msra.mxu0 0.0
    %5696 = vmatprep.subr.mxu0 0.0
    %5697 = vmatpush1.xpose.msra.mxu0 0.0
    %5698 = vmatprep.subr.mxu0 0.0
    %5699 = vmatpush1.xpose.msra.mxu0 0.0
    %5700 = vmatprep.subr.mxu0 0.0
    %5701 = vmatpush1.xpose.msra.mxu0 0.0
    %5702 = vmatprep.subr.mxu0 0.0
    %5703 = vmatpush1.xpose.msra.mxu0 0.0
    %5704 = vmatprep.subr.mxu0 0.0
    %5705 = vmatpush1.xpose.msra.mxu0 0.0
    %5706 = vmatprep.subr.mxu0 0.0
    %5707 = vmatpush1.xpose.msra.mxu0 0.0
    %5708 = vmatprep.subr.mxu0 0.0
    %5709 = vmatpush1.xpose.msra.mxu0 0.0
    %5710 = vmatprep.subr.mxu0 0.0
    %5711 = vmatpush1.xpose.msra.mxu0 0.0
    %5712 = vmatprep.subr.mxu0 0.0
    %5713 = vmatpush1.xpose.msra.mxu0 0.0
    %5714 = vmatprep.subr.mxu0 0.0
    %5715 = vmatpush1.xpose.msra.mxu0 0.0
    %5716 = vmatprep.subr.mxu0 0.0
    %5717 = vmatpush1.xpose.msra.mxu0 0.0
    %5718 = vmatprep.subr.mxu0 0.0
    %5719 = vmatpush1.xpose.msra.mxu0 0.0
    %5720 = vmatprep.subr.mxu0 0.0
    %5721 = vmatpush1.xpose.msra.mxu0 0.0
    %5722 = vmatprep.subr.mxu0 0.0
    %5723 = vmatpush1.xpose.msra.mxu0 0.0
    %5724 = vmatprep.subr.mxu0 0.0
    %5725 = vmatpush1.xpose.msra.mxu0 0.0
    %5726 = vmatprep.subr.mxu0 0.0
    %5727 = vmatpush1.xpose.msra.mxu0 0.0
    %5728 = vmatprep.subr.mxu0 0.0
    %5729 = vmatpush1.xpose.msra.mxu0 0.0
    %5730 = vmatprep.mubr.f32.mxu0 0.0
    %5731 = vmatmul.mubr.f32.gmra.mrb[0].mxu0 %v5661
    %v5732 = vpop.f32.mrb[0].mxu0
    %v5733 = vadd.f32 0.0, %v5732
    %v5734 = vpop.f32.mrb[0].mxu0
    %5735 = vdwg.mxu0
    %v5736 = vld [vmem:[%s3] sm:$0xff]
    %vm5737 = vcmp.gt.f32.partialorder %v5736, 0.5
    %v5738 = vsel %vm5737, 1, 0
    %5739 = vset.pattern.permute.xlu0 0
    %5740 = vperm.xlu0 %5739, %v5738
    %v5741 = vpop.permute.xlu0 %5740
    %vm5742 = vcmp.eq.s32.totalorder %v5741, 1
    %v5743 = vsel %vm5742, 1e-10, %v5733
    %5744 = vst [vmem:[#allocation4] sm:$0xff] 0.0
    %vm5745 = vcmask 64512
    %5746 = vst.msk [vmem:[#allocation4] sm:$0xff] %vm5745, %v5743
    %v5747 = vsel %vm5745, %v5743, -inf
    %v5748 = vrot.slane %v5747, 4
    %v5749 = vmax.f32 %v5747, %v5748
    %v5750 = vrot.slane %v5749, 2
    %v5751 = vmax.f32 %v5749, %v5750
    %v5752 = vrot.slane %v5751, 1
    %v5753 = vmax.f32 %v5751, %v5752
    %v5754 = vsub.f32 %v5743, %v5753
    %v5755 = vmul.f32 %v5754, 1.442695
    %v5756 = vpow.pop %v5755
    %v5757 = vsel %vm5745, %v5756, 0.0
    %v5758 = vrot.slane %v5757, 4
    %v5759 = vadd.f32 %v5757, %v5758
    %v5760 = vrot.slane %v5759, 2
    %v5761 = vadd.f32 %v5759, %v5760
    %v5762 = vrot.slane %v5761, 1
    %v5763 = vadd.f32 %v5761, %v5762
    %v5764 = vrcp.pop %v5763
    %v5765 = vmul.f32 %v5756, %v5764
    %5766 = vxpose.xlu0.b32.start [1/16] %v5765, 128
    %5767 = vxpose.xlu0.b32.cont [2/16] 0.0, 128
    %5768 = vxpose.xlu0.b32.cont [3/16] 0.0, 128
    %5769 = vxpose.xlu0.b32.cont [4/16] 0.0, 128
    %5770 = vxpose.xlu0.b32.cont [5/16] 0.0, 128
    %5771 = vxpose.xlu0.b32.cont [6/16] 0.0, 128
    %5772 = vxpose.xlu0.b32.cont [7/16] 0.0, 128
    %5773 = vxpose.xlu0.b32.cont [8/16] 0.0, 128
    %5774 = vxpose.xlu0.b32.cont [9/16] 0.0, 128
    %5775 = vxpose.xlu0.b32.cont [10/16] 0.0, 128
    %5776 = vxpose.xlu0.b32.cont [11/16] 0.0, 128
    %5777 = vxpose.xlu0.b32.cont [12/16] 0.0, 128
    %5778 = vxpose.xlu0.b32.cont [13/16] 0.0, 128
    %5779 = vxpose.xlu0.b32.cont [14/16] 0.0, 128
    %5780 = vxpose.xlu0.b32.cont [15/16] 0.0, 128
    %5781 = vxpose.xlu0.b32.end [16/16] 0.0, 128
    %v5782 = vpop.trf.xlu0
    %v5783 = vpop.trf.xlu0
    %v5784 = vpop.trf.xlu0
    %v5785 = vpop.trf.xlu0
    %v5786 = vpop.trf.xlu0
    %v5787 = vpop.trf.xlu0
    %v5788 = vpop.trf.xlu0
    %v5789 = vpop.trf.xlu0
    %v5790 = vpop.trf.xlu0
    %v5791 = vpop.trf.xlu0
    %v5792 = vpop.trf.xlu0
    %v5793 = vpop.trf.xlu0
    %v5794 = vpop.trf.xlu0
    %v5795 = vpop.trf.xlu0
    %v5796 = vpop.trf.xlu0
    %v5797 = vpop.trf.xlu0
    %v5799 = vsel %vm5745, %v5782, 0
    %5801 = vmatprep.subr.mxu0 0.0
    %5802 = vmatpush1.msra.mxu0 %v5658
    %5803 = vmatprep.subr.mxu0 0.0
    %5804 = vmatpush1.msra.mxu0 0.0
    %5805 = vmatprep.subr.mxu0 0.0
    %5806 = vmatpush1.msra.mxu0 0.0
    %5807 = vmatprep.subr.mxu0 0.0
    %5808 = vmatpush1.msra.mxu0 0.0
    %5809 = vmatprep.subr.mxu0 0.0
    %5810 = vmatpush1.msra.mxu0 0.0
    %5811 = vmatprep.subr.mxu0 0.0
    %5812 = vmatpush1.msra.mxu0 0.0
    %5813 = vmatprep.subr.mxu0 0.0
    %5814 = vmatpush1.msra.mxu0 0.0
    %5815 = vmatprep.subr.mxu0 0.0
    %5816 = vmatpush1.msra.mxu0 0.0
    %5817 = vmatprep.subr.mxu0 0.0
    %5818 = vmatpush1.msra.mxu0 0.0
    %5819 = vmatprep.subr.mxu0 0.0
    %5820 = vmatpush1.msra.mxu0 0.0
    %5821 = vmatprep.subr.mxu0 0.0
    %5822 = vmatpush1.msra.mxu0 0.0
    %5823 = vmatprep.subr.mxu0 0.0
    %5824 = vmatpush1.msra.mxu0 0.0
    %5825 = vmatprep.subr.mxu0 0.0
    %5826 = vmatpush1.msra.mxu0 0.0
    %5827 = vmatprep.subr.mxu0 0.0
    %5828 = vmatpush1.msra.mxu0 0.0
    %5829 = vmatprep.subr.mxu0 0.0
    %5830 = vmatpush1.msra.mxu0 0.0
    %5831 = vmatprep.subr.mxu0 0.0
    %5832 = vmatpush1.msra.mxu0 0.0
    %5833 = vmatprep.subr.mxu0 0.0
    %5834 = vmatpush1.msra.mxu0 0.0
    %5835 = vmatprep.subr.mxu0 0.0
    %5836 = vmatpush1.msra.mxu0 0.0
    %5837 = vmatprep.subr.mxu0 0.0
    %5838 = vmatpush1.msra.mxu0 0.0
    %5839 = vmatprep.subr.mxu0 0.0
    %5840 = vmatpush1.msra.mxu0 0.0
    %5841 = vmatprep.subr.mxu0 0.0
    %5842 = vmatpush1.msra.mxu0 0.0
    %5843 = vmatprep.subr.mxu0 0.0
    %5844 = vmatpush1.msra.mxu0 0.0
    %5845 = vmatprep.subr.mxu0 0.0
    %5846 = vmatpush1.msra.mxu0 0.0
    %5847 = vmatprep.subr.mxu0 0.0
    %5848 = vmatpush1.msra.mxu0 0.0
    %5849 = vmatprep.subr.mxu0 0.0
    %5850 = vmatpush1.msra.mxu0 0.0
    %5851 = vmatprep.subr.mxu0 0.0
    %5852 = vmatpush1.msra.mxu0 0.0
    %5853 = vmatprep.subr.mxu0 0.0
    %5854 = vmatpush1.msra.mxu0 0.0
    %5855 = vmatprep.subr.mxu0 0.0
    %5856 = vmatpush1.msra.mxu0 0.0
    %5857 = vmatprep.subr.mxu0 0.0
    %5858 = vmatpush1.msra.mxu0 0.0
    %5859 = vmatprep.subr.mxu0 0.0
    %5860 = vmatpush1.msra.mxu0 0.0
    %5861 = vmatprep.subr.mxu0 0.0
    %5862 = vmatpush1.msra.mxu0 0.0
    %5863 = vmatprep.subr.mxu0 0.0
    %5864 = vmatpush1.msra.mxu0 0.0
    %5865 = vmatprep.mubr.f32.mxu0 0.0
    %5866 = vmatmul.mubr.f32.gmra.mrb[0].mxu0 %v5799
    %v5867 = vpop.f32.mrb[0].mxu0
    %v5868 = vadd.f32 0.0, %v5867
    %v5869 = vpop.f32.mrb[0].mxu0
    %5870 = vdwg.mxu0
    %v5872 = vsel %vm57, %v5868, 0
    %5874 = vmatprep.subr.mxu0 0.0
    %5875 = vmatpush1.msra.mxu0 %v5648
    %5876 = vmatprep.subr.mxu0 0.0
    %5877 = vmatpush1.msra.mxu0 %v5649
    %5878 = vmatprep.subr.mxu0 0.0
    %5879 = vmatpush1.msra.mxu0 %v5650
    %5880 = vmatprep.subr.mxu0 0.0
    %5881 = vmatpush1.msra.mxu0 %v5651
    %5882 = vmatprep.subr.mxu0 0.0
    %5883 = vmatpush1.msra.mxu0 0.0
    %5884 = vmatprep.subr.mxu0 0.0
    %5885 = vmatpush1.msra.mxu0 0.0
    %5886 = vmatprep.subr.mxu0 0.0
    %5887 = vmatpush1.msra.mxu0 0.0
    %5888 = vmatprep.subr.mxu0 0.0
    %5889 = vmatpush1.msra.mxu0 0.0
    %5890 = vmatprep.subr.mxu0 0.0
    %5891 = vmatpush1.msra.mxu0 0.0
    %5892 = vmatprep.subr.mxu0 0.0
    %5893 = vmatpush1.msra.mxu0 0.0
    %5894 = vmatprep.subr.mxu0 0.0
    %5895 = vmatpush1.msra.mxu0 0.0
    %5896 = vmatprep.subr.mxu0 0.0
    %5897 = vmatpush1.msra.mxu0 0.0
    %5898 = vmatprep.subr.mxu0 0.0
    %5899 = vmatpush1.msra.mxu0 0.0
    %5900 = vmatprep.subr.mxu0 0.0
    %5901 = vmatpush1.msra.mxu0 0.0
    %5902 = vmatprep.subr.mxu0 0.0
    %5903 = vmatpush1.msra.mxu0 0.0
    %5904 = vmatprep.subr.mxu0 0.0
    %5905 = vmatpush1.msra.mxu0 0.0
    %5906 = vmatprep.subr.mxu0 0.0
    %5907 = vmatpush1.msra.mxu0 0.0
    %5908 = vmatprep.subr.mxu0 0.0
    %5909 = vmatpush1.msra.mxu0 0.0
    %5910 = vmatprep.subr.mxu0 0.0
    %5911 = vmatpush1.msra.mxu0 0.0
    %5912 = vmatprep.subr.mxu0 0.0
    %5913 = vmatpush1.msra.mxu0 0.0
    %5914 = vmatprep.subr.mxu0 0.0
    %5915 = vmatpush1.msra.mxu0 0.0
    %5916 = vmatprep.subr.mxu0 0.0
    %5917 = vmatpush1.msra.mxu0 0.0
    %5918 = vmatprep.subr.mxu0 0.0
    %5919 = vmatpush1.msra.mxu0 0.0
    %5920 = vmatprep.subr.mxu0 0.0
    %5921 = vmatpush1.msra.mxu0 0.0
    %5922 = vmatprep.subr.mxu0 0.0
    %5923 = vmatpush1.msra.mxu0 0.0
    %5924 = vmatprep.subr.mxu0 0.0
    %5925 = vmatpush1.msra.mxu0 0.0
    %5926 = vmatprep.subr.mxu0 0.0
    %5927 = vmatpush1.msra.mxu0 0.0
    %5928 = vmatprep.subr.mxu0 0.0
    %5929 = vmatpush1.msra.mxu0 0.0
    %5930 = vmatprep.subr.mxu0 0.0
    %5931 = vmatpush1.msra.mxu0 0.0
    %5932 = vmatprep.subr.mxu0 0.0
    %5933 = vmatpush1.msra.mxu0 0.0
    %5934 = vmatprep.subr.mxu0 0.0
    %5935 = vmatpush1.msra.mxu0 0.0
    %5936 = vmatprep.subr.mxu0 0.0
    %5937 = vmatpush1.msra.mxu0 0.0
    %5938 = vmatprep.mubr.f32.mxu0 0.0
    %5939 = vmatmul.mubr.f32.gmra.mrb[0].mxu0 %v5872
    %v5940 = vpop.f32.mrb[0].mxu0
    %v5941 = vadd.f32 0.0, %v5940
    %v5942 = vpop.f32.mrb[0].mxu0
    %5943 = vdwg.mxu0
    %5944 = vmatprep.subr.mxu0 0.0
    %5945 = vmatpush1.msra.mxu0 %v5644
    %5946 = vmatprep.subr.mxu0 0.0
    %5947 = vmatpush1.msra.mxu0 %v5645
    %5948 = vmatprep.subr.mxu0 0.0
    %5949 = vmatpush1.msra.mxu0 %v5646
    %5950 = vmatprep.subr.mxu0 0.0
    %5951 = vmatpush1.msra.mxu0 %v5647
    %5952 = vmatprep.subr.mxu0 0.0
    %5953 = vmatpush1.msra.mxu0 0.0
    %5954 = vmatprep.subr.mxu0 0.0
    %5955 = vmatpush1.msra.mxu0 0.0
    %5956 = vmatprep.subr.mxu0 0.0
    %5957 = vmatpush1.msra.mxu0 0.0
    %5958 = vmatprep.subr.mxu0 0.0
    %5959 = vmatpush1.msra.mxu0 0.0
    %5960 = vmatprep.subr.mxu0 0.0
    %5961 = vmatpush1.msra.mxu0 0.0
    %5962 = vmatprep.subr.mxu0 0.0
    %5963 = vmatpush1.msra.mxu0 0.0
    %5964 = vmatprep.subr.mxu0 0.0
    %5965 = vmatpush1.msra.mxu0 0.0
    %5966 = vmatprep.subr.mxu0 0.0
    %5967 = vmatpush1.msra.mxu0 0.0
    %5968 = vmatprep.subr.mxu0 0.0
    %5969 = vmatpush1.msra.mxu0 0.0
    %5970 = vmatprep.subr.mxu0 0.0
    %5971 = vmatpush1.msra.mxu0 0.0
    %5972 = vmatprep.subr.mxu0 0.0
    %5973 = vmatpush1.msra.mxu0 0.0
    %5974 = vmatprep.subr.mxu0 0.0
    %5975 = vmatpush1.msra.mxu0 0.0
    %5976 = vmatprep.subr.mxu0 0.0
    %5977 = vmatpush1.msra.mxu0 0.0
    %5978 = vmatprep.subr.mxu0 0.0
    %5979 = vmatpush1.msra.mxu0 0.0
    %5980 = vmatprep.subr.mxu0 0.0
    %5981 = vmatpush1.msra.mxu0 0.0
    %5982 = vmatprep.subr.mxu0 0.0
    %5983 = vmatpush1.msra.mxu0 0.0
    %5984 = vmatprep.subr.mxu0 0.0
    %5985 = vmatpush1.msra.mxu0 0.0
    %5986 = vmatprep.subr.mxu0 0.0
    %5987 = vmatpush1.msra.mxu0 0.0
    %5988 = vmatprep.subr.mxu0 0.0
    %5989 = vmatpush1.msra.mxu0 0.0
    %5990 = vmatprep.subr.mxu0 0.0
    %5991 = vmatpush1.msra.mxu0 0.0
    %5992 = vmatprep.subr.mxu0 0.0
    %5993 = vmatpush1.msra.mxu0 0.0
    %5994 = vmatprep.subr.mxu0 0.0
    %5995 = vmatpush1.msra.mxu0 0.0
    %5996 = vmatprep.subr.mxu0 0.0
    %5997 = vmatpush1.msra.mxu0 0.0
    %5998 = vmatprep.subr.mxu0 0.0
    %5999 = vmatpush1.msra.mxu0 0.0
    %6000 = vmatprep.subr.mxu0 0.0
    %6001 = vmatpush1.msra.mxu0 0.0
    %6002 = vmatprep.subr.mxu0 0.0
    %6003 = vmatpush1.msra.mxu0 0.0
    %6004 = vmatprep.subr.mxu0 0.0
    %6005 = vmatpush1.msra.mxu0 0.0
    %6006 = vmatprep.subr.mxu0 0.0
    %6007 = vmatpush1.msra.mxu0 0.0
    %6008 = vmatprep.mubr.f32.mxu0 0.0
    %6009 = vmatmul.mubr.f32.gmra.mrb[0].mxu0 %v5664
    %v6010 = vpop.f32.mrb[0].mxu0
    %v6011 = vadd.f32 %v5941, %v6010
    %v6012 = vpop.f32.mrb[0].mxu0
    %6013 = vdwg.mxu0
    %v6015 = vlaneseq
    %v6016 = vshrl.u32 %v6015, 7
    %v6017 = vsub.s32 0, %v6016
    %v6018 = vrot.slane %v5652, %v6017
    %v6020 = vadd.f32 %v6011, %v6018
    %v6021 = vtanh.pop %v6020
    %v6023 = vlaneseq
    %v6024 = vshrl.u32 %v6023, 7
    %v6025 = vsub.s32 0, %v6024
    %v6026 = vrot.slane %v5657, %v6025
    %v6029 = vsel %vm57, %v6021, 0
    %6031 = vmatprep.subr.mxu0 0.0
    %6032 = vmatpush1.msra.mxu0 %v5653
    %6033 = vmatprep.subr.mxu0 0.0
    %6034 = vmatpush1.msra.mxu0 %v5654
    %6035 = vmatprep.subr.mxu0 0.0
    %6036 = vmatpush1.msra.mxu0 %v5655
    %6037 = vmatprep.subr.mxu0 0.0
    %6038 = vmatpush1.msra.mxu0 %v5656
    %6039 = vmatprep.subr.mxu0 0.0
    %6040 = vmatpush1.msra.mxu0 0.0
    %6041 = vmatprep.subr.mxu0 0.0
    %6042 = vmatpush1.msra.mxu0 0.0
    %6043 = vmatprep.subr.mxu0 0.0
    %6044 = vmatpush1.msra.mxu0 0.0
    %6045 = vmatprep.subr.mxu0 0.0
    %6046 = vmatpush1.msra.mxu0 0.0
    %6047 = vmatprep.subr.mxu0 0.0
    %6048 = vmatpush1.msra.mxu0 0.0
    %6049 = vmatprep.subr.mxu0 0.0
    %6050 = vmatpush1.msra.mxu0 0.0
    %6051 = vmatprep.subr.mxu0 0.0
    %6052 = vmatpush1.msra.mxu0 0.0
    %6053 = vmatprep.subr.mxu0 0.0
    %6054 = vmatpush1.msra.mxu0 0.0
    %6055 = vmatprep.subr.mxu0 0.0
    %6056 = vmatpush1.msra.mxu0 0.0
    %6057 = vmatprep.subr.mxu0 0.0
    %6058 = vmatpush1.msra.mxu0 0.0
    %6059 = vmatprep.subr.mxu0 0.0
    %6060 = vmatpush1.msra.mxu0 0.0
    %6061 = vmatprep.subr.mxu0 0.0
    %6062 = vmatpush1.msra.mxu0 0.0
    %6063 = vmatprep.subr.mxu0 0.0
    %6064 = vmatpush1.msra.mxu0 0.0
    %6065 = vmatprep.subr.mxu0 0.0
    %6066 = vmatpush1.msra.mxu0 0.0
    %6067 = vmatprep.subr.mxu0 0.0
    %6068 = vmatpush1.msra.mxu0 0.0
    %6069 = vmatprep.subr.mxu0 0.0
    %6070 = vmatpush1.msra.mxu0 0.0
    %6071 = vmatprep.subr.mxu0 0.0
    %6072 = vmatpush1.msra.mxu0 0.0
    %6073 = vmatprep.subr.mxu0 0.0
    %6074 = vmatpush1.msra.mxu0 0.0
    %6075 = vmatprep.subr.mxu0 0.0
    %6076 = vmatpush1.msra.mxu0 0.0
    %6077 = vmatprep.subr.mxu0 0.0
    %6078 = vmatpush1.msra.mxu0 0.0
    %6079 = vmatprep.subr.mxu0 0.0
    %6080 = vmatpush1.msra.mxu0 0.0
    %6081 = vmatprep.subr.mxu0 0.0
    %6082 = vmatpush1.msra.mxu0 0.0
    %6083 = vmatprep.subr.mxu0 0.0
    %6084 = vmatpush1.msra.mxu0 0.0
    %6085 = vmatprep.subr.mxu0 0.0
    %6086 = vmatpush1.msra.mxu0 0.0
    %6087 = vmatprep.subr.mxu0 0.0
    %6088 = vmatpush1.msra.mxu0 0.0
    %6089 = vmatprep.subr.mxu0 0.0
    %6090 = vmatpush1.msra.mxu0 0.0
    %6091 = vmatprep.subr.mxu0 0.0
    %6092 = vmatpush1.msra.mxu0 0.0
    %6093 = vmatprep.subr.mxu0 0.0
    %6094 = vmatpush1.msra.mxu0 0.0
    %6095 = vmatprep.mubr.f32.mxu0 0.0
    %6096 = vmatmul.mubr.f32.gmra.mrb[0].mxu0 %v6029
    %v6097 = vpop.f32.mrb[0].mxu0
    %v6098 = vadd.f32 %v6026, %v6097
    %v6099 = vpop.f32.mrb[0].mxu0
    %6100 = vdwg.mxu0
    %6101 = vst [vmem:[%s12] sm:$0xff] %v6098
    %s6102 = scalar_lea.vmem [#allocation2], 8
    %v6103 = vld [vmem:[%s6102] sm:$0xff]
    %s6104 = scalar_lea.vmem [#allocation3], 8
    %v6105 = vld [vmem:[%s6104] sm:$0xff]
    %v6107 = vsel %vm57, %v6103, 0
    %v6110 = vsel %vm57, %v6105, 0
    %6112 = vmatprep.subr.mxu0 0.0
    %6113 = vmatpush1.xpose.msra.mxu0 %v6110
    %6114 = vmatprep.subr.mxu0 0.0
    %6115 = vmatpush1.xpose.msra.mxu0 0.0
    %6116 = vmatprep.subr.mxu0 0.0
    %6117 = vmatpush1.xpose.msra.mxu0 0.0
    %6118 = vmatprep.subr.mxu0 0.0
    %6119 = vmatpush1.xpose.msra.mxu0 0.0
    %6120 = vmatprep.subr.mxu0 0.0
    %6121 = vmatpush1.xpose.msra.mxu0 0.0
    %6122 = vmatprep.subr.mxu0 0.0
    %6123 = vmatpush1.xpose.msra.mxu0 0.0
    %6124 = vmatprep.subr.mxu0 0.0
    %6125 = vmatpush1.xpose.msra.mxu0 0.0
    %6126 = vmatprep.subr.mxu0 0.0
    %6127 = vmatpush1.xpose.msra.mxu0 0.0
    %6128 = vmatprep.subr.mxu0 0.0
    %6129 = vmatpush1.xpose.msra.mxu0 0.0
    %6130 = vmatprep.subr.mxu0 0.0
    %6131 = vmatpush1.xpose.msra.mxu0 0.0
    %6132 = vmatprep.subr.mxu0 0.0
    %6133 = vmatpush1.xpose.msra.mxu0 0.0
    %6134 = vmatprep.subr.mxu0 0.0
    %6135 = vmatpush1.xpose.msra.mxu0 0.0
    %6136 = vmatprep.subr.mxu0 0.0
    %6137 = vmatpush1.xpose.msra.mxu0 0.0
    %6138 = vmatprep.subr.mxu0 0.0
    %6139 = vmatpush1.xpose.msra.mxu0 0.0
    %6140 = vmatprep.subr.mxu0 0.0
    %6141 = vmatpush1.xpose.msra.mxu0 0.0
    %6142 = vmatprep.subr.mxu0 0.0
    %6143 = vmatpush1.xpose.msra.mxu0 0.0
    %6144 = vmatprep.subr.mxu0 0.0
    %6145 = vmatpush1.xpose.msra.mxu0 0.0
    %6146 = vmatprep.subr.mxu0 0.0
    %6147 = vmatpush1.xpose.msra.mxu0 0.0
    %6148 = vmatprep.subr.mxu0 0.0
    %6149 = vmatpush1.xpose.msra.mxu0 0.0
    %6150 = vmatprep.subr.mxu0 0.0
    %6151 = vmatpush1.xpose.msra.mxu0 0.0
    %6152 = vmatprep.subr.mxu0 0.0
    %6153 = vmatpush1.xpose.msra.mxu0 0.0
    %6154 = vmatprep.subr.mxu0 0.0
    %6155 = vmatpush1.xpose.msra.mxu0 0.0
    %6156 = vmatprep.subr.mxu0 0.0
    %6157 = vmatpush1.xpose.msra.mxu0 0.0
    %6158 = vmatprep.subr.mxu0 0.0
    %6159 = vmatpush1.xpose.msra.mxu0 0.0
    %6160 = vmatprep.subr.mxu0 0.0
    %6161 = vmatpush1.xpose.msra.mxu0 0.0
    %6162 = vmatprep.subr.mxu0 0.0
    %6163 = vmatpush1.xpose.msra.mxu0 0.0
    %6164 = vmatprep.subr.mxu0 0.0
    %6165 = vmatpush1.xpose.msra.mxu0 0.0
    %6166 = vmatprep.subr.mxu0 0.0
    %6167 = vmatpush1.xpose.msra.mxu0 0.0
    %6168 = vmatprep.subr.mxu0 0.0
    %6169 = vmatpush1.xpose.msra.mxu0 0.0
    %6170 = vmatprep.subr.mxu0 0.0
    %6171 = vmatpush1.xpose.msra.mxu0 0.0
    %6172 = vmatprep.subr.mxu0 0.0
    %6173 = vmatpush1.xpose.msra.mxu0 0.0
    %6174 = vmatprep.subr.mxu0 0.0
    %6175 = vmatpush1.xpose.msra.mxu0 0.0
    %6176 = vmatprep.mubr.f32.mxu0 0.0
    %6177 = vmatmul.mubr.f32.gmra.mrb[0].mxu0 %v6107
    %v6178 = vpop.f32.mrb[0].mxu0
    %v6179 = vadd.f32 0.0, %v6178
    %v6180 = vpop.f32.mrb[0].mxu0
    %6181 = vdwg.mxu0
    %s6182 = scalar_lea.vmem %s3, 8
    %v6183 = vld [vmem:[%s6182] sm:$0xff]
    %vm6184 = vcmp.gt.f32.partialorder %v6183, 0.5
    %v6185 = vsel %vm6184, 1, 0
    %6186 = vset.pattern.permute.xlu0 0
    %6187 = vperm.xlu0 %6186, %v6185
    %v6188 = vpop.permute.xlu0 %6187
    %vm6189 = vcmp.eq.s32.totalorder %v6188, 1
    %v6190 = vsel %vm6189, 1e-10, %v6179
    %s6191 = scalar_lea.vmem [#allocation4], 8
    %6192 = vst [vmem:[%s6191] sm:$0xff] 0.0
    %6193 = vst.msk [vmem:[%s6191] sm:$0xff] %vm5745, %v6190
    %v6194 = vsel %vm5745, %v6190, -inf
    %v6195 = vrot.slane %v6194, 4
    %v6196 = vmax.f32 %v6194, %v6195
    %v6197 = vrot.slane %v6196, 2
    %v6198 = vmax.f32 %v6196, %v6197
    %v6199 = vrot.slane %v6198, 1
    %v6200 = vmax.f32 %v6198, %v6199
    %v6201 = vsub.f32 %v6190, %v6200
    %v6202 = vmul.f32 %v6201, 1.442695
    %v6203 = vpow.pop %v6202
    %v6204 = vsel %vm5745, %v6203, 0.0
    %v6205 = vrot.slane %v6204, 4
    %v6206 = vadd.f32 %v6204, %v6205
    %v6207 = vrot.slane %v6206, 2
    %v6208 = vadd.f32 %v6206, %v6207
    %v6209 = vrot.slane %v6208, 1
    %v6210 = vadd.f32 %v6208, %v6209
    %v6211 = vrcp.pop %v6210
    %v6212 = vmul.f32 %v6203, %v6211
    %6213 = vxpose.xlu0.b32.start [1/16] %v6212, 128
    %6214 = vxpose.xlu0.b32.cont [2/16] 0.0, 128
    %6215 = vxpose.xlu0.b32.cont [3/16] 0.0, 128
    %6216 = vxpose.xlu0.b32.cont [4/16] 0.0, 128
    %6217 = vxpose.xlu0.b32.cont [5/16] 0.0, 128
    %6218 = vxpose.xlu0.b32.cont [6/16] 0.0, 128
    %6219 = vxpose.xlu0.b32.cont [7/16] 0.0, 128
    %6220 = vxpose.xlu0.b32.cont [8/16] 0.0, 128
    %6221 = vxpose.xlu0.b32.cont [9/16] 0.0, 128
    %6222 = vxpose.xlu0.b32.cont [10/16] 0.0, 128
    %6223 = vxpose.xlu0.b32.cont [11/16] 0.0, 128
    %6224 = vxpose.xlu0.b32.cont [12/16] 0.0, 128
    %6225 = vxpose.xlu0.b32.cont [13/16] 0.0, 128
    %6226 = vxpose.xlu0.b32.cont [14/16] 0.0, 128
    %6227 = vxpose.xlu0.b32.cont [15/16] 0.0, 128
    %6228 = vxpose.xlu0.b32.end [16/16] 0.0, 128
    %v6229 = vpop.trf.xlu0
    %v6230 = vpop.trf.xlu0
    %v6231 = vpop.trf.xlu0
    %v6232 = vpop.trf.xlu0
    %v6233 = vpop.trf.xlu0
    %v6234 = vpop.trf.xlu0
    %v6235 = vpop.trf.xlu0
    %v6236 = vpop.trf.xlu0
    %v6237 = vpop.trf.xlu0
    %v6238 = vpop.trf.xlu0
    %v6239 = vpop.trf.xlu0
    %v6240 = vpop.trf.xlu0
    %v6241 = vpop.trf.xlu0
    %v6242 = vpop.trf.xlu0
    %v6243 = vpop.trf.xlu0
    %v6244 = vpop.trf.xlu0
    %v6246 = vsel %vm5745, %v6229, 0
    %6248 = vmatprep.subr.mxu0 0.0
    %6249 = vmatpush1.msra.mxu0 %v6103
    %6250 = vmatprep.subr.mxu0 0.0
    %6251 = vmatpush1.msra.mxu0 0.0
    %6252 = vmatprep.subr.mxu0 0.0
    %6253 = vmatpush1.msra.mxu0 0.0
    %6254 = vmatprep.subr.mxu0 0.0
    %6255 = vmatpush1.msra.mxu0 0.0
    %6256 = vmatprep.subr.mxu0 0.0
    %6257 = vmatpush1.msra.mxu0 0.0
    %6258 = vmatprep.subr.mxu0 0.0
    %6259 = vmatpush1.msra.mxu0 0.0
    %6260 = vmatprep.subr.mxu0 0.0
    %6261 = vmatpush1.msra.mxu0 0.0
    %6262 = vmatprep.subr.mxu0 0.0
    %6263 = vmatpush1.msra.mxu0 0.0
    %6264 = vmatprep.subr.mxu0 0.0
    %6265 = vmatpush1.msra.mxu0 0.0
    %6266 = vmatprep.subr.mxu0 0.0
    %6267 = vmatpush1.msra.mxu0 0.0
    %6268 = vmatprep.subr.mxu0 0.0
    %6269 = vmatpush1.msra.mxu0 0.0
    %6270 = vmatprep.subr.mxu0 0.0
    %6271 = vmatpush1.msra.mxu0 0.0
    %6272 = vmatprep.subr.mxu0 0.0
    %6273 = vmatpush1.msra.mxu0 0.0
    %6274 = vmatprep.subr.mxu0 0.0
    %6275 = vmatpush1.msra.mxu0 0.0
    %6276 = vmatprep.subr.mxu0 0.0
    %6277 = vmatpush1.msra.mxu0 0.0
    %6278 = vmatprep.subr.mxu0 0.0
    %6279 = vmatpush1.msra.mxu0 0.0
    %6280 = vmatprep.subr.mxu0 0.0
    %6281 = vmatpush1.msra.mxu0 0.0
    %6282 = vmatprep.subr.mxu0 0.0
    %6283 = vmatpush1.msra.mxu0 0.0
    %6284 = vmatprep.subr.mxu0 0.0
    %6285 = vmatpush1.msra.mxu0 0.0
    %6286 = vmatprep.subr.mxu0 0.0
    %6287 = vmatpush1.msra.mxu0 0.0
    %6288 = vmatprep.subr.mxu0 0.0
    %6289 = vmatpush1.msra.mxu0 0.0
    %6290 = vmatprep.subr.mxu0 0.0
    %6291 = vmatpush1.msra.mxu0 0.0
    %6292 = vmatprep.subr.mxu0 0.0
    %6293 = vmatpush1.msra.mxu0 0.0
    %6294 = vmatprep.subr.mxu0 0.0
    %6295 = vmatpush1.msra.mxu0 0.0
    %6296 = vmatprep.subr.mxu0 0.0
    %6297 = vmatpush1.msra.mxu0 0.0
    %6298 = vmatprep.subr.mxu0 0.0
    %6299 = vmatpush1.msra.mxu0 0.0
    %6300 = vmatprep.subr.mxu0 0.0
    %6301 = vmatpush1.msra.mxu0 0.0
    %6302 = vmatprep.subr.mxu0 0.0
    %6303 = vmatpush1.msra.mxu0 0.0
    %6304 = vmatprep.subr.mxu0 0.0
    %6305 = vmatpush1.msra.mxu0 0.0
    %6306 = vmatprep.subr.mxu0 0.0
    %6307 = vmatpush1.msra.mxu0 0.0
    %6308 = vmatprep.subr.mxu0 0.0
    %6309 = vmatpush1.msra.mxu0 0.0
    %6310 = vmatprep.subr.mxu0 0.0
    %6311 = vmatpush1.msra.mxu0 0.0
    %6312 = vmatprep.mubr.f32.mxu0 0.0
    %6313 = vmatmul.mubr.f32.gmra.mrb[0].mxu0 %v6246
    %v6314 = vpop.f32.mrb[0].mxu0
    %v6315 = vadd.f32 0.0, %v6314
    %v6316 = vpop.f32.mrb[0].mxu0
    %6317 = vdwg.mxu0
    %v6319 = vsel %vm57, %v6315, 0
    %6321 = vmatprep.subr.mxu0 0.0
    %6322 = vmatpush1.msra.mxu0 %v5648
    %6323 = vmatprep.subr.mxu0 0.0
    %6324 = vmatpush1.msra.mxu0 %v5649
    %6325 = vmatprep.subr.mxu0 0.0
    %6326 = vmatpush1.msra.mxu0 %v5650
    %6327 = vmatprep.subr.mxu0 0.0
    %6328 = vmatpush1.msra.mxu0 %v5651
    %6329 = vmatprep.subr.mxu0 0.0
    %6330 = vmatpush1.msra.mxu0 0.0
    %6331 = vmatprep.subr.mxu0 0.0
    %6332 = vmatpush1.msra.mxu0 0.0
    %6333 = vmatprep.subr.mxu0 0.0
    %6334 = vmatpush1.msra.mxu0 0.0
    %6335 = vmatprep.subr.mxu0 0.0
    %6336 = vmatpush1.msra.mxu0 0.0
    %6337 = vmatprep.subr.mxu0 0.0
    %6338 = vmatpush1.msra.mxu0 0.0
    %6339 = vmatprep.subr.mxu0 0.0
    %6340 = vmatpush1.msra.mxu0 0.0
    %6341 = vmatprep.subr.mxu0 0.0
    %6342 = vmatpush1.msra.mxu0 0.0
    %6343 = vmatprep.subr.mxu0 0.0
    %6344 = vmatpush1.msra.mxu0 0.0
    %6345 = vmatprep.subr.mxu0 0.0
    %6346 = vmatpush1.msra.mxu0 0.0
    %6347 = vmatprep.subr.mxu0 0.0
    %6348 = vmatpush1.msra.mxu0 0.0
    %6349 = vmatprep.subr.mxu0 0.0
    %6350 = vmatpush1.msra.mxu0 0.0
    %6351 = vmatprep.subr.mxu0 0.0
    %6352 = vmatpush1.msra.mxu0 0.0
    %6353 = vmatprep.subr.mxu0 0.0
    %6354 = vmatpush1.msra.mxu0 0.0
    %6355 = vmatprep.subr.mxu0 0.0
    %6356 = vmatpush1.msra.mxu0 0.0
    %6357 = vmatprep.subr.mxu0 0.0
    %6358 = vmatpush1.msra.mxu0 0.0
    %6359 = vmatprep.subr.mxu0 0.0
    %6360 = vmatpush1.msra.mxu0 0.0
    %6361 = vmatprep.subr.mxu0 0.0
    %6362 = vmatpush1.msra.mxu0 0.0
    %6363 = vmatprep.subr.mxu0 0.0
    %6364 = vmatpush1.msra.mxu0 0.0
    %6365 = vmatprep.subr.mxu0 0.0
    %6366 = vmatpush1.msra.mxu0 0.0
    %6367 = vmatprep.subr.mxu0 0.0
    %6368 = vmatpush1.msra.mxu0 0.0
    %6369 = vmatprep.subr.mxu0 0.0
    %6370 = vmatpush1.msra.mxu0 0.0
    %6371 = vmatprep.subr.mxu0 0.0
    %6372 = vmatpush1.msra.mxu0 0.0
    %6373 = vmatprep.subr.mxu0 0.0
    %6374 = vmatpush1.msra.mxu0 0.0
    %6375 = vmatprep.subr.mxu0 0.0
    %6376 = vmatpush1.msra.mxu0 0.0
    %6377 = vmatprep.subr.mxu0 0.0
    %6378 = vmatpush1.msra.mxu0 0.0
    %6379 = vmatprep.subr.mxu0 0.0
    %6380 = vmatpush1.msra.mxu0 0.0
    %6381 = vmatprep.subr.mxu0 0.0
    %6382 = vmatpush1.msra.mxu0 0.0
    %6383 = vmatprep.subr.mxu0 0.0
    %6384 = vmatpush1.msra.mxu0 0.0
    %6385 = vmatprep.mubr.f32.mxu0 0.0
    %6386 = vmatmul.mubr.f32.gmra.mrb[0].mxu0 %v6319
    %v6387 = vpop.f32.mrb[0].mxu0
    %v6388 = vadd.f32 0.0, %v6387
    %v6389 = vpop.f32.mrb[0].mxu0
    %6390 = vdwg.mxu0
    %6391 = vmatprep.subr.mxu0 0.0
    %6392 = vmatpush1.msra.mxu0 %v5644
    %6393 = vmatprep.subr.mxu0 0.0
    %6394 = vmatpush1.msra.mxu0 %v5645
    %6395 = vmatprep.subr.mxu0 0.0
    %6396 = vmatpush1.msra.mxu0 %v5646
    %6397 = vmatprep.subr.mxu0 0.0
    %6398 = vmatpush1.msra.mxu0 %v5647
    %6399 = vmatprep.subr.mxu0 0.0
    %6400 = vmatpush1.msra.mxu0 0.0
    %6401 = vmatprep.subr.mxu0 0.0
    %6402 = vmatpush1.msra.mxu0 0.0
    %6403 = vmatprep.subr.mxu0 0.0
    %6404 = vmatpush1.msra.mxu0 0.0
    %6405 = vmatprep.subr.mxu0 0.0
    %6406 = vmatpush1.msra.mxu0 0.0
    %6407 = vmatprep.subr.mxu0 0.0
    %6408 = vmatpush1.msra.mxu0 0.0
    %6409 = vmatprep.subr.mxu0 0.0
    %6410 = vmatpush1.msra.mxu0 0.0
    %6411 = vmatprep.subr.mxu0 0.0
    %6412 = vmatpush1.msra.mxu0 0.0
    %6413 = vmatprep.subr.mxu0 0.0
    %6414 = vmatpush1.msra.mxu0 0.0
    %6415 = vmatprep.subr.mxu0 0.0
    %6416 = vmatpush1.msra.mxu0 0.0
    %6417 = vmatprep.subr.mxu0 0.0
    %6418 = vmatpush1.msra.mxu0 0.0
    %6419 = vmatprep.subr.mxu0 0.0
    %6420 = vmatpush1.msra.mxu0 0.0
    %6421 = vmatprep.subr.mxu0 0.0
    %6422 = vmatpush1.msra.mxu0 0.0
    %6423 = vmatprep.subr.mxu0 0.0
    %6424 = vmatpush1.msra.mxu0 0.0
    %6425 = vmatprep.subr.mxu0 0.0
    %6426 = vmatpush1.msra.mxu0 0.0
    %6427 = vmatprep.subr.mxu0 0.0
    %6428 = vmatpush1.msra.mxu0 0.0
    %6429 = vmatprep.subr.mxu0 0.0
    %6430 = vmatpush1.msra.mxu0 0.0
    %6431 = vmatprep.subr.mxu0 0.0
    %6432 = vmatpush1.msra.mxu0 0.0
    %6433 = vmatprep.subr.mxu0 0.0
    %6434 = vmatpush1.msra.mxu0 0.0
    %6435 = vmatprep.subr.mxu0 0.0
    %6436 = vmatpush1.msra.mxu0 0.0
    %6437 = vmatprep.subr.mxu0 0.0
    %6438 = vmatpush1.msra.mxu0 0.0
    %6439 = vmatprep.subr.mxu0 0.0
    %6440 = vmatpush1.msra.mxu0 0.0
    %6441 = vmatprep.subr.mxu0 0.0
    %6442 = vmatpush1.msra.mxu0 0.0
    %6443 = vmatprep.subr.mxu0 0.0
    %6444 = vmatpush1.msra.mxu0 0.0
    %6445 = vmatprep.subr.mxu0 0.0
    %6446 = vmatpush1.msra.mxu0 0.0
    %6447 = vmatprep.subr.mxu0 0.0
    %6448 = vmatpush1.msra.mxu0 0.0
    %6449 = vmatprep.subr.mxu0 0.0
    %6450 = vmatpush1.msra.mxu0 0.0
    %6451 = vmatprep.subr.mxu0 0.0
    %6452 = vmatpush1.msra.mxu0 0.0
    %6453 = vmatprep.subr.mxu0 0.0
    %6454 = vmatpush1.msra.mxu0 0.0
    %6455 = vmatprep.mubr.f32.mxu0 0.0
    %6456 = vmatmul.mubr.f32.gmra.mrb[0].mxu0 %v6110
    %v6457 = vpop.f32.mrb[0].mxu0
    %v6458 = vadd.f32 %v6388, %v6457
    %v6459 = vpop.f32.mrb[0].mxu0
    %6460 = vdwg.mxu0
    %v6461 = vadd.f32 %v6458, %v6018
    %v6462 = vtanh.pop %v6461
    %v6464 = vsel %vm57, %v6462, 0
    %6466 = vmatprep.subr.mxu0 0.0
    %6467 = vmatpush1.msra.mxu0 %v5653
    %6468 = vmatprep.subr.mxu0 0.0
    %6469 = vmatpush1.msra.mxu0 %v5654
    %6470 = vmatprep.subr.mxu0 0.0
    %6471 = vmatpush1.msra.mxu0 %v5655
    %6472 = vmatprep.subr.mxu0 0.0
    %6473 = vmatpush1.msra.mxu0 %v5656
    %6474 = vmatprep.subr.mxu0 0.0
    %6475 = vmatpush1.msra.mxu0 0.0
    %6476 = vmatprep.subr.mxu0 0.0
    %6477 = vmatpush1.msra.mxu0 0.0
    %6478 = vmatprep.subr.mxu0 0.0
    %6479 = vmatpush1.msra.mxu0 0.0
    %6480 = vmatprep.subr.mxu0 0.0
    %6481 = vmatpush1.msra.mxu0 0.0
    %6482 = vmatprep.subr.mxu0 0.0
    %6483 = vmatpush1.msra.mxu0 0.0
    %6484 = vmatprep.subr.mxu0 0.0
    %6485 = vmatpush1.msra.mxu0 0.0
    %6486 = vmatprep.subr.mxu0 0.0
    %6487 = vmatpush1.msra.mxu0 0.0
    %6488 = vmatprep.subr.mxu0 0.0
    %6489 = vmatpush1.msra.mxu0 0.0
    %6490 = vmatprep.subr.mxu0 0.0
    %6491 = vmatpush1.msra.mxu0 0.0
    %6492 = vmatprep.subr.mxu0 0.0
    %6493 = vmatpush1.msra.mxu0 0.0
    %6494 = vmatprep.subr.mxu0 0.0
    %6495 = vmatpush1.msra.mxu0 0.0
    %6496 = vmatprep.subr.mxu0 0.0
    %6497 = vmatpush1.msra.mxu0 0.0
    %6498 = vmatprep.subr.mxu0 0.0
    %6499 = vmatpush1.msra.mxu0 0.0
    %6500 = vmatprep.subr.mxu0 0.0
    %6501 = vmatpush1.msra.mxu0 0.0
    %6502 = vmatprep.subr.mxu0 0.0
    %6503 = vmatpush1.msra.mxu0 0.0
    %6504 = vmatprep.subr.mxu0 0.0
    %6505 = vmatpush1.msra.mxu0 0.0
    %6506 = vmatprep.subr.mxu0 0.0
    %6507 = vmatpush1.msra.mxu0 0.0
    %6508 = vmatprep.subr.mxu0 0.0
    %6509 = vmatpush1.msra.mxu0 0.0
    %6510 = vmatprep.subr.mxu0 0.0
    %6511 = vmatpush1.msra.mxu0 0.0
    %6512 = vmatprep.subr.mxu0 0.0
    %6513 = vmatpush1.msra.mxu0 0.0
    %6514 = vmatprep.subr.mxu0 0.0
    %6515 = vmatpush1.msra.mxu0 0.0
    %6516 = vmatprep.subr.mxu0 0.0
    %6517 = vmatpush1.msra.mxu0 0.0
    %6518 = vmatprep.subr.mxu0 0.0
    %6519 = vmatpush1.msra.mxu0 0.0
    %6520 = vmatprep.subr.mxu0 0.0
    %6521 = vmatpush1.msra.mxu0 0.0
    %6522 = vmatprep.subr.mxu0 0.0
    %6523 = vmatpush1.msra.mxu0 0.0
    %6524 = vmatprep.subr.mxu0 0.0
    %6525 = vmatpush1.msra.mxu0 0.0
    %6526 = vmatprep.subr.mxu0 0.0
    %6527 = vmatpush1.msra.mxu0 0.0
    %6528 = vmatprep.subr.mxu0 0.0
    %6529 = vmatpush1.msra.mxu0 0.0
    %6530 = vmatprep.mubr.f32.mxu0 0.0
    %6531 = vmatmul.mubr.f32.gmra.mrb[0].mxu0 %v6464
    %v6532 = vpop.f32.mrb[0].mxu0
    %v6533 = vadd.f32 %v6026, %v6532
    %v6534 = vpop.f32.mrb[0].mxu0
    %6535 = vdwg.mxu0
    %s6536 = scalar_lea.vmem %s12, 8
    %6537 = vst [vmem:[%s6536] sm:$0xff] %v6533
    // Predicated region
    $region46: #{seq2seq_forward.1} parent=1 // pred_check
      _
    $region47: #{seq2seq_forward.1} parent=1 // pred_check_branch
      %6539 = sbr.rel (0) target = $region49
    $region48: #{seq2seq_forward.1} parent=1 // pred_region
      %s6541 = ssub.s32 256, 256
      %6542 = vsyncadd [#allocation5], %s6541
      %s6543 = sshll.u32 [#allocation4], 4
      %s6544 = int_to_ptr.vmem [resolvable:$true] %s6543
      %6549 = dma.vmem_to_hbm [thread:$0]  %s6544, 256, %s11, [#allocation5], 128, 128, 8
    $region49: #{seq2seq_forward.1} parent=1 // pred_fallthru
      _
    // Predicated region
    $region50: #{seq2seq_forward.1} parent=1 // pred_check
      _
    $region51: #{seq2seq_forward.1} parent=1 // pred_check_branch
      %6551 = sbr.rel (0) target = $region53
    $region52: #{seq2seq_forward.1} parent=1 // pred_region
      _
    $region53: #{seq2seq_forward.1} parent=1 // pred_fallthru
      _
    // Predicated region
    $region54: #{seq2seq_forward.1} parent=1 // pred_check
      _
    $region55: #{seq2seq_forward.1} parent=1 // pred_check_branch
      %6553 = sbr.rel (0) target = $region57
    $region56: #{seq2seq_forward.1} parent=1 // pred_region
      %6554 = dma.done [#allocation5], 256
    $region57: #{seq2seq_forward.1} parent=1 // pred_fallthru
      _
    // Predicated region
    $region58: #{seq2seq_forward.1} parent=1 // pred_check
      _
    $region59: #{seq2seq_forward.1} parent=1 // pred_check_branch
      %6556 = sbr.rel (0) target = $region61
    $region60: #{seq2seq_forward.1} parent=1 // pred_region
      _
    $region61: #{seq2seq_forward.1} parent=1 // pred_fallthru
      _
    %6557 = vsyncpa [#allocation5], 1

</llo_original>
